<compile_context>
chip_gen: v7x
topology: tpu7x:2x2x1
jax: 0.10.0
libtpu: 0.0.40
codegen_flags: <defaults>
</compile_context>

<pallas_src>
import functools
import jax
import jax.numpy as jnp
from jax.experimental import pallas as pl

FF_HIDDEN = 100      # true hidden size of FeedForward / Classifier (per the module)
PAD_HIDDEN = 128     # lane-aligned zero-padded hidden (numerics unchanged)
PAD_CLASSES = 128    # lane-aligned zero-padded logits (host slices [:, :n_classes])
ATT_LANES = 128      # lane-dense attention output width (host slices [:, :, :n_head*T])


# ---------------------------------------------------------------------------
# Fused kernel: all encoder layers + final LN + mean-pool + classifier head.
# Single program; every operand / output is one whole-array VMEM block.
# ---------------------------------------------------------------------------
def fused_encoder_kernel(x_ref,
                         ln1_w, ln1_b, wq, bq, wk, bk, wv, bv, wo, bo,
                         ln2_w, ln2_b, w1, b1, w2, b2,
                         lnf_w, lnf_b, cw1, cb1, cw2, cb2,
                         logits_ref, att_ref,
                         *, n_layer, n_head, head_dim, B, T, C, eps=1e-5):
    scale = 1.0 / jnp.sqrt(jnp.float32(head_dim))

    def layer_norm(v, w, b):
        mu = jnp.mean(v, axis=-1, keepdims=True)
        var = jnp.mean((v - mu) ** 2, axis=-1, keepdims=True)
        return (v - mu) * jax.lax.rsqrt(var + eps) * w + b

    x2 = x_ref[...]                                # residual stream, (B*T, C)

    for l in range(n_layer):                       # static loop: n_layer is small
        # ---- multi-head self attention (per-head weights, folded out-proj) ----
        h = layer_norm(x2, ln1_w[l], ln1_b[l])
        x2 = x2 + bo[l]                            # output-projection bias, added once
        head_atts = []
        for hidx in range(n_head):                 # static loop; batched over B inside
            q = (jnp.dot(h, wq[l, hidx], preferred_element_type=jnp.float32)
                 + bq[l, hidx]).reshape(B, T, head_dim)
            k = (jnp.dot(h, wk[l, hidx], preferred_element_type=jnp.float32)
                 + bk[l, hidx]).reshape(B, T, head_dim)
            v = (jnp.dot(h, wv[l, hidx], preferred_element_type=jnp.float32)
                 + bv[l, hidx]).reshape(B, T, head_dim)
            s = jnp.einsum('btd,bsd->bts', q, k,
                           preferred_element_type=jnp.float32) * scale
            s = s - jnp.max(s, axis=-1, keepdims=True)
            e = jnp.exp(s)
            a = e * pl.reciprocal(jnp.sum(e, axis=-1, keepdims=True), approx=True)
            head_atts.append(jnp.mean(a, axis=0))              # batch-mean map, (T, T)
            y = jnp.einsum('bts,bsd->btd', a, v,
                           preferred_element_type=jnp.float32).reshape(B * T, head_dim)
            # folded per-head output projection, accumulated straight into the residual
            x2 = x2 + jnp.dot(y, wo[l, hidx], preferred_element_type=jnp.float32)

        # lane-dense per-layer attention store: (T, 128), data in lanes [0, n_head*T)
        pad = jnp.zeros((T, ATT_LANES - n_head * T), jnp.float32)
        att_ref[l] = jnp.concatenate(head_atts + [pad], axis=-1)

        # ---- feed forward (hidden zero-padded 100 -> 128) --------------
        h2 = layer_norm(x2, ln2_w[l], ln2_b[l])
        f = jnp.dot(h2, w1[l], preferred_element_type=jnp.float32) + b1[l]
        f = jnp.maximum(f, 0.0)
        f = jnp.dot(f, w2[l], preferred_element_type=jnp.float32) + b2[l]
        x2 = x2 + f                                              # residual 2

    # ---- final LayerNorm -> mean over T -> classifier -------------------
    xn = layer_norm(x2, lnf_w[...], lnf_b[...])
    pooled = jnp.mean(xn.reshape(B, T, C), axis=1)               # (B, C)
    hc = jnp.dot(pooled, cw1[...], preferred_element_type=jnp.float32) + cb1[...]
    hc = jnp.maximum(hc, 0.0)
    logits_ref[...] = jnp.dot(hc, cw2[...],
                              preferred_element_type=jnp.float32) + cb2[...]


def fused_forward_call(x2d, stacked, final, *, n_layer, n_head, B, T, C):
    head_dim = C // n_head
    block_names = ('ln1_w', 'ln1_b', 'wq', 'bq', 'wk', 'bk', 'wv', 'bv',
                   'wo', 'bo', 'ln2_w', 'ln2_b', 'w1', 'b1', 'w2', 'b2')
    final_names = ('lnf_w', 'lnf_b', 'cw1', 'cb1', 'cw2', 'cb2')
    operands = [stacked[n] for n in block_names] + [final[n] for n in final_names]

    kernel = functools.partial(fused_encoder_kernel, n_layer=n_layer,
                               n_head=n_head, head_dim=head_dim, B=B, T=T, C=C)
    out_shape = (jax.ShapeDtypeStruct((B, PAD_CLASSES), jnp.float32),
                 jax.ShapeDtypeStruct((n_layer, T, ATT_LANES), jnp.float32))
    # Single program (no grid): whole arrays resident in VMEM (< 1 MiB total).
    logits_pad, att_pad = pl.pallas_call(kernel, out_shape=out_shape)(x2d, *operands)
    return logits_pad, att_pad


# ---------------------------------------------------------------------------
# Parameter init (deterministic, matches the module's init) + packing.
# ---------------------------------------------------------------------------
def init_params(key, vocab_size, n_embd, n_head, n_layer, block_size,
                n_classes=3, hidden=FF_HIDDEN):
    keys = iter(jax.random.split(key, 8 + 8 * n_layer))

    def lin(fan_in, fan_out):
        w = 0.02 * jax.random.normal(next(keys), (fan_in, fan_out), jnp.float32)
        b = jnp.zeros((1, fan_out), jnp.float32)
        return w, b

    params = {
        'tok_emb': 0.02 * jax.random.normal(next(keys), (vocab_size, n_embd), jnp.float32),
        'pos_emb': 0.02 * jax.random.normal(next(keys), (block_size, n_embd), jnp.float32),
        'blocks': [],
    }
    for _ in range(n_layer):
        wq, bq = lin(n_embd, n_embd)
        wk, bk = lin(n_embd, n_embd)
        wv, bv = lin(n_embd, n_embd)
        wo, bo = lin(n_embd, n_embd)
        w1, b1 = lin(n_embd, hidden)       # FeedForward hidden = 100
        w2, b2 = lin(hidden, n_embd)
        params['blocks'].append(dict(
            ln1_w=jnp.ones((1, n_embd), jnp.float32),
            ln1_b=jnp.zeros((1, n_embd), jnp.float32),
            wq=wq, bq=bq, wk=wk, bk=bk, wv=wv, bv=bv, wo=wo, bo=bo,
            ln2_w=jnp.ones((1, n_embd), jnp.float32),
            ln2_b=jnp.zeros((1, n_embd), jnp.float32),
            w1=w1, b1=b1, w2=w2, b2=b2))
    cw1, cb1 = lin(n_embd, hidden)         # Classifier hidden = 100
    cw2, cb2 = lin(hidden, n_classes)
    params['ln_f'] = dict(w=jnp.ones((1, n_embd), jnp.float32),
                          b=jnp.zeros((1, n_embd), jnp.float32))
    params['classifier'] = dict(w1=cw1, b1=cb1, w2=cw2, b2=cb2)
    return params


def _pad_cols(w, b, to):
    p = to - w.shape[1]
    return jnp.pad(w, ((0, 0), (0, p))), jnp.pad(b, ((0, 0), (0, p)))


def _pad_rows(w, to):
    return jnp.pad(w, ((0, to - w.shape[0]), (0, 0)))


def pack_params(params, n_head):
    """Per-head split of attention weights, layer-stacked; zero-pad hidden 100->128."""
    C = params['blocks'][0]['wq'].shape[0]
    hd = C // n_head

    def split_cols(w, b):
        # (C, C) -> (H, C, hd);  (1, C) -> (H, 1, hd)   (column group h == head h)
        return (w.reshape(C, n_head, hd).transpose(1, 0, 2),
                b.reshape(1, n_head, hd).transpose(1, 0, 2))

    def split_rows(w):
        # (C, C) -> (H, hd, C)   (row group h multiplies head h's output)
        return w.reshape(n_head, hd, C)

    per_layer = []
    for bp in params['blocks']:
        d = {'ln1_w': bp['ln1_w'], 'ln1_b': bp['ln1_b'],
             'ln2_w': bp['ln2_w'], 'ln2_b': bp['ln2_b'],
             'bo': bp['bo'], 'b2': bp['b2']}
        d['wq'], d['bq'] = split_cols(bp['wq'], bp['bq'])
        d['wk'], d['bk'] = split_cols(bp['wk'], bp['bk'])
        d['wv'], d['bv'] = split_cols(bp['wv'], bp['bv'])
        d['wo'] = split_rows(bp['wo'])
        d['w1'], d['b1'] = _pad_cols(bp['w1'], bp['b1'], PAD_HIDDEN)
        d['w2'] = _pad_rows(bp['w2'], PAD_HIDDEN)
        per_layer.append(d)

    names = ('ln1_w', 'ln1_b', 'wq', 'bq', 'wk', 'bk', 'wv', 'bv',
             'wo', 'bo', 'ln2_w', 'ln2_b', 'w1', 'b1', 'w2', 'b2')
    stacked = {n: jnp.stack([d[n] for d in per_layer], axis=0) for n in names}

    # Padded regions must stay exactly zero (ReLU(0)=0 keeps numerics unchanged).
    assert float(jnp.max(jnp.abs(stacked['w1'][:, :, FF_HIDDEN:]))) == 0.0
    assert float(jnp.max(jnp.abs(stacked['b1'][:, :, FF_HIDDEN:]))) == 0.0
    assert float(jnp.max(jnp.abs(stacked['w2'][:, FF_HIDDEN:, :]))) == 0.0

    cls = params['classifier']
    cw1, cb1 = _pad_cols(cls['w1'], cls['b1'], PAD_HIDDEN)
    cw2 = _pad_rows(cls['w2'], PAD_HIDDEN)
    cw2, cb2 = _pad_cols(cw2, cls['b2'], PAD_CLASSES)
    assert float(jnp.max(jnp.abs(cw2[FF_HIDDEN:, :]))) == 0.0
    assert float(jnp.max(jnp.abs(cw2[:, cls['b2'].shape[1]:]))) == 0.0
    final = dict(lnf_w=params['ln_f']['w'], lnf_b=params['ln_f']['b'],
                 cw1=cw1, cb1=cb1, cw2=cw2, cb2=cb2)
    return stacked, final


# ---------------------------------------------------------------------------
# Full forward pass: embedding gather in plain JAX, everything else in ONE kernel.
# ---------------------------------------------------------------------------
@functools.partial(jax.jit, static_argnames=('n_head', 'n_layer', 'n_classes'))
def _forward(idx, tok_emb, pos_emb, stacked, final, n_head, n_layer, n_classes):
    B, T = idx.shape
    C = tok_emb.shape[1]
    # TODO(synk): dropout is identity (eval semantics); the torch.allclose normalization
    # warning print has no in-kernel equivalent and is omitted.
    x = jnp.take(tok_emb, idx, axis=0) + pos_emb[:T][None]       # (B, T, C)
    x2d = x.reshape(B * T, C)                                    # kernel takes (B*T, C)

    logits_pad, att_pad = fused_forward_call(x2d, stacked, final,
                                             n_layer=n_layer, n_head=n_head,
                                             B=B, T=T, C=C)
    logits = logits_pad[:, :n_classes]
    att = att_pad[:, :, :n_head * T]                             # (L, T, H*T), batch-meaned
    att4 = att.reshape(n_layer, T, n_head, T).transpose(0, 2, 1, 3)   # (L, H, T, T)
    return logits, att4.reshape(n_layer * n_head, T, T)


def encoder_with_classifier(idx, tok_emb, pos_emb, stacked, final,
                            n_head, n_layer, n_classes=3):
    logits, att = _forward(idx, tok_emb, pos_emb, stacked, final,
                           n_head=n_head, n_layer=n_layer, n_classes=n_classes)
    # Same list layout as the reference: layer-major, head-minor, each (T, T).
    return logits, list(att)


if __name__ == "__main__":
    vocab_size, n_embd, n_head, n_layer, block_size = 50, 32, 4, 2, 16
    B, T, n_classes = 2, 8, 3

    key = jax.random.PRNGKey(0)
    pkey, ikey = jax.random.split(key)
    params = init_params(pkey, vocab_size, n_embd, n_head, n_layer,
                         block_size, n_classes)
    stacked, final = pack_params(params, n_head)
    idx = jax.random.randint(ikey, (B, T), 0, vocab_size, dtype=jnp.int32)

    logits, attention_maps = encoder_with_classifier(
        idx, params['tok_emb'], params['pos_emb'], stacked, final,
        n_head, n_layer, n_classes)
    jax.block_until_ready(logits)
    jax.block_until_ready(attention_maps)

    assert logits.shape == (B, n_classes)
    assert len(attention_maps) == n_layer * n_head
    assert attention_maps[0].shape == (T, T)
    # softmax rows must sum to ~1 (mirrors the module's normalization check)
    row_sums = jnp.sum(attention_maps[0], axis=-1)
    assert bool(jnp.all(jnp.abs(row_sums - 1.0) < 1e-2))
    print("KERNEL_OK")
</pallas_src>

<mosaic_0001>
module attributes {stable_mosaic.version = 11 : i64} {
  func.func @fused_encoder_kernel(%arg0: memref<16x32xf32, #tpu.memory_space<vmem>>, %arg1: memref<2x1x32xf32, #tpu.memory_space<vmem>>, %arg2: memref<2x1x32xf32, #tpu.memory_space<vmem>>, %arg3: memref<2x4x32x8xf32, #tpu.memory_space<vmem>>, %arg4: memref<2x4x1x8xf32, #tpu.memory_space<vmem>>, %arg5: memref<2x4x32x8xf32, #tpu.memory_space<vmem>>, %arg6: memref<2x4x1x8xf32, #tpu.memory_space<vmem>>, %arg7: memref<2x4x32x8xf32, #tpu.memory_space<vmem>>, %arg8: memref<2x4x1x8xf32, #tpu.memory_space<vmem>>, %arg9: memref<2x4x8x32xf32, #tpu.memory_space<vmem>>, %arg10: memref<2x1x32xf32, #tpu.memory_space<vmem>>, %arg11: memref<2x1x32xf32, #tpu.memory_space<vmem>>, %arg12: memref<2x1x32xf32, #tpu.memory_space<vmem>>, %arg13: memref<2x32x128xf32, #tpu.memory_space<vmem>>, %arg14: memref<2x1x128xf32, #tpu.memory_space<vmem>>, %arg15: memref<2x128x32xf32, #tpu.memory_space<vmem>>, %arg16: memref<2x1x32xf32, #tpu.memory_space<vmem>>, %arg17: memref<1x32xf32, #tpu.memory_space<vmem>>, %arg18: memref<1x32xf32, #tpu.memory_space<vmem>>, %arg19: memref<32x128xf32, #tpu.memory_space<vmem>>, %arg20: memref<1x128xf32, #tpu.memory_space<vmem>>, %arg21: memref<128x128xf32, #tpu.memory_space<vmem>>, %arg22: memref<1x128xf32, #tpu.memory_space<vmem>>, %arg23: memref<2x128xf32, #tpu.memory_space<vmem>>, %arg24: memref<2x8x128xf32, #tpu.memory_space<vmem>>) attributes {dimension_semantics = [], scalar_prefetch = 0 : i64, scratch_operands = 0 : i64, tpu.core_type = #tpu.core_type<tc>} {
    %cst = arith.constant 8.000000e+00 : f32
    %0 = math.sqrt %cst : f32
    %cst_0 = arith.constant 1.000000e+00 : f32
    %1 = arith.divf %cst_0, %0 : f32
    %c0 = arith.constant 0 : index
    %c0_1 = arith.constant 0 : index
    %2 = vector.load %arg0[%c0, %c0_1] : memref<16x32xf32, #tpu.memory_space<vmem>>, vector<16x32xf32>
    %c0_2 = arith.constant 0 : index
    %c0_3 = arith.constant 0 : index
    %c0_4 = arith.constant 0 : index
    %3 = vector.load %arg1[%c0_2, %c0_3, %c0_4] : memref<2x1x32xf32, #tpu.memory_space<vmem>>, vector<1x1x32xf32>
    %4 = vector.shape_cast %3 : vector<1x1x32xf32> to vector<1x32xf32>
    %c0_5 = arith.constant 0 : index
    %c0_6 = arith.constant 0 : index
    %c0_7 = arith.constant 0 : index
    %5 = vector.load %arg2[%c0_5, %c0_6, %c0_7] : memref<2x1x32xf32, #tpu.memory_space<vmem>>, vector<1x1x32xf32>
    %6 = vector.shape_cast %5 : vector<1x1x32xf32> to vector<1x32xf32>
    %cst_8 = arith.constant dense<0.000000e+00> : vector<16xf32>
    %7 = vector.multi_reduction <add>, %2, %cst_8 [1] : vector<16x32xf32> to vector<16xf32>
    %8 = vector.shape_cast %7 : vector<16xf32> to vector<16x1xf32>
    %cst_9 = arith.constant 3.200000e+01 : f32
    %9 = vector.broadcast %cst_9 : f32 to vector<16x1xf32>
    %10 = arith.divf %8, %9 : vector<16x1xf32>
    %11 = vector.broadcast %10 : vector<16x1xf32> to vector<16x32xf32>
    %12 = arith.subf %2, %11 : vector<16x32xf32>
    %13 = arith.mulf %12, %12 : vector<16x32xf32>
    %cst_10 = arith.constant dense<0.000000e+00> : vector<16xf32>
    %14 = vector.multi_reduction <add>, %13, %cst_10 [1] : vector<16x32xf32> to vector<16xf32>
    %15 = vector.shape_cast %14 : vector<16xf32> to vector<16x1xf32>
    %cst_11 = arith.constant 3.200000e+01 : f32
    %16 = vector.broadcast %cst_11 : f32 to vector<16x1xf32>
    %17 = arith.divf %15, %16 : vector<16x1xf32>
    %18 = vector.broadcast %10 : vector<16x1xf32> to vector<16x32xf32>
    %19 = arith.subf %2, %18 : vector<16x32xf32>
    %cst_12 = arith.constant 9.99999974E-6 : f32
    %20 = vector.broadcast %cst_12 : f32 to vector<16x1xf32>
    %21 = arith.addf %17, %20 : vector<16x1xf32>
    %22 = math.rsqrt %21 : vector<16x1xf32>
    %23 = vector.broadcast %22 : vector<16x1xf32> to vector<16x32xf32>
    %24 = arith.mulf %19, %23 : vector<16x32xf32>
    %25 = vector.broadcast %4 : vector<1x32xf32> to vector<16x32xf32>
    %26 = arith.mulf %24, %25 : vector<16x32xf32>
    %27 = vector.broadcast %6 : vector<1x32xf32> to vector<16x32xf32>
    %28 = arith.addf %26, %27 : vector<16x32xf32>
    %c0_13 = arith.constant 0 : index
    %c0_14 = arith.constant 0 : index
    %c0_15 = arith.constant 0 : index
    %29 = vector.load %arg10[%c0_13, %c0_14, %c0_15] : memref<2x1x32xf32, #tpu.memory_space<vmem>>, vector<1x1x32xf32>
    %30 = vector.shape_cast %29 : vector<1x1x32xf32> to vector<1x32xf32>
    %31 = vector.broadcast %30 : vector<1x32xf32> to vector<16x32xf32>
    %32 = arith.addf %2, %31 : vector<16x32xf32>
    %c0_16 = arith.constant 0 : index
    %c0_17 = arith.constant 0 : index
    %c0_18 = arith.constant 0 : index
    %c0_19 = arith.constant 0 : index
    %33 = vector.load %arg3[%c0_16, %c0_17, %c0_18, %c0_19] : memref<2x4x32x8xf32, #tpu.memory_space<vmem>>, vector<1x1x32x8xf32>
    %34 = vector.shape_cast %33 : vector<1x1x32x8xf32> to vector<32x8xf32>
    %cst_20 = arith.constant dense<0.000000e+00> : vector<16x8xf32>
    %35 = tpu.matmul %28, %34, %cst_20 {dimension_numbers = #tpu.dot_dimension_numbers<[1], [0], [0], [1], [0, 0, 1, 1], [], []>} : vector<16x32xf32>, vector<32x8xf32>, vector<16x8xf32> -> vector<16x8xf32>
    %c0_21 = arith.constant 0 : index
    %c0_22 = arith.constant 0 : index
    %c0_23 = arith.constant 0 : index
    %c0_24 = arith.constant 0 : index
    %36 = vector.load %arg4[%c0_21, %c0_22, %c0_23, %c0_24] : memref<2x4x1x8xf32, #tpu.memory_space<vmem>>, vector<1x1x1x8xf32>
    %37 = vector.shape_cast %36 : vector<1x1x1x8xf32> to vector<1x8xf32>
    %38 = vector.broadcast %37 : vector<1x8xf32> to vector<16x8xf32>
    %39 = arith.addf %35, %38 : vector<16x8xf32>
    %40 = vector.shape_cast %39 : vector<16x8xf32> to vector<2x8x8xf32>
    %c0_25 = arith.constant 0 : index
    %c0_26 = arith.constant 0 : index
    %c0_27 = arith.constant 0 : index
    %c0_28 = arith.constant 0 : index
    %41 = vector.load %arg5[%c0_25, %c0_26, %c0_27, %c0_28] : memref<2x4x32x8xf32, #tpu.memory_space<vmem>>, vector<1x1x32x8xf32>
    %42 = vector.shape_cast %41 : vector<1x1x32x8xf32> to vector<32x8xf32>
    %cst_29 = arith.constant dense<0.000000e+00> : vector<16x8xf32>
    %43 = tpu.matmul %28, %42, %cst_29 {dimension_numbers = #tpu.dot_dimension_numbers<[1], [0], [0], [1], [0, 0, 1, 1], [], []>} : vector<16x32xf32>, vector<32x8xf32>, vector<16x8xf32> -> vector<16x8xf32>
    %c0_30 = arith.constant 0 : index
    %c0_31 = arith.constant 0 : index
    %c0_32 = arith.constant 0 : index
    %c0_33 = arith.constant 0 : index
    %44 = vector.load %arg6[%c0_30, %c0_31, %c0_32, %c0_33] : memref<2x4x1x8xf32, #tpu.memory_space<vmem>>, vector<1x1x1x8xf32>
    %45 = vector.shape_cast %44 : vector<1x1x1x8xf32> to vector<1x8xf32>
    %46 = vector.broadcast %45 : vector<1x8xf32> to vector<16x8xf32>
    %47 = arith.addf %43, %46 : vector<16x8xf32>
    %48 = vector.shape_cast %47 : vector<16x8xf32> to vector<2x8x8xf32>
    %c0_34 = arith.constant 0 : index
    %c0_35 = arith.constant 0 : index
    %c0_36 = arith.constant 0 : index
    %c0_37 = arith.constant 0 : index
    %49 = vector.load %arg7[%c0_34, %c0_35, %c0_36, %c0_37] : memref<2x4x32x8xf32, #tpu.memory_space<vmem>>, vector<1x1x32x8xf32>
    %50 = vector.shape_cast %49 : vector<1x1x32x8xf32> to vector<32x8xf32>
    %cst_38 = arith.constant dense<0.000000e+00> : vector<16x8xf32>
    %51 = tpu.matmul %28, %50, %cst_38 {dimension_numbers = #tpu.dot_dimension_numbers<[1], [0], [0], [1], [0, 0, 1, 1], [], []>} : vector<16x32xf32>, vector<32x8xf32>, vector<16x8xf32> -> vector<16x8xf32>
    %c0_39 = arith.constant 0 : index
    %c0_40 = arith.constant 0 : index
    %c0_41 = arith.constant 0 : index
    %c0_42 = arith.constant 0 : index
    %52 = vector.load %arg8[%c0_39, %c0_40, %c0_41, %c0_42] : memref<2x4x1x8xf32, #tpu.memory_space<vmem>>, vector<1x1x1x8xf32>
    %53 = vector.shape_cast %52 : vector<1x1x1x8xf32> to vector<1x8xf32>
    %54 = vector.broadcast %53 : vector<1x8xf32> to vector<16x8xf32>
    %55 = arith.addf %51, %54 : vector<16x8xf32>
    %56 = vector.shape_cast %55 : vector<16x8xf32> to vector<2x8x8xf32>
    "tpu.trace_start"() <{level = 10 : i32, message = "btd,bsd->bts"}> : () -> ()
    %cst_43 = arith.constant dense<0.000000e+00> : vector<2x8x8xf32>
    %57 = tpu.matmul %40, %48, %cst_43 {dimension_numbers = #tpu.dot_dimension_numbers<[2], [2], [1], [1], [0, 0, 0, 1, 1, 1], [0], [0]>} : vector<2x8x8xf32>, vector<2x8x8xf32>, vector<2x8x8xf32> -> vector<2x8x8xf32>
    "tpu.trace_stop"() : () -> ()
    %58 = vector.broadcast %1 : f32 to vector<2x8x8xf32>
    %59 = arith.mulf %57, %58 : vector<2x8x8xf32>
    %cst_44 = arith.constant dense<0xFF800000> : vector<2x8xf32>
    %60 = vector.multi_reduction <maximumf>, %59, %cst_44 [2] : vector<2x8x8xf32> to vector<2x8xf32>
    %61 = vector.shape_cast %60 : vector<2x8xf32> to vector<2x8x1xf32>
    %62 = vector.broadcast %61 : vector<2x8x1xf32> to vector<2x8x8xf32>
    %63 = arith.subf %59, %62 : vector<2x8x8xf32>
    %64 = math.exp %63 : vector<2x8x8xf32>
    %cst_45 = arith.constant dense<0.000000e+00> : vector<2x8xf32>
    %65 = vector.multi_reduction <add>, %64, %cst_45 [2] : vector<2x8x8xf32> to vector<2x8xf32>
    %66 = vector.shape_cast %65 : vector<2x8xf32> to vector<2x8x1xf32>
    %67 = tpu.reciprocal %66 {approx = true} : vector<2x8x1xf32> -> vector<2x8x1xf32>
    %68 = vector.broadcast %67 : vector<2x8x1xf32> to vector<2x8x8xf32>
    %69 = arith.mulf %64, %68 : vector<2x8x8xf32>
    %cst_46 = arith.constant dense<0.000000e+00> : vector<8x8xf32>
    %70 = vector.multi_reduction <add>, %69, %cst_46 [0] : vector<2x8x8xf32> to vector<8x8xf32>
    %cst_47 = arith.constant 2.000000e+00 : f32
    %71 = vector.broadcast %cst_47 : f32 to vector<8x8xf32>
    %72 = arith.divf %70, %71 : vector<8x8xf32>
    "tpu.trace_start"() <{level = 10 : i32, message = "bts,bsd->btd"}> : () -> ()
    %cst_48 = arith.constant dense<0.000000e+00> : vector<2x8x8xf32>
    %73 = tpu.matmul %69, %56, %cst_48 {dimension_numbers = #tpu.dot_dimension_numbers<[2], [1], [1], [2], [0, 0, 0, 1, 1, 2], [0], [0]>} : vector<2x8x8xf32>, vector<2x8x8xf32>, vector<2x8x8xf32> -> vector<2x8x8xf32>
    "tpu.trace_stop"() : () -> ()
    %74 = vector.shape_cast %73 : vector<2x8x8xf32> to vector<16x8xf32>
    %c0_49 = arith.constant 0 : index
    %c0_50 = arith.constant 0 : index
    %c0_51 = arith.constant 0 : index
    %c0_52 = arith.constant 0 : index
    %75 = vector.load %arg9[%c0_49, %c0_50, %c0_51, %c0_52] : memref<2x4x8x32xf32, #tpu.memory_space<vmem>>, vector<1x1x8x32xf32>
    %76 = vector.shape_cast %75 : vector<1x1x8x32xf32> to vector<8x32xf32>
    %cst_53 = arith.constant dense<0.000000e+00> : vector<16x32xf32>
    %77 = tpu.matmul %74, %76, %cst_53 {dimension_numbers = #tpu.dot_dimension_numbers<[1], [0], [0], [1], [0, 0, 1, 1], [], []>} : vector<16x8xf32>, vector<8x32xf32>, vector<16x32xf32> -> vector<16x32xf32>
    %78 = arith.addf %32, %77 : vector<16x32xf32>
    %c0_54 = arith.constant 0 : index
    %c1 = arith.constant 1 : index
    %c0_55 = arith.constant 0 : index
    %c0_56 = arith.constant 0 : index
    %79 = vector.load %arg3[%c0_54, %c1, %c0_55, %c0_56] : memref<2x4x32x8xf32, #tpu.memory_space<vmem>>, vector<1x1x32x8xf32>
    %80 = vector.shape_cast %79 : vector<1x1x32x8xf32> to vector<32x8xf32>
    %cst_57 = arith.constant dense<0.000000e+00> : vector<16x8xf32>
    %81 = tpu.matmul %28, %80, %cst_57 {dimension_numbers = #tpu.dot_dimension_numbers<[1], [0], [0], [1], [0, 0, 1, 1], [], []>} : vector<16x32xf32>, vector<32x8xf32>, vector<16x8xf32> -> vector<16x8xf32>
    %c0_58 = arith.constant 0 : index
    %c1_59 = arith.constant 1 : index
    %c0_60 = arith.constant 0 : index
    %c0_61 = arith.constant 0 : index
    %82 = vector.load %arg4[%c0_58, %c1_59, %c0_60, %c0_61] : memref<2x4x1x8xf32, #tpu.memory_space<vmem>>, vector<1x1x1x8xf32>
    %83 = vector.shape_cast %82 : vector<1x1x1x8xf32> to vector<1x8xf32>
    %84 = vector.broadcast %83 : vector<1x8xf32> to vector<16x8xf32>
    %85 = arith.addf %81, %84 : vector<16x8xf32>
    %86 = vector.shape_cast %85 : vector<16x8xf32> to vector<2x8x8xf32>
    %c0_62 = arith.constant 0 : index
    %c1_63 = arith.constant 1 : index
    %c0_64 = arith.constant 0 : index
    %c0_65 = arith.constant 0 : index
    %87 = vector.load %arg5[%c0_62, %c1_63, %c0_64, %c0_65] : memref<2x4x32x8xf32, #tpu.memory_space<vmem>>, vector<1x1x32x8xf32>
    %88 = vector.shape_cast %87 : vector<1x1x32x8xf32> to vector<32x8xf32>
    %cst_66 = arith.constant dense<0.000000e+00> : vector<16x8xf32>
    %89 = tpu.matmul %28, %88, %cst_66 {dimension_numbers = #tpu.dot_dimension_numbers<[1], [0], [0], [1], [0, 0, 1, 1], [], []>} : vector<16x32xf32>, vector<32x8xf32>, vector<16x8xf32> -> vector<16x8xf32>
    %c0_67 = arith.constant 0 : index
    %c1_68 = arith.constant 1 : index
    %c0_69 = arith.constant 0 : index
    %c0_70 = arith.constant 0 : index
    %90 = vector.load %arg6[%c0_67, %c1_68, %c0_69, %c0_70] : memref<2x4x1x8xf32, #tpu.memory_space<vmem>>, vector<1x1x1x8xf32>
    %91 = vector.shape_cast %90 : vector<1x1x1x8xf32> to vector<1x8xf32>
    %92 = vector.broadcast %91 : vector<1x8xf32> to vector<16x8xf32>
    %93 = arith.addf %89, %92 : vector<16x8xf32>
    %94 = vector.shape_cast %93 : vector<16x8xf32> to vector<2x8x8xf32>
    %c0_71 = arith.constant 0 : index
    %c1_72 = arith.constant 1 : index
    %c0_73 = arith.constant 0 : index
    %c0_74 = arith.constant 0 : index
    %95 = vector.load %arg7[%c0_71, %c1_72, %c0_73, %c0_74] : memref<2x4x32x8xf32, #tpu.memory_space<vmem>>, vector<1x1x32x8xf32>
    %96 = vector.shape_cast %95 : vector<1x1x32x8xf32> to vector<32x8xf32>
    %cst_75 = arith.constant dense<0.000000e+00> : vector<16x8xf32>
    %97 = tpu.matmul %28, %96, %cst_75 {dimension_numbers = #tpu.dot_dimension_numbers<[1], [0], [0], [1], [0, 0, 1, 1], [], []>} : vector<16x32xf32>, vector<32x8xf32>, vector<16x8xf32> -> vector<16x8xf32>
    %c0_76 = arith.constant 0 : index
    %c1_77 = arith.constant 1 : index
    %c0_78 = arith.constant 0 : index
    %c0_79 = arith.constant 0 : index
    %98 = vector.load %arg8[%c0_76, %c1_77, %c0_78, %c0_79] : memref<2x4x1x8xf32, #tpu.memory_space<vmem>>, vector<1x1x1x8xf32>
    %99 = vector.shape_cast %98 : vector<1x1x1x8xf32> to vector<1x8xf32>
    %100 = vector.broadcast %99 : vector<1x8xf32> to vector<16x8xf32>
    %101 = arith.addf %97, %100 : vector<16x8xf32>
    %102 = vector.shape_cast %101 : vector<16x8xf32> to vector<2x8x8xf32>
    "tpu.trace_start"() <{level = 10 : i32, message = "btd,bsd->bts"}> : () -> ()
    %cst_80 = arith.constant dense<0.000000e+00> : vector<2x8x8xf32>
    %103 = tpu.matmul %86, %94, %cst_80 {dimension_numbers = #tpu.dot_dimension_numbers<[2], [2], [1], [1], [0, 0, 0, 1, 1, 1], [0], [0]>} : vector<2x8x8xf32>, vector<2x8x8xf32>, vector<2x8x8xf32> -> vector<2x8x8xf32>
    "tpu.trace_stop"() : () -> ()
    %104 = vector.broadcast %1 : f32 to vector<2x8x8xf32>
    %105 = arith.mulf %103, %104 : vector<2x8x8xf32>
    %cst_81 = arith.constant dense<0xFF800000> : vector<2x8xf32>
    %106 = vector.multi_reduction <maximumf>, %105, %cst_81 [2] : vector<2x8x8xf32> to vector<2x8xf32>
    %107 = vector.shape_cast %106 : vector<2x8xf32> to vector<2x8x1xf32>
    %108 = vector.broadcast %107 : vector<2x8x1xf32> to vector<2x8x8xf32>
    %109 = arith.subf %105, %108 : vector<2x8x8xf32>
    %110 = math.exp %109 : vector<2x8x8xf32>
    %cst_82 = arith.constant dense<0.000000e+00> : vector<2x8xf32>
    %111 = vector.multi_reduction <add>, %110, %cst_82 [2] : vector<2x8x8xf32> to vector<2x8xf32>
    %112 = vector.shape_cast %111 : vector<2x8xf32> to vector<2x8x1xf32>
    %113 = tpu.reciprocal %112 {approx = true} : vector<2x8x1xf32> -> vector<2x8x1xf32>
    %114 = vector.broadcast %113 : vector<2x8x1xf32> to vector<2x8x8xf32>
    %115 = arith.mulf %110, %114 : vector<2x8x8xf32>
    %cst_83 = arith.constant dense<0.000000e+00> : vector<8x8xf32>
    %116 = vector.multi_reduction <add>, %115, %cst_83 [0] : vector<2x8x8xf32> to vector<8x8xf32>
    %cst_84 = arith.constant 2.000000e+00 : f32
    %117 = vector.broadcast %cst_84 : f32 to vector<8x8xf32>
    %118 = arith.divf %116, %117 : vector<8x8xf32>
    "tpu.trace_start"() <{level = 10 : i32, message = "bts,bsd->btd"}> : () -> ()
    %cst_85 = arith.constant dense<0.000000e+00> : vector<2x8x8xf32>
    %119 = tpu.matmul %115, %102, %cst_85 {dimension_numbers = #tpu.dot_dimension_numbers<[2], [1], [1], [2], [0, 0, 0, 1, 1, 2], [0], [0]>} : vector<2x8x8xf32>, vector<2x8x8xf32>, vector<2x8x8xf32> -> vector<2x8x8xf32>
    "tpu.trace_stop"() : () -> ()
    %120 = vector.shape_cast %119 : vector<2x8x8xf32> to vector<16x8xf32>
    %c0_86 = arith.constant 0 : index
    %c1_87 = arith.constant 1 : index
    %c0_88 = arith.constant 0 : index
    %c0_89 = arith.constant 0 : index
    %121 = vector.load %arg9[%c0_86, %c1_87, %c0_88, %c0_89] : memref<2x4x8x32xf32, #tpu.memory_space<vmem>>, vector<1x1x8x32xf32>
    %122 = vector.shape_cast %121 : vector<1x1x8x32xf32> to vector<8x32xf32>
    %cst_90 = arith.constant dense<0.000000e+00> : vector<16x32xf32>
    %123 = tpu.matmul %120, %122, %cst_90 {dimension_numbers = #tpu.dot_dimension_numbers<[1], [0], [0], [1], [0, 0, 1, 1], [], []>} : vector<16x8xf32>, vector<8x32xf32>, vector<16x32xf32> -> vector<16x32xf32>
    %124 = arith.addf %78, %123 : vector<16x32xf32>
    %c0_91 = arith.constant 0 : index
    %c2 = arith.constant 2 : index
    %c0_92 = arith.constant 0 : index
    %c0_93 = arith.constant 0 : index
    %125 = vector.load %arg3[%c0_91, %c2, %c0_92, %c0_93] : memref<2x4x32x8xf32, #tpu.memory_space<vmem>>, vector<1x1x32x8xf32>
    %126 = vector.shape_cast %125 : vector<1x1x32x8xf32> to vector<32x8xf32>
    %cst_94 = arith.constant dense<0.000000e+00> : vector<16x8xf32>
    %127 = tpu.matmul %28, %126, %cst_94 {dimension_numbers = #tpu.dot_dimension_numbers<[1], [0], [0], [1], [0, 0, 1, 1], [], []>} : vector<16x32xf32>, vector<32x8xf32>, vector<16x8xf32> -> vector<16x8xf32>
    %c0_95 = arith.constant 0 : index
    %c2_96 = arith.constant 2 : index
    %c0_97 = arith.constant 0 : index
    %c0_98 = arith.constant 0 : index
    %128 = vector.load %arg4[%c0_95, %c2_96, %c0_97, %c0_98] : memref<2x4x1x8xf32, #tpu.memory_space<vmem>>, vector<1x1x1x8xf32>
    %129 = vector.shape_cast %128 : vector<1x1x1x8xf32> to vector<1x8xf32>
    %130 = vector.broadcast %129 : vector<1x8xf32> to vector<16x8xf32>
    %131 = arith.addf %127, %130 : vector<16x8xf32>
    %132 = vector.shape_cast %131 : vector<16x8xf32> to vector<2x8x8xf32>
    %c0_99 = arith.constant 0 : index
    %c2_100 = arith.constant 2 : index
    %c0_101 = arith.constant 0 : index
    %c0_102 = arith.constant 0 : index
    %133 = vector.load %arg5[%c0_99, %c2_100, %c0_101, %c0_102] : memref<2x4x32x8xf32, #tpu.memory_space<vmem>>, vector<1x1x32x8xf32>
    %134 = vector.shape_cast %133 : vector<1x1x32x8xf32> to vector<32x8xf32>
    %cst_103 = arith.constant dense<0.000000e+00> : vector<16x8xf32>
    %135 = tpu.matmul %28, %134, %cst_103 {dimension_numbers = #tpu.dot_dimension_numbers<[1], [0], [0], [1], [0, 0, 1, 1], [], []>} : vector<16x32xf32>, vector<32x8xf32>, vector<16x8xf32> -> vector<16x8xf32>
    %c0_104 = arith.constant 0 : index
    %c2_105 = arith.constant 2 : index
    %c0_106 = arith.constant 0 : index
    %c0_107 = arith.constant 0 : index
    %136 = vector.load %arg6[%c0_104, %c2_105, %c0_106, %c0_107] : memref<2x4x1x8xf32, #tpu.memory_space<vmem>>, vector<1x1x1x8xf32>
    %137 = vector.shape_cast %136 : vector<1x1x1x8xf32> to vector<1x8xf32>
    %138 = vector.broadcast %137 : vector<1x8xf32> to vector<16x8xf32>
    %139 = arith.addf %135, %138 : vector<16x8xf32>
    %140 = vector.shape_cast %139 : vector<16x8xf32> to vector<2x8x8xf32>
    %c0_108 = arith.constant 0 : index
    %c2_109 = arith.constant 2 : index
    %c0_110 = arith.constant 0 : index
    %c0_111 = arith.constant 0 : index
    %141 = vector.load %arg7[%c0_108, %c2_109, %c0_110, %c0_111] : memref<2x4x32x8xf32, #tpu.memory_space<vmem>>, vector<1x1x32x8xf32>
    %142 = vector.shape_cast %141 : vector<1x1x32x8xf32> to vector<32x8xf32>
    %cst_112 = arith.constant dense<0.000000e+00> : vector<16x8xf32>
    %143 = tpu.matmul %28, %142, %cst_112 {dimension_numbers = #tpu.dot_dimension_numbers<[1], [0], [0], [1], [0, 0, 1, 1], [], []>} : vector<16x32xf32>, vector<32x8xf32>, vector<16x8xf32> -> vector<16x8xf32>
    %c0_113 = arith.constant 0 : index
    %c2_114 = arith.constant 2 : index
    %c0_115 = arith.constant 0 : index
    %c0_116 = arith.constant 0 : index
    %144 = vector.load %arg8[%c0_113, %c2_114, %c0_115, %c0_116] : memref<2x4x1x8xf32, #tpu.memory_space<vmem>>, vector<1x1x1x8xf32>
    %145 = vector.shape_cast %144 : vector<1x1x1x8xf32> to vector<1x8xf32>
    %146 = vector.broadcast %145 : vector<1x8xf32> to vector<16x8xf32>
    %147 = arith.addf %143, %146 : vector<16x8xf32>
    %148 = vector.shape_cast %147 : vector<16x8xf32> to vector<2x8x8xf32>
    "tpu.trace_start"() <{level = 10 : i32, message = "btd,bsd->bts"}> : () -> ()
    %cst_117 = arith.constant dense<0.000000e+00> : vector<2x8x8xf32>
    %149 = tpu.matmul %132, %140, %cst_117 {dimension_numbers = #tpu.dot_dimension_numbers<[2], [2], [1], [1], [0, 0, 0, 1, 1, 1], [0], [0]>} : vector<2x8x8xf32>, vector<2x8x8xf32>, vector<2x8x8xf32> -> vector<2x8x8xf32>
    "tpu.trace_stop"() : () -> ()
    %150 = vector.broadcast %1 : f32 to vector<2x8x8xf32>
    %151 = arith.mulf %149, %150 : vector<2x8x8xf32>
    %cst_118 = arith.constant dense<0xFF800000> : vector<2x8xf32>
    %152 = vector.multi_reduction <maximumf>, %151, %cst_118 [2] : vector<2x8x8xf32> to vector<2x8xf32>
    %153 = vector.shape_cast %152 : vector<2x8xf32> to vector<2x8x1xf32>
    %154 = vector.broadcast %153 : vector<2x8x1xf32> to vector<2x8x8xf32>
    %155 = arith.subf %151, %154 : vector<2x8x8xf32>
    %156 = math.exp %155 : vector<2x8x8xf32>
    %cst_119 = arith.constant dense<0.000000e+00> : vector<2x8xf32>
    %157 = vector.multi_reduction <add>, %156, %cst_119 [2] : vector<2x8x8xf32> to vector<2x8xf32>
    %158 = vector.shape_cast %157 : vector<2x8xf32> to vector<2x8x1xf32>
    %159 = tpu.reciprocal %158 {approx = true} : vector<2x8x1xf32> -> vector<2x8x1xf32>
    %160 = vector.broadcast %159 : vector<2x8x1xf32> to vector<2x8x8xf32>
    %161 = arith.mulf %156, %160 : vector<2x8x8xf32>
    %cst_120 = arith.constant dense<0.000000e+00> : vector<8x8xf32>
    %162 = vector.multi_reduction <add>, %161, %cst_120 [0] : vector<2x8x8xf32> to vector<8x8xf32>
    %cst_121 = arith.constant 2.000000e+00 : f32
    %163 = vector.broadcast %cst_121 : f32 to vector<8x8xf32>
    %164 = arith.divf %162, %163 : vector<8x8xf32>
    "tpu.trace_start"() <{level = 10 : i32, message = "bts,bsd->btd"}> : () -> ()
    %cst_122 = arith.constant dense<0.000000e+00> : vector<2x8x8xf32>
    %165 = tpu.matmul %161, %148, %cst_122 {dimension_numbers = #tpu.dot_dimension_numbers<[2], [1], [1], [2], [0, 0, 0, 1, 1, 2], [0], [0]>} : vector<2x8x8xf32>, vector<2x8x8xf32>, vector<2x8x8xf32> -> vector<2x8x8xf32>
    "tpu.trace_stop"() : () -> ()
    %166 = vector.shape_cast %165 : vector<2x8x8xf32> to vector<16x8xf32>
    %c0_123 = arith.constant 0 : index
    %c2_124 = arith.constant 2 : index
    %c0_125 = arith.constant 0 : index
    %c0_126 = arith.constant 0 : index
    %167 = vector.load %arg9[%c0_123, %c2_124, %c0_125, %c0_126] : memref<2x4x8x32xf32, #tpu.memory_space<vmem>>, vector<1x1x8x32xf32>
    %168 = vector.shape_cast %167 : vector<1x1x8x32xf32> to vector<8x32xf32>
    %cst_127 = arith.constant dense<0.000000e+00> : vector<16x32xf32>
    %169 = tpu.matmul %166, %168, %cst_127 {dimension_numbers = #tpu.dot_dimension_numbers<[1], [0], [0], [1], [0, 0, 1, 1], [], []>} : vector<16x8xf32>, vector<8x32xf32>, vector<16x32xf32> -> vector<16x32xf32>
    %170 = arith.addf %124, %169 : vector<16x32xf32>
    %c0_128 = arith.constant 0 : index
    %c3 = arith.constant 3 : index
    %c0_129 = arith.constant 0 : index
    %c0_130 = arith.constant 0 : index
    %171 = vector.load %arg3[%c0_128, %c3, %c0_129, %c0_130] : memref<2x4x32x8xf32, #tpu.memory_space<vmem>>, vector<1x1x32x8xf32>
    %172 = vector.shape_cast %171 : vector<1x1x32x8xf32> to vector<32x8xf32>
    %cst_131 = arith.constant dense<0.000000e+00> : vector<16x8xf32>
    %173 = tpu.matmul %28, %172, %cst_131 {dimension_numbers = #tpu.dot_dimension_numbers<[1], [0], [0], [1], [0, 0, 1, 1], [], []>} : vector<16x32xf32>, vector<32x8xf32>, vector<16x8xf32> -> vector<16x8xf32>
    %c0_132 = arith.constant 0 : index
    %c3_133 = arith.constant 3 : index
    %c0_134 = arith.constant 0 : index
    %c0_135 = arith.constant 0 : index
    %174 = vector.load %arg4[%c0_132, %c3_133, %c0_134, %c0_135] : memref<2x4x1x8xf32, #tpu.memory_space<vmem>>, vector<1x1x1x8xf32>
    %175 = vector.shape_cast %174 : vector<1x1x1x8xf32> to vector<1x8xf32>
    %176 = vector.broadcast %175 : vector<1x8xf32> to vector<16x8xf32>
    %177 = arith.addf %173, %176 : vector<16x8xf32>
    %178 = vector.shape_cast %177 : vector<16x8xf32> to vector<2x8x8xf32>
    %c0_136 = arith.constant 0 : index
    %c3_137 = arith.constant 3 : index
    %c0_138 = arith.constant 0 : index
    %c0_139 = arith.constant 0 : index
    %179 = vector.load %arg5[%c0_136, %c3_137, %c0_138, %c0_139] : memref<2x4x32x8xf32, #tpu.memory_space<vmem>>, vector<1x1x32x8xf32>
    %180 = vector.shape_cast %179 : vector<1x1x32x8xf32> to vector<32x8xf32>
    %cst_140 = arith.constant dense<0.000000e+00> : vector<16x8xf32>
    %181 = tpu.matmul %28, %180, %cst_140 {dimension_numbers = #tpu.dot_dimension_numbers<[1], [0], [0], [1], [0, 0, 1, 1], [], []>} : vector<16x32xf32>, vector<32x8xf32>, vector<16x8xf32> -> vector<16x8xf32>
    %c0_141 = arith.constant 0 : index
    %c3_142 = arith.constant 3 : index
    %c0_143 = arith.constant 0 : index
    %c0_144 = arith.constant 0 : index
    %182 = vector.load %arg6[%c0_141, %c3_142, %c0_143, %c0_144] : memref<2x4x1x8xf32, #tpu.memory_space<vmem>>, vector<1x1x1x8xf32>
    %183 = vector.shape_cast %182 : vector<1x1x1x8xf32> to vector<1x8xf32>
    %184 = vector.broadcast %183 : vector<1x8xf32> to vector<16x8xf32>
    %185 = arith.addf %181, %184 : vector<16x8xf32>
    %186 = vector.shape_cast %185 : vector<16x8xf32> to vector<2x8x8xf32>
    %c0_145 = arith.constant 0 : index
    %c3_146 = arith.constant 3 : index
    %c0_147 = arith.constant 0 : index
    %c0_148 = arith.constant 0 : index
    %187 = vector.load %arg7[%c0_145, %c3_146, %c0_147, %c0_148] : memref<2x4x32x8xf32, #tpu.memory_space<vmem>>, vector<1x1x32x8xf32>
    %188 = vector.shape_cast %187 : vector<1x1x32x8xf32> to vector<32x8xf32>
    %cst_149 = arith.constant dense<0.000000e+00> : vector<16x8xf32>
    %189 = tpu.matmul %28, %188, %cst_149 {dimension_numbers = #tpu.dot_dimension_numbers<[1], [0], [0], [1], [0, 0, 1, 1], [], []>} : vector<16x32xf32>, vector<32x8xf32>, vector<16x8xf32> -> vector<16x8xf32>
    %c0_150 = arith.constant 0 : index
    %c3_151 = arith.constant 3 : index
    %c0_152 = arith.constant 0 : index
    %c0_153 = arith.constant 0 : index
    %190 = vector.load %arg8[%c0_150, %c3_151, %c0_152, %c0_153] : memref<2x4x1x8xf32, #tpu.memory_space<vmem>>, vector<1x1x1x8xf32>
    %191 = vector.shape_cast %190 : vector<1x1x1x8xf32> to vector<1x8xf32>
    %192 = vector.broadcast %191 : vector<1x8xf32> to vector<16x8xf32>
    %193 = arith.addf %189, %192 : vector<16x8xf32>
    %194 = vector.shape_cast %193 : vector<16x8xf32> to vector<2x8x8xf32>
    "tpu.trace_start"() <{level = 10 : i32, message = "btd,bsd->bts"}> : () -> ()
    %cst_154 = arith.constant dense<0.000000e+00> : vector<2x8x8xf32>
    %195 = tpu.matmul %178, %186, %cst_154 {dimension_numbers = #tpu.dot_dimension_numbers<[2], [2], [1], [1], [0, 0, 0, 1, 1, 1], [0], [0]>} : vector<2x8x8xf32>, vector<2x8x8xf32>, vector<2x8x8xf32> -> vector<2x8x8xf32>
    "tpu.trace_stop"() : () -> ()
    %196 = vector.broadcast %1 : f32 to vector<2x8x8xf32>
    %197 = arith.mulf %195, %196 : vector<2x8x8xf32>
    %cst_155 = arith.constant dense<0xFF800000> : vector<2x8xf32>
    %198 = vector.multi_reduction <maximumf>, %197, %cst_155 [2] : vector<2x8x8xf32> to vector<2x8xf32>
    %199 = vector.shape_cast %198 : vector<2x8xf32> to vector<2x8x1xf32>
    %200 = vector.broadcast %199 : vector<2x8x1xf32> to vector<2x8x8xf32>
    %201 = arith.subf %197, %200 : vector<2x8x8xf32>
    %202 = math.exp %201 : vector<2x8x8xf32>
    %cst_156 = arith.constant dense<0.000000e+00> : vector<2x8xf32>
    %203 = vector.multi_reduction <add>, %202, %cst_156 [2] : vector<2x8x8xf32> to vector<2x8xf32>
    %204 = vector.shape_cast %203 : vector<2x8xf32> to vector<2x8x1xf32>
    %205 = tpu.reciprocal %204 {approx = true} : vector<2x8x1xf32> -> vector<2x8x1xf32>
    %206 = vector.broadcast %205 : vector<2x8x1xf32> to vector<2x8x8xf32>
    %207 = arith.mulf %202, %206 : vector<2x8x8xf32>
    %cst_157 = arith.constant dense<0.000000e+00> : vector<8x8xf32>
    %208 = vector.multi_reduction <add>, %207, %cst_157 [0] : vector<2x8x8xf32> to vector<8x8xf32>
    %cst_158 = arith.constant 2.000000e+00 : f32
    %209 = vector.broadcast %cst_158 : f32 to vector<8x8xf32>
    %210 = arith.divf %208, %209 : vector<8x8xf32>
    "tpu.trace_start"() <{level = 10 : i32, message = "bts,bsd->btd"}> : () -> ()
    %cst_159 = arith.constant dense<0.000000e+00> : vector<2x8x8xf32>
    %211 = tpu.matmul %207, %194, %cst_159 {dimension_numbers = #tpu.dot_dimension_numbers<[2], [1], [1], [2], [0, 0, 0, 1, 1, 2], [0], [0]>} : vector<2x8x8xf32>, vector<2x8x8xf32>, vector<2x8x8xf32> -> vector<2x8x8xf32>
    "tpu.trace_stop"() : () -> ()
    %212 = vector.shape_cast %211 : vector<2x8x8xf32> to vector<16x8xf32>
    %c0_160 = arith.constant 0 : index
    %c3_161 = arith.constant 3 : index
    %c0_162 = arith.constant 0 : index
    %c0_163 = arith.constant 0 : index
    %213 = vector.load %arg9[%c0_160, %c3_161, %c0_162, %c0_163] : memref<2x4x8x32xf32, #tpu.memory_space<vmem>>, vector<1x1x8x32xf32>
    %214 = vector.shape_cast %213 : vector<1x1x8x32xf32> to vector<8x32xf32>
    %cst_164 = arith.constant dense<0.000000e+00> : vector<16x32xf32>
    %215 = tpu.matmul %212, %214, %cst_164 {dimension_numbers = #tpu.dot_dimension_numbers<[1], [0], [0], [1], [0, 0, 1, 1], [], []>} : vector<16x8xf32>, vector<8x32xf32>, vector<16x32xf32> -> vector<16x32xf32>
    %216 = arith.addf %170, %215 : vector<16x32xf32>
    %cst_165 = arith.constant 0.000000e+00 : f32
    %217 = vector.broadcast %cst_165 : f32 to vector<8x96xf32>
    %218 = tpu.concatenate %72, %118, %164, %210, %217 in 1 : vector<8x8xf32>, vector<8x8xf32>, vector<8x8xf32>, vector<8x8xf32>, vector<8x96xf32> -> vector<8x128xf32>
    %c0_166 = arith.constant 0 : index
    %c0_167 = arith.constant 0 : index
    %c0_168 = arith.constant 0 : index
    %219 = vector.load %arg24[%c0_166, %c0_167, %c0_168] : memref<2x8x128xf32, #tpu.memory_space<vmem>>, vector<1x8x128xf32>
    %220 = vector.shape_cast %219 : vector<1x8x128xf32> to vector<8x128xf32>
    %221 = vector.shape_cast %218 : vector<8x128xf32> to vector<1x8x128xf32>
    tpu.vector_store %arg24[%c0_166, %c0_167, %c0_168], %221 {strides = array<i32>} : memref<2x8x128xf32, #tpu.memory_space<vmem>>, vector<1x8x128xf32>,
    %c0_169 = arith.constant 0 : index
    %c0_170 = arith.constant 0 : index
    %c0_171 = arith.constant 0 : index
    %222 = vector.load %arg11[%c0_169, %c0_170, %c0_171] : memref<2x1x32xf32, #tpu.memory_space<vmem>>, vector<1x1x32xf32>
    %223 = vector.shape_cast %222 : vector<1x1x32xf32> to vector<1x32xf32>
    %c0_172 = arith.constant 0 : index
    %c0_173 = arith.constant 0 : index
    %c0_174 = arith.constant 0 : index
    %224 = vector.load %arg12[%c0_172, %c0_173, %c0_174] : memref<2x1x32xf32, #tpu.memory_space<vmem>>, vector<1x1x32xf32>
    %225 = vector.shape_cast %224 : vector<1x1x32xf32> to vector<1x32xf32>
    %cst_175 = arith.constant dense<0.000000e+00> : vector<16xf32>
    %226 = vector.multi_reduction <add>, %216, %cst_175 [1] : vector<16x32xf32> to vector<16xf32>
    %227 = vector.shape_cast %226 : vector<16xf32> to vector<16x1xf32>
    %cst_176 = arith.constant 3.200000e+01 : f32
    %228 = vector.broadcast %cst_176 : f32 to vector<16x1xf32>
    %229 = arith.divf %227, %228 : vector<16x1xf32>
    %230 = vector.broadcast %229 : vector<16x1xf32> to vector<16x32xf32>
    %231 = arith.subf %216, %230 : vector<16x32xf32>
    %232 = arith.mulf %231, %231 : vector<16x32xf32>
    %cst_177 = arith.constant dense<0.000000e+00> : vector<16xf32>
    %233 = vector.multi_reduction <add>, %232, %cst_177 [1] : vector<16x32xf32> to vector<16xf32>
    %234 = vector.shape_cast %233 : vector<16xf32> to vector<16x1xf32>
    %cst_178 = arith.constant 3.200000e+01 : f32
    %235 = vector.broadcast %cst_178 : f32 to vector<16x1xf32>
    %236 = arith.divf %234, %235 : vector<16x1xf32>
    %237 = vector.broadcast %229 : vector<16x1xf32> to vector<16x32xf32>
    %238 = arith.subf %216, %237 : vector<16x32xf32>
    %cst_179 = arith.constant 9.99999974E-6 : f32
    %239 = vector.broadcast %cst_179 : f32 to vector<16x1xf32>
    %240 = arith.addf %236, %239 : vector<16x1xf32>
    %241 = math.rsqrt %240 : vector<16x1xf32>
    %242 = vector.broadcast %241 : vector<16x1xf32> to vector<16x32xf32>
    %243 = arith.mulf %238, %242 : vector<16x32xf32>
    %244 = vector.broadcast %223 : vector<1x32xf32> to vector<16x32xf32>
    %245 = arith.mulf %243, %244 : vector<16x32xf32>
    %246 = vector.broadcast %225 : vector<1x32xf32> to vector<16x32xf32>
    %247 = arith.addf %245, %246 : vector<16x32xf32>
    %c0_180 = arith.constant 0 : index
    %c0_181 = arith.constant 0 : index
    %c0_182 = arith.constant 0 : index
    %248 = vector.load %arg13[%c0_180, %c0_181, %c0_182] : memref<2x32x128xf32, #tpu.memory_space<vmem>>, vector<1x32x128xf32>
    %249 = vector.shape_cast %248 : vector<1x32x128xf32> to vector<32x128xf32>
    %cst_183 = arith.constant dense<0.000000e+00> : vector<16x128xf32>
    %250 = tpu.matmul %247, %249, %cst_183 {dimension_numbers = #tpu.dot_dimension_numbers<[1], [0], [0], [1], [0, 0, 1, 1], [], []>} : vector<16x32xf32>, vector<32x128xf32>, vector<16x128xf32> -> vector<16x128xf32>
    %c0_184 = arith.constant 0 : index
    %c0_185 = arith.constant 0 : index
    %c0_186 = arith.constant 0 : index
    %251 = vector.load %arg14[%c0_184, %c0_185, %c0_186] : memref<2x1x128xf32, #tpu.memory_space<vmem>>, vector<1x1x128xf32>
    %252 = vector.shape_cast %251 : vector<1x1x128xf32> to vector<1x128xf32>
    %253 = vector.broadcast %252 : vector<1x128xf32> to vector<16x128xf32>
    %254 = arith.addf %250, %253 : vector<16x128xf32>
    %cst_187 = arith.constant 0.000000e+00 : f32
    %255 = vector.broadcast %cst_187 : f32 to vector<16x128xf32>
    %256 = arith.maximumf %254, %255 : vector<16x128xf32>
    %c0_188 = arith.constant 0 : index
    %c0_189 = arith.constant 0 : index
    %c0_190 = arith.constant 0 : index
    %257 = vector.load %arg15[%c0_188, %c0_189, %c0_190] : memref<2x128x32xf32, #tpu.memory_space<vmem>>, vector<1x128x32xf32>
    %258 = vector.shape_cast %257 : vector<1x128x32xf32> to vector<128x32xf32>
    %cst_191 = arith.constant dense<0.000000e+00> : vector<16x32xf32>
    %259 = tpu.matmul %256, %258, %cst_191 {dimension_numbers = #tpu.dot_dimension_numbers<[1], [0], [0], [1], [0, 0, 1, 1], [], []>} : vector<16x128xf32>, vector<128x32xf32>, vector<16x32xf32> -> vector<16x32xf32>
    %c0_192 = arith.constant 0 : index
    %c0_193 = arith.constant 0 : index
    %c0_194 = arith.constant 0 : index
    %260 = vector.load %arg16[%c0_192, %c0_193, %c0_194] : memref<2x1x32xf32, #tpu.memory_space<vmem>>, vector<1x1x32xf32>
    %261 = vector.shape_cast %260 : vector<1x1x32xf32> to vector<1x32xf32>
    %262 = vector.broadcast %261 : vector<1x32xf32> to vector<16x32xf32>
    %263 = arith.addf %259, %262 : vector<16x32xf32>
    %264 = arith.addf %216, %263 : vector<16x32xf32>
    %c1_195 = arith.constant 1 : index
    %c0_196 = arith.constant 0 : index
    %c0_197 = arith.constant 0 : index
    %265 = vector.load %arg1[%c1_195, %c0_196, %c0_197] : memref<2x1x32xf32, #tpu.memory_space<vmem>>, vector<1x1x32xf32>
    %266 = vector.shape_cast %265 : vector<1x1x32xf32> to vector<1x32xf32>
    %c1_198 = arith.constant 1 : index
    %c0_199 = arith.constant 0 : index
    %c0_200 = arith.constant 0 : index
    %267 = vector.load %arg2[%c1_198, %c0_199, %c0_200] : memref<2x1x32xf32, #tpu.memory_space<vmem>>, vector<1x1x32xf32>
    %268 = vector.shape_cast %267 : vector<1x1x32xf32> to vector<1x32xf32>
    %cst_201 = arith.constant dense<0.000000e+00> : vector<16xf32>
    %269 = vector.multi_reduction <add>, %264, %cst_201 [1] : vector<16x32xf32> to vector<16xf32>
    %270 = vector.shape_cast %269 : vector<16xf32> to vector<16x1xf32>
    %cst_202 = arith.constant 3.200000e+01 : f32
    %271 = vector.broadcast %cst_202 : f32 to vector<16x1xf32>
    %272 = arith.divf %270, %271 : vector<16x1xf32>
    %273 = vector.broadcast %272 : vector<16x1xf32> to vector<16x32xf32>
    %274 = arith.subf %264, %273 : vector<16x32xf32>
    %275 = arith.mulf %274, %274 : vector<16x32xf32>
    %cst_203 = arith.constant dense<0.000000e+00> : vector<16xf32>
    %276 = vector.multi_reduction <add>, %275, %cst_203 [1] : vector<16x32xf32> to vector<16xf32>
    %277 = vector.shape_cast %276 : vector<16xf32> to vector<16x1xf32>
    %cst_204 = arith.constant 3.200000e+01 : f32
    %278 = vector.broadcast %cst_204 : f32 to vector<16x1xf32>
    %279 = arith.divf %277, %278 : vector<16x1xf32>
    %280 = vector.broadcast %272 : vector<16x1xf32> to vector<16x32xf32>
    %281 = arith.subf %264, %280 : vector<16x32xf32>
    %cst_205 = arith.constant 9.99999974E-6 : f32
    %282 = vector.broadcast %cst_205 : f32 to vector<16x1xf32>
    %283 = arith.addf %279, %282 : vector<16x1xf32>
    %284 = math.rsqrt %283 : vector<16x1xf32>
    %285 = vector.broadcast %284 : vector<16x1xf32> to vector<16x32xf32>
    %286 = arith.mulf %281, %285 : vector<16x32xf32>
    %287 = vector.broadcast %266 : vector<1x32xf32> to vector<16x32xf32>
    %288 = arith.mulf %286, %287 : vector<16x32xf32>
    %289 = vector.broadcast %268 : vector<1x32xf32> to vector<16x32xf32>
    %290 = arith.addf %288, %289 : vector<16x32xf32>
    %c1_206 = arith.constant 1 : index
    %c0_207 = arith.constant 0 : index
    %c0_208 = arith.constant 0 : index
    %291 = vector.load %arg10[%c1_206, %c0_207, %c0_208] : memref<2x1x32xf32, #tpu.memory_space<vmem>>, vector<1x1x32xf32>
    %292 = vector.shape_cast %291 : vector<1x1x32xf32> to vector<1x32xf32>
    %293 = vector.broadcast %292 : vector<1x32xf32> to vector<16x32xf32>
    %294 = arith.addf %264, %293 : vector<16x32xf32>
    %c1_209 = arith.constant 1 : index
    %c0_210 = arith.constant 0 : index
    %c0_211 = arith.constant 0 : index
    %c0_212 = arith.constant 0 : index
    %295 = vector.load %arg3[%c1_209, %c0_210, %c0_211, %c0_212] : memref<2x4x32x8xf32, #tpu.memory_space<vmem>>, vector<1x1x32x8xf32>
    %296 = vector.shape_cast %295 : vector<1x1x32x8xf32> to vector<32x8xf32>
    %cst_213 = arith.constant dense<0.000000e+00> : vector<16x8xf32>
    %297 = tpu.matmul %290, %296, %cst_213 {dimension_numbers = #tpu.dot_dimension_numbers<[1], [0], [0], [1], [0, 0, 1, 1], [], []>} : vector<16x32xf32>, vector<32x8xf32>, vector<16x8xf32> -> vector<16x8xf32>
    %c1_214 = arith.constant 1 : index
    %c0_215 = arith.constant 0 : index
    %c0_216 = arith.constant 0 : index
    %c0_217 = arith.constant 0 : index
    %298 = vector.load %arg4[%c1_214, %c0_215, %c0_216, %c0_217] : memref<2x4x1x8xf32, #tpu.memory_space<vmem>>, vector<1x1x1x8xf32>
    %299 = vector.shape_cast %298 : vector<1x1x1x8xf32> to vector<1x8xf32>
    %300 = vector.broadcast %299 : vector<1x8xf32> to vector<16x8xf32>
    %301 = arith.addf %297, %300 : vector<16x8xf32>
    %302 = vector.shape_cast %301 : vector<16x8xf32> to vector<2x8x8xf32>
    %c1_218 = arith.constant 1 : index
    %c0_219 = arith.constant 0 : index
    %c0_220 = arith.constant 0 : index
    %c0_221 = arith.constant 0 : index
    %303 = vector.load %arg5[%c1_218, %c0_219, %c0_220, %c0_221] : memref<2x4x32x8xf32, #tpu.memory_space<vmem>>, vector<1x1x32x8xf32>
    %304 = vector.shape_cast %303 : vector<1x1x32x8xf32> to vector<32x8xf32>
    %cst_222 = arith.constant dense<0.000000e+00> : vector<16x8xf32>
    %305 = tpu.matmul %290, %304, %cst_222 {dimension_numbers = #tpu.dot_dimension_numbers<[1], [0], [0], [1], [0, 0, 1, 1], [], []>} : vector<16x32xf32>, vector<32x8xf32>, vector<16x8xf32> -> vector<16x8xf32>
    %c1_223 = arith.constant 1 : index
    %c0_224 = arith.constant 0 : index
    %c0_225 = arith.constant 0 : index
    %c0_226 = arith.constant 0 : index
    %306 = vector.load %arg6[%c1_223, %c0_224, %c0_225, %c0_226] : memref<2x4x1x8xf32, #tpu.memory_space<vmem>>, vector<1x1x1x8xf32>
    %307 = vector.shape_cast %306 : vector<1x1x1x8xf32> to vector<1x8xf32>
    %308 = vector.broadcast %307 : vector<1x8xf32> to vector<16x8xf32>
    %309 = arith.addf %305, %308 : vector<16x8xf32>
    %310 = vector.shape_cast %309 : vector<16x8xf32> to vector<2x8x8xf32>
    %c1_227 = arith.constant 1 : index
    %c0_228 = arith.constant 0 : index
    %c0_229 = arith.constant 0 : index
    %c0_230 = arith.constant 0 : index
    %311 = vector.load %arg7[%c1_227, %c0_228, %c0_229, %c0_230] : memref<2x4x32x8xf32, #tpu.memory_space<vmem>>, vector<1x1x32x8xf32>
    %312 = vector.shape_cast %311 : vector<1x1x32x8xf32> to vector<32x8xf32>
    %cst_231 = arith.constant dense<0.000000e+00> : vector<16x8xf32>
    %313 = tpu.matmul %290, %312, %cst_231 {dimension_numbers = #tpu.dot_dimension_numbers<[1], [0], [0], [1], [0, 0, 1, 1], [], []>} : vector<16x32xf32>, vector<32x8xf32>, vector<16x8xf32> -> vector<16x8xf32>
    %c1_232 = arith.constant 1 : index
    %c0_233 = arith.constant 0 : index
    %c0_234 = arith.constant 0 : index
    %c0_235 = arith.constant 0 : index
    %314 = vector.load %arg8[%c1_232, %c0_233, %c0_234, %c0_235] : memref<2x4x1x8xf32, #tpu.memory_space<vmem>>, vector<1x1x1x8xf32>
    %315 = vector.shape_cast %314 : vector<1x1x1x8xf32> to vector<1x8xf32>
    %316 = vector.broadcast %315 : vector<1x8xf32> to vector<16x8xf32>
    %317 = arith.addf %313, %316 : vector<16x8xf32>
    %318 = vector.shape_cast %317 : vector<16x8xf32> to vector<2x8x8xf32>
    "tpu.trace_start"() <{level = 10 : i32, message = "btd,bsd->bts"}> : () -> ()
    %cst_236 = arith.constant dense<0.000000e+00> : vector<2x8x8xf32>
    %319 = tpu.matmul %302, %310, %cst_236 {dimension_numbers = #tpu.dot_dimension_numbers<[2], [2], [1], [1], [0, 0, 0, 1, 1, 1], [0], [0]>} : vector<2x8x8xf32>, vector<2x8x8xf32>, vector<2x8x8xf32> -> vector<2x8x8xf32>
    "tpu.trace_stop"() : () -> ()
    %320 = vector.broadcast %1 : f32 to vector<2x8x8xf32>
    %321 = arith.mulf %319, %320 : vector<2x8x8xf32>
    %cst_237 = arith.constant dense<0xFF800000> : vector<2x8xf32>
    %322 = vector.multi_reduction <maximumf>, %321, %cst_237 [2] : vector<2x8x8xf32> to vector<2x8xf32>
    %323 = vector.shape_cast %322 : vector<2x8xf32> to vector<2x8x1xf32>
    %324 = vector.broadcast %323 : vector<2x8x1xf32> to vector<2x8x8xf32>
    %325 = arith.subf %321, %324 : vector<2x8x8xf32>
    %326 = math.exp %325 : vector<2x8x8xf32>
    %cst_238 = arith.constant dense<0.000000e+00> : vector<2x8xf32>
    %327 = vector.multi_reduction <add>, %326, %cst_238 [2] : vector<2x8x8xf32> to vector<2x8xf32>
    %328 = vector.shape_cast %327 : vector<2x8xf32> to vector<2x8x1xf32>
    %329 = tpu.reciprocal %328 {approx = true} : vector<2x8x1xf32> -> vector<2x8x1xf32>
    %330 = vector.broadcast %329 : vector<2x8x1xf32> to vector<2x8x8xf32>
    %331 = arith.mulf %326, %330 : vector<2x8x8xf32>
    %cst_239 = arith.constant dense<0.000000e+00> : vector<8x8xf32>
    %332 = vector.multi_reduction <add>, %331, %cst_239 [0] : vector<2x8x8xf32> to vector<8x8xf32>
    %cst_240 = arith.constant 2.000000e+00 : f32
    %333 = vector.broadcast %cst_240 : f32 to vector<8x8xf32>
    %334 = arith.divf %332, %333 : vector<8x8xf32>
    "tpu.trace_start"() <{level = 10 : i32, message = "bts,bsd->btd"}> : () -> ()
    %cst_241 = arith.constant dense<0.000000e+00> : vector<2x8x8xf32>
    %335 = tpu.matmul %331, %318, %cst_241 {dimension_numbers = #tpu.dot_dimension_numbers<[2], [1], [1], [2], [0, 0, 0, 1, 1, 2], [0], [0]>} : vector<2x8x8xf32>, vector<2x8x8xf32>, vector<2x8x8xf32> -> vector<2x8x8xf32>
    "tpu.trace_stop"() : () -> ()
    %336 = vector.shape_cast %335 : vector<2x8x8xf32> to vector<16x8xf32>
    %c1_242 = arith.constant 1 : index
    %c0_243 = arith.constant 0 : index
    %c0_244 = arith.constant 0 : index
    %c0_245 = arith.constant 0 : index
    %337 = vector.load %arg9[%c1_242, %c0_243, %c0_244, %c0_245] : memref<2x4x8x32xf32, #tpu.memory_space<vmem>>, vector<1x1x8x32xf32>
    %338 = vector.shape_cast %337 : vector<1x1x8x32xf32> to vector<8x32xf32>
    %cst_246 = arith.constant dense<0.000000e+00> : vector<16x32xf32>
    %339 = tpu.matmul %336, %338, %cst_246 {dimension_numbers = #tpu.dot_dimension_numbers<[1], [0], [0], [1], [0, 0, 1, 1], [], []>} : vector<16x8xf32>, vector<8x32xf32>, vector<16x32xf32> -> vector<16x32xf32>
    %340 = arith.addf %294, %339 : vector<16x32xf32>
    %c1_247 = arith.constant 1 : index
    %c1_248 = arith.constant 1 : index
    %c0_249 = arith.constant 0 : index
    %c0_250 = arith.constant 0 : index
    %341 = vector.load %arg3[%c1_247, %c1_248, %c0_249, %c0_250] : memref<2x4x32x8xf32, #tpu.memory_space<vmem>>, vector<1x1x32x8xf32>
    %342 = vector.shape_cast %341 : vector<1x1x32x8xf32> to vector<32x8xf32>
    %cst_251 = arith.constant dense<0.000000e+00> : vector<16x8xf32>
    %343 = tpu.matmul %290, %342, %cst_251 {dimension_numbers = #tpu.dot_dimension_numbers<[1], [0], [0], [1], [0, 0, 1, 1], [], []>} : vector<16x32xf32>, vector<32x8xf32>, vector<16x8xf32> -> vector<16x8xf32>
    %c1_252 = arith.constant 1 : index
    %c1_253 = arith.constant 1 : index
    %c0_254 = arith.constant 0 : index
    %c0_255 = arith.constant 0 : index
    %344 = vector.load %arg4[%c1_252, %c1_253, %c0_254, %c0_255] : memref<2x4x1x8xf32, #tpu.memory_space<vmem>>, vector<1x1x1x8xf32>
    %345 = vector.shape_cast %344 : vector<1x1x1x8xf32> to vector<1x8xf32>
    %346 = vector.broadcast %345 : vector<1x8xf32> to vector<16x8xf32>
    %347 = arith.addf %343, %346 : vector<16x8xf32>
    %348 = vector.shape_cast %347 : vector<16x8xf32> to vector<2x8x8xf32>
    %c1_256 = arith.constant 1 : index
    %c1_257 = arith.constant 1 : index
    %c0_258 = arith.constant 0 : index
    %c0_259 = arith.constant 0 : index
    %349 = vector.load %arg5[%c1_256, %c1_257, %c0_258, %c0_259] : memref<2x4x32x8xf32, #tpu.memory_space<vmem>>, vector<1x1x32x8xf32>
    %350 = vector.shape_cast %349 : vector<1x1x32x8xf32> to vector<32x8xf32>
    %cst_260 = arith.constant dense<0.000000e+00> : vector<16x8xf32>
    %351 = tpu.matmul %290, %350, %cst_260 {dimension_numbers = #tpu.dot_dimension_numbers<[1], [0], [0], [1], [0, 0, 1, 1], [], []>} : vector<16x32xf32>, vector<32x8xf32>, vector<16x8xf32> -> vector<16x8xf32>
    %c1_261 = arith.constant 1 : index
    %c1_262 = arith.constant 1 : index
    %c0_263 = arith.constant 0 : index
    %c0_264 = arith.constant 0 : index
    %352 = vector.load %arg6[%c1_261, %c1_262, %c0_263, %c0_264] : memref<2x4x1x8xf32, #tpu.memory_space<vmem>>, vector<1x1x1x8xf32>
    %353 = vector.shape_cast %352 : vector<1x1x1x8xf32> to vector<1x8xf32>
    %354 = vector.broadcast %353 : vector<1x8xf32> to vector<16x8xf32>
    %355 = arith.addf %351, %354 : vector<16x8xf32>
    %356 = vector.shape_cast %355 : vector<16x8xf32> to vector<2x8x8xf32>
    %c1_265 = arith.constant 1 : index
    %c1_266 = arith.constant 1 : index
    %c0_267 = arith.constant 0 : index
    %c0_268 = arith.constant 0 : index
    %357 = vector.load %arg7[%c1_265, %c1_266, %c0_267, %c0_268] : memref<2x4x32x8xf32, #tpu.memory_space<vmem>>, vector<1x1x32x8xf32>
    %358 = vector.shape_cast %357 : vector<1x1x32x8xf32> to vector<32x8xf32>
    %cst_269 = arith.constant dense<0.000000e+00> : vector<16x8xf32>
    %359 = tpu.matmul %290, %358, %cst_269 {dimension_numbers = #tpu.dot_dimension_numbers<[1], [0], [0], [1], [0, 0, 1, 1], [], []>} : vector<16x32xf32>, vector<32x8xf32>, vector<16x8xf32> -> vector<16x8xf32>
    %c1_270 = arith.constant 1 : index
    %c1_271 = arith.constant 1 : index
    %c0_272 = arith.constant 0 : index
    %c0_273 = arith.constant 0 : index
    %360 = vector.load %arg8[%c1_270, %c1_271, %c0_272, %c0_273] : memref<2x4x1x8xf32, #tpu.memory_space<vmem>>, vector<1x1x1x8xf32>
    %361 = vector.shape_cast %360 : vector<1x1x1x8xf32> to vector<1x8xf32>
    %362 = vector.broadcast %361 : vector<1x8xf32> to vector<16x8xf32>
    %363 = arith.addf %359, %362 : vector<16x8xf32>
    %364 = vector.shape_cast %363 : vector<16x8xf32> to vector<2x8x8xf32>
    "tpu.trace_start"() <{level = 10 : i32, message = "btd,bsd->bts"}> : () -> ()
    %cst_274 = arith.constant dense<0.000000e+00> : vector<2x8x8xf32>
    %365 = tpu.matmul %348, %356, %cst_274 {dimension_numbers = #tpu.dot_dimension_numbers<[2], [2], [1], [1], [0, 0, 0, 1, 1, 1], [0], [0]>} : vector<2x8x8xf32>, vector<2x8x8xf32>, vector<2x8x8xf32> -> vector<2x8x8xf32>
    "tpu.trace_stop"() : () -> ()
    %366 = vector.broadcast %1 : f32 to vector<2x8x8xf32>
    %367 = arith.mulf %365, %366 : vector<2x8x8xf32>
    %cst_275 = arith.constant dense<0xFF800000> : vector<2x8xf32>
    %368 = vector.multi_reduction <maximumf>, %367, %cst_275 [2] : vector<2x8x8xf32> to vector<2x8xf32>
    %369 = vector.shape_cast %368 : vector<2x8xf32> to vector<2x8x1xf32>
    %370 = vector.broadcast %369 : vector<2x8x1xf32> to vector<2x8x8xf32>
    %371 = arith.subf %367, %370 : vector<2x8x8xf32>
    %372 = math.exp %371 : vector<2x8x8xf32>
    %cst_276 = arith.constant dense<0.000000e+00> : vector<2x8xf32>
    %373 = vector.multi_reduction <add>, %372, %cst_276 [2] : vector<2x8x8xf32> to vector<2x8xf32>
    %374 = vector.shape_cast %373 : vector<2x8xf32> to vector<2x8x1xf32>
    %375 = tpu.reciprocal %374 {approx = true} : vector<2x8x1xf32> -> vector<2x8x1xf32>
    %376 = vector.broadcast %375 : vector<2x8x1xf32> to vector<2x8x8xf32>
    %377 = arith.mulf %372, %376 : vector<2x8x8xf32>
    %cst_277 = arith.constant dense<0.000000e+00> : vector<8x8xf32>
    %378 = vector.multi_reduction <add>, %377, %cst_277 [0] : vector<2x8x8xf32> to vector<8x8xf32>
    %cst_278 = arith.constant 2.000000e+00 : f32
    %379 = vector.broadcast %cst_278 : f32 to vector<8x8xf32>
    %380 = arith.divf %378, %379 : vector<8x8xf32>
    "tpu.trace_start"() <{level = 10 : i32, message = "bts,bsd->btd"}> : () -> ()
    %cst_279 = arith.constant dense<0.000000e+00> : vector<2x8x8xf32>
    %381 = tpu.matmul %377, %364, %cst_279 {dimension_numbers = #tpu.dot_dimension_numbers<[2], [1], [1], [2], [0, 0, 0, 1, 1, 2], [0], [0]>} : vector<2x8x8xf32>, vector<2x8x8xf32>, vector<2x8x8xf32> -> vector<2x8x8xf32>
    "tpu.trace_stop"() : () -> ()
    %382 = vector.shape_cast %381 : vector<2x8x8xf32> to vector<16x8xf32>
    %c1_280 = arith.constant 1 : index
    %c1_281 = arith.constant 1 : index
    %c0_282 = arith.constant 0 : index
    %c0_283 = arith.constant 0 : index
    %383 = vector.load %arg9[%c1_280, %c1_281, %c0_282, %c0_283] : memref<2x4x8x32xf32, #tpu.memory_space<vmem>>, vector<1x1x8x32xf32>
    %384 = vector.shape_cast %383 : vector<1x1x8x32xf32> to vector<8x32xf32>
    %cst_284 = arith.constant dense<0.000000e+00> : vector<16x32xf32>
    %385 = tpu.matmul %382, %384, %cst_284 {dimension_numbers = #tpu.dot_dimension_numbers<[1], [0], [0], [1], [0, 0, 1, 1], [], []>} : vector<16x8xf32>, vector<8x32xf32>, vector<16x32xf32> -> vector<16x32xf32>
    %386 = arith.addf %340, %385 : vector<16x32xf32>
    %c1_285 = arith.constant 1 : index
    %c2_286 = arith.constant 2 : index
    %c0_287 = arith.constant 0 : index
    %c0_288 = arith.constant 0 : index
    %387 = vector.load %arg3[%c1_285, %c2_286, %c0_287, %c0_288] : memref<2x4x32x8xf32, #tpu.memory_space<vmem>>, vector<1x1x32x8xf32>
    %388 = vector.shape_cast %387 : vector<1x1x32x8xf32> to vector<32x8xf32>
    %cst_289 = arith.constant dense<0.000000e+00> : vector<16x8xf32>
    %389 = tpu.matmul %290, %388, %cst_289 {dimension_numbers = #tpu.dot_dimension_numbers<[1], [0], [0], [1], [0, 0, 1, 1], [], []>} : vector<16x32xf32>, vector<32x8xf32>, vector<16x8xf32> -> vector<16x8xf32>
    %c1_290 = arith.constant 1 : index
    %c2_291 = arith.constant 2 : index
    %c0_292 = arith.constant 0 : index
    %c0_293 = arith.constant 0 : index
    %390 = vector.load %arg4[%c1_290, %c2_291, %c0_292, %c0_293] : memref<2x4x1x8xf32, #tpu.memory_space<vmem>>, vector<1x1x1x8xf32>
    %391 = vector.shape_cast %390 : vector<1x1x1x8xf32> to vector<1x8xf32>
    %392 = vector.broadcast %391 : vector<1x8xf32> to vector<16x8xf32>
    %393 = arith.addf %389, %392 : vector<16x8xf32>
    %394 = vector.shape_cast %393 : vector<16x8xf32> to vector<2x8x8xf32>
    %c1_294 = arith.constant 1 : index
    %c2_295 = arith.constant 2 : index
    %c0_296 = arith.constant 0 : index
    %c0_297 = arith.constant 0 : index
    %395 = vector.load %arg5[%c1_294, %c2_295, %c0_296, %c0_297] : memref<2x4x32x8xf32, #tpu.memory_space<vmem>>, vector<1x1x32x8xf32>
    %396 = vector.shape_cast %395 : vector<1x1x32x8xf32> to vector<32x8xf32>
    %cst_298 = arith.constant dense<0.000000e+00> : vector<16x8xf32>
    %397 = tpu.matmul %290, %396, %cst_298 {dimension_numbers = #tpu.dot_dimension_numbers<[1], [0], [0], [1], [0, 0, 1, 1], [], []>} : vector<16x32xf32>, vector<32x8xf32>, vector<16x8xf32> -> vector<16x8xf32>
    %c1_299 = arith.constant 1 : index
    %c2_300 = arith.constant 2 : index
    %c0_301 = arith.constant 0 : index
    %c0_302 = arith.constant 0 : index
    %398 = vector.load %arg6[%c1_299, %c2_300, %c0_301, %c0_302] : memref<2x4x1x8xf32, #tpu.memory_space<vmem>>, vector<1x1x1x8xf32>
    %399 = vector.shape_cast %398 : vector<1x1x1x8xf32> to vector<1x8xf32>
    %400 = vector.broadcast %399 : vector<1x8xf32> to vector<16x8xf32>
    %401 = arith.addf %397, %400 : vector<16x8xf32>
    %402 = vector.shape_cast %401 : vector<16x8xf32> to vector<2x8x8xf32>
    %c1_303 = arith.constant 1 : index
    %c2_304 = arith.constant 2 : index
    %c0_305 = arith.constant 0 : index
    %c0_306 = arith.constant 0 : index
    %403 = vector.load %arg7[%c1_303, %c2_304, %c0_305, %c0_306] : memref<2x4x32x8xf32, #tpu.memory_space<vmem>>, vector<1x1x32x8xf32>
    %404 = vector.shape_cast %403 : vector<1x1x32x8xf32> to vector<32x8xf32>
    %cst_307 = arith.constant dense<0.000000e+00> : vector<16x8xf32>
    %405 = tpu.matmul %290, %404, %cst_307 {dimension_numbers = #tpu.dot_dimension_numbers<[1], [0], [0], [1], [0, 0, 1, 1], [], []>} : vector<16x32xf32>, vector<32x8xf32>, vector<16x8xf32> -> vector<16x8xf32>
    %c1_308 = arith.constant 1 : index
    %c2_309 = arith.constant 2 : index
    %c0_310 = arith.constant 0 : index
    %c0_311 = arith.constant 0 : index
    %406 = vector.load %arg8[%c1_308, %c2_309, %c0_310, %c0_311] : memref<2x4x1x8xf32, #tpu.memory_space<vmem>>, vector<1x1x1x8xf32>
    %407 = vector.shape_cast %406 : vector<1x1x1x8xf32> to vector<1x8xf32>
    %408 = vector.broadcast %407 : vector<1x8xf32> to vector<16x8xf32>
    %409 = arith.addf %405, %408 : vector<16x8xf32>
    %410 = vector.shape_cast %409 : vector<16x8xf32> to vector<2x8x8xf32>
    "tpu.trace_start"() <{level = 10 : i32, message = "btd,bsd->bts"}> : () -> ()
    %cst_312 = arith.constant dense<0.000000e+00> : vector<2x8x8xf32>
    %411 = tpu.matmul %394, %402, %cst_312 {dimension_numbers = #tpu.dot_dimension_numbers<[2], [2], [1], [1], [0, 0, 0, 1, 1, 1], [0], [0]>} : vector<2x8x8xf32>, vector<2x8x8xf32>, vector<2x8x8xf32> -> vector<2x8x8xf32>
    "tpu.trace_stop"() : () -> ()
    %412 = vector.broadcast %1 : f32 to vector<2x8x8xf32>
    %413 = arith.mulf %411, %412 : vector<2x8x8xf32>
    %cst_313 = arith.constant dense<0xFF800000> : vector<2x8xf32>
    %414 = vector.multi_reduction <maximumf>, %413, %cst_313 [2] : vector<2x8x8xf32> to vector<2x8xf32>
    %415 = vector.shape_cast %414 : vector<2x8xf32> to vector<2x8x1xf32>
    %416 = vector.broadcast %415 : vector<2x8x1xf32> to vector<2x8x8xf32>
    %417 = arith.subf %413, %416 : vector<2x8x8xf32>
    %418 = math.exp %417 : vector<2x8x8xf32>
    %cst_314 = arith.constant dense<0.000000e+00> : vector<2x8xf32>
    %419 = vector.multi_reduction <add>, %418, %cst_314 [2] : vector<2x8x8xf32> to vector<2x8xf32>
    %420 = vector.shape_cast %419 : vector<2x8xf32> to vector<2x8x1xf32>
    %421 = tpu.reciprocal %420 {approx = true} : vector<2x8x1xf32> -> vector<2x8x1xf32>
    %422 = vector.broadcast %421 : vector<2x8x1xf32> to vector<2x8x8xf32>
    %423 = arith.mulf %418, %422 : vector<2x8x8xf32>
    %cst_315 = arith.constant dense<0.000000e+00> : vector<8x8xf32>
    %424 = vector.multi_reduction <add>, %423, %cst_315 [0] : vector<2x8x8xf32> to vector<8x8xf32>
    %cst_316 = arith.constant 2.000000e+00 : f32
    %425 = vector.broadcast %cst_316 : f32 to vector<8x8xf32>
    %426 = arith.divf %424, %425 : vector<8x8xf32>
    "tpu.trace_start"() <{level = 10 : i32, message = "bts,bsd->btd"}> : () -> ()
    %cst_317 = arith.constant dense<0.000000e+00> : vector<2x8x8xf32>
    %427 = tpu.matmul %423, %410, %cst_317 {dimension_numbers = #tpu.dot_dimension_numbers<[2], [1], [1], [2], [0, 0, 0, 1, 1, 2], [0], [0]>} : vector<2x8x8xf32>, vector<2x8x8xf32>, vector<2x8x8xf32> -> vector<2x8x8xf32>
    "tpu.trace_stop"() : () -> ()
    %428 = vector.shape_cast %427 : vector<2x8x8xf32> to vector<16x8xf32>
    %c1_318 = arith.constant 1 : index
    %c2_319 = arith.constant 2 : index
    %c0_320 = arith.constant 0 : index
    %c0_321 = arith.constant 0 : index
    %429 = vector.load %arg9[%c1_318, %c2_319, %c0_320, %c0_321] : memref<2x4x8x32xf32, #tpu.memory_space<vmem>>, vector<1x1x8x32xf32>
    %430 = vector.shape_cast %429 : vector<1x1x8x32xf32> to vector<8x32xf32>
    %cst_322 = arith.constant dense<0.000000e+00> : vector<16x32xf32>
    %431 = tpu.matmul %428, %430, %cst_322 {dimension_numbers = #tpu.dot_dimension_numbers<[1], [0], [0], [1], [0, 0, 1, 1], [], []>} : vector<16x8xf32>, vector<8x32xf32>, vector<16x32xf32> -> vector<16x32xf32>
    %432 = arith.addf %386, %431 : vector<16x32xf32>
    %c1_323 = arith.constant 1 : index
    %c3_324 = arith.constant 3 : index
    %c0_325 = arith.constant 0 : index
    %c0_326 = arith.constant 0 : index
    %433 = vector.load %arg3[%c1_323, %c3_324, %c0_325, %c0_326] : memref<2x4x32x8xf32, #tpu.memory_space<vmem>>, vector<1x1x32x8xf32>
    %434 = vector.shape_cast %433 : vector<1x1x32x8xf32> to vector<32x8xf32>
    %cst_327 = arith.constant dense<0.000000e+00> : vector<16x8xf32>
    %435 = tpu.matmul %290, %434, %cst_327 {dimension_numbers = #tpu.dot_dimension_numbers<[1], [0], [0], [1], [0, 0, 1, 1], [], []>} : vector<16x32xf32>, vector<32x8xf32>, vector<16x8xf32> -> vector<16x8xf32>
    %c1_328 = arith.constant 1 : index
    %c3_329 = arith.constant 3 : index
    %c0_330 = arith.constant 0 : index
    %c0_331 = arith.constant 0 : index
    %436 = vector.load %arg4[%c1_328, %c3_329, %c0_330, %c0_331] : memref<2x4x1x8xf32, #tpu.memory_space<vmem>>, vector<1x1x1x8xf32>
    %437 = vector.shape_cast %436 : vector<1x1x1x8xf32> to vector<1x8xf32>
    %438 = vector.broadcast %437 : vector<1x8xf32> to vector<16x8xf32>
    %439 = arith.addf %435, %438 : vector<16x8xf32>
    %440 = vector.shape_cast %439 : vector<16x8xf32> to vector<2x8x8xf32>
    %c1_332 = arith.constant 1 : index
    %c3_333 = arith.constant 3 : index
    %c0_334 = arith.constant 0 : index
    %c0_335 = arith.constant 0 : index
    %441 = vector.load %arg5[%c1_332, %c3_333, %c0_334, %c0_335] : memref<2x4x32x8xf32, #tpu.memory_space<vmem>>, vector<1x1x32x8xf32>
    %442 = vector.shape_cast %441 : vector<1x1x32x8xf32> to vector<32x8xf32>
    %cst_336 = arith.constant dense<0.000000e+00> : vector<16x8xf32>
    %443 = tpu.matmul %290, %442, %cst_336 {dimension_numbers = #tpu.dot_dimension_numbers<[1], [0], [0], [1], [0, 0, 1, 1], [], []>} : vector<16x32xf32>, vector<32x8xf32>, vector<16x8xf32> -> vector<16x8xf32>
    %c1_337 = arith.constant 1 : index
    %c3_338 = arith.constant 3 : index
    %c0_339 = arith.constant 0 : index
    %c0_340 = arith.constant 0 : index
    %444 = vector.load %arg6[%c1_337, %c3_338, %c0_339, %c0_340] : memref<2x4x1x8xf32, #tpu.memory_space<vmem>>, vector<1x1x1x8xf32>
    %445 = vector.shape_cast %444 : vector<1x1x1x8xf32> to vector<1x8xf32>
    %446 = vector.broadcast %445 : vector<1x8xf32> to vector<16x8xf32>
    %447 = arith.addf %443, %446 : vector<16x8xf32>
    %448 = vector.shape_cast %447 : vector<16x8xf32> to vector<2x8x8xf32>
    %c1_341 = arith.constant 1 : index
    %c3_342 = arith.constant 3 : index
    %c0_343 = arith.constant 0 : index
    %c0_344 = arith.constant 0 : index
    %449 = vector.load %arg7[%c1_341, %c3_342, %c0_343, %c0_344] : memref<2x4x32x8xf32, #tpu.memory_space<vmem>>, vector<1x1x32x8xf32>
    %450 = vector.shape_cast %449 : vector<1x1x32x8xf32> to vector<32x8xf32>
    %cst_345 = arith.constant dense<0.000000e+00> : vector<16x8xf32>
    %451 = tpu.matmul %290, %450, %cst_345 {dimension_numbers = #tpu.dot_dimension_numbers<[1], [0], [0], [1], [0, 0, 1, 1], [], []>} : vector<16x32xf32>, vector<32x8xf32>, vector<16x8xf32> -> vector<16x8xf32>
    %c1_346 = arith.constant 1 : index
    %c3_347 = arith.constant 3 : index
    %c0_348 = arith.constant 0 : index
    %c0_349 = arith.constant 0 : index
    %452 = vector.load %arg8[%c1_346, %c3_347, %c0_348, %c0_349] : memref<2x4x1x8xf32, #tpu.memory_space<vmem>>, vector<1x1x1x8xf32>
    %453 = vector.shape_cast %452 : vector<1x1x1x8xf32> to vector<1x8xf32>
    %454 = vector.broadcast %453 : vector<1x8xf32> to vector<16x8xf32>
    %455 = arith.addf %451, %454 : vector<16x8xf32>
    %456 = vector.shape_cast %455 : vector<16x8xf32> to vector<2x8x8xf32>
    "tpu.trace_start"() <{level = 10 : i32, message = "btd,bsd->bts"}> : () -> ()
    %cst_350 = arith.constant dense<0.000000e+00> : vector<2x8x8xf32>
    %457 = tpu.matmul %440, %448, %cst_350 {dimension_numbers = #tpu.dot_dimension_numbers<[2], [2], [1], [1], [0, 0, 0, 1, 1, 1], [0], [0]>} : vector<2x8x8xf32>, vector<2x8x8xf32>, vector<2x8x8xf32> -> vector<2x8x8xf32>
    "tpu.trace_stop"() : () -> ()
    %458 = vector.broadcast %1 : f32 to vector<2x8x8xf32>
    %459 = arith.mulf %457, %458 : vector<2x8x8xf32>
    %cst_351 = arith.constant dense<0xFF800000> : vector<2x8xf32>
    %460 = vector.multi_reduction <maximumf>, %459, %cst_351 [2] : vector<2x8x8xf32> to vector<2x8xf32>
    %461 = vector.shape_cast %460 : vector<2x8xf32> to vector<2x8x1xf32>
    %462 = vector.broadcast %461 : vector<2x8x1xf32> to vector<2x8x8xf32>
    %463 = arith.subf %459, %462 : vector<2x8x8xf32>
    %464 = math.exp %463 : vector<2x8x8xf32>
    %cst_352 = arith.constant dense<0.000000e+00> : vector<2x8xf32>
    %465 = vector.multi_reduction <add>, %464, %cst_352 [2] : vector<2x8x8xf32> to vector<2x8xf32>
    %466 = vector.shape_cast %465 : vector<2x8xf32> to vector<2x8x1xf32>
    %467 = tpu.reciprocal %466 {approx = true} : vector<2x8x1xf32> -> vector<2x8x1xf32>
    %468 = vector.broadcast %467 : vector<2x8x1xf32> to vector<2x8x8xf32>
    %469 = arith.mulf %464, %468 : vector<2x8x8xf32>
    %cst_353 = arith.constant dense<0.000000e+00> : vector<8x8xf32>
    %470 = vector.multi_reduction <add>, %469, %cst_353 [0] : vector<2x8x8xf32> to vector<8x8xf32>
    %cst_354 = arith.constant 2.000000e+00 : f32
    %471 = vector.broadcast %cst_354 : f32 to vector<8x8xf32>
    %472 = arith.divf %470, %471 : vector<8x8xf32>
    "tpu.trace_start"() <{level = 10 : i32, message = "bts,bsd->btd"}> : () -> ()
    %cst_355 = arith.constant dense<0.000000e+00> : vector<2x8x8xf32>
    %473 = tpu.matmul %469, %456, %cst_355 {dimension_numbers = #tpu.dot_dimension_numbers<[2], [1], [1], [2], [0, 0, 0, 1, 1, 2], [0], [0]>} : vector<2x8x8xf32>, vector<2x8x8xf32>, vector<2x8x8xf32> -> vector<2x8x8xf32>
    "tpu.trace_stop"() : () -> ()
    %474 = vector.shape_cast %473 : vector<2x8x8xf32> to vector<16x8xf32>
    %c1_356 = arith.constant 1 : index
    %c3_357 = arith.constant 3 : index
    %c0_358 = arith.constant 0 : index
    %c0_359 = arith.constant 0 : index
    %475 = vector.load %arg9[%c1_356, %c3_357, %c0_358, %c0_359] : memref<2x4x8x32xf32, #tpu.memory_space<vmem>>, vector<1x1x8x32xf32>
    %476 = vector.shape_cast %475 : vector<1x1x8x32xf32> to vector<8x32xf32>
    %cst_360 = arith.constant dense<0.000000e+00> : vector<16x32xf32>
    %477 = tpu.matmul %474, %476, %cst_360 {dimension_numbers = #tpu.dot_dimension_numbers<[1], [0], [0], [1], [0, 0, 1, 1], [], []>} : vector<16x8xf32>, vector<8x32xf32>, vector<16x32xf32> -> vector<16x32xf32>
    %478 = arith.addf %432, %477 : vector<16x32xf32>
    %cst_361 = arith.constant 0.000000e+00 : f32
    %479 = vector.broadcast %cst_361 : f32 to vector<8x96xf32>
    %480 = tpu.concatenate %334, %380, %426, %472, %479 in 1 : vector<8x8xf32>, vector<8x8xf32>, vector<8x8xf32>, vector<8x8xf32>, vector<8x96xf32> -> vector<8x128xf32>
    %c1_362 = arith.constant 1 : index
    %c0_363 = arith.constant 0 : index
    %c0_364 = arith.constant 0 : index
    %481 = vector.load %arg24[%c1_362, %c0_363, %c0_364] : memref<2x8x128xf32, #tpu.memory_space<vmem>>, vector<1x8x128xf32>
    %482 = vector.shape_cast %481 : vector<1x8x128xf32> to vector<8x128xf32>
    %483 = vector.shape_cast %480 : vector<8x128xf32> to vector<1x8x128xf32>
    tpu.vector_store %arg24[%c1_362, %c0_363, %c0_364], %483 {strides = array<i32>} : memref<2x8x128xf32, #tpu.memory_space<vmem>>, vector<1x8x128xf32>,
    %c1_365 = arith.constant 1 : index
    %c0_366 = arith.constant 0 : index
    %c0_367 = arith.constant 0 : index
    %484 = vector.load %arg11[%c1_365, %c0_366, %c0_367] : memref<2x1x32xf32, #tpu.memory_space<vmem>>, vector<1x1x32xf32>
    %485 = vector.shape_cast %484 : vector<1x1x32xf32> to vector<1x32xf32>
    %c1_368 = arith.constant 1 : index
    %c0_369 = arith.constant 0 : index
    %c0_370 = arith.constant 0 : index
    %486 = vector.load %arg12[%c1_368, %c0_369, %c0_370] : memref<2x1x32xf32, #tpu.memory_space<vmem>>, vector<1x1x32xf32>
    %487 = vector.shape_cast %486 : vector<1x1x32xf32> to vector<1x32xf32>
    %cst_371 = arith.constant dense<0.000000e+00> : vector<16xf32>
    %488 = vector.multi_reduction <add>, %478, %cst_371 [1] : vector<16x32xf32> to vector<16xf32>
    %489 = vector.shape_cast %488 : vector<16xf32> to vector<16x1xf32>
    %cst_372 = arith.constant 3.200000e+01 : f32
    %490 = vector.broadcast %cst_372 : f32 to vector<16x1xf32>
    %491 = arith.divf %489, %490 : vector<16x1xf32>
    %492 = vector.broadcast %491 : vector<16x1xf32> to vector<16x32xf32>
    %493 = arith.subf %478, %492 : vector<16x32xf32>
    %494 = arith.mulf %493, %493 : vector<16x32xf32>
    %cst_373 = arith.constant dense<0.000000e+00> : vector<16xf32>
    %495 = vector.multi_reduction <add>, %494, %cst_373 [1] : vector<16x32xf32> to vector<16xf32>
    %496 = vector.shape_cast %495 : vector<16xf32> to vector<16x1xf32>
    %cst_374 = arith.constant 3.200000e+01 : f32
    %497 = vector.broadcast %cst_374 : f32 to vector<16x1xf32>
    %498 = arith.divf %496, %497 : vector<16x1xf32>
    %499 = vector.broadcast %491 : vector<16x1xf32> to vector<16x32xf32>
    %500 = arith.subf %478, %499 : vector<16x32xf32>
    %cst_375 = arith.constant 9.99999974E-6 : f32
    %501 = vector.broadcast %cst_375 : f32 to vector<16x1xf32>
    %502 = arith.addf %498, %501 : vector<16x1xf32>
    %503 = math.rsqrt %502 : vector<16x1xf32>
    %504 = vector.broadcast %503 : vector<16x1xf32> to vector<16x32xf32>
    %505 = arith.mulf %500, %504 : vector<16x32xf32>
    %506 = vector.broadcast %485 : vector<1x32xf32> to vector<16x32xf32>
    %507 = arith.mulf %505, %506 : vector<16x32xf32>
    %508 = vector.broadcast %487 : vector<1x32xf32> to vector<16x32xf32>
    %509 = arith.addf %507, %508 : vector<16x32xf32>
    %c1_376 = arith.constant 1 : index
    %c0_377 = arith.constant 0 : index
    %c0_378 = arith.constant 0 : index
    %510 = vector.load %arg13[%c1_376, %c0_377, %c0_378] : memref<2x32x128xf32, #tpu.memory_space<vmem>>, vector<1x32x128xf32>
    %511 = vector.shape_cast %510 : vector<1x32x128xf32> to vector<32x128xf32>
    %cst_379 = arith.constant dense<0.000000e+00> : vector<16x128xf32>
    %512 = tpu.matmul %509, %511, %cst_379 {dimension_numbers = #tpu.dot_dimension_numbers<[1], [0], [0], [1], [0, 0, 1, 1], [], []>} : vector<16x32xf32>, vector<32x128xf32>, vector<16x128xf32> -> vector<16x128xf32>
    %c1_380 = arith.constant 1 : index
    %c0_381 = arith.constant 0 : index
    %c0_382 = arith.constant 0 : index
    %513 = vector.load %arg14[%c1_380, %c0_381, %c0_382] : memref<2x1x128xf32, #tpu.memory_space<vmem>>, vector<1x1x128xf32>
    %514 = vector.shape_cast %513 : vector<1x1x128xf32> to vector<1x128xf32>
    %515 = vector.broadcast %514 : vector<1x128xf32> to vector<16x128xf32>
    %516 = arith.addf %512, %515 : vector<16x128xf32>
    %cst_383 = arith.constant 0.000000e+00 : f32
    %517 = vector.broadcast %cst_383 : f32 to vector<16x128xf32>
    %518 = arith.maximumf %516, %517 : vector<16x128xf32>
    %c1_384 = arith.constant 1 : index
    %c0_385 = arith.constant 0 : index
    %c0_386 = arith.constant 0 : index
    %519 = vector.load %arg15[%c1_384, %c0_385, %c0_386] : memref<2x128x32xf32, #tpu.memory_space<vmem>>, vector<1x128x32xf32>
    %520 = vector.shape_cast %519 : vector<1x128x32xf32> to vector<128x32xf32>
    %cst_387 = arith.constant dense<0.000000e+00> : vector<16x32xf32>
    %521 = tpu.matmul %518, %520, %cst_387 {dimension_numbers = #tpu.dot_dimension_numbers<[1], [0], [0], [1], [0, 0, 1, 1], [], []>} : vector<16x128xf32>, vector<128x32xf32>, vector<16x32xf32> -> vector<16x32xf32>
    %c1_388 = arith.constant 1 : index
    %c0_389 = arith.constant 0 : index
    %c0_390 = arith.constant 0 : index
    %522 = vector.load %arg16[%c1_388, %c0_389, %c0_390] : memref<2x1x32xf32, #tpu.memory_space<vmem>>, vector<1x1x32xf32>
    %523 = vector.shape_cast %522 : vector<1x1x32xf32> to vector<1x32xf32>
    %524 = vector.broadcast %523 : vector<1x32xf32> to vector<16x32xf32>
    %525 = arith.addf %521, %524 : vector<16x32xf32>
    %526 = arith.addf %478, %525 : vector<16x32xf32>
    %c0_391 = arith.constant 0 : index
    %c0_392 = arith.constant 0 : index
    %527 = vector.load %arg17[%c0_391, %c0_392] : memref<1x32xf32, #tpu.memory_space<vmem>>, vector<1x32xf32>
    %c0_393 = arith.constant 0 : index
    %c0_394 = arith.constant 0 : index
    %528 = vector.load %arg18[%c0_393, %c0_394] : memref<1x32xf32, #tpu.memory_space<vmem>>, vector<1x32xf32>
    %cst_395 = arith.constant dense<0.000000e+00> : vector<16xf32>
    %529 = vector.multi_reduction <add>, %526, %cst_395 [1] : vector<16x32xf32> to vector<16xf32>
    %530 = vector.shape_cast %529 : vector<16xf32> to vector<16x1xf32>
    %cst_396 = arith.constant 3.200000e+01 : f32
    %531 = vector.broadcast %cst_396 : f32 to vector<16x1xf32>
    %532 = arith.divf %530, %531 : vector<16x1xf32>
    %533 = vector.broadcast %532 : vector<16x1xf32> to vector<16x32xf32>
    %534 = arith.subf %526, %533 : vector<16x32xf32>
    %535 = arith.mulf %534, %534 : vector<16x32xf32>
    %cst_397 = arith.constant dense<0.000000e+00> : vector<16xf32>
    %536 = vector.multi_reduction <add>, %535, %cst_397 [1] : vector<16x32xf32> to vector<16xf32>
    %537 = vector.shape_cast %536 : vector<16xf32> to vector<16x1xf32>
    %cst_398 = arith.constant 3.200000e+01 : f32
    %538 = vector.broadcast %cst_398 : f32 to vector<16x1xf32>
    %539 = arith.divf %537, %538 : vector<16x1xf32>
    %540 = vector.broadcast %532 : vector<16x1xf32> to vector<16x32xf32>
    %541 = arith.subf %526, %540 : vector<16x32xf32>
    %cst_399 = arith.constant 9.99999974E-6 : f32
    %542 = vector.broadcast %cst_399 : f32 to vector<16x1xf32>
    %543 = arith.addf %539, %542 : vector<16x1xf32>
    %544 = math.rsqrt %543 : vector<16x1xf32>
    %545 = vector.broadcast %544 : vector<16x1xf32> to vector<16x32xf32>
    %546 = arith.mulf %541, %545 : vector<16x32xf32>
    %547 = vector.broadcast %527 : vector<1x32xf32> to vector<16x32xf32>
    %548 = arith.mulf %546, %547 : vector<16x32xf32>
    %549 = vector.broadcast %528 : vector<1x32xf32> to vector<16x32xf32>
    %550 = arith.addf %548, %549 : vector<16x32xf32>
    %551 = vector.shape_cast %550 : vector<16x32xf32> to vector<2x8x32xf32>
    %cst_400 = arith.constant dense<0.000000e+00> : vector<2x32xf32>
    %552 = vector.multi_reduction <add>, %551, %cst_400 [1] : vector<2x8x32xf32> to vector<2x32xf32>
    %cst_401 = arith.constant 8.000000e+00 : f32
    %553 = vector.broadcast %cst_401 : f32 to vector<2x32xf32>
    %554 = arith.divf %552, %553 : vector<2x32xf32>
    %c0_402 = arith.constant 0 : index
    %c0_403 = arith.constant 0 : index
    %555 = vector.load %arg19[%c0_402, %c0_403] : memref<32x128xf32, #tpu.memory_space<vmem>>, vector<32x128xf32>
    %cst_404 = arith.constant dense<0.000000e+00> : vector<2x128xf32>
    %556 = tpu.matmul %554, %555, %cst_404 {dimension_numbers = #tpu.dot_dimension_numbers<[1], [0], [0], [1], [0, 0, 1, 1], [], []>} : vector<2x32xf32>, vector<32x128xf32>, vector<2x128xf32> -> vector<2x128xf32>
    %c0_405 = arith.constant 0 : index
    %c0_406 = arith.constant 0 : index
    %557 = vector.load %arg20[%c0_405, %c0_406] : memref<1x128xf32, #tpu.memory_space<vmem>>, vector<1x128xf32>
    %558 = vector.broadcast %557 : vector<1x128xf32> to vector<2x128xf32>
    %559 = arith.addf %556, %558 : vector<2x128xf32>
    %cst_407 = arith.constant 0.000000e+00 : f32
    %560 = vector.broadcast %cst_407 : f32 to vector<2x128xf32>
    %561 = arith.maximumf %559, %560 : vector<2x128xf32>
    %c0_408 = arith.constant 0 : index
    %c0_409 = arith.constant 0 : index
    %562 = vector.load %arg21[%c0_408, %c0_409] : memref<128x128xf32, #tpu.memory_space<vmem>>, vector<128x128xf32>
    %cst_410 = arith.constant dense<0.000000e+00> : vector<2x128xf32>
    %563 = tpu.matmul %561, %562, %cst_410 {dimension_numbers = #tpu.dot_dimension_numbers<[1], [0], [0], [1], [0, 0, 1, 1], [], []>} : vector<2x128xf32>, vector<128x128xf32>, vector<2x128xf32> -> vector<2x128xf32>
    %c0_411 = arith.constant 0 : index
    %c0_412 = arith.constant 0 : index
    %564 = vector.load %arg22[%c0_411, %c0_412] : memref<1x128xf32, #tpu.memory_space<vmem>>, vector<1x128xf32>
    %565 = vector.broadcast %564 : vector<1x128xf32> to vector<2x128xf32>
    %566 = arith.addf %563, %565 : vector<2x128xf32>
    %c0_413 = arith.constant 0 : index
    %c0_414 = arith.constant 0 : index
    %567 = vector.load %arg23[%c0_413, %c0_414] : memref<2x128xf32, #tpu.memory_space<vmem>>, vector<2x128xf32>
    tpu.vector_store %arg23[%c0_413, %c0_414], %566 {strides = array<i32>} : memref<2x128xf32, #tpu.memory_space<vmem>>, vector<2x128xf32>,
    return
  }
}

</mosaic_0001>

<llo_original>
// kernel: _forward.1
$region0: #{_forward.1}
  #allocation0 [shape = 'u32[]', space=smem, size = 0x4, offset = 0x4, fixed_abs, tag = 'smem constant byte address 0x4 - core index']
  #allocation1 [shape = 'u32[144,128]{1,0:T(1,128)}', space=vmem, size = 0x12000, scoped, tag = 'internal scratch']
  %s0 = inlined_call_operand.vmem [shape: f32[16,32], index: 0, kind: input, shape index: {}]
  %s1 = inlined_call_operand.vmem [shape: f32[2,1,32], index: 1, kind: input, shape index: {}]
  %s2 = inlined_call_operand.vmem [shape: f32[2,1,32], index: 2, kind: input, shape index: {}]
  %s3 = inlined_call_operand.vmem [shape: f32[2,4,32,8], index: 3, kind: input, shape index: {}]
  %s4 = inlined_call_operand.vmem [shape: f32[2,4,1,8], index: 4, kind: input, shape index: {}]
  %s5 = inlined_call_operand.vmem [shape: f32[2,4,32,8], index: 5, kind: input, shape index: {}]
  %s6 = inlined_call_operand.vmem [shape: f32[2,4,1,8], index: 6, kind: input, shape index: {}]
  %s7 = inlined_call_operand.vmem [shape: f32[2,4,32,8], index: 7, kind: input, shape index: {}]
  %s8 = inlined_call_operand.vmem [shape: f32[2,4,1,8], index: 8, kind: input, shape index: {}]
  %s9 = inlined_call_operand.vmem [shape: f32[2,4,8,32], index: 9, kind: input, shape index: {}]
  %s10 = inlined_call_operand.vmem [shape: f32[2,1,32], index: 10, kind: input, shape index: {}]
  %s11 = inlined_call_operand.vmem [shape: f32[2,1,32], index: 11, kind: input, shape index: {}]
  %s12 = inlined_call_operand.vmem [shape: f32[2,1,32], index: 12, kind: input, shape index: {}]
  %s13 = inlined_call_operand.vmem [shape: f32[2,32,128], index: 13, kind: input, shape index: {}]
  %s14 = inlined_call_operand.vmem [shape: f32[2,1,128], index: 14, kind: input, shape index: {}]
  %s15 = inlined_call_operand.vmem [shape: f32[2,128,32], index: 15, kind: input, shape index: {}]
  %s16 = inlined_call_operand.vmem [shape: f32[2,1,32], index: 16, kind: input, shape index: {}]
  %s17 = inlined_call_operand.vmem [shape: f32[1,32], index: 17, kind: input, shape index: {}]
  %s18 = inlined_call_operand.vmem [shape: f32[1,32], index: 18, kind: input, shape index: {}]
  %s19 = inlined_call_operand.vmem [shape: f32[32,128], index: 19, kind: input, shape index: {}]
  %s20 = inlined_call_operand.vmem [shape: f32[1,128], index: 20, kind: input, shape index: {}]
  %s21 = inlined_call_operand.vmem [shape: f32[128,128], index: 21, kind: input, shape index: {}]
  %s22 = inlined_call_operand.vmem [shape: f32[1,128], index: 22, kind: input, shape index: {}]
  %s23 = inlined_call_operand.hbm [shape: f32[2,128], index: 23, kind: output, shape index: {0}]
  %s24 = inlined_call_operand.vmem [shape: f32[2,8,128], index: 24, kind: output, shape index: {1}]
  %25 = xla_tuple %s23, %s24
  %s26 = sld [smem:[#allocation0]]
  $region110: #{_forward.1} parent=0
    _
  %s28 = ssub.s32 1, %s26
  %s29 = scalar_select 0, %s28, %s26
  $region1: #{_forward.1} parent=0
    #allocation2 [shape = 'u8[1024]{0}', space=vmem, size = 0x400, scoped, tag = 'output window, operand 0, single buffered']
    #allocation3 [shape = 's32[1]{0}', space=sflag, size = 0x4, scoped, tag = 'scoped memory for _forward.1']
    %30 = vsyncpa [#allocation3], 0
    // Predicated region
    $region2: #{_forward.1} parent=1 // pred_check
      _
    $region3: #{_forward.1} parent=1 // pred_check_branch
      %32 = sbr.rel (0) target = $region5
    $region4: #{_forward.1} parent=1 // pred_region
      _
    $region5: #{_forward.1} parent=1 // pred_fallthru
      _
    // Predicated region
    $region6: #{_forward.1} parent=1 // pred_check
      _
    $region7: #{_forward.1} parent=1 // pred_check_branch
      %34 = sbr.rel (0) target = $region9
    $region8: #{_forward.1} parent=1 // pred_region
      _
    $region9: #{_forward.1} parent=1 // pred_fallthru
      _
    // Predicated region
    $region10: #{_forward.1} parent=1 // pred_check
      _
    $region11: #{_forward.1} parent=1 // pred_check_branch
      %36 = sbr.rel (0) target = $region13
    $region12: #{_forward.1} parent=1 // pred_region
      _
    $region13: #{_forward.1} parent=1 // pred_fallthru
      _
    // Predicated region
    $region14: #{_forward.1} parent=1 // pred_check
      _
    $region15: #{_forward.1} parent=1 // pred_check_branch
      %38 = sbr.rel (0) target = $region17
    $region16: #{_forward.1} parent=1 // pred_region
      _
    $region17: #{_forward.1} parent=1 // pred_fallthru
      _
    // Predicated region
    $region18: #{_forward.1} parent=1 // pred_check
      _
    $region19: #{_forward.1} parent=1 // pred_check_branch
      %40 = sbr.rel (0) target = $region21
    $region20: #{_forward.1} parent=1 // pred_region
      _
    $region21: #{_forward.1} parent=1 // pred_fallthru
      _
    // Predicated region
    $region22: #{_forward.1} parent=1 // pred_check
      _
    $region23: #{_forward.1} parent=1 // pred_check_branch
      %42 = sbr.rel (0) target = $region25
    $region24: #{_forward.1} parent=1 // pred_region
      _
    $region25: #{_forward.1} parent=1 // pred_fallthru
      _
    // Predicated region
    $region26: #{_forward.1} parent=1 // pred_check
      _
    $region27: #{_forward.1} parent=1 // pred_check_branch
      %44 = sbr.rel (0) target = $region29
    $region28: #{_forward.1} parent=1 // pred_region
      _
    $region29: #{_forward.1} parent=1 // pred_fallthru
      _
    // Predicated region
    $region30: #{_forward.1} parent=1 // pred_check
      _
    $region31: #{_forward.1} parent=1 // pred_check_branch
      %46 = sbr.rel (0) target = $region33
    $region32: #{_forward.1} parent=1 // pred_region
      _
    $region33: #{_forward.1} parent=1 // pred_fallthru
      _
    // Predicated region
    $region34: #{_forward.1} parent=1 // pred_check
      _
    $region35: #{_forward.1} parent=1 // pred_check_branch
      %48 = sbr.rel (0) target = $region37
    $region36: #{_forward.1} parent=1 // pred_region
      _
    $region37: #{_forward.1} parent=1 // pred_fallthru
      _
    // Predicated region
    $region38: #{_forward.1} parent=1 // pred_check
      _
    $region39: #{_forward.1} parent=1 // pred_check_branch
      %50 = sbr.rel (0) target = $region41
    $region40: #{_forward.1} parent=1 // pred_region
      _
    $region41: #{_forward.1} parent=1 // pred_fallthru
      _
    // Predicated region
    $region42: #{_forward.1} parent=1 // pred_check
      _
    $region43: #{_forward.1} parent=1 // pred_check_branch
      %52 = sbr.rel (0) target = $region45
    $region44: #{_forward.1} parent=1 // pred_region
      _
    $region45: #{_forward.1} parent=1 // pred_fallthru
      _
    // Predicated region
    $region46: #{_forward.1} parent=1 // pred_check
      _
    $region47: #{_forward.1} parent=1 // pred_check_branch
      %54 = sbr.rel (0) target = $region49
    $region48: #{_forward.1} parent=1 // pred_region
      _
    $region49: #{_forward.1} parent=1 // pred_fallthru
      _
    // Predicated region
    $region50: #{_forward.1} parent=1 // pred_check
      _
    $region51: #{_forward.1} parent=1 // pred_check_branch
      %56 = sbr.rel (0) target = $region53
    $region52: #{_forward.1} parent=1 // pred_region
      _
    $region53: #{_forward.1} parent=1 // pred_fallthru
      _
    // Predicated region
    $region54: #{_forward.1} parent=1 // pred_check
      _
    $region55: #{_forward.1} parent=1 // pred_check_branch
      %58 = sbr.rel (0) target = $region57
    $region56: #{_forward.1} parent=1 // pred_region
      _
    $region57: #{_forward.1} parent=1 // pred_fallthru
      _
    // Predicated region
    $region58: #{_forward.1} parent=1 // pred_check
      _
    $region59: #{_forward.1} parent=1 // pred_check_branch
      %60 = sbr.rel (0) target = $region61
    $region60: #{_forward.1} parent=1 // pred_region
      _
    $region61: #{_forward.1} parent=1 // pred_fallthru
      _
    // Predicated region
    $region62: #{_forward.1} parent=1 // pred_check
      _
    $region63: #{_forward.1} parent=1 // pred_check_branch
      %62 = sbr.rel (0) target = $region65
    $region64: #{_forward.1} parent=1 // pred_region
      _
    $region65: #{_forward.1} parent=1 // pred_fallthru
      _
    // Predicated region
    $region66: #{_forward.1} parent=1 // pred_check
      _
    $region67: #{_forward.1} parent=1 // pred_check_branch
      %64 = sbr.rel (0) target = $region69
    $region68: #{_forward.1} parent=1 // pred_region
      _
    $region69: #{_forward.1} parent=1 // pred_fallthru
      _
    // Predicated region
    $region70: #{_forward.1} parent=1 // pred_check
      _
    $region71: #{_forward.1} parent=1 // pred_check_branch
      %66 = sbr.rel (0) target = $region73
    $region72: #{_forward.1} parent=1 // pred_region
      _
    $region73: #{_forward.1} parent=1 // pred_fallthru
      _
    // Predicated region
    $region74: #{_forward.1} parent=1 // pred_check
      _
    $region75: #{_forward.1} parent=1 // pred_check_branch
      %68 = sbr.rel (0) target = $region77
    $region76: #{_forward.1} parent=1 // pred_region
      _
    $region77: #{_forward.1} parent=1 // pred_fallthru
      _
    // Predicated region
    $region78: #{_forward.1} parent=1 // pred_check
      _
    $region79: #{_forward.1} parent=1 // pred_check_branch
      %70 = sbr.rel (0) target = $region81
    $region80: #{_forward.1} parent=1 // pred_region
      _
    $region81: #{_forward.1} parent=1 // pred_fallthru
      _
    // Predicated region
    $region82: #{_forward.1} parent=1 // pred_check
      _
    $region83: #{_forward.1} parent=1 // pred_check_branch
      %72 = sbr.rel (0) target = $region85
    $region84: #{_forward.1} parent=1 // pred_region
      _
    $region85: #{_forward.1} parent=1 // pred_fallthru
      _
    // Predicated region
    $region86: #{_forward.1} parent=1 // pred_check
      _
    $region87: #{_forward.1} parent=1 // pred_check_branch
      %74 = sbr.rel (0) target = $region89
    $region88: #{_forward.1} parent=1 // pred_region
      _
    $region89: #{_forward.1} parent=1 // pred_fallthru
      _
    // Predicated region
    $region90: #{_forward.1} parent=1 // pred_check
      _
    $region91: #{_forward.1} parent=1 // pred_check_branch
      %76 = sbr.rel (0) target = $region93
    $region92: #{_forward.1} parent=1 // pred_region
      _
    $region93: #{_forward.1} parent=1 // pred_fallthru
      _
    %v77 = vld [vmem:[%s0] sm:$0xff]
    %v78 = vld [vmem:[%s0 + $0x8] sm:$0xff]
    %v79 = vld [vmem:[%s1] sm:$0x1]
    %v80 = vld [vmem:[%s2] sm:$0x1]
    %vm81 = vcmask 261120
    %v82 = vsel %vm81, %v77, 0.0
    %83 = vadd.xlane.f32.xlu0 %v82
    %v84 = vpop.xlane.xlu0 %83
    %v85 = vsel %vm81, %v78, 0.0
    %86 = vadd.xlane.f32.xlu0 %v85
    %v87 = vpop.xlane.xlu0 %86
    %v88 = vrcp.pop 32.0
    %v89 = vmul.f32 %v84, %v88
    %v90 = vmul.f32 %v87, %v88
    %v91 = vsub.f32 %v77, %v89
    %v92 = vsub.f32 %v78, %v90
    %v93 = vmul.f32 %v91, %v91
    %v94 = vmul.f32 %v92, %v92
    %v95 = vsel %vm81, %v93, 0.0
    %96 = vadd.xlane.f32.xlu0 %v95
    %v97 = vpop.xlane.xlu0 %96
    %v98 = vsel %vm81, %v94, 0.0
    %99 = vadd.xlane.f32.xlu0 %v98
    %v100 = vpop.xlane.xlu0 %99
    %v101 = vmul.f32 %v97, %v88
    %v102 = vmul.f32 %v100, %v88
    %v103 = vadd.f32 %v101, 1e-05
    %v104 = vadd.f32 %v102, 1e-05
    %v105 = vrsqrt.pop %v103
    %v106 = vrsqrt.pop %v104
    %v107 = vmul.f32 %v91, %v105
    %v108 = vmul.f32 %v92, %v106
    %v110 = vlaneseq
    %v111 = vshrl.u32 %v110, 7
    %v112 = vsub.s32 0, %v111
    %v113 = vrot.slane %v79, %v112
    %v115 = vmul.f32 %v107, %v113
    %v116 = vmul.f32 %v108, %v113
    %v118 = vlaneseq
    %v119 = vshrl.u32 %v118, 7
    %v120 = vsub.s32 0, %v119
    %v121 = vrot.slane %v80, %v120
    %v123 = vadd.f32 %v115, %v121
    %v124 = vadd.f32 %v116, %v121
    %v125 = vld [vmem:[%s10] sm:$0x1]
    %v127 = vlaneseq
    %v128 = vshrl.u32 %v127, 7
    %v129 = vsub.s32 0, %v128
    %v130 = vrot.slane %v125, %v129
    %v132 = vadd.f32 %v77, %v130
    %v133 = vadd.f32 %v78, %v130
    %v134 = vld [vmem:[%s3] sm:$0xff]
    %v135 = vld [vmem:[%s3 + $0x8] sm:$0xff]
    %v136 = vld [vmem:[%s3 + $0x10] sm:$0xff]
    %v137 = vld [vmem:[%s3 + $0x18] sm:$0xff]
    %v138 = vld [vmem:[%s4] sm:$0x1]
    %v140 = vlaneseq
    %v141 = vshrl.u32 %v140, 7
    %v142 = vsub.s32 0, %v141
    %v143 = vrot.slane %v138, %v142
    %v146 = vsel %vm81, %v123, 0
    %v149 = vsel %vm81, %v124, 0
    %151 = vmatprep.subr.mxu0 0.0
    %152 = vmatpush1.msra.mxu0 %v134
    %153 = vmatprep.subr.mxu0 0.0
    %154 = vmatpush1.msra.mxu0 %v135
    %155 = vmatprep.subr.mxu0 0.0
    %156 = vmatpush1.msra.mxu0 %v136
    %157 = vmatprep.subr.mxu0 0.0
    %158 = vmatpush1.msra.mxu0 %v137
    %159 = vmatprep.subr.mxu0 0.0
    %160 = vmatpush1.msra.mxu0 0.0
    %161 = vmatprep.subr.mxu0 0.0
    %162 = vmatpush1.msra.mxu0 0.0
    %163 = vmatprep.subr.mxu0 0.0
    %164 = vmatpush1.msra.mxu0 0.0
    %165 = vmatprep.subr.mxu0 0.0
    %166 = vmatpush1.msra.mxu0 0.0
    %167 = vmatprep.subr.mxu0 0.0
    %168 = vmatpush1.msra.mxu0 0.0
    %169 = vmatprep.subr.mxu0 0.0
    %170 = vmatpush1.msra.mxu0 0.0
    %171 = vmatprep.subr.mxu0 0.0
    %172 = vmatpush1.msra.mxu0 0.0
    %173 = vmatprep.subr.mxu0 0.0
    %174 = vmatpush1.msra.mxu0 0.0
    %175 = vmatprep.subr.mxu0 0.0
    %176 = vmatpush1.msra.mxu0 0.0
    %177 = vmatprep.subr.mxu0 0.0
    %178 = vmatpush1.msra.mxu0 0.0
    %179 = vmatprep.subr.mxu0 0.0
    %180 = vmatpush1.msra.mxu0 0.0
    %181 = vmatprep.subr.mxu0 0.0
    %182 = vmatpush1.msra.mxu0 0.0
    %183 = vmatprep.subr.mxu0 0.0
    %184 = vmatpush1.msra.mxu0 0.0
    %185 = vmatprep.subr.mxu0 0.0
    %186 = vmatpush1.msra.mxu0 0.0
    %187 = vmatprep.subr.mxu0 0.0
    %188 = vmatpush1.msra.mxu0 0.0
    %189 = vmatprep.subr.mxu0 0.0
    %190 = vmatpush1.msra.mxu0 0.0
    %191 = vmatprep.subr.mxu0 0.0
    %192 = vmatpush1.msra.mxu0 0.0
    %193 = vmatprep.subr.mxu0 0.0
    %194 = vmatpush1.msra.mxu0 0.0
    %195 = vmatprep.subr.mxu0 0.0
    %196 = vmatpush1.msra.mxu0 0.0
    %197 = vmatprep.subr.mxu0 0.0
    %198 = vmatpush1.msra.mxu0 0.0
    %199 = vmatprep.subr.mxu0 0.0
    %200 = vmatpush1.msra.mxu0 0.0
    %201 = vmatprep.subr.mxu0 0.0
    %202 = vmatpush1.msra.mxu0 0.0
    %203 = vmatprep.subr.mxu0 0.0
    %204 = vmatpush1.msra.mxu0 0.0
    %205 = vmatprep.subr.mxu0 0.0
    %206 = vmatpush1.msra.mxu0 0.0
    %207 = vmatprep.subr.mxu0 0.0
    %208 = vmatpush1.msra.mxu0 0.0
    %209 = vmatprep.subr.mxu0 0.0
    %210 = vmatpush1.msra.mxu0 0.0
    %211 = vmatprep.subr.mxu0 0.0
    %212 = vmatpush1.msra.mxu0 0.0
    %213 = vmatprep.subr.mxu0 0.0
    %214 = vmatpush1.msra.mxu0 0.0
    %215 = vmatprep.mubr.f32.mxu0 0.0
    %216 = vmatmul.mubr.f32.gmra.mrb[0].mxu0 %v146
    %v217 = vpop.f32.mrb[0].mxu0
    %v218 = vadd.f32 %v143, %v217
    %v219 = vpop.f32.mrb[0].mxu0
    %220 = vmatprep.mubr.f32.mxu0 0.0
    %221 = vmatmul.mubr.f32.gmra.mrb[0].mxu0 %v149
    %v222 = vpop.f32.mrb[0].mxu0
    %v223 = vadd.f32 %v143, %v222
    %v224 = vpop.f32.mrb[0].mxu0
    %225 = vdwg.mxu0
    %v226 = vld [vmem:[%s5] sm:$0xff]
    %v227 = vld [vmem:[%s5 + $0x8] sm:$0xff]
    %v228 = vld [vmem:[%s5 + $0x10] sm:$0xff]
    %v229 = vld [vmem:[%s5 + $0x18] sm:$0xff]
    %v230 = vld [vmem:[%s6] sm:$0x1]
    %v232 = vlaneseq
    %v233 = vshrl.u32 %v232, 7
    %v234 = vsub.s32 0, %v233
    %v235 = vrot.slane %v230, %v234
    %237 = vmatprep.subr.mxu0 0.0
    %238 = vmatpush1.msra.mxu0 %v226
    %239 = vmatprep.subr.mxu0 0.0
    %240 = vmatpush1.msra.mxu0 %v227
    %241 = vmatprep.subr.mxu0 0.0
    %242 = vmatpush1.msra.mxu0 %v228
    %243 = vmatprep.subr.mxu0 0.0
    %244 = vmatpush1.msra.mxu0 %v229
    %245 = vmatprep.subr.mxu0 0.0
    %246 = vmatpush1.msra.mxu0 0.0
    %247 = vmatprep.subr.mxu0 0.0
    %248 = vmatpush1.msra.mxu0 0.0
    %249 = vmatprep.subr.mxu0 0.0
    %250 = vmatpush1.msra.mxu0 0.0
    %251 = vmatprep.subr.mxu0 0.0
    %252 = vmatpush1.msra.mxu0 0.0
    %253 = vmatprep.subr.mxu0 0.0
    %254 = vmatpush1.msra.mxu0 0.0
    %255 = vmatprep.subr.mxu0 0.0
    %256 = vmatpush1.msra.mxu0 0.0
    %257 = vmatprep.subr.mxu0 0.0
    %258 = vmatpush1.msra.mxu0 0.0
    %259 = vmatprep.subr.mxu0 0.0
    %260 = vmatpush1.msra.mxu0 0.0
    %261 = vmatprep.subr.mxu0 0.0
    %262 = vmatpush1.msra.mxu0 0.0
    %263 = vmatprep.subr.mxu0 0.0
    %264 = vmatpush1.msra.mxu0 0.0
    %265 = vmatprep.subr.mxu0 0.0
    %266 = vmatpush1.msra.mxu0 0.0
    %267 = vmatprep.subr.mxu0 0.0
    %268 = vmatpush1.msra.mxu0 0.0
    %269 = vmatprep.subr.mxu0 0.0
    %270 = vmatpush1.msra.mxu0 0.0
    %271 = vmatprep.subr.mxu0 0.0
    %272 = vmatpush1.msra.mxu0 0.0
    %273 = vmatprep.subr.mxu0 0.0
    %274 = vmatpush1.msra.mxu0 0.0
    %275 = vmatprep.subr.mxu0 0.0
    %276 = vmatpush1.msra.mxu0 0.0
    %277 = vmatprep.subr.mxu0 0.0
    %278 = vmatpush1.msra.mxu0 0.0
    %279 = vmatprep.subr.mxu0 0.0
    %280 = vmatpush1.msra.mxu0 0.0
    %281 = vmatprep.subr.mxu0 0.0
    %282 = vmatpush1.msra.mxu0 0.0
    %283 = vmatprep.subr.mxu0 0.0
    %284 = vmatpush1.msra.mxu0 0.0
    %285 = vmatprep.subr.mxu0 0.0
    %286 = vmatpush1.msra.mxu0 0.0
    %287 = vmatprep.subr.mxu0 0.0
    %288 = vmatpush1.msra.mxu0 0.0
    %289 = vmatprep.subr.mxu0 0.0
    %290 = vmatpush1.msra.mxu0 0.0
    %291 = vmatprep.subr.mxu0 0.0
    %292 = vmatpush1.msra.mxu0 0.0
    %293 = vmatprep.subr.mxu0 0.0
    %294 = vmatpush1.msra.mxu0 0.0
    %295 = vmatprep.subr.mxu0 0.0
    %296 = vmatpush1.msra.mxu0 0.0
    %297 = vmatprep.subr.mxu0 0.0
    %298 = vmatpush1.msra.mxu0 0.0
    %299 = vmatprep.subr.mxu0 0.0
    %300 = vmatpush1.msra.mxu0 0.0
    %301 = vmatprep.mubr.f32.mxu0 0.0
    %302 = vmatmul.mubr.f32.gmra.mrb[0].mxu0 %v146
    %v303 = vpop.f32.mrb[0].mxu0
    %v304 = vadd.f32 %v235, %v303
    %v305 = vpop.f32.mrb[0].mxu0
    %306 = vmatprep.mubr.f32.mxu0 0.0
    %307 = vmatmul.mubr.f32.gmra.mrb[0].mxu0 %v149
    %v308 = vpop.f32.mrb[0].mxu0
    %v309 = vadd.f32 %v235, %v308
    %v310 = vpop.f32.mrb[0].mxu0
    %311 = vdwg.mxu0
    %v312 = vld [vmem:[%s7] sm:$0xff]
    %v313 = vld [vmem:[%s7 + $0x8] sm:$0xff]
    %v314 = vld [vmem:[%s7 + $0x10] sm:$0xff]
    %v315 = vld [vmem:[%s7 + $0x18] sm:$0xff]
    %v316 = vld [vmem:[%s8] sm:$0x1]
    %v318 = vlaneseq
    %v319 = vshrl.u32 %v318, 7
    %v320 = vsub.s32 0, %v319
    %v321 = vrot.slane %v316, %v320
    %323 = vmatprep.subr.mxu0 0.0
    %324 = vmatpush1.msra.mxu0 %v312
    %325 = vmatprep.subr.mxu0 0.0
    %326 = vmatpush1.msra.mxu0 %v313
    %327 = vmatprep.subr.mxu0 0.0
    %328 = vmatpush1.msra.mxu0 %v314
    %329 = vmatprep.subr.mxu0 0.0
    %330 = vmatpush1.msra.mxu0 %v315
    %331 = vmatprep.subr.mxu0 0.0
    %332 = vmatpush1.msra.mxu0 0.0
    %333 = vmatprep.subr.mxu0 0.0
    %334 = vmatpush1.msra.mxu0 0.0
    %335 = vmatprep.subr.mxu0 0.0
    %336 = vmatpush1.msra.mxu0 0.0
    %337 = vmatprep.subr.mxu0 0.0
    %338 = vmatpush1.msra.mxu0 0.0
    %339 = vmatprep.subr.mxu0 0.0
    %340 = vmatpush1.msra.mxu0 0.0
    %341 = vmatprep.subr.mxu0 0.0
    %342 = vmatpush1.msra.mxu0 0.0
    %343 = vmatprep.subr.mxu0 0.0
    %344 = vmatpush1.msra.mxu0 0.0
    %345 = vmatprep.subr.mxu0 0.0
    %346 = vmatpush1.msra.mxu0 0.0
    %347 = vmatprep.subr.mxu0 0.0
    %348 = vmatpush1.msra.mxu0 0.0
    %349 = vmatprep.subr.mxu0 0.0
    %350 = vmatpush1.msra.mxu0 0.0
    %351 = vmatprep.subr.mxu0 0.0
    %352 = vmatpush1.msra.mxu0 0.0
    %353 = vmatprep.subr.mxu0 0.0
    %354 = vmatpush1.msra.mxu0 0.0
    %355 = vmatprep.subr.mxu0 0.0
    %356 = vmatpush1.msra.mxu0 0.0
    %357 = vmatprep.subr.mxu0 0.0
    %358 = vmatpush1.msra.mxu0 0.0
    %359 = vmatprep.subr.mxu0 0.0
    %360 = vmatpush1.msra.mxu0 0.0
    %361 = vmatprep.subr.mxu0 0.0
    %362 = vmatpush1.msra.mxu0 0.0
    %363 = vmatprep.subr.mxu0 0.0
    %364 = vmatpush1.msra.mxu0 0.0
    %365 = vmatprep.subr.mxu0 0.0
    %366 = vmatpush1.msra.mxu0 0.0
    %367 = vmatprep.subr.mxu0 0.0
    %368 = vmatpush1.msra.mxu0 0.0
    %369 = vmatprep.subr.mxu0 0.0
    %370 = vmatpush1.msra.mxu0 0.0
    %371 = vmatprep.subr.mxu0 0.0
    %372 = vmatpush1.msra.mxu0 0.0
    %373 = vmatprep.subr.mxu0 0.0
    %374 = vmatpush1.msra.mxu0 0.0
    %375 = vmatprep.subr.mxu0 0.0
    %376 = vmatpush1.msra.mxu0 0.0
    %377 = vmatprep.subr.mxu0 0.0
    %378 = vmatpush1.msra.mxu0 0.0
    %379 = vmatprep.subr.mxu0 0.0
    %380 = vmatpush1.msra.mxu0 0.0
    %381 = vmatprep.subr.mxu0 0.0
    %382 = vmatpush1.msra.mxu0 0.0
    %383 = vmatprep.subr.mxu0 0.0
    %384 = vmatpush1.msra.mxu0 0.0
    %385 = vmatprep.subr.mxu0 0.0
    %386 = vmatpush1.msra.mxu0 0.0
    %387 = vmatprep.mubr.f32.mxu0 0.0
    %388 = vmatmul.mubr.f32.gmra.mrb[0].mxu0 %v146
    %v389 = vpop.f32.mrb[0].mxu0
    %v390 = vadd.f32 %v321, %v389
    %v391 = vpop.f32.mrb[0].mxu0
    %392 = vmatprep.mubr.f32.mxu0 0.0
    %393 = vmatmul.mubr.f32.gmra.mrb[0].mxu0 %v149
    %v394 = vpop.f32.mrb[0].mxu0
    %v395 = vadd.f32 %v321, %v394
    %v396 = vpop.f32.mrb[0].mxu0
    %397 = vdwg.mxu0
    %vm398 = vcmask 64512
    %v400 = vsel %vm398, %v218, 0
    %v403 = vsel %vm398, %v304, 0
    %405 = vmatprep.subr.mxu0 0.0
    %406 = vmatpush1.xpose.msra.mxu0 %v403
    %407 = vmatprep.subr.mxu0 0.0
    %408 = vmatpush1.xpose.msra.mxu0 0.0
    %409 = vmatprep.subr.mxu0 0.0
    %410 = vmatpush1.xpose.msra.mxu0 0.0
    %411 = vmatprep.subr.mxu0 0.0
    %412 = vmatpush1.xpose.msra.mxu0 0.0
    %413 = vmatprep.subr.mxu0 0.0
    %414 = vmatpush1.xpose.msra.mxu0 0.0
    %415 = vmatprep.subr.mxu0 0.0
    %416 = vmatpush1.xpose.msra.mxu0 0.0
    %417 = vmatprep.subr.mxu0 0.0
    %418 = vmatpush1.xpose.msra.mxu0 0.0
    %419 = vmatprep.subr.mxu0 0.0
    %420 = vmatpush1.xpose.msra.mxu0 0.0
    %421 = vmatprep.subr.mxu0 0.0
    %422 = vmatpush1.xpose.msra.mxu0 0.0
    %423 = vmatprep.subr.mxu0 0.0
    %424 = vmatpush1.xpose.msra.mxu0 0.0
    %425 = vmatprep.subr.mxu0 0.0
    %426 = vmatpush1.xpose.msra.mxu0 0.0
    %427 = vmatprep.subr.mxu0 0.0
    %428 = vmatpush1.xpose.msra.mxu0 0.0
    %429 = vmatprep.subr.mxu0 0.0
    %430 = vmatpush1.xpose.msra.mxu0 0.0
    %431 = vmatprep.subr.mxu0 0.0
    %432 = vmatpush1.xpose.msra.mxu0 0.0
    %433 = vmatprep.subr.mxu0 0.0
    %434 = vmatpush1.xpose.msra.mxu0 0.0
    %435 = vmatprep.subr.mxu0 0.0
    %436 = vmatpush1.xpose.msra.mxu0 0.0
    %437 = vmatprep.subr.mxu0 0.0
    %438 = vmatpush1.xpose.msra.mxu0 0.0
    %439 = vmatprep.subr.mxu0 0.0
    %440 = vmatpush1.xpose.msra.mxu0 0.0
    %441 = vmatprep.subr.mxu0 0.0
    %442 = vmatpush1.xpose.msra.mxu0 0.0
    %443 = vmatprep.subr.mxu0 0.0
    %444 = vmatpush1.xpose.msra.mxu0 0.0
    %445 = vmatprep.subr.mxu0 0.0
    %446 = vmatpush1.xpose.msra.mxu0 0.0
    %447 = vmatprep.subr.mxu0 0.0
    %448 = vmatpush1.xpose.msra.mxu0 0.0
    %449 = vmatprep.subr.mxu0 0.0
    %450 = vmatpush1.xpose.msra.mxu0 0.0
    %451 = vmatprep.subr.mxu0 0.0
    %452 = vmatpush1.xpose.msra.mxu0 0.0
    %453 = vmatprep.subr.mxu0 0.0
    %454 = vmatpush1.xpose.msra.mxu0 0.0
    %455 = vmatprep.subr.mxu0 0.0
    %456 = vmatpush1.xpose.msra.mxu0 0.0
    %457 = vmatprep.subr.mxu0 0.0
    %458 = vmatpush1.xpose.msra.mxu0 0.0
    %459 = vmatprep.subr.mxu0 0.0
    %460 = vmatpush1.xpose.msra.mxu0 0.0
    %461 = vmatprep.subr.mxu0 0.0
    %462 = vmatpush1.xpose.msra.mxu0 0.0
    %463 = vmatprep.subr.mxu0 0.0
    %464 = vmatpush1.xpose.msra.mxu0 0.0
    %465 = vmatprep.subr.mxu0 0.0
    %466 = vmatpush1.xpose.msra.mxu0 0.0
    %467 = vmatprep.subr.mxu0 0.0
    %468 = vmatpush1.xpose.msra.mxu0 0.0
    %469 = vmatprep.mubr.f32.mxu0 0.0
    %470 = vmatmul.mubr.f32.gmra.mrb[0].mxu0 %v400
    %v471 = vpop.f32.mrb[0].mxu0
    %v472 = vadd.f32 0.0, %v471
    %v473 = vpop.f32.mrb[0].mxu0
    %474 = vdwg.mxu0
    %v476 = vsel %vm398, %v223, 0
    %v479 = vsel %vm398, %v309, 0
    %481 = vmatprep.subr.mxu0 0.0
    %482 = vmatpush1.xpose.msra.mxu0 %v479
    %483 = vmatprep.subr.mxu0 0.0
    %484 = vmatpush1.xpose.msra.mxu0 0.0
    %485 = vmatprep.subr.mxu0 0.0
    %486 = vmatpush1.xpose.msra.mxu0 0.0
    %487 = vmatprep.subr.mxu0 0.0
    %488 = vmatpush1.xpose.msra.mxu0 0.0
    %489 = vmatprep.subr.mxu0 0.0
    %490 = vmatpush1.xpose.msra.mxu0 0.0
    %491 = vmatprep.subr.mxu0 0.0
    %492 = vmatpush1.xpose.msra.mxu0 0.0
    %493 = vmatprep.subr.mxu0 0.0
    %494 = vmatpush1.xpose.msra.mxu0 0.0
    %495 = vmatprep.subr.mxu0 0.0
    %496 = vmatpush1.xpose.msra.mxu0 0.0
    %497 = vmatprep.subr.mxu0 0.0
    %498 = vmatpush1.xpose.msra.mxu0 0.0
    %499 = vmatprep.subr.mxu0 0.0
    %500 = vmatpush1.xpose.msra.mxu0 0.0
    %501 = vmatprep.subr.mxu0 0.0
    %502 = vmatpush1.xpose.msra.mxu0 0.0
    %503 = vmatprep.subr.mxu0 0.0
    %504 = vmatpush1.xpose.msra.mxu0 0.0
    %505 = vmatprep.subr.mxu0 0.0
    %506 = vmatpush1.xpose.msra.mxu0 0.0
    %507 = vmatprep.subr.mxu0 0.0
    %508 = vmatpush1.xpose.msra.mxu0 0.0
    %509 = vmatprep.subr.mxu0 0.0
    %510 = vmatpush1.xpose.msra.mxu0 0.0
    %511 = vmatprep.subr.mxu0 0.0
    %512 = vmatpush1.xpose.msra.mxu0 0.0
    %513 = vmatprep.subr.mxu0 0.0
    %514 = vmatpush1.xpose.msra.mxu0 0.0
    %515 = vmatprep.subr.mxu0 0.0
    %516 = vmatpush1.xpose.msra.mxu0 0.0
    %517 = vmatprep.subr.mxu0 0.0
    %518 = vmatpush1.xpose.msra.mxu0 0.0
    %519 = vmatprep.subr.mxu0 0.0
    %520 = vmatpush1.xpose.msra.mxu0 0.0
    %521 = vmatprep.subr.mxu0 0.0
    %522 = vmatpush1.xpose.msra.mxu0 0.0
    %523 = vmatprep.subr.mxu0 0.0
    %524 = vmatpush1.xpose.msra.mxu0 0.0
    %525 = vmatprep.subr.mxu0 0.0
    %526 = vmatpush1.xpose.msra.mxu0 0.0
    %527 = vmatprep.subr.mxu0 0.0
    %528 = vmatpush1.xpose.msra.mxu0 0.0
    %529 = vmatprep.subr.mxu0 0.0
    %530 = vmatpush1.xpose.msra.mxu0 0.0
    %531 = vmatprep.subr.mxu0 0.0
    %532 = vmatpush1.xpose.msra.mxu0 0.0
    %533 = vmatprep.subr.mxu0 0.0
    %534 = vmatpush1.xpose.msra.mxu0 0.0
    %535 = vmatprep.subr.mxu0 0.0
    %536 = vmatpush1.xpose.msra.mxu0 0.0
    %537 = vmatprep.subr.mxu0 0.0
    %538 = vmatpush1.xpose.msra.mxu0 0.0
    %539 = vmatprep.subr.mxu0 0.0
    %540 = vmatpush1.xpose.msra.mxu0 0.0
    %541 = vmatprep.subr.mxu0 0.0
    %542 = vmatpush1.xpose.msra.mxu0 0.0
    %543 = vmatprep.subr.mxu0 0.0
    %544 = vmatpush1.xpose.msra.mxu0 0.0
    %545 = vmatprep.mubr.f32.mxu0 0.0
    %546 = vmatmul.mubr.f32.gmra.mrb[0].mxu0 %v476
    %v547 = vpop.f32.mrb[0].mxu0
    %v548 = vadd.f32 0.0, %v547
    %v549 = vpop.f32.mrb[0].mxu0
    %550 = vdwg.mxu0
    %v551 = vmul.f32 %v472, 0.35355338
    %v552 = vmul.f32 %v548, 0.35355338
    %v553 = vsel %vm398, %v551, -inf
    %554 = vmax.xlane.f32.xlu0 %v553
    %v555 = vpop.xlane.xlu0 %554
    %v556 = vsel %vm398, %v552, -inf
    %557 = vmax.xlane.f32.xlu0 %v556
    %v558 = vpop.xlane.xlu0 %557
    %v559 = vsub.f32 %v551, %v555
    %v560 = vsub.f32 %v552, %v558
    %v561 = vmul.f32 %v559, 1.442695
    %v562 = vpow.pop %v561
    %v563 = vmul.f32 %v560, 1.442695
    %v564 = vpow.pop %v563
    %v565 = vsel %vm398, %v562, 0.0
    %566 = vadd.xlane.f32.xlu0 %v565
    %v567 = vpop.xlane.xlu0 %566
    %v568 = vsel %vm398, %v564, 0.0
    %569 = vadd.xlane.f32.xlu0 %v568
    %v570 = vpop.xlane.xlu0 %569
    %v571 = vrcp.pop %v567
    %v572 = vrcp.pop %v570
    %v573 = vmul.f32 %v562, %v571
    %v574 = vmul.f32 %v564, %v572
    %v575 = vsel %vm398, %v573, 0.0
    %v576 = vsel %vm398, %v574, 0.0
    %v577 = vadd.f32 %v575, %v576
    %v578 = vrcp.pop 2.0
    %v579 = vmul.f32 %v577, %v578
    %v581 = vsel %vm398, %v573, 0
    %583 = vmatprep.subr.mxu0 0.0
    %584 = vmatpush1.msra.mxu0 %v390
    %585 = vmatprep.subr.mxu0 0.0
    %586 = vmatpush1.msra.mxu0 0.0
    %587 = vmatprep.subr.mxu0 0.0
    %588 = vmatpush1.msra.mxu0 0.0
    %589 = vmatprep.subr.mxu0 0.0
    %590 = vmatpush1.msra.mxu0 0.0
    %591 = vmatprep.subr.mxu0 0.0
    %592 = vmatpush1.msra.mxu0 0.0
    %593 = vmatprep.subr.mxu0 0.0
    %594 = vmatpush1.msra.mxu0 0.0
    %595 = vmatprep.subr.mxu0 0.0
    %596 = vmatpush1.msra.mxu0 0.0
    %597 = vmatprep.subr.mxu0 0.0
    %598 = vmatpush1.msra.mxu0 0.0
    %599 = vmatprep.subr.mxu0 0.0
    %600 = vmatpush1.msra.mxu0 0.0
    %601 = vmatprep.subr.mxu0 0.0
    %602 = vmatpush1.msra.mxu0 0.0
    %603 = vmatprep.subr.mxu0 0.0
    %604 = vmatpush1.msra.mxu0 0.0
    %605 = vmatprep.subr.mxu0 0.0
    %606 = vmatpush1.msra.mxu0 0.0
    %607 = vmatprep.subr.mxu0 0.0
    %608 = vmatpush1.msra.mxu0 0.0
    %609 = vmatprep.subr.mxu0 0.0
    %610 = vmatpush1.msra.mxu0 0.0
    %611 = vmatprep.subr.mxu0 0.0
    %612 = vmatpush1.msra.mxu0 0.0
    %613 = vmatprep.subr.mxu0 0.0
    %614 = vmatpush1.msra.mxu0 0.0
    %615 = vmatprep.subr.mxu0 0.0
    %616 = vmatpush1.msra.mxu0 0.0
    %617 = vmatprep.subr.mxu0 0.0
    %618 = vmatpush1.msra.mxu0 0.0
    %619 = vmatprep.subr.mxu0 0.0
    %620 = vmatpush1.msra.mxu0 0.0
    %621 = vmatprep.subr.mxu0 0.0
    %622 = vmatpush1.msra.mxu0 0.0
    %623 = vmatprep.subr.mxu0 0.0
    %624 = vmatpush1.msra.mxu0 0.0
    %625 = vmatprep.subr.mxu0 0.0
    %626 = vmatpush1.msra.mxu0 0.0
    %627 = vmatprep.subr.mxu0 0.0
    %628 = vmatpush1.msra.mxu0 0.0
    %629 = vmatprep.subr.mxu0 0.0
    %630 = vmatpush1.msra.mxu0 0.0
    %631 = vmatprep.subr.mxu0 0.0
    %632 = vmatpush1.msra.mxu0 0.0
    %633 = vmatprep.subr.mxu0 0.0
    %634 = vmatpush1.msra.mxu0 0.0
    %635 = vmatprep.subr.mxu0 0.0
    %636 = vmatpush1.msra.mxu0 0.0
    %637 = vmatprep.subr.mxu0 0.0
    %638 = vmatpush1.msra.mxu0 0.0
    %639 = vmatprep.subr.mxu0 0.0
    %640 = vmatpush1.msra.mxu0 0.0
    %641 = vmatprep.subr.mxu0 0.0
    %642 = vmatpush1.msra.mxu0 0.0
    %643 = vmatprep.subr.mxu0 0.0
    %644 = vmatpush1.msra.mxu0 0.0
    %645 = vmatprep.subr.mxu0 0.0
    %646 = vmatpush1.msra.mxu0 0.0
    %647 = vmatprep.mubr.f32.mxu0 0.0
    %648 = vmatmul.mubr.f32.gmra.mrb[0].mxu0 %v581
    %v649 = vpop.f32.mrb[0].mxu0
    %v650 = vadd.f32 0.0, %v649
    %v651 = vpop.f32.mrb[0].mxu0
    %652 = vdwg.mxu0
    %v654 = vsel %vm398, %v574, 0
    %656 = vmatprep.subr.mxu0 0.0
    %657 = vmatpush1.msra.mxu0 %v395
    %658 = vmatprep.subr.mxu0 0.0
    %659 = vmatpush1.msra.mxu0 0.0
    %660 = vmatprep.subr.mxu0 0.0
    %661 = vmatpush1.msra.mxu0 0.0
    %662 = vmatprep.subr.mxu0 0.0
    %663 = vmatpush1.msra.mxu0 0.0
    %664 = vmatprep.subr.mxu0 0.0
    %665 = vmatpush1.msra.mxu0 0.0
    %666 = vmatprep.subr.mxu0 0.0
    %667 = vmatpush1.msra.mxu0 0.0
    %668 = vmatprep.subr.mxu0 0.0
    %669 = vmatpush1.msra.mxu0 0.0
    %670 = vmatprep.subr.mxu0 0.0
    %671 = vmatpush1.msra.mxu0 0.0
    %672 = vmatprep.subr.mxu0 0.0
    %673 = vmatpush1.msra.mxu0 0.0
    %674 = vmatprep.subr.mxu0 0.0
    %675 = vmatpush1.msra.mxu0 0.0
    %676 = vmatprep.subr.mxu0 0.0
    %677 = vmatpush1.msra.mxu0 0.0
    %678 = vmatprep.subr.mxu0 0.0
    %679 = vmatpush1.msra.mxu0 0.0
    %680 = vmatprep.subr.mxu0 0.0
    %681 = vmatpush1.msra.mxu0 0.0
    %682 = vmatprep.subr.mxu0 0.0
    %683 = vmatpush1.msra.mxu0 0.0
    %684 = vmatprep.subr.mxu0 0.0
    %685 = vmatpush1.msra.mxu0 0.0
    %686 = vmatprep.subr.mxu0 0.0
    %687 = vmatpush1.msra.mxu0 0.0
    %688 = vmatprep.subr.mxu0 0.0
    %689 = vmatpush1.msra.mxu0 0.0
    %690 = vmatprep.subr.mxu0 0.0
    %691 = vmatpush1.msra.mxu0 0.0
    %692 = vmatprep.subr.mxu0 0.0
    %693 = vmatpush1.msra.mxu0 0.0
    %694 = vmatprep.subr.mxu0 0.0
    %695 = vmatpush1.msra.mxu0 0.0
    %696 = vmatprep.subr.mxu0 0.0
    %697 = vmatpush1.msra.mxu0 0.0
    %698 = vmatprep.subr.mxu0 0.0
    %699 = vmatpush1.msra.mxu0 0.0
    %700 = vmatprep.subr.mxu0 0.0
    %701 = vmatpush1.msra.mxu0 0.0
    %702 = vmatprep.subr.mxu0 0.0
    %703 = vmatpush1.msra.mxu0 0.0
    %704 = vmatprep.subr.mxu0 0.0
    %705 = vmatpush1.msra.mxu0 0.0
    %706 = vmatprep.subr.mxu0 0.0
    %707 = vmatpush1.msra.mxu0 0.0
    %708 = vmatprep.subr.mxu0 0.0
    %709 = vmatpush1.msra.mxu0 0.0
    %710 = vmatprep.subr.mxu0 0.0
    %711 = vmatpush1.msra.mxu0 0.0
    %712 = vmatprep.subr.mxu0 0.0
    %713 = vmatpush1.msra.mxu0 0.0
    %714 = vmatprep.subr.mxu0 0.0
    %715 = vmatpush1.msra.mxu0 0.0
    %716 = vmatprep.subr.mxu0 0.0
    %717 = vmatpush1.msra.mxu0 0.0
    %718 = vmatprep.subr.mxu0 0.0
    %719 = vmatpush1.msra.mxu0 0.0
    %720 = vmatprep.mubr.f32.mxu0 0.0
    %721 = vmatmul.mubr.f32.gmra.mrb[0].mxu0 %v654
    %v722 = vpop.f32.mrb[0].mxu0
    %v723 = vadd.f32 0.0, %v722
    %v724 = vpop.f32.mrb[0].mxu0
    %725 = vdwg.mxu0
    %v726 = vld [vmem:[%s9] sm:$0xff]
    %v728 = vsel %vm398, %v650, 0
    %v731 = vsel %vm398, %v723, 0
    %733 = vmatprep.subr.mxu0 0.0
    %734 = vmatpush1.msra.mxu0 %v726
    %735 = vmatprep.subr.mxu0 0.0
    %736 = vmatpush1.msra.mxu0 0.0
    %737 = vmatprep.subr.mxu0 0.0
    %738 = vmatpush1.msra.mxu0 0.0
    %739 = vmatprep.subr.mxu0 0.0
    %740 = vmatpush1.msra.mxu0 0.0
    %741 = vmatprep.subr.mxu0 0.0
    %742 = vmatpush1.msra.mxu0 0.0
    %743 = vmatprep.subr.mxu0 0.0
    %744 = vmatpush1.msra.mxu0 0.0
    %745 = vmatprep.subr.mxu0 0.0
    %746 = vmatpush1.msra.mxu0 0.0
    %747 = vmatprep.subr.mxu0 0.0
    %748 = vmatpush1.msra.mxu0 0.0
    %749 = vmatprep.subr.mxu0 0.0
    %750 = vmatpush1.msra.mxu0 0.0
    %751 = vmatprep.subr.mxu0 0.0
    %752 = vmatpush1.msra.mxu0 0.0
    %753 = vmatprep.subr.mxu0 0.0
    %754 = vmatpush1.msra.mxu0 0.0
    %755 = vmatprep.subr.mxu0 0.0
    %756 = vmatpush1.msra.mxu0 0.0
    %757 = vmatprep.subr.mxu0 0.0
    %758 = vmatpush1.msra.mxu0 0.0
    %759 = vmatprep.subr.mxu0 0.0
    %760 = vmatpush1.msra.mxu0 0.0
    %761 = vmatprep.subr.mxu0 0.0
    %762 = vmatpush1.msra.mxu0 0.0
    %763 = vmatprep.subr.mxu0 0.0
    %764 = vmatpush1.msra.mxu0 0.0
    %765 = vmatprep.subr.mxu0 0.0
    %766 = vmatpush1.msra.mxu0 0.0
    %767 = vmatprep.subr.mxu0 0.0
    %768 = vmatpush1.msra.mxu0 0.0
    %769 = vmatprep.subr.mxu0 0.0
    %770 = vmatpush1.msra.mxu0 0.0
    %771 = vmatprep.subr.mxu0 0.0
    %772 = vmatpush1.msra.mxu0 0.0
    %773 = vmatprep.subr.mxu0 0.0
    %774 = vmatpush1.msra.mxu0 0.0
    %775 = vmatprep.subr.mxu0 0.0
    %776 = vmatpush1.msra.mxu0 0.0
    %777 = vmatprep.subr.mxu0 0.0
    %778 = vmatpush1.msra.mxu0 0.0
    %779 = vmatprep.subr.mxu0 0.0
    %780 = vmatpush1.msra.mxu0 0.0
    %781 = vmatprep.subr.mxu0 0.0
    %782 = vmatpush1.msra.mxu0 0.0
    %783 = vmatprep.subr.mxu0 0.0
    %784 = vmatpush1.msra.mxu0 0.0
    %785 = vmatprep.subr.mxu0 0.0
    %786 = vmatpush1.msra.mxu0 0.0
    %787 = vmatprep.subr.mxu0 0.0
    %788 = vmatpush1.msra.mxu0 0.0
    %789 = vmatprep.subr.mxu0 0.0
    %790 = vmatpush1.msra.mxu0 0.0
    %791 = vmatprep.subr.mxu0 0.0
    %792 = vmatpush1.msra.mxu0 0.0
    %793 = vmatprep.subr.mxu0 0.0
    %794 = vmatpush1.msra.mxu0 0.0
    %795 = vmatprep.subr.mxu0 0.0
    %796 = vmatpush1.msra.mxu0 0.0
    %797 = vmatprep.mubr.f32.mxu0 0.0
    %798 = vmatmul.mubr.f32.gmra.mrb[0].mxu0 %v728
    %v799 = vpop.f32.mrb[0].mxu0
    %v800 = vadd.f32 0.0, %v799
    %v801 = vpop.f32.mrb[0].mxu0
    %802 = vmatprep.mubr.f32.mxu0 0.0
    %803 = vmatmul.mubr.f32.gmra.mrb[0].mxu0 %v731
    %v804 = vpop.f32.mrb[0].mxu0
    %v805 = vadd.f32 0.0, %v804
    %v806 = vpop.f32.mrb[0].mxu0
    %807 = vdwg.mxu0
    %v808 = vadd.f32 %v132, %v800
    %v809 = vadd.f32 %v133, %v805
    %s810 = scalar_lea.vmem %s3, 32
    %v811 = vld [vmem:[%s810] sm:$0xff]
    %v812 = vld [vmem:[%s810 + $0x8] sm:$0xff]
    %v813 = vld [vmem:[%s810 + $0x10] sm:$0xff]
    %v814 = vld [vmem:[%s810 + $0x18] sm:$0xff]
    %s815 = scalar_lea.vmem %s4, 1
    %v816 = vld [vmem:[%s815] sm:$0x1]
    %v818 = vlaneseq
    %v819 = vshrl.u32 %v818, 7
    %v820 = vsub.s32 0, %v819
    %v821 = vrot.slane %v816, %v820
    %823 = vmatprep.subr.mxu0 0.0
    %824 = vmatpush1.msra.mxu0 %v811
    %825 = vmatprep.subr.mxu0 0.0
    %826 = vmatpush1.msra.mxu0 %v812
    %827 = vmatprep.subr.mxu0 0.0
    %828 = vmatpush1.msra.mxu0 %v813
    %829 = vmatprep.subr.mxu0 0.0
    %830 = vmatpush1.msra.mxu0 %v814
    %831 = vmatprep.subr.mxu0 0.0
    %832 = vmatpush1.msra.mxu0 0.0
    %833 = vmatprep.subr.mxu0 0.0
    %834 = vmatpush1.msra.mxu0 0.0
    %835 = vmatprep.subr.mxu0 0.0
    %836 = vmatpush1.msra.mxu0 0.0
    %837 = vmatprep.subr.mxu0 0.0
    %838 = vmatpush1.msra.mxu0 0.0
    %839 = vmatprep.subr.mxu0 0.0
    %840 = vmatpush1.msra.mxu0 0.0
    %841 = vmatprep.subr.mxu0 0.0
    %842 = vmatpush1.msra.mxu0 0.0
    %843 = vmatprep.subr.mxu0 0.0
    %844 = vmatpush1.msra.mxu0 0.0
    %845 = vmatprep.subr.mxu0 0.0
    %846 = vmatpush1.msra.mxu0 0.0
    %847 = vmatprep.subr.mxu0 0.0
    %848 = vmatpush1.msra.mxu0 0.0
    %849 = vmatprep.subr.mxu0 0.0
    %850 = vmatpush1.msra.mxu0 0.0
    %851 = vmatprep.subr.mxu0 0.0
    %852 = vmatpush1.msra.mxu0 0.0
    %853 = vmatprep.subr.mxu0 0.0
    %854 = vmatpush1.msra.mxu0 0.0
    %855 = vmatprep.subr.mxu0 0.0
    %856 = vmatpush1.msra.mxu0 0.0
    %857 = vmatprep.subr.mxu0 0.0
    %858 = vmatpush1.msra.mxu0 0.0
    %859 = vmatprep.subr.mxu0 0.0
    %860 = vmatpush1.msra.mxu0 0.0
    %861 = vmatprep.subr.mxu0 0.0
    %862 = vmatpush1.msra.mxu0 0.0
    %863 = vmatprep.subr.mxu0 0.0
    %864 = vmatpush1.msra.mxu0 0.0
    %865 = vmatprep.subr.mxu0 0.0
    %866 = vmatpush1.msra.mxu0 0.0
    %867 = vmatprep.subr.mxu0 0.0
    %868 = vmatpush1.msra.mxu0 0.0
    %869 = vmatprep.subr.mxu0 0.0
    %870 = vmatpush1.msra.mxu0 0.0
    %871 = vmatprep.subr.mxu0 0.0
    %872 = vmatpush1.msra.mxu0 0.0
    %873 = vmatprep.subr.mxu0 0.0
    %874 = vmatpush1.msra.mxu0 0.0
    %875 = vmatprep.subr.mxu0 0.0
    %876 = vmatpush1.msra.mxu0 0.0
    %877 = vmatprep.subr.mxu0 0.0
    %878 = vmatpush1.msra.mxu0 0.0
    %879 = vmatprep.subr.mxu0 0.0
    %880 = vmatpush1.msra.mxu0 0.0
    %881 = vmatprep.subr.mxu0 0.0
    %882 = vmatpush1.msra.mxu0 0.0
    %883 = vmatprep.subr.mxu0 0.0
    %884 = vmatpush1.msra.mxu0 0.0
    %885 = vmatprep.subr.mxu0 0.0
    %886 = vmatpush1.msra.mxu0 0.0
    %887 = vmatprep.mubr.f32.mxu0 0.0
    %888 = vmatmul.mubr.f32.gmra.mrb[0].mxu0 %v146
    %v889 = vpop.f32.mrb[0].mxu0
    %v890 = vadd.f32 %v821, %v889
    %v891 = vpop.f32.mrb[0].mxu0
    %892 = vmatprep.mubr.f32.mxu0 0.0
    %893 = vmatmul.mubr.f32.gmra.mrb[0].mxu0 %v149
    %v894 = vpop.f32.mrb[0].mxu0
    %v895 = vadd.f32 %v821, %v894
    %v896 = vpop.f32.mrb[0].mxu0
    %897 = vdwg.mxu0
    %s898 = scalar_lea.vmem %s5, 32
    %v899 = vld [vmem:[%s898] sm:$0xff]
    %v900 = vld [vmem:[%s898 + $0x8] sm:$0xff]
    %v901 = vld [vmem:[%s898 + $0x10] sm:$0xff]
    %v902 = vld [vmem:[%s898 + $0x18] sm:$0xff]
    %s903 = scalar_lea.vmem %s6, 1
    %v904 = vld [vmem:[%s903] sm:$0x1]
    %v906 = vlaneseq
    %v907 = vshrl.u32 %v906, 7
    %v908 = vsub.s32 0, %v907
    %v909 = vrot.slane %v904, %v908
    %911 = vmatprep.subr.mxu0 0.0
    %912 = vmatpush1.msra.mxu0 %v899
    %913 = vmatprep.subr.mxu0 0.0
    %914 = vmatpush1.msra.mxu0 %v900
    %915 = vmatprep.subr.mxu0 0.0
    %916 = vmatpush1.msra.mxu0 %v901
    %917 = vmatprep.subr.mxu0 0.0
    %918 = vmatpush1.msra.mxu0 %v902
    %919 = vmatprep.subr.mxu0 0.0
    %920 = vmatpush1.msra.mxu0 0.0
    %921 = vmatprep.subr.mxu0 0.0
    %922 = vmatpush1.msra.mxu0 0.0
    %923 = vmatprep.subr.mxu0 0.0
    %924 = vmatpush1.msra.mxu0 0.0
    %925 = vmatprep.subr.mxu0 0.0
    %926 = vmatpush1.msra.mxu0 0.0
    %927 = vmatprep.subr.mxu0 0.0
    %928 = vmatpush1.msra.mxu0 0.0
    %929 = vmatprep.subr.mxu0 0.0
    %930 = vmatpush1.msra.mxu0 0.0
    %931 = vmatprep.subr.mxu0 0.0
    %932 = vmatpush1.msra.mxu0 0.0
    %933 = vmatprep.subr.mxu0 0.0
    %934 = vmatpush1.msra.mxu0 0.0
    %935 = vmatprep.subr.mxu0 0.0
    %936 = vmatpush1.msra.mxu0 0.0
    %937 = vmatprep.subr.mxu0 0.0
    %938 = vmatpush1.msra.mxu0 0.0
    %939 = vmatprep.subr.mxu0 0.0
    %940 = vmatpush1.msra.mxu0 0.0
    %941 = vmatprep.subr.mxu0 0.0
    %942 = vmatpush1.msra.mxu0 0.0
    %943 = vmatprep.subr.mxu0 0.0
    %944 = vmatpush1.msra.mxu0 0.0
    %945 = vmatprep.subr.mxu0 0.0
    %946 = vmatpush1.msra.mxu0 0.0
    %947 = vmatprep.subr.mxu0 0.0
    %948 = vmatpush1.msra.mxu0 0.0
    %949 = vmatprep.subr.mxu0 0.0
    %950 = vmatpush1.msra.mxu0 0.0
    %951 = vmatprep.subr.mxu0 0.0
    %952 = vmatpush1.msra.mxu0 0.0
    %953 = vmatprep.subr.mxu0 0.0
    %954 = vmatpush1.msra.mxu0 0.0
    %955 = vmatprep.subr.mxu0 0.0
    %956 = vmatpush1.msra.mxu0 0.0
    %957 = vmatprep.subr.mxu0 0.0
    %958 = vmatpush1.msra.mxu0 0.0
    %959 = vmatprep.subr.mxu0 0.0
    %960 = vmatpush1.msra.mxu0 0.0
    %961 = vmatprep.subr.mxu0 0.0
    %962 = vmatpush1.msra.mxu0 0.0
    %963 = vmatprep.subr.mxu0 0.0
    %964 = vmatpush1.msra.mxu0 0.0
    %965 = vmatprep.subr.mxu0 0.0
    %966 = vmatpush1.msra.mxu0 0.0
    %967 = vmatprep.subr.mxu0 0.0
    %968 = vmatpush1.msra.mxu0 0.0
    %969 = vmatprep.subr.mxu0 0.0
    %970 = vmatpush1.msra.mxu0 0.0
    %971 = vmatprep.subr.mxu0 0.0
    %972 = vmatpush1.msra.mxu0 0.0
    %973 = vmatprep.subr.mxu0 0.0
    %974 = vmatpush1.msra.mxu0 0.0
    %975 = vmatprep.mubr.f32.mxu0 0.0
    %976 = vmatmul.mubr.f32.gmra.mrb[0].mxu0 %v146
    %v977 = vpop.f32.mrb[0].mxu0
    %v978 = vadd.f32 %v909, %v977
    %v979 = vpop.f32.mrb[0].mxu0
    %980 = vmatprep.mubr.f32.mxu0 0.0
    %981 = vmatmul.mubr.f32.gmra.mrb[0].mxu0 %v149
    %v982 = vpop.f32.mrb[0].mxu0
    %v983 = vadd.f32 %v909, %v982
    %v984 = vpop.f32.mrb[0].mxu0
    %985 = vdwg.mxu0
    %s986 = scalar_lea.vmem %s7, 32
    %v987 = vld [vmem:[%s986] sm:$0xff]
    %v988 = vld [vmem:[%s986 + $0x8] sm:$0xff]
    %v989 = vld [vmem:[%s986 + $0x10] sm:$0xff]
    %v990 = vld [vmem:[%s986 + $0x18] sm:$0xff]
    %s991 = scalar_lea.vmem %s8, 1
    %v992 = vld [vmem:[%s991] sm:$0x1]
    %v994 = vlaneseq
    %v995 = vshrl.u32 %v994, 7
    %v996 = vsub.s32 0, %v995
    %v997 = vrot.slane %v992, %v996
    %999 = vmatprep.subr.mxu0 0.0
    %1000 = vmatpush1.msra.mxu0 %v987
    %1001 = vmatprep.subr.mxu0 0.0
    %1002 = vmatpush1.msra.mxu0 %v988
    %1003 = vmatprep.subr.mxu0 0.0
    %1004 = vmatpush1.msra.mxu0 %v989
    %1005 = vmatprep.subr.mxu0 0.0
    %1006 = vmatpush1.msra.mxu0 %v990
    %1007 = vmatprep.subr.mxu0 0.0
    %1008 = vmatpush1.msra.mxu0 0.0
    %1009 = vmatprep.subr.mxu0 0.0
    %1010 = vmatpush1.msra.mxu0 0.0
    %1011 = vmatprep.subr.mxu0 0.0
    %1012 = vmatpush1.msra.mxu0 0.0
    %1013 = vmatprep.subr.mxu0 0.0
    %1014 = vmatpush1.msra.mxu0 0.0
    %1015 = vmatprep.subr.mxu0 0.0
    %1016 = vmatpush1.msra.mxu0 0.0
    %1017 = vmatprep.subr.mxu0 0.0
    %1018 = vmatpush1.msra.mxu0 0.0
    %1019 = vmatprep.subr.mxu0 0.0
    %1020 = vmatpush1.msra.mxu0 0.0
    %1021 = vmatprep.subr.mxu0 0.0
    %1022 = vmatpush1.msra.mxu0 0.0
    %1023 = vmatprep.subr.mxu0 0.0
    %1024 = vmatpush1.msra.mxu0 0.0
    %1025 = vmatprep.subr.mxu0 0.0
    %1026 = vmatpush1.msra.mxu0 0.0
    %1027 = vmatprep.subr.mxu0 0.0
    %1028 = vmatpush1.msra.mxu0 0.0
    %1029 = vmatprep.subr.mxu0 0.0
    %1030 = vmatpush1.msra.mxu0 0.0
    %1031 = vmatprep.subr.mxu0 0.0
    %1032 = vmatpush1.msra.mxu0 0.0
    %1033 = vmatprep.subr.mxu0 0.0
    %1034 = vmatpush1.msra.mxu0 0.0
    %1035 = vmatprep.subr.mxu0 0.0
    %1036 = vmatpush1.msra.mxu0 0.0
    %1037 = vmatprep.subr.mxu0 0.0
    %1038 = vmatpush1.msra.mxu0 0.0
    %1039 = vmatprep.subr.mxu0 0.0
    %1040 = vmatpush1.msra.mxu0 0.0
    %1041 = vmatprep.subr.mxu0 0.0
    %1042 = vmatpush1.msra.mxu0 0.0
    %1043 = vmatprep.subr.mxu0 0.0
    %1044 = vmatpush1.msra.mxu0 0.0
    %1045 = vmatprep.subr.mxu0 0.0
    %1046 = vmatpush1.msra.mxu0 0.0
    %1047 = vmatprep.subr.mxu0 0.0
    %1048 = vmatpush1.msra.mxu0 0.0
    %1049 = vmatprep.subr.mxu0 0.0
    %1050 = vmatpush1.msra.mxu0 0.0
    %1051 = vmatprep.subr.mxu0 0.0
    %1052 = vmatpush1.msra.mxu0 0.0
    %1053 = vmatprep.subr.mxu0 0.0
    %1054 = vmatpush1.msra.mxu0 0.0
    %1055 = vmatprep.subr.mxu0 0.0
    %1056 = vmatpush1.msra.mxu0 0.0
    %1057 = vmatprep.subr.mxu0 0.0
    %1058 = vmatpush1.msra.mxu0 0.0
    %1059 = vmatprep.subr.mxu0 0.0
    %1060 = vmatpush1.msra.mxu0 0.0
    %1061 = vmatprep.subr.mxu0 0.0
    %1062 = vmatpush1.msra.mxu0 0.0
    %1063 = vmatprep.mubr.f32.mxu0 0.0
    %1064 = vmatmul.mubr.f32.gmra.mrb[0].mxu0 %v146
    %v1065 = vpop.f32.mrb[0].mxu0
    %v1066 = vadd.f32 %v997, %v1065
    %v1067 = vpop.f32.mrb[0].mxu0
    %1068 = vmatprep.mubr.f32.mxu0 0.0
    %1069 = vmatmul.mubr.f32.gmra.mrb[0].mxu0 %v149
    %v1070 = vpop.f32.mrb[0].mxu0
    %v1071 = vadd.f32 %v997, %v1070
    %v1072 = vpop.f32.mrb[0].mxu0
    %1073 = vdwg.mxu0
    %v1075 = vsel %vm398, %v890, 0
    %v1078 = vsel %vm398, %v978, 0
    %1080 = vmatprep.subr.mxu0 0.0
    %1081 = vmatpush1.xpose.msra.mxu0 %v1078
    %1082 = vmatprep.subr.mxu0 0.0
    %1083 = vmatpush1.xpose.msra.mxu0 0.0
    %1084 = vmatprep.subr.mxu0 0.0
    %1085 = vmatpush1.xpose.msra.mxu0 0.0
    %1086 = vmatprep.subr.mxu0 0.0
    %1087 = vmatpush1.xpose.msra.mxu0 0.0
    %1088 = vmatprep.subr.mxu0 0.0
    %1089 = vmatpush1.xpose.msra.mxu0 0.0
    %1090 = vmatprep.subr.mxu0 0.0
    %1091 = vmatpush1.xpose.msra.mxu0 0.0
    %1092 = vmatprep.subr.mxu0 0.0
    %1093 = vmatpush1.xpose.msra.mxu0 0.0
    %1094 = vmatprep.subr.mxu0 0.0
    %1095 = vmatpush1.xpose.msra.mxu0 0.0
    %1096 = vmatprep.subr.mxu0 0.0
    %1097 = vmatpush1.xpose.msra.mxu0 0.0
    %1098 = vmatprep.subr.mxu0 0.0
    %1099 = vmatpush1.xpose.msra.mxu0 0.0
    %1100 = vmatprep.subr.mxu0 0.0
    %1101 = vmatpush1.xpose.msra.mxu0 0.0
    %1102 = vmatprep.subr.mxu0 0.0
    %1103 = vmatpush1.xpose.msra.mxu0 0.0
    %1104 = vmatprep.subr.mxu0 0.0
    %1105 = vmatpush1.xpose.msra.mxu0 0.0
    %1106 = vmatprep.subr.mxu0 0.0
    %1107 = vmatpush1.xpose.msra.mxu0 0.0
    %1108 = vmatprep.subr.mxu0 0.0
    %1109 = vmatpush1.xpose.msra.mxu0 0.0
    %1110 = vmatprep.subr.mxu0 0.0
    %1111 = vmatpush1.xpose.msra.mxu0 0.0
    %1112 = vmatprep.subr.mxu0 0.0
    %1113 = vmatpush1.xpose.msra.mxu0 0.0
    %1114 = vmatprep.subr.mxu0 0.0
    %1115 = vmatpush1.xpose.msra.mxu0 0.0
    %1116 = vmatprep.subr.mxu0 0.0
    %1117 = vmatpush1.xpose.msra.mxu0 0.0
    %1118 = vmatprep.subr.mxu0 0.0
    %1119 = vmatpush1.xpose.msra.mxu0 0.0
    %1120 = vmatprep.subr.mxu0 0.0
    %1121 = vmatpush1.xpose.msra.mxu0 0.0
    %1122 = vmatprep.subr.mxu0 0.0
    %1123 = vmatpush1.xpose.msra.mxu0 0.0
    %1124 = vmatprep.subr.mxu0 0.0
    %1125 = vmatpush1.xpose.msra.mxu0 0.0
    %1126 = vmatprep.subr.mxu0 0.0
    %1127 = vmatpush1.xpose.msra.mxu0 0.0
    %1128 = vmatprep.subr.mxu0 0.0
    %1129 = vmatpush1.xpose.msra.mxu0 0.0
    %1130 = vmatprep.subr.mxu0 0.0
    %1131 = vmatpush1.xpose.msra.mxu0 0.0
    %1132 = vmatprep.subr.mxu0 0.0
    %1133 = vmatpush1.xpose.msra.mxu0 0.0
    %1134 = vmatprep.subr.mxu0 0.0
    %1135 = vmatpush1.xpose.msra.mxu0 0.0
    %1136 = vmatprep.subr.mxu0 0.0
    %1137 = vmatpush1.xpose.msra.mxu0 0.0
    %1138 = vmatprep.subr.mxu0 0.0
    %1139 = vmatpush1.xpose.msra.mxu0 0.0
    %1140 = vmatprep.subr.mxu0 0.0
    %1141 = vmatpush1.xpose.msra.mxu0 0.0
    %1142 = vmatprep.subr.mxu0 0.0
    %1143 = vmatpush1.xpose.msra.mxu0 0.0
    %1144 = vmatprep.mubr.f32.mxu0 0.0
    %1145 = vmatmul.mubr.f32.gmra.mrb[0].mxu0 %v1075
    %v1146 = vpop.f32.mrb[0].mxu0
    %v1147 = vadd.f32 0.0, %v1146
    %v1148 = vpop.f32.mrb[0].mxu0
    %1149 = vdwg.mxu0
    %v1151 = vsel %vm398, %v895, 0
    %v1154 = vsel %vm398, %v983, 0
    %1156 = vmatprep.subr.mxu0 0.0
    %1157 = vmatpush1.xpose.msra.mxu0 %v1154
    %1158 = vmatprep.subr.mxu0 0.0
    %1159 = vmatpush1.xpose.msra.mxu0 0.0
    %1160 = vmatprep.subr.mxu0 0.0
    %1161 = vmatpush1.xpose.msra.mxu0 0.0
    %1162 = vmatprep.subr.mxu0 0.0
    %1163 = vmatpush1.xpose.msra.mxu0 0.0
    %1164 = vmatprep.subr.mxu0 0.0
    %1165 = vmatpush1.xpose.msra.mxu0 0.0
    %1166 = vmatprep.subr.mxu0 0.0
    %1167 = vmatpush1.xpose.msra.mxu0 0.0
    %1168 = vmatprep.subr.mxu0 0.0
    %1169 = vmatpush1.xpose.msra.mxu0 0.0
    %1170 = vmatprep.subr.mxu0 0.0
    %1171 = vmatpush1.xpose.msra.mxu0 0.0
    %1172 = vmatprep.subr.mxu0 0.0
    %1173 = vmatpush1.xpose.msra.mxu0 0.0
    %1174 = vmatprep.subr.mxu0 0.0
    %1175 = vmatpush1.xpose.msra.mxu0 0.0
    %1176 = vmatprep.subr.mxu0 0.0
    %1177 = vmatpush1.xpose.msra.mxu0 0.0
    %1178 = vmatprep.subr.mxu0 0.0
    %1179 = vmatpush1.xpose.msra.mxu0 0.0
    %1180 = vmatprep.subr.mxu0 0.0
    %1181 = vmatpush1.xpose.msra.mxu0 0.0
    %1182 = vmatprep.subr.mxu0 0.0
    %1183 = vmatpush1.xpose.msra.mxu0 0.0
    %1184 = vmatprep.subr.mxu0 0.0
    %1185 = vmatpush1.xpose.msra.mxu0 0.0
    %1186 = vmatprep.subr.mxu0 0.0
    %1187 = vmatpush1.xpose.msra.mxu0 0.0
    %1188 = vmatprep.subr.mxu0 0.0
    %1189 = vmatpush1.xpose.msra.mxu0 0.0
    %1190 = vmatprep.subr.mxu0 0.0
    %1191 = vmatpush1.xpose.msra.mxu0 0.0
    %1192 = vmatprep.subr.mxu0 0.0
    %1193 = vmatpush1.xpose.msra.mxu0 0.0
    %1194 = vmatprep.subr.mxu0 0.0
    %1195 = vmatpush1.xpose.msra.mxu0 0.0
    %1196 = vmatprep.subr.mxu0 0.0
    %1197 = vmatpush1.xpose.msra.mxu0 0.0
    %1198 = vmatprep.subr.mxu0 0.0
    %1199 = vmatpush1.xpose.msra.mxu0 0.0
    %1200 = vmatprep.subr.mxu0 0.0
    %1201 = vmatpush1.xpose.msra.mxu0 0.0
    %1202 = vmatprep.subr.mxu0 0.0
    %1203 = vmatpush1.xpose.msra.mxu0 0.0
    %1204 = vmatprep.subr.mxu0 0.0
    %1205 = vmatpush1.xpose.msra.mxu0 0.0
    %1206 = vmatprep.subr.mxu0 0.0
    %1207 = vmatpush1.xpose.msra.mxu0 0.0
    %1208 = vmatprep.subr.mxu0 0.0
    %1209 = vmatpush1.xpose.msra.mxu0 0.0
    %1210 = vmatprep.subr.mxu0 0.0
    %1211 = vmatpush1.xpose.msra.mxu0 0.0
    %1212 = vmatprep.subr.mxu0 0.0
    %1213 = vmatpush1.xpose.msra.mxu0 0.0
    %1214 = vmatprep.subr.mxu0 0.0
    %1215 = vmatpush1.xpose.msra.mxu0 0.0
    %1216 = vmatprep.subr.mxu0 0.0
    %1217 = vmatpush1.xpose.msra.mxu0 0.0
    %1218 = vmatprep.subr.mxu0 0.0
    %1219 = vmatpush1.xpose.msra.mxu0 0.0
    %1220 = vmatprep.mubr.f32.mxu0 0.0
    %1221 = vmatmul.mubr.f32.gmra.mrb[0].mxu0 %v1151
    %v1222 = vpop.f32.mrb[0].mxu0
    %v1223 = vadd.f32 0.0, %v1222
    %v1224 = vpop.f32.mrb[0].mxu0
    %1225 = vdwg.mxu0
    %v1226 = vmul.f32 %v1147, 0.35355338
    %v1227 = vmul.f32 %v1223, 0.35355338
    %v1228 = vsel %vm398, %v1226, -inf
    %1229 = vmax.xlane.f32.xlu0 %v1228
    %v1230 = vpop.xlane.xlu0 %1229
    %v1231 = vsel %vm398, %v1227, -inf
    %1232 = vmax.xlane.f32.xlu0 %v1231
    %v1233 = vpop.xlane.xlu0 %1232
    %v1234 = vsub.f32 %v1226, %v1230
    %v1235 = vsub.f32 %v1227, %v1233
    %v1236 = vmul.f32 %v1234, 1.442695
    %v1237 = vpow.pop %v1236
    %v1238 = vmul.f32 %v1235, 1.442695
    %v1239 = vpow.pop %v1238
    %v1240 = vsel %vm398, %v1237, 0.0
    %1241 = vadd.xlane.f32.xlu0 %v1240
    %v1242 = vpop.xlane.xlu0 %1241
    %v1243 = vsel %vm398, %v1239, 0.0
    %1244 = vadd.xlane.f32.xlu0 %v1243
    %v1245 = vpop.xlane.xlu0 %1244
    %v1246 = vrcp.pop %v1242
    %v1247 = vrcp.pop %v1245
    %v1248 = vmul.f32 %v1237, %v1246
    %v1249 = vmul.f32 %v1239, %v1247
    %v1250 = vsel %vm398, %v1248, 0.0
    %v1251 = vsel %vm398, %v1249, 0.0
    %v1252 = vadd.f32 %v1250, %v1251
    %v1253 = vmul.f32 %v1252, %v578
    %v1255 = vsel %vm398, %v1248, 0
    %1257 = vmatprep.subr.mxu0 0.0
    %1258 = vmatpush1.msra.mxu0 %v1066
    %1259 = vmatprep.subr.mxu0 0.0
    %1260 = vmatpush1.msra.mxu0 0.0
    %1261 = vmatprep.subr.mxu0 0.0
    %1262 = vmatpush1.msra.mxu0 0.0
    %1263 = vmatprep.subr.mxu0 0.0
    %1264 = vmatpush1.msra.mxu0 0.0
    %1265 = vmatprep.subr.mxu0 0.0
    %1266 = vmatpush1.msra.mxu0 0.0
    %1267 = vmatprep.subr.mxu0 0.0
    %1268 = vmatpush1.msra.mxu0 0.0
    %1269 = vmatprep.subr.mxu0 0.0
    %1270 = vmatpush1.msra.mxu0 0.0
    %1271 = vmatprep.subr.mxu0 0.0
    %1272 = vmatpush1.msra.mxu0 0.0
    %1273 = vmatprep.subr.mxu0 0.0
    %1274 = vmatpush1.msra.mxu0 0.0
    %1275 = vmatprep.subr.mxu0 0.0
    %1276 = vmatpush1.msra.mxu0 0.0
    %1277 = vmatprep.subr.mxu0 0.0
    %1278 = vmatpush1.msra.mxu0 0.0
    %1279 = vmatprep.subr.mxu0 0.0
    %1280 = vmatpush1.msra.mxu0 0.0
    %1281 = vmatprep.subr.mxu0 0.0
    %1282 = vmatpush1.msra.mxu0 0.0
    %1283 = vmatprep.subr.mxu0 0.0
    %1284 = vmatpush1.msra.mxu0 0.0
    %1285 = vmatprep.subr.mxu0 0.0
    %1286 = vmatpush1.msra.mxu0 0.0
    %1287 = vmatprep.subr.mxu0 0.0
    %1288 = vmatpush1.msra.mxu0 0.0
    %1289 = vmatprep.subr.mxu0 0.0
    %1290 = vmatpush1.msra.mxu0 0.0
    %1291 = vmatprep.subr.mxu0 0.0
    %1292 = vmatpush1.msra.mxu0 0.0
    %1293 = vmatprep.subr.mxu0 0.0
    %1294 = vmatpush1.msra.mxu0 0.0
    %1295 = vmatprep.subr.mxu0 0.0
    %1296 = vmatpush1.msra.mxu0 0.0
    %1297 = vmatprep.subr.mxu0 0.0
    %1298 = vmatpush1.msra.mxu0 0.0
    %1299 = vmatprep.subr.mxu0 0.0
    %1300 = vmatpush1.msra.mxu0 0.0
    %1301 = vmatprep.subr.mxu0 0.0
    %1302 = vmatpush1.msra.mxu0 0.0
    %1303 = vmatprep.subr.mxu0 0.0
    %1304 = vmatpush1.msra.mxu0 0.0
    %1305 = vmatprep.subr.mxu0 0.0
    %1306 = vmatpush1.msra.mxu0 0.0
    %1307 = vmatprep.subr.mxu0 0.0
    %1308 = vmatpush1.msra.mxu0 0.0
    %1309 = vmatprep.subr.mxu0 0.0
    %1310 = vmatpush1.msra.mxu0 0.0
    %1311 = vmatprep.subr.mxu0 0.0
    %1312 = vmatpush1.msra.mxu0 0.0
    %1313 = vmatprep.subr.mxu0 0.0
    %1314 = vmatpush1.msra.mxu0 0.0
    %1315 = vmatprep.subr.mxu0 0.0
    %1316 = vmatpush1.msra.mxu0 0.0
    %1317 = vmatprep.subr.mxu0 0.0
    %1318 = vmatpush1.msra.mxu0 0.0
    %1319 = vmatprep.subr.mxu0 0.0
    %1320 = vmatpush1.msra.mxu0 0.0
    %1321 = vmatprep.mubr.f32.mxu0 0.0
    %1322 = vmatmul.mubr.f32.gmra.mrb[0].mxu0 %v1255
    %v1323 = vpop.f32.mrb[0].mxu0
    %v1324 = vadd.f32 0.0, %v1323
    %v1325 = vpop.f32.mrb[0].mxu0
    %1326 = vdwg.mxu0
    %v1328 = vsel %vm398, %v1249, 0
    %1330 = vmatprep.subr.mxu0 0.0
    %1331 = vmatpush1.msra.mxu0 %v1071
    %1332 = vmatprep.subr.mxu0 0.0
    %1333 = vmatpush1.msra.mxu0 0.0
    %1334 = vmatprep.subr.mxu0 0.0
    %1335 = vmatpush1.msra.mxu0 0.0
    %1336 = vmatprep.subr.mxu0 0.0
    %1337 = vmatpush1.msra.mxu0 0.0
    %1338 = vmatprep.subr.mxu0 0.0
    %1339 = vmatpush1.msra.mxu0 0.0
    %1340 = vmatprep.subr.mxu0 0.0
    %1341 = vmatpush1.msra.mxu0 0.0
    %1342 = vmatprep.subr.mxu0 0.0
    %1343 = vmatpush1.msra.mxu0 0.0
    %1344 = vmatprep.subr.mxu0 0.0
    %1345 = vmatpush1.msra.mxu0 0.0
    %1346 = vmatprep.subr.mxu0 0.0
    %1347 = vmatpush1.msra.mxu0 0.0
    %1348 = vmatprep.subr.mxu0 0.0
    %1349 = vmatpush1.msra.mxu0 0.0
    %1350 = vmatprep.subr.mxu0 0.0
    %1351 = vmatpush1.msra.mxu0 0.0
    %1352 = vmatprep.subr.mxu0 0.0
    %1353 = vmatpush1.msra.mxu0 0.0
    %1354 = vmatprep.subr.mxu0 0.0
    %1355 = vmatpush1.msra.mxu0 0.0
    %1356 = vmatprep.subr.mxu0 0.0
    %1357 = vmatpush1.msra.mxu0 0.0
    %1358 = vmatprep.subr.mxu0 0.0
    %1359 = vmatpush1.msra.mxu0 0.0
    %1360 = vmatprep.subr.mxu0 0.0
    %1361 = vmatpush1.msra.mxu0 0.0
    %1362 = vmatprep.subr.mxu0 0.0
    %1363 = vmatpush1.msra.mxu0 0.0
    %1364 = vmatprep.subr.mxu0 0.0
    %1365 = vmatpush1.msra.mxu0 0.0
    %1366 = vmatprep.subr.mxu0 0.0
    %1367 = vmatpush1.msra.mxu0 0.0
    %1368 = vmatprep.subr.mxu0 0.0
    %1369 = vmatpush1.msra.mxu0 0.0
    %1370 = vmatprep.subr.mxu0 0.0
    %1371 = vmatpush1.msra.mxu0 0.0
    %1372 = vmatprep.subr.mxu0 0.0
    %1373 = vmatpush1.msra.mxu0 0.0
    %1374 = vmatprep.subr.mxu0 0.0
    %1375 = vmatpush1.msra.mxu0 0.0
    %1376 = vmatprep.subr.mxu0 0.0
    %1377 = vmatpush1.msra.mxu0 0.0
    %1378 = vmatprep.subr.mxu0 0.0
    %1379 = vmatpush1.msra.mxu0 0.0
    %1380 = vmatprep.subr.mxu0 0.0
    %1381 = vmatpush1.msra.mxu0 0.0
    %1382 = vmatprep.subr.mxu0 0.0
    %1383 = vmatpush1.msra.mxu0 0.0
    %1384 = vmatprep.subr.mxu0 0.0
    %1385 = vmatpush1.msra.mxu0 0.0
    %1386 = vmatprep.subr.mxu0 0.0
    %1387 = vmatpush1.msra.mxu0 0.0
    %1388 = vmatprep.subr.mxu0 0.0
    %1389 = vmatpush1.msra.mxu0 0.0
    %1390 = vmatprep.subr.mxu0 0.0
    %1391 = vmatpush1.msra.mxu0 0.0
    %1392 = vmatprep.subr.mxu0 0.0
    %1393 = vmatpush1.msra.mxu0 0.0
    %1394 = vmatprep.mubr.f32.mxu0 0.0
    %1395 = vmatmul.mubr.f32.gmra.mrb[0].mxu0 %v1328
    %v1396 = vpop.f32.mrb[0].mxu0
    %v1397 = vadd.f32 0.0, %v1396
    %v1398 = vpop.f32.mrb[0].mxu0
    %1399 = vdwg.mxu0
    %s1400 = scalar_lea.vmem %s9, 8
    %v1401 = vld [vmem:[%s1400] sm:$0xff]
    %v1403 = vsel %vm398, %v1324, 0
    %v1406 = vsel %vm398, %v1397, 0
    %1408 = vmatprep.subr.mxu0 0.0
    %1409 = vmatpush1.msra.mxu0 %v1401
    %1410 = vmatprep.subr.mxu0 0.0
    %1411 = vmatpush1.msra.mxu0 0.0
    %1412 = vmatprep.subr.mxu0 0.0
    %1413 = vmatpush1.msra.mxu0 0.0
    %1414 = vmatprep.subr.mxu0 0.0
    %1415 = vmatpush1.msra.mxu0 0.0
    %1416 = vmatprep.subr.mxu0 0.0
    %1417 = vmatpush1.msra.mxu0 0.0
    %1418 = vmatprep.subr.mxu0 0.0
    %1419 = vmatpush1.msra.mxu0 0.0
    %1420 = vmatprep.subr.mxu0 0.0
    %1421 = vmatpush1.msra.mxu0 0.0
    %1422 = vmatprep.subr.mxu0 0.0
    %1423 = vmatpush1.msra.mxu0 0.0
    %1424 = vmatprep.subr.mxu0 0.0
    %1425 = vmatpush1.msra.mxu0 0.0
    %1426 = vmatprep.subr.mxu0 0.0
    %1427 = vmatpush1.msra.mxu0 0.0
    %1428 = vmatprep.subr.mxu0 0.0
    %1429 = vmatpush1.msra.mxu0 0.0
    %1430 = vmatprep.subr.mxu0 0.0
    %1431 = vmatpush1.msra.mxu0 0.0
    %1432 = vmatprep.subr.mxu0 0.0
    %1433 = vmatpush1.msra.mxu0 0.0
    %1434 = vmatprep.subr.mxu0 0.0
    %1435 = vmatpush1.msra.mxu0 0.0
    %1436 = vmatprep.subr.mxu0 0.0
    %1437 = vmatpush1.msra.mxu0 0.0
    %1438 = vmatprep.subr.mxu0 0.0
    %1439 = vmatpush1.msra.mxu0 0.0
    %1440 = vmatprep.subr.mxu0 0.0
    %1441 = vmatpush1.msra.mxu0 0.0
    %1442 = vmatprep.subr.mxu0 0.0
    %1443 = vmatpush1.msra.mxu0 0.0
    %1444 = vmatprep.subr.mxu0 0.0
    %1445 = vmatpush1.msra.mxu0 0.0
    %1446 = vmatprep.subr.mxu0 0.0
    %1447 = vmatpush1.msra.mxu0 0.0
    %1448 = vmatprep.subr.mxu0 0.0
    %1449 = vmatpush1.msra.mxu0 0.0
    %1450 = vmatprep.subr.mxu0 0.0
    %1451 = vmatpush1.msra.mxu0 0.0
    %1452 = vmatprep.subr.mxu0 0.0
    %1453 = vmatpush1.msra.mxu0 0.0
    %1454 = vmatprep.subr.mxu0 0.0
    %1455 = vmatpush1.msra.mxu0 0.0
    %1456 = vmatprep.subr.mxu0 0.0
    %1457 = vmatpush1.msra.mxu0 0.0
    %1458 = vmatprep.subr.mxu0 0.0
    %1459 = vmatpush1.msra.mxu0 0.0
    %1460 = vmatprep.subr.mxu0 0.0
    %1461 = vmatpush1.msra.mxu0 0.0
    %1462 = vmatprep.subr.mxu0 0.0
    %1463 = vmatpush1.msra.mxu0 0.0
    %1464 = vmatprep.subr.mxu0 0.0
    %1465 = vmatpush1.msra.mxu0 0.0
    %1466 = vmatprep.subr.mxu0 0.0
    %1467 = vmatpush1.msra.mxu0 0.0
    %1468 = vmatprep.subr.mxu0 0.0
    %1469 = vmatpush1.msra.mxu0 0.0
    %1470 = vmatprep.subr.mxu0 0.0
    %1471 = vmatpush1.msra.mxu0 0.0
    %1472 = vmatprep.mubr.f32.mxu0 0.0
    %1473 = vmatmul.mubr.f32.gmra.mrb[0].mxu0 %v1403
    %v1474 = vpop.f32.mrb[0].mxu0
    %v1475 = vadd.f32 0.0, %v1474
    %v1476 = vpop.f32.mrb[0].mxu0
    %1477 = vmatprep.mubr.f32.mxu0 0.0
    %1478 = vmatmul.mubr.f32.gmra.mrb[0].mxu0 %v1406
    %v1479 = vpop.f32.mrb[0].mxu0
    %v1480 = vadd.f32 0.0, %v1479
    %v1481 = vpop.f32.mrb[0].mxu0
    %1482 = vdwg.mxu0
    %v1483 = vadd.f32 %v808, %v1475
    %v1484 = vadd.f32 %v809, %v1480
    %s1485 = scalar_lea.vmem %s3, 64
    %v1486 = vld [vmem:[%s1485] sm:$0xff]
    %v1487 = vld [vmem:[%s1485 + $0x8] sm:$0xff]
    %v1488 = vld [vmem:[%s1485 + $0x10] sm:$0xff]
    %v1489 = vld [vmem:[%s1485 + $0x18] sm:$0xff]
    %s1490 = scalar_lea.vmem %s4, 2
    %v1491 = vld [vmem:[%s1490] sm:$0x1]
    %v1493 = vlaneseq
    %v1494 = vshrl.u32 %v1493, 7
    %v1495 = vsub.s32 0, %v1494
    %v1496 = vrot.slane %v1491, %v1495
    %1498 = vmatprep.subr.mxu0 0.0
    %1499 = vmatpush1.msra.mxu0 %v1486
    %1500 = vmatprep.subr.mxu0 0.0
    %1501 = vmatpush1.msra.mxu0 %v1487
    %1502 = vmatprep.subr.mxu0 0.0
    %1503 = vmatpush1.msra.mxu0 %v1488
    %1504 = vmatprep.subr.mxu0 0.0
    %1505 = vmatpush1.msra.mxu0 %v1489
    %1506 = vmatprep.subr.mxu0 0.0
    %1507 = vmatpush1.msra.mxu0 0.0
    %1508 = vmatprep.subr.mxu0 0.0
    %1509 = vmatpush1.msra.mxu0 0.0
    %1510 = vmatprep.subr.mxu0 0.0
    %1511 = vmatpush1.msra.mxu0 0.0
    %1512 = vmatprep.subr.mxu0 0.0
    %1513 = vmatpush1.msra.mxu0 0.0
    %1514 = vmatprep.subr.mxu0 0.0
    %1515 = vmatpush1.msra.mxu0 0.0
    %1516 = vmatprep.subr.mxu0 0.0
    %1517 = vmatpush1.msra.mxu0 0.0
    %1518 = vmatprep.subr.mxu0 0.0
    %1519 = vmatpush1.msra.mxu0 0.0
    %1520 = vmatprep.subr.mxu0 0.0
    %1521 = vmatpush1.msra.mxu0 0.0
    %1522 = vmatprep.subr.mxu0 0.0
    %1523 = vmatpush1.msra.mxu0 0.0
    %1524 = vmatprep.subr.mxu0 0.0
    %1525 = vmatpush1.msra.mxu0 0.0
    %1526 = vmatprep.subr.mxu0 0.0
    %1527 = vmatpush1.msra.mxu0 0.0
    %1528 = vmatprep.subr.mxu0 0.0
    %1529 = vmatpush1.msra.mxu0 0.0
    %1530 = vmatprep.subr.mxu0 0.0
    %1531 = vmatpush1.msra.mxu0 0.0
    %1532 = vmatprep.subr.mxu0 0.0
    %1533 = vmatpush1.msra.mxu0 0.0
    %1534 = vmatprep.subr.mxu0 0.0
    %1535 = vmatpush1.msra.mxu0 0.0
    %1536 = vmatprep.subr.mxu0 0.0
    %1537 = vmatpush1.msra.mxu0 0.0
    %1538 = vmatprep.subr.mxu0 0.0
    %1539 = vmatpush1.msra.mxu0 0.0
    %1540 = vmatprep.subr.mxu0 0.0
    %1541 = vmatpush1.msra.mxu0 0.0
    %1542 = vmatprep.subr.mxu0 0.0
    %1543 = vmatpush1.msra.mxu0 0.0
    %1544 = vmatprep.subr.mxu0 0.0
    %1545 = vmatpush1.msra.mxu0 0.0
    %1546 = vmatprep.subr.mxu0 0.0
    %1547 = vmatpush1.msra.mxu0 0.0
    %1548 = vmatprep.subr.mxu0 0.0
    %1549 = vmatpush1.msra.mxu0 0.0
    %1550 = vmatprep.subr.mxu0 0.0
    %1551 = vmatpush1.msra.mxu0 0.0
    %1552 = vmatprep.subr.mxu0 0.0
    %1553 = vmatpush1.msra.mxu0 0.0
    %1554 = vmatprep.subr.mxu0 0.0
    %1555 = vmatpush1.msra.mxu0 0.0
    %1556 = vmatprep.subr.mxu0 0.0
    %1557 = vmatpush1.msra.mxu0 0.0
    %1558 = vmatprep.subr.mxu0 0.0
    %1559 = vmatpush1.msra.mxu0 0.0
    %1560 = vmatprep.subr.mxu0 0.0
    %1561 = vmatpush1.msra.mxu0 0.0
    %1562 = vmatprep.mubr.f32.mxu0 0.0
    %1563 = vmatmul.mubr.f32.gmra.mrb[0].mxu0 %v146
    %v1564 = vpop.f32.mrb[0].mxu0
    %v1565 = vadd.f32 %v1496, %v1564
    %v1566 = vpop.f32.mrb[0].mxu0
    %1567 = vmatprep.mubr.f32.mxu0 0.0
    %1568 = vmatmul.mubr.f32.gmra.mrb[0].mxu0 %v149
    %v1569 = vpop.f32.mrb[0].mxu0
    %v1570 = vadd.f32 %v1496, %v1569
    %v1571 = vpop.f32.mrb[0].mxu0
    %1572 = vdwg.mxu0
    %s1573 = scalar_lea.vmem %s5, 64
    %v1574 = vld [vmem:[%s1573] sm:$0xff]
    %v1575 = vld [vmem:[%s1573 + $0x8] sm:$0xff]
    %v1576 = vld [vmem:[%s1573 + $0x10] sm:$0xff]
    %v1577 = vld [vmem:[%s1573 + $0x18] sm:$0xff]
    %s1578 = scalar_lea.vmem %s6, 2
    %v1579 = vld [vmem:[%s1578] sm:$0x1]
    %v1581 = vlaneseq
    %v1582 = vshrl.u32 %v1581, 7
    %v1583 = vsub.s32 0, %v1582
    %v1584 = vrot.slane %v1579, %v1583
    %1586 = vmatprep.subr.mxu0 0.0
    %1587 = vmatpush1.msra.mxu0 %v1574
    %1588 = vmatprep.subr.mxu0 0.0
    %1589 = vmatpush1.msra.mxu0 %v1575
    %1590 = vmatprep.subr.mxu0 0.0
    %1591 = vmatpush1.msra.mxu0 %v1576
    %1592 = vmatprep.subr.mxu0 0.0
    %1593 = vmatpush1.msra.mxu0 %v1577
    %1594 = vmatprep.subr.mxu0 0.0
    %1595 = vmatpush1.msra.mxu0 0.0
    %1596 = vmatprep.subr.mxu0 0.0
    %1597 = vmatpush1.msra.mxu0 0.0
    %1598 = vmatprep.subr.mxu0 0.0
    %1599 = vmatpush1.msra.mxu0 0.0
    %1600 = vmatprep.subr.mxu0 0.0
    %1601 = vmatpush1.msra.mxu0 0.0
    %1602 = vmatprep.subr.mxu0 0.0
    %1603 = vmatpush1.msra.mxu0 0.0
    %1604 = vmatprep.subr.mxu0 0.0
    %1605 = vmatpush1.msra.mxu0 0.0
    %1606 = vmatprep.subr.mxu0 0.0
    %1607 = vmatpush1.msra.mxu0 0.0
    %1608 = vmatprep.subr.mxu0 0.0
    %1609 = vmatpush1.msra.mxu0 0.0
    %1610 = vmatprep.subr.mxu0 0.0
    %1611 = vmatpush1.msra.mxu0 0.0
    %1612 = vmatprep.subr.mxu0 0.0
    %1613 = vmatpush1.msra.mxu0 0.0
    %1614 = vmatprep.subr.mxu0 0.0
    %1615 = vmatpush1.msra.mxu0 0.0
    %1616 = vmatprep.subr.mxu0 0.0
    %1617 = vmatpush1.msra.mxu0 0.0
    %1618 = vmatprep.subr.mxu0 0.0
    %1619 = vmatpush1.msra.mxu0 0.0
    %1620 = vmatprep.subr.mxu0 0.0
    %1621 = vmatpush1.msra.mxu0 0.0
    %1622 = vmatprep.subr.mxu0 0.0
    %1623 = vmatpush1.msra.mxu0 0.0
    %1624 = vmatprep.subr.mxu0 0.0
    %1625 = vmatpush1.msra.mxu0 0.0
    %1626 = vmatprep.subr.mxu0 0.0
    %1627 = vmatpush1.msra.mxu0 0.0
    %1628 = vmatprep.subr.mxu0 0.0
    %1629 = vmatpush1.msra.mxu0 0.0
    %1630 = vmatprep.subr.mxu0 0.0
    %1631 = vmatpush1.msra.mxu0 0.0
    %1632 = vmatprep.subr.mxu0 0.0
    %1633 = vmatpush1.msra.mxu0 0.0
    %1634 = vmatprep.subr.mxu0 0.0
    %1635 = vmatpush1.msra.mxu0 0.0
    %1636 = vmatprep.subr.mxu0 0.0
    %1637 = vmatpush1.msra.mxu0 0.0
    %1638 = vmatprep.subr.mxu0 0.0
    %1639 = vmatpush1.msra.mxu0 0.0
    %1640 = vmatprep.subr.mxu0 0.0
    %1641 = vmatpush1.msra.mxu0 0.0
    %1642 = vmatprep.subr.mxu0 0.0
    %1643 = vmatpush1.msra.mxu0 0.0
    %1644 = vmatprep.subr.mxu0 0.0
    %1645 = vmatpush1.msra.mxu0 0.0
    %1646 = vmatprep.subr.mxu0 0.0
    %1647 = vmatpush1.msra.mxu0 0.0
    %1648 = vmatprep.subr.mxu0 0.0
    %1649 = vmatpush1.msra.mxu0 0.0
    %1650 = vmatprep.mubr.f32.mxu0 0.0
    %1651 = vmatmul.mubr.f32.gmra.mrb[0].mxu0 %v146
    %v1652 = vpop.f32.mrb[0].mxu0
    %v1653 = vadd.f32 %v1584, %v1652
    %v1654 = vpop.f32.mrb[0].mxu0
    %1655 = vmatprep.mubr.f32.mxu0 0.0
    %1656 = vmatmul.mubr.f32.gmra.mrb[0].mxu0 %v149
    %v1657 = vpop.f32.mrb[0].mxu0
    %v1658 = vadd.f32 %v1584, %v1657
    %v1659 = vpop.f32.mrb[0].mxu0
    %1660 = vdwg.mxu0
    %s1661 = scalar_lea.vmem %s7, 64
    %v1662 = vld [vmem:[%s1661] sm:$0xff]
    %v1663 = vld [vmem:[%s1661 + $0x8] sm:$0xff]
    %v1664 = vld [vmem:[%s1661 + $0x10] sm:$0xff]
    %v1665 = vld [vmem:[%s1661 + $0x18] sm:$0xff]
    %s1666 = scalar_lea.vmem %s8, 2
    %v1667 = vld [vmem:[%s1666] sm:$0x1]
    %v1669 = vlaneseq
    %v1670 = vshrl.u32 %v1669, 7
    %v1671 = vsub.s32 0, %v1670
    %v1672 = vrot.slane %v1667, %v1671
    %1674 = vmatprep.subr.mxu0 0.0
    %1675 = vmatpush1.msra.mxu0 %v1662
    %1676 = vmatprep.subr.mxu0 0.0
    %1677 = vmatpush1.msra.mxu0 %v1663
    %1678 = vmatprep.subr.mxu0 0.0
    %1679 = vmatpush1.msra.mxu0 %v1664
    %1680 = vmatprep.subr.mxu0 0.0
    %1681 = vmatpush1.msra.mxu0 %v1665
    %1682 = vmatprep.subr.mxu0 0.0
    %1683 = vmatpush1.msra.mxu0 0.0
    %1684 = vmatprep.subr.mxu0 0.0
    %1685 = vmatpush1.msra.mxu0 0.0
    %1686 = vmatprep.subr.mxu0 0.0
    %1687 = vmatpush1.msra.mxu0 0.0
    %1688 = vmatprep.subr.mxu0 0.0
    %1689 = vmatpush1.msra.mxu0 0.0
    %1690 = vmatprep.subr.mxu0 0.0
    %1691 = vmatpush1.msra.mxu0 0.0
    %1692 = vmatprep.subr.mxu0 0.0
    %1693 = vmatpush1.msra.mxu0 0.0
    %1694 = vmatprep.subr.mxu0 0.0
    %1695 = vmatpush1.msra.mxu0 0.0
    %1696 = vmatprep.subr.mxu0 0.0
    %1697 = vmatpush1.msra.mxu0 0.0
    %1698 = vmatprep.subr.mxu0 0.0
    %1699 = vmatpush1.msra.mxu0 0.0
    %1700 = vmatprep.subr.mxu0 0.0
    %1701 = vmatpush1.msra.mxu0 0.0
    %1702 = vmatprep.subr.mxu0 0.0
    %1703 = vmatpush1.msra.mxu0 0.0
    %1704 = vmatprep.subr.mxu0 0.0
    %1705 = vmatpush1.msra.mxu0 0.0
    %1706 = vmatprep.subr.mxu0 0.0
    %1707 = vmatpush1.msra.mxu0 0.0
    %1708 = vmatprep.subr.mxu0 0.0
    %1709 = vmatpush1.msra.mxu0 0.0
    %1710 = vmatprep.subr.mxu0 0.0
    %1711 = vmatpush1.msra.mxu0 0.0
    %1712 = vmatprep.subr.mxu0 0.0
    %1713 = vmatpush1.msra.mxu0 0.0
    %1714 = vmatprep.subr.mxu0 0.0
    %1715 = vmatpush1.msra.mxu0 0.0
    %1716 = vmatprep.subr.mxu0 0.0
    %1717 = vmatpush1.msra.mxu0 0.0
    %1718 = vmatprep.subr.mxu0 0.0
    %1719 = vmatpush1.msra.mxu0 0.0
    %1720 = vmatprep.subr.mxu0 0.0
    %1721 = vmatpush1.msra.mxu0 0.0
    %1722 = vmatprep.subr.mxu0 0.0
    %1723 = vmatpush1.msra.mxu0 0.0
    %1724 = vmatprep.subr.mxu0 0.0
    %1725 = vmatpush1.msra.mxu0 0.0
    %1726 = vmatprep.subr.mxu0 0.0
    %1727 = vmatpush1.msra.mxu0 0.0
    %1728 = vmatprep.subr.mxu0 0.0
    %1729 = vmatpush1.msra.mxu0 0.0
    %1730 = vmatprep.subr.mxu0 0.0
    %1731 = vmatpush1.msra.mxu0 0.0
    %1732 = vmatprep.subr.mxu0 0.0
    %1733 = vmatpush1.msra.mxu0 0.0
    %1734 = vmatprep.subr.mxu0 0.0
    %1735 = vmatpush1.msra.mxu0 0.0
    %1736 = vmatprep.subr.mxu0 0.0
    %1737 = vmatpush1.msra.mxu0 0.0
    %1738 = vmatprep.mubr.f32.mxu0 0.0
    %1739 = vmatmul.mubr.f32.gmra.mrb[0].mxu0 %v146
    %v1740 = vpop.f32.mrb[0].mxu0
    %v1741 = vadd.f32 %v1672, %v1740
    %v1742 = vpop.f32.mrb[0].mxu0
    %1743 = vmatprep.mubr.f32.mxu0 0.0
    %1744 = vmatmul.mubr.f32.gmra.mrb[0].mxu0 %v149
    %v1745 = vpop.f32.mrb[0].mxu0
    %v1746 = vadd.f32 %v1672, %v1745
    %v1747 = vpop.f32.mrb[0].mxu0
    %1748 = vdwg.mxu0
    %v1750 = vsel %vm398, %v1565, 0
    %v1753 = vsel %vm398, %v1653, 0
    %1755 = vmatprep.subr.mxu0 0.0
    %1756 = vmatpush1.xpose.msra.mxu0 %v1753
    %1757 = vmatprep.subr.mxu0 0.0
    %1758 = vmatpush1.xpose.msra.mxu0 0.0
    %1759 = vmatprep.subr.mxu0 0.0
    %1760 = vmatpush1.xpose.msra.mxu0 0.0
    %1761 = vmatprep.subr.mxu0 0.0
    %1762 = vmatpush1.xpose.msra.mxu0 0.0
    %1763 = vmatprep.subr.mxu0 0.0
    %1764 = vmatpush1.xpose.msra.mxu0 0.0
    %1765 = vmatprep.subr.mxu0 0.0
    %1766 = vmatpush1.xpose.msra.mxu0 0.0
    %1767 = vmatprep.subr.mxu0 0.0
    %1768 = vmatpush1.xpose.msra.mxu0 0.0
    %1769 = vmatprep.subr.mxu0 0.0
    %1770 = vmatpush1.xpose.msra.mxu0 0.0
    %1771 = vmatprep.subr.mxu0 0.0
    %1772 = vmatpush1.xpose.msra.mxu0 0.0
    %1773 = vmatprep.subr.mxu0 0.0
    %1774 = vmatpush1.xpose.msra.mxu0 0.0
    %1775 = vmatprep.subr.mxu0 0.0
    %1776 = vmatpush1.xpose.msra.mxu0 0.0
    %1777 = vmatprep.subr.mxu0 0.0
    %1778 = vmatpush1.xpose.msra.mxu0 0.0
    %1779 = vmatprep.subr.mxu0 0.0
    %1780 = vmatpush1.xpose.msra.mxu0 0.0
    %1781 = vmatprep.subr.mxu0 0.0
    %1782 = vmatpush1.xpose.msra.mxu0 0.0
    %1783 = vmatprep.subr.mxu0 0.0
    %1784 = vmatpush1.xpose.msra.mxu0 0.0
    %1785 = vmatprep.subr.mxu0 0.0
    %1786 = vmatpush1.xpose.msra.mxu0 0.0
    %1787 = vmatprep.subr.mxu0 0.0
    %1788 = vmatpush1.xpose.msra.mxu0 0.0
    %1789 = vmatprep.subr.mxu0 0.0
    %1790 = vmatpush1.xpose.msra.mxu0 0.0
    %1791 = vmatprep.subr.mxu0 0.0
    %1792 = vmatpush1.xpose.msra.mxu0 0.0
    %1793 = vmatprep.subr.mxu0 0.0
    %1794 = vmatpush1.xpose.msra.mxu0 0.0
    %1795 = vmatprep.subr.mxu0 0.0
    %1796 = vmatpush1.xpose.msra.mxu0 0.0
    %1797 = vmatprep.subr.mxu0 0.0
    %1798 = vmatpush1.xpose.msra.mxu0 0.0
    %1799 = vmatprep.subr.mxu0 0.0
    %1800 = vmatpush1.xpose.msra.mxu0 0.0
    %1801 = vmatprep.subr.mxu0 0.0
    %1802 = vmatpush1.xpose.msra.mxu0 0.0
    %1803 = vmatprep.subr.mxu0 0.0
    %1804 = vmatpush1.xpose.msra.mxu0 0.0
    %1805 = vmatprep.subr.mxu0 0.0
    %1806 = vmatpush1.xpose.msra.mxu0 0.0
    %1807 = vmatprep.subr.mxu0 0.0
    %1808 = vmatpush1.xpose.msra.mxu0 0.0
    %1809 = vmatprep.subr.mxu0 0.0
    %1810 = vmatpush1.xpose.msra.mxu0 0.0
    %1811 = vmatprep.subr.mxu0 0.0
    %1812 = vmatpush1.xpose.msra.mxu0 0.0
    %1813 = vmatprep.subr.mxu0 0.0
    %1814 = vmatpush1.xpose.msra.mxu0 0.0
    %1815 = vmatprep.subr.mxu0 0.0
    %1816 = vmatpush1.xpose.msra.mxu0 0.0
    %1817 = vmatprep.subr.mxu0 0.0
    %1818 = vmatpush1.xpose.msra.mxu0 0.0
    %1819 = vmatprep.mubr.f32.mxu0 0.0
    %1820 = vmatmul.mubr.f32.gmra.mrb[0].mxu0 %v1750
    %v1821 = vpop.f32.mrb[0].mxu0
    %v1822 = vadd.f32 0.0, %v1821
    %v1823 = vpop.f32.mrb[0].mxu0
    %1824 = vdwg.mxu0
    %v1826 = vsel %vm398, %v1570, 0
    %v1829 = vsel %vm398, %v1658, 0
    %1831 = vmatprep.subr.mxu0 0.0
    %1832 = vmatpush1.xpose.msra.mxu0 %v1829
    %1833 = vmatprep.subr.mxu0 0.0
    %1834 = vmatpush1.xpose.msra.mxu0 0.0
    %1835 = vmatprep.subr.mxu0 0.0
    %1836 = vmatpush1.xpose.msra.mxu0 0.0
    %1837 = vmatprep.subr.mxu0 0.0
    %1838 = vmatpush1.xpose.msra.mxu0 0.0
    %1839 = vmatprep.subr.mxu0 0.0
    %1840 = vmatpush1.xpose.msra.mxu0 0.0
    %1841 = vmatprep.subr.mxu0 0.0
    %1842 = vmatpush1.xpose.msra.mxu0 0.0
    %1843 = vmatprep.subr.mxu0 0.0
    %1844 = vmatpush1.xpose.msra.mxu0 0.0
    %1845 = vmatprep.subr.mxu0 0.0
    %1846 = vmatpush1.xpose.msra.mxu0 0.0
    %1847 = vmatprep.subr.mxu0 0.0
    %1848 = vmatpush1.xpose.msra.mxu0 0.0
    %1849 = vmatprep.subr.mxu0 0.0
    %1850 = vmatpush1.xpose.msra.mxu0 0.0
    %1851 = vmatprep.subr.mxu0 0.0
    %1852 = vmatpush1.xpose.msra.mxu0 0.0
    %1853 = vmatprep.subr.mxu0 0.0
    %1854 = vmatpush1.xpose.msra.mxu0 0.0
    %1855 = vmatprep.subr.mxu0 0.0
    %1856 = vmatpush1.xpose.msra.mxu0 0.0
    %1857 = vmatprep.subr.mxu0 0.0
    %1858 = vmatpush1.xpose.msra.mxu0 0.0
    %1859 = vmatprep.subr.mxu0 0.0
    %1860 = vmatpush1.xpose.msra.mxu0 0.0
    %1861 = vmatprep.subr.mxu0 0.0
    %1862 = vmatpush1.xpose.msra.mxu0 0.0
    %1863 = vmatprep.subr.mxu0 0.0
    %1864 = vmatpush1.xpose.msra.mxu0 0.0
    %1865 = vmatprep.subr.mxu0 0.0
    %1866 = vmatpush1.xpose.msra.mxu0 0.0
    %1867 = vmatprep.subr.mxu0 0.0
    %1868 = vmatpush1.xpose.msra.mxu0 0.0
    %1869 = vmatprep.subr.mxu0 0.0
    %1870 = vmatpush1.xpose.msra.mxu0 0.0
    %1871 = vmatprep.subr.mxu0 0.0
    %1872 = vmatpush1.xpose.msra.mxu0 0.0
    %1873 = vmatprep.subr.mxu0 0.0
    %1874 = vmatpush1.xpose.msra.mxu0 0.0
    %1875 = vmatprep.subr.mxu0 0.0
    %1876 = vmatpush1.xpose.msra.mxu0 0.0
    %1877 = vmatprep.subr.mxu0 0.0
    %1878 = vmatpush1.xpose.msra.mxu0 0.0
    %1879 = vmatprep.subr.mxu0 0.0
    %1880 = vmatpush1.xpose.msra.mxu0 0.0
    %1881 = vmatprep.subr.mxu0 0.0
    %1882 = vmatpush1.xpose.msra.mxu0 0.0
    %1883 = vmatprep.subr.mxu0 0.0
    %1884 = vmatpush1.xpose.msra.mxu0 0.0
    %1885 = vmatprep.subr.mxu0 0.0
    %1886 = vmatpush1.xpose.msra.mxu0 0.0
    %1887 = vmatprep.subr.mxu0 0.0
    %1888 = vmatpush1.xpose.msra.mxu0 0.0
    %1889 = vmatprep.subr.mxu0 0.0
    %1890 = vmatpush1.xpose.msra.mxu0 0.0
    %1891 = vmatprep.subr.mxu0 0.0
    %1892 = vmatpush1.xpose.msra.mxu0 0.0
    %1893 = vmatprep.subr.mxu0 0.0
    %1894 = vmatpush1.xpose.msra.mxu0 0.0
    %1895 = vmatprep.mubr.f32.mxu0 0.0
    %1896 = vmatmul.mubr.f32.gmra.mrb[0].mxu0 %v1826
    %v1897 = vpop.f32.mrb[0].mxu0
    %v1898 = vadd.f32 0.0, %v1897
    %v1899 = vpop.f32.mrb[0].mxu0
    %1900 = vdwg.mxu0
    %v1901 = vmul.f32 %v1822, 0.35355338
    %v1902 = vmul.f32 %v1898, 0.35355338
    %v1903 = vsel %vm398, %v1901, -inf
    %1904 = vmax.xlane.f32.xlu0 %v1903
    %v1905 = vpop.xlane.xlu0 %1904
    %v1906 = vsel %vm398, %v1902, -inf
    %1907 = vmax.xlane.f32.xlu0 %v1906
    %v1908 = vpop.xlane.xlu0 %1907
    %v1909 = vsub.f32 %v1901, %v1905
    %v1910 = vsub.f32 %v1902, %v1908
    %v1911 = vmul.f32 %v1909, 1.442695
    %v1912 = vpow.pop %v1911
    %v1913 = vmul.f32 %v1910, 1.442695
    %v1914 = vpow.pop %v1913
    %v1915 = vsel %vm398, %v1912, 0.0
    %1916 = vadd.xlane.f32.xlu0 %v1915
    %v1917 = vpop.xlane.xlu0 %1916
    %v1918 = vsel %vm398, %v1914, 0.0
    %1919 = vadd.xlane.f32.xlu0 %v1918
    %v1920 = vpop.xlane.xlu0 %1919
    %v1921 = vrcp.pop %v1917
    %v1922 = vrcp.pop %v1920
    %v1923 = vmul.f32 %v1912, %v1921
    %v1924 = vmul.f32 %v1914, %v1922
    %v1925 = vsel %vm398, %v1923, 0.0
    %v1926 = vsel %vm398, %v1924, 0.0
    %v1927 = vadd.f32 %v1925, %v1926
    %v1928 = vmul.f32 %v1927, %v578
    %v1930 = vsel %vm398, %v1923, 0
    %1932 = vmatprep.subr.mxu0 0.0
    %1933 = vmatpush1.msra.mxu0 %v1741
    %1934 = vmatprep.subr.mxu0 0.0
    %1935 = vmatpush1.msra.mxu0 0.0
    %1936 = vmatprep.subr.mxu0 0.0
    %1937 = vmatpush1.msra.mxu0 0.0
    %1938 = vmatprep.subr.mxu0 0.0
    %1939 = vmatpush1.msra.mxu0 0.0
    %1940 = vmatprep.subr.mxu0 0.0
    %1941 = vmatpush1.msra.mxu0 0.0
    %1942 = vmatprep.subr.mxu0 0.0
    %1943 = vmatpush1.msra.mxu0 0.0
    %1944 = vmatprep.subr.mxu0 0.0
    %1945 = vmatpush1.msra.mxu0 0.0
    %1946 = vmatprep.subr.mxu0 0.0
    %1947 = vmatpush1.msra.mxu0 0.0
    %1948 = vmatprep.subr.mxu0 0.0
    %1949 = vmatpush1.msra.mxu0 0.0
    %1950 = vmatprep.subr.mxu0 0.0
    %1951 = vmatpush1.msra.mxu0 0.0
    %1952 = vmatprep.subr.mxu0 0.0
    %1953 = vmatpush1.msra.mxu0 0.0
    %1954 = vmatprep.subr.mxu0 0.0
    %1955 = vmatpush1.msra.mxu0 0.0
    %1956 = vmatprep.subr.mxu0 0.0
    %1957 = vmatpush1.msra.mxu0 0.0
    %1958 = vmatprep.subr.mxu0 0.0
    %1959 = vmatpush1.msra.mxu0 0.0
    %1960 = vmatprep.subr.mxu0 0.0
    %1961 = vmatpush1.msra.mxu0 0.0
    %1962 = vmatprep.subr.mxu0 0.0
    %1963 = vmatpush1.msra.mxu0 0.0
    %1964 = vmatprep.subr.mxu0 0.0
    %1965 = vmatpush1.msra.mxu0 0.0
    %1966 = vmatprep.subr.mxu0 0.0
    %1967 = vmatpush1.msra.mxu0 0.0
    %1968 = vmatprep.subr.mxu0 0.0
    %1969 = vmatpush1.msra.mxu0 0.0
    %1970 = vmatprep.subr.mxu0 0.0
    %1971 = vmatpush1.msra.mxu0 0.0
    %1972 = vmatprep.subr.mxu0 0.0
    %1973 = vmatpush1.msra.mxu0 0.0
    %1974 = vmatprep.subr.mxu0 0.0
    %1975 = vmatpush1.msra.mxu0 0.0
    %1976 = vmatprep.subr.mxu0 0.0
    %1977 = vmatpush1.msra.mxu0 0.0
    %1978 = vmatprep.subr.mxu0 0.0
    %1979 = vmatpush1.msra.mxu0 0.0
    %1980 = vmatprep.subr.mxu0 0.0
    %1981 = vmatpush1.msra.mxu0 0.0
    %1982 = vmatprep.subr.mxu0 0.0
    %1983 = vmatpush1.msra.mxu0 0.0
    %1984 = vmatprep.subr.mxu0 0.0
    %1985 = vmatpush1.msra.mxu0 0.0
    %1986 = vmatprep.subr.mxu0 0.0
    %1987 = vmatpush1.msra.mxu0 0.0
    %1988 = vmatprep.subr.mxu0 0.0
    %1989 = vmatpush1.msra.mxu0 0.0
    %1990 = vmatprep.subr.mxu0 0.0
    %1991 = vmatpush1.msra.mxu0 0.0
    %1992 = vmatprep.subr.mxu0 0.0
    %1993 = vmatpush1.msra.mxu0 0.0
    %1994 = vmatprep.subr.mxu0 0.0
    %1995 = vmatpush1.msra.mxu0 0.0
    %1996 = vmatprep.mubr.f32.mxu0 0.0
    %1997 = vmatmul.mubr.f32.gmra.mrb[0].mxu0 %v1930
    %v1998 = vpop.f32.mrb[0].mxu0
    %v1999 = vadd.f32 0.0, %v1998
    %v2000 = vpop.f32.mrb[0].mxu0
    %2001 = vdwg.mxu0
    %v2003 = vsel %vm398, %v1924, 0
    %2005 = vmatprep.subr.mxu0 0.0
    %2006 = vmatpush1.msra.mxu0 %v1746
    %2007 = vmatprep.subr.mxu0 0.0
    %2008 = vmatpush1.msra.mxu0 0.0
    %2009 = vmatprep.subr.mxu0 0.0
    %2010 = vmatpush1.msra.mxu0 0.0
    %2011 = vmatprep.subr.mxu0 0.0
    %2012 = vmatpush1.msra.mxu0 0.0
    %2013 = vmatprep.subr.mxu0 0.0
    %2014 = vmatpush1.msra.mxu0 0.0
    %2015 = vmatprep.subr.mxu0 0.0
    %2016 = vmatpush1.msra.mxu0 0.0
    %2017 = vmatprep.subr.mxu0 0.0
    %2018 = vmatpush1.msra.mxu0 0.0
    %2019 = vmatprep.subr.mxu0 0.0
    %2020 = vmatpush1.msra.mxu0 0.0
    %2021 = vmatprep.subr.mxu0 0.0
    %2022 = vmatpush1.msra.mxu0 0.0
    %2023 = vmatprep.subr.mxu0 0.0
    %2024 = vmatpush1.msra.mxu0 0.0
    %2025 = vmatprep.subr.mxu0 0.0
    %2026 = vmatpush1.msra.mxu0 0.0
    %2027 = vmatprep.subr.mxu0 0.0
    %2028 = vmatpush1.msra.mxu0 0.0
    %2029 = vmatprep.subr.mxu0 0.0
    %2030 = vmatpush1.msra.mxu0 0.0
    %2031 = vmatprep.subr.mxu0 0.0
    %2032 = vmatpush1.msra.mxu0 0.0
    %2033 = vmatprep.subr.mxu0 0.0
    %2034 = vmatpush1.msra.mxu0 0.0
    %2035 = vmatprep.subr.mxu0 0.0
    %2036 = vmatpush1.msra.mxu0 0.0
    %2037 = vmatprep.subr.mxu0 0.0
    %2038 = vmatpush1.msra.mxu0 0.0
    %2039 = vmatprep.subr.mxu0 0.0
    %2040 = vmatpush1.msra.mxu0 0.0
    %2041 = vmatprep.subr.mxu0 0.0
    %2042 = vmatpush1.msra.mxu0 0.0
    %2043 = vmatprep.subr.mxu0 0.0
    %2044 = vmatpush1.msra.mxu0 0.0
    %2045 = vmatprep.subr.mxu0 0.0
    %2046 = vmatpush1.msra.mxu0 0.0
    %2047 = vmatprep.subr.mxu0 0.0
    %2048 = vmatpush1.msra.mxu0 0.0
    %2049 = vmatprep.subr.mxu0 0.0
    %2050 = vmatpush1.msra.mxu0 0.0
    %2051 = vmatprep.subr.mxu0 0.0
    %2052 = vmatpush1.msra.mxu0 0.0
    %2053 = vmatprep.subr.mxu0 0.0
    %2054 = vmatpush1.msra.mxu0 0.0
    %2055 = vmatprep.subr.mxu0 0.0
    %2056 = vmatpush1.msra.mxu0 0.0
    %2057 = vmatprep.subr.mxu0 0.0
    %2058 = vmatpush1.msra.mxu0 0.0
    %2059 = vmatprep.subr.mxu0 0.0
    %2060 = vmatpush1.msra.mxu0 0.0
    %2061 = vmatprep.subr.mxu0 0.0
    %2062 = vmatpush1.msra.mxu0 0.0
    %2063 = vmatprep.subr.mxu0 0.0
    %2064 = vmatpush1.msra.mxu0 0.0
    %2065 = vmatprep.subr.mxu0 0.0
    %2066 = vmatpush1.msra.mxu0 0.0
    %2067 = vmatprep.subr.mxu0 0.0
    %2068 = vmatpush1.msra.mxu0 0.0
    %2069 = vmatprep.mubr.f32.mxu0 0.0
    %2070 = vmatmul.mubr.f32.gmra.mrb[0].mxu0 %v2003
    %v2071 = vpop.f32.mrb[0].mxu0
    %v2072 = vadd.f32 0.0, %v2071
    %v2073 = vpop.f32.mrb[0].mxu0
    %2074 = vdwg.mxu0
    %s2075 = scalar_lea.vmem %s9, 16
    %v2076 = vld [vmem:[%s2075] sm:$0xff]
    %v2078 = vsel %vm398, %v1999, 0
    %v2081 = vsel %vm398, %v2072, 0
    %2083 = vmatprep.subr.mxu0 0.0
    %2084 = vmatpush1.msra.mxu0 %v2076
    %2085 = vmatprep.subr.mxu0 0.0
    %2086 = vmatpush1.msra.mxu0 0.0
    %2087 = vmatprep.subr.mxu0 0.0
    %2088 = vmatpush1.msra.mxu0 0.0
    %2089 = vmatprep.subr.mxu0 0.0
    %2090 = vmatpush1.msra.mxu0 0.0
    %2091 = vmatprep.subr.mxu0 0.0
    %2092 = vmatpush1.msra.mxu0 0.0
    %2093 = vmatprep.subr.mxu0 0.0
    %2094 = vmatpush1.msra.mxu0 0.0
    %2095 = vmatprep.subr.mxu0 0.0
    %2096 = vmatpush1.msra.mxu0 0.0
    %2097 = vmatprep.subr.mxu0 0.0
    %2098 = vmatpush1.msra.mxu0 0.0
    %2099 = vmatprep.subr.mxu0 0.0
    %2100 = vmatpush1.msra.mxu0 0.0
    %2101 = vmatprep.subr.mxu0 0.0
    %2102 = vmatpush1.msra.mxu0 0.0
    %2103 = vmatprep.subr.mxu0 0.0
    %2104 = vmatpush1.msra.mxu0 0.0
    %2105 = vmatprep.subr.mxu0 0.0
    %2106 = vmatpush1.msra.mxu0 0.0
    %2107 = vmatprep.subr.mxu0 0.0
    %2108 = vmatpush1.msra.mxu0 0.0
    %2109 = vmatprep.subr.mxu0 0.0
    %2110 = vmatpush1.msra.mxu0 0.0
    %2111 = vmatprep.subr.mxu0 0.0
    %2112 = vmatpush1.msra.mxu0 0.0
    %2113 = vmatprep.subr.mxu0 0.0
    %2114 = vmatpush1.msra.mxu0 0.0
    %2115 = vmatprep.subr.mxu0 0.0
    %2116 = vmatpush1.msra.mxu0 0.0
    %2117 = vmatprep.subr.mxu0 0.0
    %2118 = vmatpush1.msra.mxu0 0.0
    %2119 = vmatprep.subr.mxu0 0.0
    %2120 = vmatpush1.msra.mxu0 0.0
    %2121 = vmatprep.subr.mxu0 0.0
    %2122 = vmatpush1.msra.mxu0 0.0
    %2123 = vmatprep.subr.mxu0 0.0
    %2124 = vmatpush1.msra.mxu0 0.0
    %2125 = vmatprep.subr.mxu0 0.0
    %2126 = vmatpush1.msra.mxu0 0.0
    %2127 = vmatprep.subr.mxu0 0.0
    %2128 = vmatpush1.msra.mxu0 0.0
    %2129 = vmatprep.subr.mxu0 0.0
    %2130 = vmatpush1.msra.mxu0 0.0
    %2131 = vmatprep.subr.mxu0 0.0
    %2132 = vmatpush1.msra.mxu0 0.0
    %2133 = vmatprep.subr.mxu0 0.0
    %2134 = vmatpush1.msra.mxu0 0.0
    %2135 = vmatprep.subr.mxu0 0.0
    %2136 = vmatpush1.msra.mxu0 0.0
    %2137 = vmatprep.subr.mxu0 0.0
    %2138 = vmatpush1.msra.mxu0 0.0
    %2139 = vmatprep.subr.mxu0 0.0
    %2140 = vmatpush1.msra.mxu0 0.0
    %2141 = vmatprep.subr.mxu0 0.0
    %2142 = vmatpush1.msra.mxu0 0.0
    %2143 = vmatprep.subr.mxu0 0.0
    %2144 = vmatpush1.msra.mxu0 0.0
    %2145 = vmatprep.subr.mxu0 0.0
    %2146 = vmatpush1.msra.mxu0 0.0
    %2147 = vmatprep.mubr.f32.mxu0 0.0
    %2148 = vmatmul.mubr.f32.gmra.mrb[0].mxu0 %v2078
    %v2149 = vpop.f32.mrb[0].mxu0
    %v2150 = vadd.f32 0.0, %v2149
    %v2151 = vpop.f32.mrb[0].mxu0
    %2152 = vmatprep.mubr.f32.mxu0 0.0
    %2153 = vmatmul.mubr.f32.gmra.mrb[0].mxu0 %v2081
    %v2154 = vpop.f32.mrb[0].mxu0
    %v2155 = vadd.f32 0.0, %v2154
    %v2156 = vpop.f32.mrb[0].mxu0
    %2157 = vdwg.mxu0
    %v2158 = vadd.f32 %v1483, %v2150
    %v2159 = vadd.f32 %v1484, %v2155
    %s2160 = scalar_lea.vmem %s3, 96
    %v2161 = vld [vmem:[%s2160] sm:$0xff]
    %v2162 = vld [vmem:[%s2160 + $0x8] sm:$0xff]
    %v2163 = vld [vmem:[%s2160 + $0x10] sm:$0xff]
    %v2164 = vld [vmem:[%s2160 + $0x18] sm:$0xff]
    %s2165 = scalar_lea.vmem %s4, 3
    %v2166 = vld [vmem:[%s2165] sm:$0x1]
    %v2168 = vlaneseq
    %v2169 = vshrl.u32 %v2168, 7
    %v2170 = vsub.s32 0, %v2169
    %v2171 = vrot.slane %v2166, %v2170
    %2173 = vmatprep.subr.mxu0 0.0
    %2174 = vmatpush1.msra.mxu0 %v2161
    %2175 = vmatprep.subr.mxu0 0.0
    %2176 = vmatpush1.msra.mxu0 %v2162
    %2177 = vmatprep.subr.mxu0 0.0
    %2178 = vmatpush1.msra.mxu0 %v2163
    %2179 = vmatprep.subr.mxu0 0.0
    %2180 = vmatpush1.msra.mxu0 %v2164
    %2181 = vmatprep.subr.mxu0 0.0
    %2182 = vmatpush1.msra.mxu0 0.0
    %2183 = vmatprep.subr.mxu0 0.0
    %2184 = vmatpush1.msra.mxu0 0.0
    %2185 = vmatprep.subr.mxu0 0.0
    %2186 = vmatpush1.msra.mxu0 0.0
    %2187 = vmatprep.subr.mxu0 0.0
    %2188 = vmatpush1.msra.mxu0 0.0
    %2189 = vmatprep.subr.mxu0 0.0
    %2190 = vmatpush1.msra.mxu0 0.0
    %2191 = vmatprep.subr.mxu0 0.0
    %2192 = vmatpush1.msra.mxu0 0.0
    %2193 = vmatprep.subr.mxu0 0.0
    %2194 = vmatpush1.msra.mxu0 0.0
    %2195 = vmatprep.subr.mxu0 0.0
    %2196 = vmatpush1.msra.mxu0 0.0
    %2197 = vmatprep.subr.mxu0 0.0
    %2198 = vmatpush1.msra.mxu0 0.0
    %2199 = vmatprep.subr.mxu0 0.0
    %2200 = vmatpush1.msra.mxu0 0.0
    %2201 = vmatprep.subr.mxu0 0.0
    %2202 = vmatpush1.msra.mxu0 0.0
    %2203 = vmatprep.subr.mxu0 0.0
    %2204 = vmatpush1.msra.mxu0 0.0
    %2205 = vmatprep.subr.mxu0 0.0
    %2206 = vmatpush1.msra.mxu0 0.0
    %2207 = vmatprep.subr.mxu0 0.0
    %2208 = vmatpush1.msra.mxu0 0.0
    %2209 = vmatprep.subr.mxu0 0.0
    %2210 = vmatpush1.msra.mxu0 0.0
    %2211 = vmatprep.subr.mxu0 0.0
    %2212 = vmatpush1.msra.mxu0 0.0
    %2213 = vmatprep.subr.mxu0 0.0
    %2214 = vmatpush1.msra.mxu0 0.0
    %2215 = vmatprep.subr.mxu0 0.0
    %2216 = vmatpush1.msra.mxu0 0.0
    %2217 = vmatprep.subr.mxu0 0.0
    %2218 = vmatpush1.msra.mxu0 0.0
    %2219 = vmatprep.subr.mxu0 0.0
    %2220 = vmatpush1.msra.mxu0 0.0
    %2221 = vmatprep.subr.mxu0 0.0
    %2222 = vmatpush1.msra.mxu0 0.0
    %2223 = vmatprep.subr.mxu0 0.0
    %2224 = vmatpush1.msra.mxu0 0.0
    %2225 = vmatprep.subr.mxu0 0.0
    %2226 = vmatpush1.msra.mxu0 0.0
    %2227 = vmatprep.subr.mxu0 0.0
    %2228 = vmatpush1.msra.mxu0 0.0
    %2229 = vmatprep.subr.mxu0 0.0
    %2230 = vmatpush1.msra.mxu0 0.0
    %2231 = vmatprep.subr.mxu0 0.0
    %2232 = vmatpush1.msra.mxu0 0.0
    %2233 = vmatprep.subr.mxu0 0.0
    %2234 = vmatpush1.msra.mxu0 0.0
    %2235 = vmatprep.subr.mxu0 0.0
    %2236 = vmatpush1.msra.mxu0 0.0
    %2237 = vmatprep.mubr.f32.mxu0 0.0
    %2238 = vmatmul.mubr.f32.gmra.mrb[0].mxu0 %v146
    %v2239 = vpop.f32.mrb[0].mxu0
    %v2240 = vadd.f32 %v2171, %v2239
    %v2241 = vpop.f32.mrb[0].mxu0
    %2242 = vmatprep.mubr.f32.mxu0 0.0
    %2243 = vmatmul.mubr.f32.gmra.mrb[0].mxu0 %v149
    %v2244 = vpop.f32.mrb[0].mxu0
    %v2245 = vadd.f32 %v2171, %v2244
    %v2246 = vpop.f32.mrb[0].mxu0
    %2247 = vdwg.mxu0
    %s2248 = scalar_lea.vmem %s5, 96
    %v2249 = vld [vmem:[%s2248] sm:$0xff]
    %v2250 = vld [vmem:[%s2248 + $0x8] sm:$0xff]
    %v2251 = vld [vmem:[%s2248 + $0x10] sm:$0xff]
    %v2252 = vld [vmem:[%s2248 + $0x18] sm:$0xff]
    %s2253 = scalar_lea.vmem %s6, 3
    %v2254 = vld [vmem:[%s2253] sm:$0x1]
    %v2256 = vlaneseq
    %v2257 = vshrl.u32 %v2256, 7
    %v2258 = vsub.s32 0, %v2257
    %v2259 = vrot.slane %v2254, %v2258
    %2261 = vmatprep.subr.mxu0 0.0
    %2262 = vmatpush1.msra.mxu0 %v2249
    %2263 = vmatprep.subr.mxu0 0.0
    %2264 = vmatpush1.msra.mxu0 %v2250
    %2265 = vmatprep.subr.mxu0 0.0
    %2266 = vmatpush1.msra.mxu0 %v2251
    %2267 = vmatprep.subr.mxu0 0.0
    %2268 = vmatpush1.msra.mxu0 %v2252
    %2269 = vmatprep.subr.mxu0 0.0
    %2270 = vmatpush1.msra.mxu0 0.0
    %2271 = vmatprep.subr.mxu0 0.0
    %2272 = vmatpush1.msra.mxu0 0.0
    %2273 = vmatprep.subr.mxu0 0.0
    %2274 = vmatpush1.msra.mxu0 0.0
    %2275 = vmatprep.subr.mxu0 0.0
    %2276 = vmatpush1.msra.mxu0 0.0
    %2277 = vmatprep.subr.mxu0 0.0
    %2278 = vmatpush1.msra.mxu0 0.0
    %2279 = vmatprep.subr.mxu0 0.0
    %2280 = vmatpush1.msra.mxu0 0.0
    %2281 = vmatprep.subr.mxu0 0.0
    %2282 = vmatpush1.msra.mxu0 0.0
    %2283 = vmatprep.subr.mxu0 0.0
    %2284 = vmatpush1.msra.mxu0 0.0
    %2285 = vmatprep.subr.mxu0 0.0
    %2286 = vmatpush1.msra.mxu0 0.0
    %2287 = vmatprep.subr.mxu0 0.0
    %2288 = vmatpush1.msra.mxu0 0.0
    %2289 = vmatprep.subr.mxu0 0.0
    %2290 = vmatpush1.msra.mxu0 0.0
    %2291 = vmatprep.subr.mxu0 0.0
    %2292 = vmatpush1.msra.mxu0 0.0
    %2293 = vmatprep.subr.mxu0 0.0
    %2294 = vmatpush1.msra.mxu0 0.0
    %2295 = vmatprep.subr.mxu0 0.0
    %2296 = vmatpush1.msra.mxu0 0.0
    %2297 = vmatprep.subr.mxu0 0.0
    %2298 = vmatpush1.msra.mxu0 0.0
    %2299 = vmatprep.subr.mxu0 0.0
    %2300 = vmatpush1.msra.mxu0 0.0
    %2301 = vmatprep.subr.mxu0 0.0
    %2302 = vmatpush1.msra.mxu0 0.0
    %2303 = vmatprep.subr.mxu0 0.0
    %2304 = vmatpush1.msra.mxu0 0.0
    %2305 = vmatprep.subr.mxu0 0.0
    %2306 = vmatpush1.msra.mxu0 0.0
    %2307 = vmatprep.subr.mxu0 0.0
    %2308 = vmatpush1.msra.mxu0 0.0
    %2309 = vmatprep.subr.mxu0 0.0
    %2310 = vmatpush1.msra.mxu0 0.0
    %2311 = vmatprep.subr.mxu0 0.0
    %2312 = vmatpush1.msra.mxu0 0.0
    %2313 = vmatprep.subr.mxu0 0.0
    %2314 = vmatpush1.msra.mxu0 0.0
    %2315 = vmatprep.subr.mxu0 0.0
    %2316 = vmatpush1.msra.mxu0 0.0
    %2317 = vmatprep.subr.mxu0 0.0
    %2318 = vmatpush1.msra.mxu0 0.0
    %2319 = vmatprep.subr.mxu0 0.0
    %2320 = vmatpush1.msra.mxu0 0.0
    %2321 = vmatprep.subr.mxu0 0.0
    %2322 = vmatpush1.msra.mxu0 0.0
    %2323 = vmatprep.subr.mxu0 0.0
    %2324 = vmatpush1.msra.mxu0 0.0
    %2325 = vmatprep.mubr.f32.mxu0 0.0
    %2326 = vmatmul.mubr.f32.gmra.mrb[0].mxu0 %v146
    %v2327 = vpop.f32.mrb[0].mxu0
    %v2328 = vadd.f32 %v2259, %v2327
    %v2329 = vpop.f32.mrb[0].mxu0
    %2330 = vmatprep.mubr.f32.mxu0 0.0
    %2331 = vmatmul.mubr.f32.gmra.mrb[0].mxu0 %v149
    %v2332 = vpop.f32.mrb[0].mxu0
    %v2333 = vadd.f32 %v2259, %v2332
    %v2334 = vpop.f32.mrb[0].mxu0
    %2335 = vdwg.mxu0
    %s2336 = scalar_lea.vmem %s7, 96
    %v2337 = vld [vmem:[%s2336] sm:$0xff]
    %v2338 = vld [vmem:[%s2336 + $0x8] sm:$0xff]
    %v2339 = vld [vmem:[%s2336 + $0x10] sm:$0xff]
    %v2340 = vld [vmem:[%s2336 + $0x18] sm:$0xff]
    %s2341 = scalar_lea.vmem %s8, 3
    %v2342 = vld [vmem:[%s2341] sm:$0x1]
    %v2344 = vlaneseq
    %v2345 = vshrl.u32 %v2344, 7
    %v2346 = vsub.s32 0, %v2345
    %v2347 = vrot.slane %v2342, %v2346
    %2349 = vmatprep.subr.mxu0 0.0
    %2350 = vmatpush1.msra.mxu0 %v2337
    %2351 = vmatprep.subr.mxu0 0.0
    %2352 = vmatpush1.msra.mxu0 %v2338
    %2353 = vmatprep.subr.mxu0 0.0
    %2354 = vmatpush1.msra.mxu0 %v2339
    %2355 = vmatprep.subr.mxu0 0.0
    %2356 = vmatpush1.msra.mxu0 %v2340
    %2357 = vmatprep.subr.mxu0 0.0
    %2358 = vmatpush1.msra.mxu0 0.0
    %2359 = vmatprep.subr.mxu0 0.0
    %2360 = vmatpush1.msra.mxu0 0.0
    %2361 = vmatprep.subr.mxu0 0.0
    %2362 = vmatpush1.msra.mxu0 0.0
    %2363 = vmatprep.subr.mxu0 0.0
    %2364 = vmatpush1.msra.mxu0 0.0
    %2365 = vmatprep.subr.mxu0 0.0
    %2366 = vmatpush1.msra.mxu0 0.0
    %2367 = vmatprep.subr.mxu0 0.0
    %2368 = vmatpush1.msra.mxu0 0.0
    %2369 = vmatprep.subr.mxu0 0.0
    %2370 = vmatpush1.msra.mxu0 0.0
    %2371 = vmatprep.subr.mxu0 0.0
    %2372 = vmatpush1.msra.mxu0 0.0
    %2373 = vmatprep.subr.mxu0 0.0
    %2374 = vmatpush1.msra.mxu0 0.0
    %2375 = vmatprep.subr.mxu0 0.0
    %2376 = vmatpush1.msra.mxu0 0.0
    %2377 = vmatprep.subr.mxu0 0.0
    %2378 = vmatpush1.msra.mxu0 0.0
    %2379 = vmatprep.subr.mxu0 0.0
    %2380 = vmatpush1.msra.mxu0 0.0
    %2381 = vmatprep.subr.mxu0 0.0
    %2382 = vmatpush1.msra.mxu0 0.0
    %2383 = vmatprep.subr.mxu0 0.0
    %2384 = vmatpush1.msra.mxu0 0.0
    %2385 = vmatprep.subr.mxu0 0.0
    %2386 = vmatpush1.msra.mxu0 0.0
    %2387 = vmatprep.subr.mxu0 0.0
    %2388 = vmatpush1.msra.mxu0 0.0
    %2389 = vmatprep.subr.mxu0 0.0
    %2390 = vmatpush1.msra.mxu0 0.0
    %2391 = vmatprep.subr.mxu0 0.0
    %2392 = vmatpush1.msra.mxu0 0.0
    %2393 = vmatprep.subr.mxu0 0.0
    %2394 = vmatpush1.msra.mxu0 0.0
    %2395 = vmatprep.subr.mxu0 0.0
    %2396 = vmatpush1.msra.mxu0 0.0
    %2397 = vmatprep.subr.mxu0 0.0
    %2398 = vmatpush1.msra.mxu0 0.0
    %2399 = vmatprep.subr.mxu0 0.0
    %2400 = vmatpush1.msra.mxu0 0.0
    %2401 = vmatprep.subr.mxu0 0.0
    %2402 = vmatpush1.msra.mxu0 0.0
    %2403 = vmatprep.subr.mxu0 0.0
    %2404 = vmatpush1.msra.mxu0 0.0
    %2405 = vmatprep.subr.mxu0 0.0
    %2406 = vmatpush1.msra.mxu0 0.0
    %2407 = vmatprep.subr.mxu0 0.0
    %2408 = vmatpush1.msra.mxu0 0.0
    %2409 = vmatprep.subr.mxu0 0.0
    %2410 = vmatpush1.msra.mxu0 0.0
    %2411 = vmatprep.subr.mxu0 0.0
    %2412 = vmatpush1.msra.mxu0 0.0
    %2413 = vmatprep.mubr.f32.mxu0 0.0
    %2414 = vmatmul.mubr.f32.gmra.mrb[0].mxu0 %v146
    %v2415 = vpop.f32.mrb[0].mxu0
    %v2416 = vadd.f32 %v2347, %v2415
    %v2417 = vpop.f32.mrb[0].mxu0
    %2418 = vmatprep.mubr.f32.mxu0 0.0
    %2419 = vmatmul.mubr.f32.gmra.mrb[0].mxu0 %v149
    %v2420 = vpop.f32.mrb[0].mxu0
    %v2421 = vadd.f32 %v2347, %v2420
    %v2422 = vpop.f32.mrb[0].mxu0
    %2423 = vdwg.mxu0
    %v2425 = vsel %vm398, %v2240, 0
    %v2428 = vsel %vm398, %v2328, 0
    %2430 = vmatprep.subr.mxu0 0.0
    %2431 = vmatpush1.xpose.msra.mxu0 %v2428
    %2432 = vmatprep.subr.mxu0 0.0
    %2433 = vmatpush1.xpose.msra.mxu0 0.0
    %2434 = vmatprep.subr.mxu0 0.0
    %2435 = vmatpush1.xpose.msra.mxu0 0.0
    %2436 = vmatprep.subr.mxu0 0.0
    %2437 = vmatpush1.xpose.msra.mxu0 0.0
    %2438 = vmatprep.subr.mxu0 0.0
    %2439 = vmatpush1.xpose.msra.mxu0 0.0
    %2440 = vmatprep.subr.mxu0 0.0
    %2441 = vmatpush1.xpose.msra.mxu0 0.0
    %2442 = vmatprep.subr.mxu0 0.0
    %2443 = vmatpush1.xpose.msra.mxu0 0.0
    %2444 = vmatprep.subr.mxu0 0.0
    %2445 = vmatpush1.xpose.msra.mxu0 0.0
    %2446 = vmatprep.subr.mxu0 0.0
    %2447 = vmatpush1.xpose.msra.mxu0 0.0
    %2448 = vmatprep.subr.mxu0 0.0
    %2449 = vmatpush1.xpose.msra.mxu0 0.0
    %2450 = vmatprep.subr.mxu0 0.0
    %2451 = vmatpush1.xpose.msra.mxu0 0.0
    %2452 = vmatprep.subr.mxu0 0.0
    %2453 = vmatpush1.xpose.msra.mxu0 0.0
    %2454 = vmatprep.subr.mxu0 0.0
    %2455 = vmatpush1.xpose.msra.mxu0 0.0
    %2456 = vmatprep.subr.mxu0 0.0
    %2457 = vmatpush1.xpose.msra.mxu0 0.0
    %2458 = vmatprep.subr.mxu0 0.0
    %2459 = vmatpush1.xpose.msra.mxu0 0.0
    %2460 = vmatprep.subr.mxu0 0.0
    %2461 = vmatpush1.xpose.msra.mxu0 0.0
    %2462 = vmatprep.subr.mxu0 0.0
    %2463 = vmatpush1.xpose.msra.mxu0 0.0
    %2464 = vmatprep.subr.mxu0 0.0
    %2465 = vmatpush1.xpose.msra.mxu0 0.0
    %2466 = vmatprep.subr.mxu0 0.0
    %2467 = vmatpush1.xpose.msra.mxu0 0.0
    %2468 = vmatprep.subr.mxu0 0.0
    %2469 = vmatpush1.xpose.msra.mxu0 0.0
    %2470 = vmatprep.subr.mxu0 0.0
    %2471 = vmatpush1.xpose.msra.mxu0 0.0
    %2472 = vmatprep.subr.mxu0 0.0
    %2473 = vmatpush1.xpose.msra.mxu0 0.0
    %2474 = vmatprep.subr.mxu0 0.0
    %2475 = vmatpush1.xpose.msra.mxu0 0.0
    %2476 = vmatprep.subr.mxu0 0.0
    %2477 = vmatpush1.xpose.msra.mxu0 0.0
    %2478 = vmatprep.subr.mxu0 0.0
    %2479 = vmatpush1.xpose.msra.mxu0 0.0
    %2480 = vmatprep.subr.mxu0 0.0
    %2481 = vmatpush1.xpose.msra.mxu0 0.0
    %2482 = vmatprep.subr.mxu0 0.0
    %2483 = vmatpush1.xpose.msra.mxu0 0.0
    %2484 = vmatprep.subr.mxu0 0.0
    %2485 = vmatpush1.xpose.msra.mxu0 0.0
    %2486 = vmatprep.subr.mxu0 0.0
    %2487 = vmatpush1.xpose.msra.mxu0 0.0
    %2488 = vmatprep.subr.mxu0 0.0
    %2489 = vmatpush1.xpose.msra.mxu0 0.0
    %2490 = vmatprep.subr.mxu0 0.0
    %2491 = vmatpush1.xpose.msra.mxu0 0.0
    %2492 = vmatprep.subr.mxu0 0.0
    %2493 = vmatpush1.xpose.msra.mxu0 0.0
    %2494 = vmatprep.mubr.f32.mxu0 0.0
    %2495 = vmatmul.mubr.f32.gmra.mrb[0].mxu0 %v2425
    %v2496 = vpop.f32.mrb[0].mxu0
    %v2497 = vadd.f32 0.0, %v2496
    %v2498 = vpop.f32.mrb[0].mxu0
    %2499 = vdwg.mxu0
    %v2501 = vsel %vm398, %v2245, 0
    %v2504 = vsel %vm398, %v2333, 0
    %2506 = vmatprep.subr.mxu0 0.0
    %2507 = vmatpush1.xpose.msra.mxu0 %v2504
    %2508 = vmatprep.subr.mxu0 0.0
    %2509 = vmatpush1.xpose.msra.mxu0 0.0
    %2510 = vmatprep.subr.mxu0 0.0
    %2511 = vmatpush1.xpose.msra.mxu0 0.0
    %2512 = vmatprep.subr.mxu0 0.0
    %2513 = vmatpush1.xpose.msra.mxu0 0.0
    %2514 = vmatprep.subr.mxu0 0.0
    %2515 = vmatpush1.xpose.msra.mxu0 0.0
    %2516 = vmatprep.subr.mxu0 0.0
    %2517 = vmatpush1.xpose.msra.mxu0 0.0
    %2518 = vmatprep.subr.mxu0 0.0
    %2519 = vmatpush1.xpose.msra.mxu0 0.0
    %2520 = vmatprep.subr.mxu0 0.0
    %2521 = vmatpush1.xpose.msra.mxu0 0.0
    %2522 = vmatprep.subr.mxu0 0.0
    %2523 = vmatpush1.xpose.msra.mxu0 0.0
    %2524 = vmatprep.subr.mxu0 0.0
    %2525 = vmatpush1.xpose.msra.mxu0 0.0
    %2526 = vmatprep.subr.mxu0 0.0
    %2527 = vmatpush1.xpose.msra.mxu0 0.0
    %2528 = vmatprep.subr.mxu0 0.0
    %2529 = vmatpush1.xpose.msra.mxu0 0.0
    %2530 = vmatprep.subr.mxu0 0.0
    %2531 = vmatpush1.xpose.msra.mxu0 0.0
    %2532 = vmatprep.subr.mxu0 0.0
    %2533 = vmatpush1.xpose.msra.mxu0 0.0
    %2534 = vmatprep.subr.mxu0 0.0
    %2535 = vmatpush1.xpose.msra.mxu0 0.0
    %2536 = vmatprep.subr.mxu0 0.0
    %2537 = vmatpush1.xpose.msra.mxu0 0.0
    %2538 = vmatprep.subr.mxu0 0.0
    %2539 = vmatpush1.xpose.msra.mxu0 0.0
    %2540 = vmatprep.subr.mxu0 0.0
    %2541 = vmatpush1.xpose.msra.mxu0 0.0
    %2542 = vmatprep.subr.mxu0 0.0
    %2543 = vmatpush1.xpose.msra.mxu0 0.0
    %2544 = vmatprep.subr.mxu0 0.0
    %2545 = vmatpush1.xpose.msra.mxu0 0.0
    %2546 = vmatprep.subr.mxu0 0.0
    %2547 = vmatpush1.xpose.msra.mxu0 0.0
    %2548 = vmatprep.subr.mxu0 0.0
    %2549 = vmatpush1.xpose.msra.mxu0 0.0
    %2550 = vmatprep.subr.mxu0 0.0
    %2551 = vmatpush1.xpose.msra.mxu0 0.0
    %2552 = vmatprep.subr.mxu0 0.0
    %2553 = vmatpush1.xpose.msra.mxu0 0.0
    %2554 = vmatprep.subr.mxu0 0.0
    %2555 = vmatpush1.xpose.msra.mxu0 0.0
    %2556 = vmatprep.subr.mxu0 0.0
    %2557 = vmatpush1.xpose.msra.mxu0 0.0
    %2558 = vmatprep.subr.mxu0 0.0
    %2559 = vmatpush1.xpose.msra.mxu0 0.0
    %2560 = vmatprep.subr.mxu0 0.0
    %2561 = vmatpush1.xpose.msra.mxu0 0.0
    %2562 = vmatprep.subr.mxu0 0.0
    %2563 = vmatpush1.xpose.msra.mxu0 0.0
    %2564 = vmatprep.subr.mxu0 0.0
    %2565 = vmatpush1.xpose.msra.mxu0 0.0
    %2566 = vmatprep.subr.mxu0 0.0
    %2567 = vmatpush1.xpose.msra.mxu0 0.0
    %2568 = vmatprep.subr.mxu0 0.0
    %2569 = vmatpush1.xpose.msra.mxu0 0.0
    %2570 = vmatprep.mubr.f32.mxu0 0.0
    %2571 = vmatmul.mubr.f32.gmra.mrb[0].mxu0 %v2501
    %v2572 = vpop.f32.mrb[0].mxu0
    %v2573 = vadd.f32 0.0, %v2572
    %v2574 = vpop.f32.mrb[0].mxu0
    %2575 = vdwg.mxu0
    %v2576 = vmul.f32 %v2497, 0.35355338
    %v2577 = vmul.f32 %v2573, 0.35355338
    %v2578 = vsel %vm398, %v2576, -inf
    %2579 = vmax.xlane.f32.xlu0 %v2578
    %v2580 = vpop.xlane.xlu0 %2579
    %v2581 = vsel %vm398, %v2577, -inf
    %2582 = vmax.xlane.f32.xlu0 %v2581
    %v2583 = vpop.xlane.xlu0 %2582
    %v2584 = vsub.f32 %v2576, %v2580
    %v2585 = vsub.f32 %v2577, %v2583
    %v2586 = vmul.f32 %v2584, 1.442695
    %v2587 = vpow.pop %v2586
    %v2588 = vmul.f32 %v2585, 1.442695
    %v2589 = vpow.pop %v2588
    %v2590 = vsel %vm398, %v2587, 0.0
    %2591 = vadd.xlane.f32.xlu0 %v2590
    %v2592 = vpop.xlane.xlu0 %2591
    %v2593 = vsel %vm398, %v2589, 0.0
    %2594 = vadd.xlane.f32.xlu0 %v2593
    %v2595 = vpop.xlane.xlu0 %2594
    %v2596 = vrcp.pop %v2592
    %v2597 = vrcp.pop %v2595
    %v2598 = vmul.f32 %v2587, %v2596
    %v2599 = vmul.f32 %v2589, %v2597
    %v2600 = vsel %vm398, %v2598, 0.0
    %v2601 = vsel %vm398, %v2599, 0.0
    %v2602 = vadd.f32 %v2600, %v2601
    %v2603 = vmul.f32 %v2602, %v578
    %v2605 = vsel %vm398, %v2598, 0
    %2607 = vmatprep.subr.mxu0 0.0
    %2608 = vmatpush1.msra.mxu0 %v2416
    %2609 = vmatprep.subr.mxu0 0.0
    %2610 = vmatpush1.msra.mxu0 0.0
    %2611 = vmatprep.subr.mxu0 0.0
    %2612 = vmatpush1.msra.mxu0 0.0
    %2613 = vmatprep.subr.mxu0 0.0
    %2614 = vmatpush1.msra.mxu0 0.0
    %2615 = vmatprep.subr.mxu0 0.0
    %2616 = vmatpush1.msra.mxu0 0.0
    %2617 = vmatprep.subr.mxu0 0.0
    %2618 = vmatpush1.msra.mxu0 0.0
    %2619 = vmatprep.subr.mxu0 0.0
    %2620 = vmatpush1.msra.mxu0 0.0
    %2621 = vmatprep.subr.mxu0 0.0
    %2622 = vmatpush1.msra.mxu0 0.0
    %2623 = vmatprep.subr.mxu0 0.0
    %2624 = vmatpush1.msra.mxu0 0.0
    %2625 = vmatprep.subr.mxu0 0.0
    %2626 = vmatpush1.msra.mxu0 0.0
    %2627 = vmatprep.subr.mxu0 0.0
    %2628 = vmatpush1.msra.mxu0 0.0
    %2629 = vmatprep.subr.mxu0 0.0
    %2630 = vmatpush1.msra.mxu0 0.0
    %2631 = vmatprep.subr.mxu0 0.0
    %2632 = vmatpush1.msra.mxu0 0.0
    %2633 = vmatprep.subr.mxu0 0.0
    %2634 = vmatpush1.msra.mxu0 0.0
    %2635 = vmatprep.subr.mxu0 0.0
    %2636 = vmatpush1.msra.mxu0 0.0
    %2637 = vmatprep.subr.mxu0 0.0
    %2638 = vmatpush1.msra.mxu0 0.0
    %2639 = vmatprep.subr.mxu0 0.0
    %2640 = vmatpush1.msra.mxu0 0.0
    %2641 = vmatprep.subr.mxu0 0.0
    %2642 = vmatpush1.msra.mxu0 0.0
    %2643 = vmatprep.subr.mxu0 0.0
    %2644 = vmatpush1.msra.mxu0 0.0
    %2645 = vmatprep.subr.mxu0 0.0
    %2646 = vmatpush1.msra.mxu0 0.0
    %2647 = vmatprep.subr.mxu0 0.0
    %2648 = vmatpush1.msra.mxu0 0.0
    %2649 = vmatprep.subr.mxu0 0.0
    %2650 = vmatpush1.msra.mxu0 0.0
    %2651 = vmatprep.subr.mxu0 0.0
    %2652 = vmatpush1.msra.mxu0 0.0
    %2653 = vmatprep.subr.mxu0 0.0
    %2654 = vmatpush1.msra.mxu0 0.0
    %2655 = vmatprep.subr.mxu0 0.0
    %2656 = vmatpush1.msra.mxu0 0.0
    %2657 = vmatprep.subr.mxu0 0.0
    %2658 = vmatpush1.msra.mxu0 0.0
    %2659 = vmatprep.subr.mxu0 0.0
    %2660 = vmatpush1.msra.mxu0 0.0
    %2661 = vmatprep.subr.mxu0 0.0
    %2662 = vmatpush1.msra.mxu0 0.0
    %2663 = vmatprep.subr.mxu0 0.0
    %2664 = vmatpush1.msra.mxu0 0.0
    %2665 = vmatprep.subr.mxu0 0.0
    %2666 = vmatpush1.msra.mxu0 0.0
    %2667 = vmatprep.subr.mxu0 0.0
    %2668 = vmatpush1.msra.mxu0 0.0
    %2669 = vmatprep.subr.mxu0 0.0
    %2670 = vmatpush1.msra.mxu0 0.0
    %2671 = vmatprep.mubr.f32.mxu0 0.0
    %2672 = vmatmul.mubr.f32.gmra.mrb[0].mxu0 %v2605
    %v2673 = vpop.f32.mrb[0].mxu0
    %v2674 = vadd.f32 0.0, %v2673
    %v2675 = vpop.f32.mrb[0].mxu0
    %2676 = vdwg.mxu0
    %v2678 = vsel %vm398, %v2599, 0
    %2680 = vmatprep.subr.mxu0 0.0
    %2681 = vmatpush1.msra.mxu0 %v2421
    %2682 = vmatprep.subr.mxu0 0.0
    %2683 = vmatpush1.msra.mxu0 0.0
    %2684 = vmatprep.subr.mxu0 0.0
    %2685 = vmatpush1.msra.mxu0 0.0
    %2686 = vmatprep.subr.mxu0 0.0
    %2687 = vmatpush1.msra.mxu0 0.0
    %2688 = vmatprep.subr.mxu0 0.0
    %2689 = vmatpush1.msra.mxu0 0.0
    %2690 = vmatprep.subr.mxu0 0.0
    %2691 = vmatpush1.msra.mxu0 0.0
    %2692 = vmatprep.subr.mxu0 0.0
    %2693 = vmatpush1.msra.mxu0 0.0
    %2694 = vmatprep.subr.mxu0 0.0
    %2695 = vmatpush1.msra.mxu0 0.0
    %2696 = vmatprep.subr.mxu0 0.0
    %2697 = vmatpush1.msra.mxu0 0.0
    %2698 = vmatprep.subr.mxu0 0.0
    %2699 = vmatpush1.msra.mxu0 0.0
    %2700 = vmatprep.subr.mxu0 0.0
    %2701 = vmatpush1.msra.mxu0 0.0
    %2702 = vmatprep.subr.mxu0 0.0
    %2703 = vmatpush1.msra.mxu0 0.0
    %2704 = vmatprep.subr.mxu0 0.0
    %2705 = vmatpush1.msra.mxu0 0.0
    %2706 = vmatprep.subr.mxu0 0.0
    %2707 = vmatpush1.msra.mxu0 0.0
    %2708 = vmatprep.subr.mxu0 0.0
    %2709 = vmatpush1.msra.mxu0 0.0
    %2710 = vmatprep.subr.mxu0 0.0
    %2711 = vmatpush1.msra.mxu0 0.0
    %2712 = vmatprep.subr.mxu0 0.0
    %2713 = vmatpush1.msra.mxu0 0.0
    %2714 = vmatprep.subr.mxu0 0.0
    %2715 = vmatpush1.msra.mxu0 0.0
    %2716 = vmatprep.subr.mxu0 0.0
    %2717 = vmatpush1.msra.mxu0 0.0
    %2718 = vmatprep.subr.mxu0 0.0
    %2719 = vmatpush1.msra.mxu0 0.0
    %2720 = vmatprep.subr.mxu0 0.0
    %2721 = vmatpush1.msra.mxu0 0.0
    %2722 = vmatprep.subr.mxu0 0.0
    %2723 = vmatpush1.msra.mxu0 0.0
    %2724 = vmatprep.subr.mxu0 0.0
    %2725 = vmatpush1.msra.mxu0 0.0
    %2726 = vmatprep.subr.mxu0 0.0
    %2727 = vmatpush1.msra.mxu0 0.0
    %2728 = vmatprep.subr.mxu0 0.0
    %2729 = vmatpush1.msra.mxu0 0.0
    %2730 = vmatprep.subr.mxu0 0.0
    %2731 = vmatpush1.msra.mxu0 0.0
    %2732 = vmatprep.subr.mxu0 0.0
    %2733 = vmatpush1.msra.mxu0 0.0
    %2734 = vmatprep.subr.mxu0 0.0
    %2735 = vmatpush1.msra.mxu0 0.0
    %2736 = vmatprep.subr.mxu0 0.0
    %2737 = vmatpush1.msra.mxu0 0.0
    %2738 = vmatprep.subr.mxu0 0.0
    %2739 = vmatpush1.msra.mxu0 0.0
    %2740 = vmatprep.subr.mxu0 0.0
    %2741 = vmatpush1.msra.mxu0 0.0
    %2742 = vmatprep.subr.mxu0 0.0
    %2743 = vmatpush1.msra.mxu0 0.0
    %2744 = vmatprep.mubr.f32.mxu0 0.0
    %2745 = vmatmul.mubr.f32.gmra.mrb[0].mxu0 %v2678
    %v2746 = vpop.f32.mrb[0].mxu0
    %v2747 = vadd.f32 0.0, %v2746
    %v2748 = vpop.f32.mrb[0].mxu0
    %2749 = vdwg.mxu0
    %s2750 = scalar_lea.vmem %s9, 24
    %v2751 = vld [vmem:[%s2750] sm:$0xff]
    %v2753 = vsel %vm398, %v2674, 0
    %v2756 = vsel %vm398, %v2747, 0
    %2758 = vmatprep.subr.mxu0 0.0
    %2759 = vmatpush1.msra.mxu0 %v2751
    %2760 = vmatprep.subr.mxu0 0.0
    %2761 = vmatpush1.msra.mxu0 0.0
    %2762 = vmatprep.subr.mxu0 0.0
    %2763 = vmatpush1.msra.mxu0 0.0
    %2764 = vmatprep.subr.mxu0 0.0
    %2765 = vmatpush1.msra.mxu0 0.0
    %2766 = vmatprep.subr.mxu0 0.0
    %2767 = vmatpush1.msra.mxu0 0.0
    %2768 = vmatprep.subr.mxu0 0.0
    %2769 = vmatpush1.msra.mxu0 0.0
    %2770 = vmatprep.subr.mxu0 0.0
    %2771 = vmatpush1.msra.mxu0 0.0
    %2772 = vmatprep.subr.mxu0 0.0
    %2773 = vmatpush1.msra.mxu0 0.0
    %2774 = vmatprep.subr.mxu0 0.0
    %2775 = vmatpush1.msra.mxu0 0.0
    %2776 = vmatprep.subr.mxu0 0.0
    %2777 = vmatpush1.msra.mxu0 0.0
    %2778 = vmatprep.subr.mxu0 0.0
    %2779 = vmatpush1.msra.mxu0 0.0
    %2780 = vmatprep.subr.mxu0 0.0
    %2781 = vmatpush1.msra.mxu0 0.0
    %2782 = vmatprep.subr.mxu0 0.0
    %2783 = vmatpush1.msra.mxu0 0.0
    %2784 = vmatprep.subr.mxu0 0.0
    %2785 = vmatpush1.msra.mxu0 0.0
    %2786 = vmatprep.subr.mxu0 0.0
    %2787 = vmatpush1.msra.mxu0 0.0
    %2788 = vmatprep.subr.mxu0 0.0
    %2789 = vmatpush1.msra.mxu0 0.0
    %2790 = vmatprep.subr.mxu0 0.0
    %2791 = vmatpush1.msra.mxu0 0.0
    %2792 = vmatprep.subr.mxu0 0.0
    %2793 = vmatpush1.msra.mxu0 0.0
    %2794 = vmatprep.subr.mxu0 0.0
    %2795 = vmatpush1.msra.mxu0 0.0
    %2796 = vmatprep.subr.mxu0 0.0
    %2797 = vmatpush1.msra.mxu0 0.0
    %2798 = vmatprep.subr.mxu0 0.0
    %2799 = vmatpush1.msra.mxu0 0.0
    %2800 = vmatprep.subr.mxu0 0.0
    %2801 = vmatpush1.msra.mxu0 0.0
    %2802 = vmatprep.subr.mxu0 0.0
    %2803 = vmatpush1.msra.mxu0 0.0
    %2804 = vmatprep.subr.mxu0 0.0
    %2805 = vmatpush1.msra.mxu0 0.0
    %2806 = vmatprep.subr.mxu0 0.0
    %2807 = vmatpush1.msra.mxu0 0.0
    %2808 = vmatprep.subr.mxu0 0.0
    %2809 = vmatpush1.msra.mxu0 0.0
    %2810 = vmatprep.subr.mxu0 0.0
    %2811 = vmatpush1.msra.mxu0 0.0
    %2812 = vmatprep.subr.mxu0 0.0
    %2813 = vmatpush1.msra.mxu0 0.0
    %2814 = vmatprep.subr.mxu0 0.0
    %2815 = vmatpush1.msra.mxu0 0.0
    %2816 = vmatprep.subr.mxu0 0.0
    %2817 = vmatpush1.msra.mxu0 0.0
    %2818 = vmatprep.subr.mxu0 0.0
    %2819 = vmatpush1.msra.mxu0 0.0
    %2820 = vmatprep.subr.mxu0 0.0
    %2821 = vmatpush1.msra.mxu0 0.0
    %2822 = vmatprep.mubr.f32.mxu0 0.0
    %2823 = vmatmul.mubr.f32.gmra.mrb[0].mxu0 %v2753
    %v2824 = vpop.f32.mrb[0].mxu0
    %v2825 = vadd.f32 0.0, %v2824
    %v2826 = vpop.f32.mrb[0].mxu0
    %2827 = vmatprep.mubr.f32.mxu0 0.0
    %2828 = vmatmul.mubr.f32.gmra.mrb[0].mxu0 %v2756
    %v2829 = vpop.f32.mrb[0].mxu0
    %v2830 = vadd.f32 0.0, %v2829
    %v2831 = vpop.f32.mrb[0].mxu0
    %2832 = vdwg.mxu0
    %v2833 = vadd.f32 %v2158, %v2825
    %v2834 = vadd.f32 %v2159, %v2830
    %2836 = vrot.lane.b32.xlu0 %v1253, 8
    %v2837 = vpop.permute.xlu0 %2836
    %2840 = vrot.lane.b32.xlu0 %v1928, 16
    %v2841 = vpop.permute.xlu0 %2840
    %2844 = vrot.lane.b32.xlu0 %v2603, 24
    %v2845 = vpop.permute.xlu0 %2844
    %v2847 = vsel %vm398, %v579, %v2837
    %vm2848 = vcmask 130048
    %v2849 = vsel %vm2848, %v2847, %v2841
    %vm2850 = vcmask 195584
    %v2851 = vsel %vm2850, %v2849, %v2845
    %v2852 = vsel %vm81, %v2851, 0.0
    %2853 = vst [vmem:[%s24] sm:$0xff] %v2852
    %v2854 = vld [vmem:[%s11] sm:$0x1]
    %v2855 = vld [vmem:[%s12] sm:$0x1]
    %v2856 = vsel %vm81, %v2833, 0.0
    %2857 = vadd.xlane.f32.xlu0 %v2856
    %v2858 = vpop.xlane.xlu0 %2857
    %v2859 = vsel %vm81, %v2834, 0.0
    %2860 = vadd.xlane.f32.xlu0 %v2859
    %v2861 = vpop.xlane.xlu0 %2860
    %v2862 = vmul.f32 %v2858, %v88
    %v2863 = vmul.f32 %v2861, %v88
    %v2864 = vsub.f32 %v2833, %v2862
    %v2865 = vsub.f32 %v2834, %v2863
    %v2866 = vmul.f32 %v2864, %v2864
    %v2867 = vmul.f32 %v2865, %v2865
    %v2868 = vsel %vm81, %v2866, 0.0
    %2869 = vadd.xlane.f32.xlu0 %v2868
    %v2870 = vpop.xlane.xlu0 %2869
    %v2871 = vsel %vm81, %v2867, 0.0
    %2872 = vadd.xlane.f32.xlu0 %v2871
    %v2873 = vpop.xlane.xlu0 %2872
    %v2874 = vmul.f32 %v2870, %v88
    %v2875 = vmul.f32 %v2873, %v88
    %v2876 = vadd.f32 %v2874, 1e-05
    %v2877 = vadd.f32 %v2875, 1e-05
    %v2878 = vrsqrt.pop %v2876
    %v2879 = vrsqrt.pop %v2877
    %v2880 = vmul.f32 %v2864, %v2878
    %v2881 = vmul.f32 %v2865, %v2879
    %v2883 = vlaneseq
    %v2884 = vshrl.u32 %v2883, 7
    %v2885 = vsub.s32 0, %v2884
    %v2886 = vrot.slane %v2854, %v2885
    %v2888 = vmul.f32 %v2880, %v2886
    %v2889 = vmul.f32 %v2881, %v2886
    %v2891 = vlaneseq
    %v2892 = vshrl.u32 %v2891, 7
    %v2893 = vsub.s32 0, %v2892
    %v2894 = vrot.slane %v2855, %v2893
    %v2896 = vadd.f32 %v2888, %v2894
    %v2897 = vadd.f32 %v2889, %v2894
    %v2898 = vld [vmem:[%s13] sm:$0xff]
    %v2899 = vld [vmem:[%s13 + $0x8] sm:$0xff]
    %v2900 = vld [vmem:[%s13 + $0x10] sm:$0xff]
    %v2901 = vld [vmem:[%s13 + $0x18] sm:$0xff]
    %v2902 = vld [vmem:[%s14] sm:$0x1]
    %v2904 = vlaneseq
    %v2905 = vshrl.u32 %v2904, 7
    %v2906 = vsub.s32 0, %v2905
    %v2907 = vrot.slane %v2902, %v2906
    %v2910 = vsel %vm81, %v2896, 0
    %v2913 = vsel %vm81, %v2897, 0
    %2915 = vmatprep.subr.mxu0 0.0
    %2916 = vmatpush1.msra.mxu0 %v2898
    %2917 = vmatprep.subr.mxu0 0.0
    %2918 = vmatpush1.msra.mxu0 %v2899
    %2919 = vmatprep.subr.mxu0 0.0
    %2920 = vmatpush1.msra.mxu0 %v2900
    %2921 = vmatprep.subr.mxu0 0.0
    %2922 = vmatpush1.msra.mxu0 %v2901
    %2923 = vmatprep.subr.mxu0 0.0
    %2924 = vmatpush1.msra.mxu0 0.0
    %2925 = vmatprep.subr.mxu0 0.0
    %2926 = vmatpush1.msra.mxu0 0.0
    %2927 = vmatprep.subr.mxu0 0.0
    %2928 = vmatpush1.msra.mxu0 0.0
    %2929 = vmatprep.subr.mxu0 0.0
    %2930 = vmatpush1.msra.mxu0 0.0
    %2931 = vmatprep.subr.mxu0 0.0
    %2932 = vmatpush1.msra.mxu0 0.0
    %2933 = vmatprep.subr.mxu0 0.0
    %2934 = vmatpush1.msra.mxu0 0.0
    %2935 = vmatprep.subr.mxu0 0.0
    %2936 = vmatpush1.msra.mxu0 0.0
    %2937 = vmatprep.subr.mxu0 0.0
    %2938 = vmatpush1.msra.mxu0 0.0
    %2939 = vmatprep.subr.mxu0 0.0
    %2940 = vmatpush1.msra.mxu0 0.0
    %2941 = vmatprep.subr.mxu0 0.0
    %2942 = vmatpush1.msra.mxu0 0.0
    %2943 = vmatprep.subr.mxu0 0.0
    %2944 = vmatpush1.msra.mxu0 0.0
    %2945 = vmatprep.subr.mxu0 0.0
    %2946 = vmatpush1.msra.mxu0 0.0
    %2947 = vmatprep.subr.mxu0 0.0
    %2948 = vmatpush1.msra.mxu0 0.0
    %2949 = vmatprep.subr.mxu0 0.0
    %2950 = vmatpush1.msra.mxu0 0.0
    %2951 = vmatprep.subr.mxu0 0.0
    %2952 = vmatpush1.msra.mxu0 0.0
    %2953 = vmatprep.subr.mxu0 0.0
    %2954 = vmatpush1.msra.mxu0 0.0
    %2955 = vmatprep.subr.mxu0 0.0
    %2956 = vmatpush1.msra.mxu0 0.0
    %2957 = vmatprep.subr.mxu0 0.0
    %2958 = vmatpush1.msra.mxu0 0.0
    %2959 = vmatprep.subr.mxu0 0.0
    %2960 = vmatpush1.msra.mxu0 0.0
    %2961 = vmatprep.subr.mxu0 0.0
    %2962 = vmatpush1.msra.mxu0 0.0
    %2963 = vmatprep.subr.mxu0 0.0
    %2964 = vmatpush1.msra.mxu0 0.0
    %2965 = vmatprep.subr.mxu0 0.0
    %2966 = vmatpush1.msra.mxu0 0.0
    %2967 = vmatprep.subr.mxu0 0.0
    %2968 = vmatpush1.msra.mxu0 0.0
    %2969 = vmatprep.subr.mxu0 0.0
    %2970 = vmatpush1.msra.mxu0 0.0
    %2971 = vmatprep.subr.mxu0 0.0
    %2972 = vmatpush1.msra.mxu0 0.0
    %2973 = vmatprep.subr.mxu0 0.0
    %2974 = vmatpush1.msra.mxu0 0.0
    %2975 = vmatprep.subr.mxu0 0.0
    %2976 = vmatpush1.msra.mxu0 0.0
    %2977 = vmatprep.subr.mxu0 0.0
    %2978 = vmatpush1.msra.mxu0 0.0
    %2979 = vmatprep.mubr.f32.mxu0 0.0
    %2980 = vmatmul.mubr.f32.gmra.mrb[0].mxu0 %v2910
    %v2981 = vpop.f32.mrb[0].mxu0
    %v2982 = vadd.f32 %v2907, %v2981
    %v2983 = vpop.f32.mrb[0].mxu0
    %2984 = vmatprep.mubr.f32.mxu0 0.0
    %2985 = vmatmul.mubr.f32.gmra.mrb[0].mxu0 %v2913
    %v2986 = vpop.f32.mrb[0].mxu0
    %v2987 = vadd.f32 %v2907, %v2986
    %v2988 = vpop.f32.mrb[0].mxu0
    %2989 = vdwg.mxu0
    %v2990 = vmax.f32 %v2982, 0.0
    %v2991 = vmax.f32 %v2987, 0.0
    %v2992 = vld [vmem:[%s15] sm:$0xff]
    %v2993 = vld [vmem:[%s15 + $0x8] sm:$0xff]
    %v2994 = vld [vmem:[%s15 + $0x10] sm:$0xff]
    %v2995 = vld [vmem:[%s15 + $0x18] sm:$0xff]
    %v2996 = vld [vmem:[%s15 + $0x20] sm:$0xff]
    %v2997 = vld [vmem:[%s15 + $0x28] sm:$0xff]
    %v2998 = vld [vmem:[%s15 + $0x30] sm:$0xff]
    %v2999 = vld [vmem:[%s15 + $0x38] sm:$0xff]
    %v3000 = vld [vmem:[%s15 + $0x40] sm:$0xff]
    %v3001 = vld [vmem:[%s15 + $0x48] sm:$0xff]
    %v3002 = vld [vmem:[%s15 + $0x50] sm:$0xff]
    %v3003 = vld [vmem:[%s15 + $0x58] sm:$0xff]
    %v3004 = vld [vmem:[%s15 + $0x60] sm:$0xff]
    %v3005 = vld [vmem:[%s15 + $0x68] sm:$0xff]
    %v3006 = vld [vmem:[%s15 + $0x70] sm:$0xff]
    %v3007 = vld [vmem:[%s15 + $0x78] sm:$0xff]
    %v3008 = vld [vmem:[%s16] sm:$0x1]
    %v3010 = vlaneseq
    %v3011 = vshrl.u32 %v3010, 7
    %v3012 = vsub.s32 0, %v3011
    %v3013 = vrot.slane %v3008, %v3012
    %3015 = vmatprep.subr.mxu0 0.0
    %3016 = vmatpush1.msra.mxu0 %v2992
    %3017 = vmatprep.subr.mxu0 0.0
    %3018 = vmatpush1.msra.mxu0 %v2993
    %3019 = vmatprep.subr.mxu0 0.0
    %3020 = vmatpush1.msra.mxu0 %v2994
    %3021 = vmatprep.subr.mxu0 0.0
    %3022 = vmatpush1.msra.mxu0 %v2995
    %3023 = vmatprep.subr.mxu0 0.0
    %3024 = vmatpush1.msra.mxu0 %v2996
    %3025 = vmatprep.subr.mxu0 0.0
    %3026 = vmatpush1.msra.mxu0 %v2997
    %3027 = vmatprep.subr.mxu0 0.0
    %3028 = vmatpush1.msra.mxu0 %v2998
    %3029 = vmatprep.subr.mxu0 0.0
    %3030 = vmatpush1.msra.mxu0 %v2999
    %3031 = vmatprep.subr.mxu0 0.0
    %3032 = vmatpush1.msra.mxu0 %v3000
    %3033 = vmatprep.subr.mxu0 0.0
    %3034 = vmatpush1.msra.mxu0 %v3001
    %3035 = vmatprep.subr.mxu0 0.0
    %3036 = vmatpush1.msra.mxu0 %v3002
    %3037 = vmatprep.subr.mxu0 0.0
    %3038 = vmatpush1.msra.mxu0 %v3003
    %3039 = vmatprep.subr.mxu0 0.0
    %3040 = vmatpush1.msra.mxu0 %v3004
    %3041 = vmatprep.subr.mxu0 0.0
    %3042 = vmatpush1.msra.mxu0 %v3005
    %3043 = vmatprep.subr.mxu0 0.0
    %3044 = vmatpush1.msra.mxu0 %v3006
    %3045 = vmatprep.subr.mxu0 0.0
    %3046 = vmatpush1.msra.mxu0 %v3007
    %3047 = vmatprep.subr.mxu0 0.0
    %3048 = vmatpush1.msra.mxu0 0.0
    %3049 = vmatprep.subr.mxu0 0.0
    %3050 = vmatpush1.msra.mxu0 0.0
    %3051 = vmatprep.subr.mxu0 0.0
    %3052 = vmatpush1.msra.mxu0 0.0
    %3053 = vmatprep.subr.mxu0 0.0
    %3054 = vmatpush1.msra.mxu0 0.0
    %3055 = vmatprep.subr.mxu0 0.0
    %3056 = vmatpush1.msra.mxu0 0.0
    %3057 = vmatprep.subr.mxu0 0.0
    %3058 = vmatpush1.msra.mxu0 0.0
    %3059 = vmatprep.subr.mxu0 0.0
    %3060 = vmatpush1.msra.mxu0 0.0
    %3061 = vmatprep.subr.mxu0 0.0
    %3062 = vmatpush1.msra.mxu0 0.0
    %3063 = vmatprep.subr.mxu0 0.0
    %3064 = vmatpush1.msra.mxu0 0.0
    %3065 = vmatprep.subr.mxu0 0.0
    %3066 = vmatpush1.msra.mxu0 0.0
    %3067 = vmatprep.subr.mxu0 0.0
    %3068 = vmatpush1.msra.mxu0 0.0
    %3069 = vmatprep.subr.mxu0 0.0
    %3070 = vmatpush1.msra.mxu0 0.0
    %3071 = vmatprep.subr.mxu0 0.0
    %3072 = vmatpush1.msra.mxu0 0.0
    %3073 = vmatprep.subr.mxu0 0.0
    %3074 = vmatpush1.msra.mxu0 0.0
    %3075 = vmatprep.subr.mxu0 0.0
    %3076 = vmatpush1.msra.mxu0 0.0
    %3077 = vmatprep.subr.mxu0 0.0
    %3078 = vmatpush1.msra.mxu0 0.0
    %3079 = vmatprep.mubr.f32.mxu0 0.0
    %3080 = vmatmul.mubr.f32.gmra.mrb[0].mxu0 %v2990
    %v3081 = vpop.f32.mrb[0].mxu0
    %v3082 = vadd.f32 %v3013, %v3081
    %v3083 = vpop.f32.mrb[0].mxu0
    %3084 = vmatprep.mubr.f32.mxu0 0.0
    %3085 = vmatmul.mubr.f32.gmra.mrb[0].mxu0 %v2991
    %v3086 = vpop.f32.mrb[0].mxu0
    %v3087 = vadd.f32 %v3013, %v3086
    %v3088 = vpop.f32.mrb[0].mxu0
    %3089 = vdwg.mxu0
    %v3090 = vadd.f32 %v2833, %v3082
    %v3091 = vadd.f32 %v2834, %v3087
    %s3092 = scalar_lea.vmem %s1, 1
    %v3093 = vld [vmem:[%s3092] sm:$0x1]
    %s3094 = scalar_lea.vmem %s2, 1
    %v3095 = vld [vmem:[%s3094] sm:$0x1]
    %v3096 = vsel %vm81, %v3090, 0.0
    %3097 = vadd.xlane.f32.xlu0 %v3096
    %v3098 = vpop.xlane.xlu0 %3097
    %v3099 = vsel %vm81, %v3091, 0.0
    %3100 = vadd.xlane.f32.xlu0 %v3099
    %v3101 = vpop.xlane.xlu0 %3100
    %v3102 = vmul.f32 %v3098, %v88
    %v3103 = vmul.f32 %v3101, %v88
    %v3104 = vsub.f32 %v3090, %v3102
    %v3105 = vsub.f32 %v3091, %v3103
    %v3106 = vmul.f32 %v3104, %v3104
    %v3107 = vmul.f32 %v3105, %v3105
    %v3108 = vsel %vm81, %v3106, 0.0
    %3109 = vadd.xlane.f32.xlu0 %v3108
    %v3110 = vpop.xlane.xlu0 %3109
    %v3111 = vsel %vm81, %v3107, 0.0
    %3112 = vadd.xlane.f32.xlu0 %v3111
    %v3113 = vpop.xlane.xlu0 %3112
    %v3114 = vmul.f32 %v3110, %v88
    %v3115 = vmul.f32 %v3113, %v88
    %v3116 = vadd.f32 %v3114, 1e-05
    %v3117 = vadd.f32 %v3115, 1e-05
    %v3118 = vrsqrt.pop %v3116
    %v3119 = vrsqrt.pop %v3117
    %v3120 = vmul.f32 %v3104, %v3118
    %v3121 = vmul.f32 %v3105, %v3119
    %v3123 = vlaneseq
    %v3124 = vshrl.u32 %v3123, 7
    %v3125 = vsub.s32 0, %v3124
    %v3126 = vrot.slane %v3093, %v3125
    %v3128 = vmul.f32 %v3120, %v3126
    %v3129 = vmul.f32 %v3121, %v3126
    %v3131 = vlaneseq
    %v3132 = vshrl.u32 %v3131, 7
    %v3133 = vsub.s32 0, %v3132
    %v3134 = vrot.slane %v3095, %v3133
    %v3136 = vadd.f32 %v3128, %v3134
    %v3137 = vadd.f32 %v3129, %v3134
    %s3138 = scalar_lea.vmem %s10, 1
    %v3139 = vld [vmem:[%s3138] sm:$0x1]
    %v3141 = vlaneseq
    %v3142 = vshrl.u32 %v3141, 7
    %v3143 = vsub.s32 0, %v3142
    %v3144 = vrot.slane %v3139, %v3143
    %v3146 = vadd.f32 %v3090, %v3144
    %v3147 = vadd.f32 %v3091, %v3144
    %s3148 = scalar_lea.vmem %s3, 128
    %v3149 = vld [vmem:[%s3148] sm:$0xff]
    %v3150 = vld [vmem:[%s3148 + $0x8] sm:$0xff]
    %v3151 = vld [vmem:[%s3148 + $0x10] sm:$0xff]
    %v3152 = vld [vmem:[%s3148 + $0x18] sm:$0xff]
    %s3153 = scalar_lea.vmem %s4, 4
    %v3154 = vld [vmem:[%s3153] sm:$0x1]
    %v3156 = vlaneseq
    %v3157 = vshrl.u32 %v3156, 7
    %v3158 = vsub.s32 0, %v3157
    %v3159 = vrot.slane %v3154, %v3158
    %v3162 = vsel %vm81, %v3136, 0
    %v3165 = vsel %vm81, %v3137, 0
    %3167 = vmatprep.subr.mxu0 0.0
    %3168 = vmatpush1.msra.mxu0 %v3149
    %3169 = vmatprep.subr.mxu0 0.0
    %3170 = vmatpush1.msra.mxu0 %v3150
    %3171 = vmatprep.subr.mxu0 0.0
    %3172 = vmatpush1.msra.mxu0 %v3151
    %3173 = vmatprep.subr.mxu0 0.0
    %3174 = vmatpush1.msra.mxu0 %v3152
    %3175 = vmatprep.subr.mxu0 0.0
    %3176 = vmatpush1.msra.mxu0 0.0
    %3177 = vmatprep.subr.mxu0 0.0
    %3178 = vmatpush1.msra.mxu0 0.0
    %3179 = vmatprep.subr.mxu0 0.0
    %3180 = vmatpush1.msra.mxu0 0.0
    %3181 = vmatprep.subr.mxu0 0.0
    %3182 = vmatpush1.msra.mxu0 0.0
    %3183 = vmatprep.subr.mxu0 0.0
    %3184 = vmatpush1.msra.mxu0 0.0
    %3185 = vmatprep.subr.mxu0 0.0
    %3186 = vmatpush1.msra.mxu0 0.0
    %3187 = vmatprep.subr.mxu0 0.0
    %3188 = vmatpush1.msra.mxu0 0.0
    %3189 = vmatprep.subr.mxu0 0.0
    %3190 = vmatpush1.msra.mxu0 0.0
    %3191 = vmatprep.subr.mxu0 0.0
    %3192 = vmatpush1.msra.mxu0 0.0
    %3193 = vmatprep.subr.mxu0 0.0
    %3194 = vmatpush1.msra.mxu0 0.0
    %3195 = vmatprep.subr.mxu0 0.0
    %3196 = vmatpush1.msra.mxu0 0.0
    %3197 = vmatprep.subr.mxu0 0.0
    %3198 = vmatpush1.msra.mxu0 0.0
    %3199 = vmatprep.subr.mxu0 0.0
    %3200 = vmatpush1.msra.mxu0 0.0
    %3201 = vmatprep.subr.mxu0 0.0
    %3202 = vmatpush1.msra.mxu0 0.0
    %3203 = vmatprep.subr.mxu0 0.0
    %3204 = vmatpush1.msra.mxu0 0.0
    %3205 = vmatprep.subr.mxu0 0.0
    %3206 = vmatpush1.msra.mxu0 0.0
    %3207 = vmatprep.subr.mxu0 0.0
    %3208 = vmatpush1.msra.mxu0 0.0
    %3209 = vmatprep.subr.mxu0 0.0
    %3210 = vmatpush1.msra.mxu0 0.0
    %3211 = vmatprep.subr.mxu0 0.0
    %3212 = vmatpush1.msra.mxu0 0.0
    %3213 = vmatprep.subr.mxu0 0.0
    %3214 = vmatpush1.msra.mxu0 0.0
    %3215 = vmatprep.subr.mxu0 0.0
    %3216 = vmatpush1.msra.mxu0 0.0
    %3217 = vmatprep.subr.mxu0 0.0
    %3218 = vmatpush1.msra.mxu0 0.0
    %3219 = vmatprep.subr.mxu0 0.0
    %3220 = vmatpush1.msra.mxu0 0.0
    %3221 = vmatprep.subr.mxu0 0.0
    %3222 = vmatpush1.msra.mxu0 0.0
    %3223 = vmatprep.subr.mxu0 0.0
    %3224 = vmatpush1.msra.mxu0 0.0
    %3225 = vmatprep.subr.mxu0 0.0
    %3226 = vmatpush1.msra.mxu0 0.0
    %3227 = vmatprep.subr.mxu0 0.0
    %3228 = vmatpush1.msra.mxu0 0.0
    %3229 = vmatprep.subr.mxu0 0.0
    %3230 = vmatpush1.msra.mxu0 0.0
    %3231 = vmatprep.mubr.f32.mxu0 0.0
    %3232 = vmatmul.mubr.f32.gmra.mrb[0].mxu0 %v3162
    %v3233 = vpop.f32.mrb[0].mxu0
    %v3234 = vadd.f32 %v3159, %v3233
    %v3235 = vpop.f32.mrb[0].mxu0
    %3236 = vmatprep.mubr.f32.mxu0 0.0
    %3237 = vmatmul.mubr.f32.gmra.mrb[0].mxu0 %v3165
    %v3238 = vpop.f32.mrb[0].mxu0
    %v3239 = vadd.f32 %v3159, %v3238
    %v3240 = vpop.f32.mrb[0].mxu0
    %3241 = vdwg.mxu0
    %s3242 = scalar_lea.vmem %s5, 128
    %v3243 = vld [vmem:[%s3242] sm:$0xff]
    %v3244 = vld [vmem:[%s3242 + $0x8] sm:$0xff]
    %v3245 = vld [vmem:[%s3242 + $0x10] sm:$0xff]
    %v3246 = vld [vmem:[%s3242 + $0x18] sm:$0xff]
    %s3247 = scalar_lea.vmem %s6, 4
    %v3248 = vld [vmem:[%s3247] sm:$0x1]
    %v3250 = vlaneseq
    %v3251 = vshrl.u32 %v3250, 7
    %v3252 = vsub.s32 0, %v3251
    %v3253 = vrot.slane %v3248, %v3252
    %3255 = vmatprep.subr.mxu0 0.0
    %3256 = vmatpush1.msra.mxu0 %v3243
    %3257 = vmatprep.subr.mxu0 0.0
    %3258 = vmatpush1.msra.mxu0 %v3244
    %3259 = vmatprep.subr.mxu0 0.0
    %3260 = vmatpush1.msra.mxu0 %v3245
    %3261 = vmatprep.subr.mxu0 0.0
    %3262 = vmatpush1.msra.mxu0 %v3246
    %3263 = vmatprep.subr.mxu0 0.0
    %3264 = vmatpush1.msra.mxu0 0.0
    %3265 = vmatprep.subr.mxu0 0.0
    %3266 = vmatpush1.msra.mxu0 0.0
    %3267 = vmatprep.subr.mxu0 0.0
    %3268 = vmatpush1.msra.mxu0 0.0
    %3269 = vmatprep.subr.mxu0 0.0
    %3270 = vmatpush1.msra.mxu0 0.0
    %3271 = vmatprep.subr.mxu0 0.0
    %3272 = vmatpush1.msra.mxu0 0.0
    %3273 = vmatprep.subr.mxu0 0.0
    %3274 = vmatpush1.msra.mxu0 0.0
    %3275 = vmatprep.subr.mxu0 0.0
    %3276 = vmatpush1.msra.mxu0 0.0
    %3277 = vmatprep.subr.mxu0 0.0
    %3278 = vmatpush1.msra.mxu0 0.0
    %3279 = vmatprep.subr.mxu0 0.0
    %3280 = vmatpush1.msra.mxu0 0.0
    %3281 = vmatprep.subr.mxu0 0.0
    %3282 = vmatpush1.msra.mxu0 0.0
    %3283 = vmatprep.subr.mxu0 0.0
    %3284 = vmatpush1.msra.mxu0 0.0
    %3285 = vmatprep.subr.mxu0 0.0
    %3286 = vmatpush1.msra.mxu0 0.0
    %3287 = vmatprep.subr.mxu0 0.0
    %3288 = vmatpush1.msra.mxu0 0.0
    %3289 = vmatprep.subr.mxu0 0.0
    %3290 = vmatpush1.msra.mxu0 0.0
    %3291 = vmatprep.subr.mxu0 0.0
    %3292 = vmatpush1.msra.mxu0 0.0
    %3293 = vmatprep.subr.mxu0 0.0
    %3294 = vmatpush1.msra.mxu0 0.0
    %3295 = vmatprep.subr.mxu0 0.0
    %3296 = vmatpush1.msra.mxu0 0.0
    %3297 = vmatprep.subr.mxu0 0.0
    %3298 = vmatpush1.msra.mxu0 0.0
    %3299 = vmatprep.subr.mxu0 0.0
    %3300 = vmatpush1.msra.mxu0 0.0
    %3301 = vmatprep.subr.mxu0 0.0
    %3302 = vmatpush1.msra.mxu0 0.0
    %3303 = vmatprep.subr.mxu0 0.0
    %3304 = vmatpush1.msra.mxu0 0.0
    %3305 = vmatprep.subr.mxu0 0.0
    %3306 = vmatpush1.msra.mxu0 0.0
    %3307 = vmatprep.subr.mxu0 0.0
    %3308 = vmatpush1.msra.mxu0 0.0
    %3309 = vmatprep.subr.mxu0 0.0
    %3310 = vmatpush1.msra.mxu0 0.0
    %3311 = vmatprep.subr.mxu0 0.0
    %3312 = vmatpush1.msra.mxu0 0.0
    %3313 = vmatprep.subr.mxu0 0.0
    %3314 = vmatpush1.msra.mxu0 0.0
    %3315 = vmatprep.subr.mxu0 0.0
    %3316 = vmatpush1.msra.mxu0 0.0
    %3317 = vmatprep.subr.mxu0 0.0
    %3318 = vmatpush1.msra.mxu0 0.0
    %3319 = vmatprep.mubr.f32.mxu0 0.0
    %3320 = vmatmul.mubr.f32.gmra.mrb[0].mxu0 %v3162
    %v3321 = vpop.f32.mrb[0].mxu0
    %v3322 = vadd.f32 %v3253, %v3321
    %v3323 = vpop.f32.mrb[0].mxu0
    %3324 = vmatprep.mubr.f32.mxu0 0.0
    %3325 = vmatmul.mubr.f32.gmra.mrb[0].mxu0 %v3165
    %v3326 = vpop.f32.mrb[0].mxu0
    %v3327 = vadd.f32 %v3253, %v3326
    %v3328 = vpop.f32.mrb[0].mxu0
    %3329 = vdwg.mxu0
    %s3330 = scalar_lea.vmem %s7, 128
    %v3331 = vld [vmem:[%s3330] sm:$0xff]
    %v3332 = vld [vmem:[%s3330 + $0x8] sm:$0xff]
    %v3333 = vld [vmem:[%s3330 + $0x10] sm:$0xff]
    %v3334 = vld [vmem:[%s3330 + $0x18] sm:$0xff]
    %s3335 = scalar_lea.vmem %s8, 4
    %v3336 = vld [vmem:[%s3335] sm:$0x1]
    %v3338 = vlaneseq
    %v3339 = vshrl.u32 %v3338, 7
    %v3340 = vsub.s32 0, %v3339
    %v3341 = vrot.slane %v3336, %v3340
    %3343 = vmatprep.subr.mxu0 0.0
    %3344 = vmatpush1.msra.mxu0 %v3331
    %3345 = vmatprep.subr.mxu0 0.0
    %3346 = vmatpush1.msra.mxu0 %v3332
    %3347 = vmatprep.subr.mxu0 0.0
    %3348 = vmatpush1.msra.mxu0 %v3333
    %3349 = vmatprep.subr.mxu0 0.0
    %3350 = vmatpush1.msra.mxu0 %v3334
    %3351 = vmatprep.subr.mxu0 0.0
    %3352 = vmatpush1.msra.mxu0 0.0
    %3353 = vmatprep.subr.mxu0 0.0
    %3354 = vmatpush1.msra.mxu0 0.0
    %3355 = vmatprep.subr.mxu0 0.0
    %3356 = vmatpush1.msra.mxu0 0.0
    %3357 = vmatprep.subr.mxu0 0.0
    %3358 = vmatpush1.msra.mxu0 0.0
    %3359 = vmatprep.subr.mxu0 0.0
    %3360 = vmatpush1.msra.mxu0 0.0
    %3361 = vmatprep.subr.mxu0 0.0
    %3362 = vmatpush1.msra.mxu0 0.0
    %3363 = vmatprep.subr.mxu0 0.0
    %3364 = vmatpush1.msra.mxu0 0.0
    %3365 = vmatprep.subr.mxu0 0.0
    %3366 = vmatpush1.msra.mxu0 0.0
    %3367 = vmatprep.subr.mxu0 0.0
    %3368 = vmatpush1.msra.mxu0 0.0
    %3369 = vmatprep.subr.mxu0 0.0
    %3370 = vmatpush1.msra.mxu0 0.0
    %3371 = vmatprep.subr.mxu0 0.0
    %3372 = vmatpush1.msra.mxu0 0.0
    %3373 = vmatprep.subr.mxu0 0.0
    %3374 = vmatpush1.msra.mxu0 0.0
    %3375 = vmatprep.subr.mxu0 0.0
    %3376 = vmatpush1.msra.mxu0 0.0
    %3377 = vmatprep.subr.mxu0 0.0
    %3378 = vmatpush1.msra.mxu0 0.0
    %3379 = vmatprep.subr.mxu0 0.0
    %3380 = vmatpush1.msra.mxu0 0.0
    %3381 = vmatprep.subr.mxu0 0.0
    %3382 = vmatpush1.msra.mxu0 0.0
    %3383 = vmatprep.subr.mxu0 0.0
    %3384 = vmatpush1.msra.mxu0 0.0
    %3385 = vmatprep.subr.mxu0 0.0
    %3386 = vmatpush1.msra.mxu0 0.0
    %3387 = vmatprep.subr.mxu0 0.0
    %3388 = vmatpush1.msra.mxu0 0.0
    %3389 = vmatprep.subr.mxu0 0.0
    %3390 = vmatpush1.msra.mxu0 0.0
    %3391 = vmatprep.subr.mxu0 0.0
    %3392 = vmatpush1.msra.mxu0 0.0
    %3393 = vmatprep.subr.mxu0 0.0
    %3394 = vmatpush1.msra.mxu0 0.0
    %3395 = vmatprep.subr.mxu0 0.0
    %3396 = vmatpush1.msra.mxu0 0.0
    %3397 = vmatprep.subr.mxu0 0.0
    %3398 = vmatpush1.msra.mxu0 0.0
    %3399 = vmatprep.subr.mxu0 0.0
    %3400 = vmatpush1.msra.mxu0 0.0
    %3401 = vmatprep.subr.mxu0 0.0
    %3402 = vmatpush1.msra.mxu0 0.0
    %3403 = vmatprep.subr.mxu0 0.0
    %3404 = vmatpush1.msra.mxu0 0.0
    %3405 = vmatprep.subr.mxu0 0.0
    %3406 = vmatpush1.msra.mxu0 0.0
    %3407 = vmatprep.mubr.f32.mxu0 0.0
    %3408 = vmatmul.mubr.f32.gmra.mrb[0].mxu0 %v3162
    %v3409 = vpop.f32.mrb[0].mxu0
    %v3410 = vadd.f32 %v3341, %v3409
    %v3411 = vpop.f32.mrb[0].mxu0
    %3412 = vmatprep.mubr.f32.mxu0 0.0
    %3413 = vmatmul.mubr.f32.gmra.mrb[0].mxu0 %v3165
    %v3414 = vpop.f32.mrb[0].mxu0
    %v3415 = vadd.f32 %v3341, %v3414
    %v3416 = vpop.f32.mrb[0].mxu0
    %3417 = vdwg.mxu0
    %v3419 = vsel %vm398, %v3234, 0
    %v3422 = vsel %vm398, %v3322, 0
    %3424 = vmatprep.subr.mxu0 0.0
    %3425 = vmatpush1.xpose.msra.mxu0 %v3422
    %3426 = vmatprep.subr.mxu0 0.0
    %3427 = vmatpush1.xpose.msra.mxu0 0.0
    %3428 = vmatprep.subr.mxu0 0.0
    %3429 = vmatpush1.xpose.msra.mxu0 0.0
    %3430 = vmatprep.subr.mxu0 0.0
    %3431 = vmatpush1.xpose.msra.mxu0 0.0
    %3432 = vmatprep.subr.mxu0 0.0
    %3433 = vmatpush1.xpose.msra.mxu0 0.0
    %3434 = vmatprep.subr.mxu0 0.0
    %3435 = vmatpush1.xpose.msra.mxu0 0.0
    %3436 = vmatprep.subr.mxu0 0.0
    %3437 = vmatpush1.xpose.msra.mxu0 0.0
    %3438 = vmatprep.subr.mxu0 0.0
    %3439 = vmatpush1.xpose.msra.mxu0 0.0
    %3440 = vmatprep.subr.mxu0 0.0
    %3441 = vmatpush1.xpose.msra.mxu0 0.0
    %3442 = vmatprep.subr.mxu0 0.0
    %3443 = vmatpush1.xpose.msra.mxu0 0.0
    %3444 = vmatprep.subr.mxu0 0.0
    %3445 = vmatpush1.xpose.msra.mxu0 0.0
    %3446 = vmatprep.subr.mxu0 0.0
    %3447 = vmatpush1.xpose.msra.mxu0 0.0
    %3448 = vmatprep.subr.mxu0 0.0
    %3449 = vmatpush1.xpose.msra.mxu0 0.0
    %3450 = vmatprep.subr.mxu0 0.0
    %3451 = vmatpush1.xpose.msra.mxu0 0.0
    %3452 = vmatprep.subr.mxu0 0.0
    %3453 = vmatpush1.xpose.msra.mxu0 0.0
    %3454 = vmatprep.subr.mxu0 0.0
    %3455 = vmatpush1.xpose.msra.mxu0 0.0
    %3456 = vmatprep.subr.mxu0 0.0
    %3457 = vmatpush1.xpose.msra.mxu0 0.0
    %3458 = vmatprep.subr.mxu0 0.0
    %3459 = vmatpush1.xpose.msra.mxu0 0.0
    %3460 = vmatprep.subr.mxu0 0.0
    %3461 = vmatpush1.xpose.msra.mxu0 0.0
    %3462 = vmatprep.subr.mxu0 0.0
    %3463 = vmatpush1.xpose.msra.mxu0 0.0
    %3464 = vmatprep.subr.mxu0 0.0
    %3465 = vmatpush1.xpose.msra.mxu0 0.0
    %3466 = vmatprep.subr.mxu0 0.0
    %3467 = vmatpush1.xpose.msra.mxu0 0.0
    %3468 = vmatprep.subr.mxu0 0.0
    %3469 = vmatpush1.xpose.msra.mxu0 0.0
    %3470 = vmatprep.subr.mxu0 0.0
    %3471 = vmatpush1.xpose.msra.mxu0 0.0
    %3472 = vmatprep.subr.mxu0 0.0
    %3473 = vmatpush1.xpose.msra.mxu0 0.0
    %3474 = vmatprep.subr.mxu0 0.0
    %3475 = vmatpush1.xpose.msra.mxu0 0.0
    %3476 = vmatprep.subr.mxu0 0.0
    %3477 = vmatpush1.xpose.msra.mxu0 0.0
    %3478 = vmatprep.subr.mxu0 0.0
    %3479 = vmatpush1.xpose.msra.mxu0 0.0
    %3480 = vmatprep.subr.mxu0 0.0
    %3481 = vmatpush1.xpose.msra.mxu0 0.0
    %3482 = vmatprep.subr.mxu0 0.0
    %3483 = vmatpush1.xpose.msra.mxu0 0.0
    %3484 = vmatprep.subr.mxu0 0.0
    %3485 = vmatpush1.xpose.msra.mxu0 0.0
    %3486 = vmatprep.subr.mxu0 0.0
    %3487 = vmatpush1.xpose.msra.mxu0 0.0
    %3488 = vmatprep.mubr.f32.mxu0 0.0
    %3489 = vmatmul.mubr.f32.gmra.mrb[0].mxu0 %v3419
    %v3490 = vpop.f32.mrb[0].mxu0
    %v3491 = vadd.f32 0.0, %v3490
    %v3492 = vpop.f32.mrb[0].mxu0
    %3493 = vdwg.mxu0
    %v3495 = vsel %vm398, %v3239, 0
    %v3498 = vsel %vm398, %v3327, 0
    %3500 = vmatprep.subr.mxu0 0.0
    %3501 = vmatpush1.xpose.msra.mxu0 %v3498
    %3502 = vmatprep.subr.mxu0 0.0
    %3503 = vmatpush1.xpose.msra.mxu0 0.0
    %3504 = vmatprep.subr.mxu0 0.0
    %3505 = vmatpush1.xpose.msra.mxu0 0.0
    %3506 = vmatprep.subr.mxu0 0.0
    %3507 = vmatpush1.xpose.msra.mxu0 0.0
    %3508 = vmatprep.subr.mxu0 0.0
    %3509 = vmatpush1.xpose.msra.mxu0 0.0
    %3510 = vmatprep.subr.mxu0 0.0
    %3511 = vmatpush1.xpose.msra.mxu0 0.0
    %3512 = vmatprep.subr.mxu0 0.0
    %3513 = vmatpush1.xpose.msra.mxu0 0.0
    %3514 = vmatprep.subr.mxu0 0.0
    %3515 = vmatpush1.xpose.msra.mxu0 0.0
    %3516 = vmatprep.subr.mxu0 0.0
    %3517 = vmatpush1.xpose.msra.mxu0 0.0
    %3518 = vmatprep.subr.mxu0 0.0
    %3519 = vmatpush1.xpose.msra.mxu0 0.0
    %3520 = vmatprep.subr.mxu0 0.0
    %3521 = vmatpush1.xpose.msra.mxu0 0.0
    %3522 = vmatprep.subr.mxu0 0.0
    %3523 = vmatpush1.xpose.msra.mxu0 0.0
    %3524 = vmatprep.subr.mxu0 0.0
    %3525 = vmatpush1.xpose.msra.mxu0 0.0
    %3526 = vmatprep.subr.mxu0 0.0
    %3527 = vmatpush1.xpose.msra.mxu0 0.0
    %3528 = vmatprep.subr.mxu0 0.0
    %3529 = vmatpush1.xpose.msra.mxu0 0.0
    %3530 = vmatprep.subr.mxu0 0.0
    %3531 = vmatpush1.xpose.msra.mxu0 0.0
    %3532 = vmatprep.subr.mxu0 0.0
    %3533 = vmatpush1.xpose.msra.mxu0 0.0
    %3534 = vmatprep.subr.mxu0 0.0
    %3535 = vmatpush1.xpose.msra.mxu0 0.0
    %3536 = vmatprep.subr.mxu0 0.0
    %3537 = vmatpush1.xpose.msra.mxu0 0.0
    %3538 = vmatprep.subr.mxu0 0.0
    %3539 = vmatpush1.xpose.msra.mxu0 0.0
    %3540 = vmatprep.subr.mxu0 0.0
    %3541 = vmatpush1.xpose.msra.mxu0 0.0
    %3542 = vmatprep.subr.mxu0 0.0
    %3543 = vmatpush1.xpose.msra.mxu0 0.0
    %3544 = vmatprep.subr.mxu0 0.0
    %3545 = vmatpush1.xpose.msra.mxu0 0.0
    %3546 = vmatprep.subr.mxu0 0.0
    %3547 = vmatpush1.xpose.msra.mxu0 0.0
    %3548 = vmatprep.subr.mxu0 0.0
    %3549 = vmatpush1.xpose.msra.mxu0 0.0
    %3550 = vmatprep.subr.mxu0 0.0
    %3551 = vmatpush1.xpose.msra.mxu0 0.0
    %3552 = vmatprep.subr.mxu0 0.0
    %3553 = vmatpush1.xpose.msra.mxu0 0.0
    %3554 = vmatprep.subr.mxu0 0.0
    %3555 = vmatpush1.xpose.msra.mxu0 0.0
    %3556 = vmatprep.subr.mxu0 0.0
    %3557 = vmatpush1.xpose.msra.mxu0 0.0
    %3558 = vmatprep.subr.mxu0 0.0
    %3559 = vmatpush1.xpose.msra.mxu0 0.0
    %3560 = vmatprep.subr.mxu0 0.0
    %3561 = vmatpush1.xpose.msra.mxu0 0.0
    %3562 = vmatprep.subr.mxu0 0.0
    %3563 = vmatpush1.xpose.msra.mxu0 0.0
    %3564 = vmatprep.mubr.f32.mxu0 0.0
    %3565 = vmatmul.mubr.f32.gmra.mrb[0].mxu0 %v3495
    %v3566 = vpop.f32.mrb[0].mxu0
    %v3567 = vadd.f32 0.0, %v3566
    %v3568 = vpop.f32.mrb[0].mxu0
    %3569 = vdwg.mxu0
    %v3570 = vmul.f32 %v3491, 0.35355338
    %v3571 = vmul.f32 %v3567, 0.35355338
    %v3572 = vsel %vm398, %v3570, -inf
    %3573 = vmax.xlane.f32.xlu0 %v3572
    %v3574 = vpop.xlane.xlu0 %3573
    %v3575 = vsel %vm398, %v3571, -inf
    %3576 = vmax.xlane.f32.xlu0 %v3575
    %v3577 = vpop.xlane.xlu0 %3576
    %v3578 = vsub.f32 %v3570, %v3574
    %v3579 = vsub.f32 %v3571, %v3577
    %v3580 = vmul.f32 %v3578, 1.442695
    %v3581 = vpow.pop %v3580
    %v3582 = vmul.f32 %v3579, 1.442695
    %v3583 = vpow.pop %v3582
    %v3584 = vsel %vm398, %v3581, 0.0
    %3585 = vadd.xlane.f32.xlu0 %v3584
    %v3586 = vpop.xlane.xlu0 %3585
    %v3587 = vsel %vm398, %v3583, 0.0
    %3588 = vadd.xlane.f32.xlu0 %v3587
    %v3589 = vpop.xlane.xlu0 %3588
    %v3590 = vrcp.pop %v3586
    %v3591 = vrcp.pop %v3589
    %v3592 = vmul.f32 %v3581, %v3590
    %v3593 = vmul.f32 %v3583, %v3591
    %v3594 = vsel %vm398, %v3592, 0.0
    %v3595 = vsel %vm398, %v3593, 0.0
    %v3596 = vadd.f32 %v3594, %v3595
    %v3597 = vmul.f32 %v3596, %v578
    %v3599 = vsel %vm398, %v3592, 0
    %3601 = vmatprep.subr.mxu0 0.0
    %3602 = vmatpush1.msra.mxu0 %v3410
    %3603 = vmatprep.subr.mxu0 0.0
    %3604 = vmatpush1.msra.mxu0 0.0
    %3605 = vmatprep.subr.mxu0 0.0
    %3606 = vmatpush1.msra.mxu0 0.0
    %3607 = vmatprep.subr.mxu0 0.0
    %3608 = vmatpush1.msra.mxu0 0.0
    %3609 = vmatprep.subr.mxu0 0.0
    %3610 = vmatpush1.msra.mxu0 0.0
    %3611 = vmatprep.subr.mxu0 0.0
    %3612 = vmatpush1.msra.mxu0 0.0
    %3613 = vmatprep.subr.mxu0 0.0
    %3614 = vmatpush1.msra.mxu0 0.0
    %3615 = vmatprep.subr.mxu0 0.0
    %3616 = vmatpush1.msra.mxu0 0.0
    %3617 = vmatprep.subr.mxu0 0.0
    %3618 = vmatpush1.msra.mxu0 0.0
    %3619 = vmatprep.subr.mxu0 0.0
    %3620 = vmatpush1.msra.mxu0 0.0
    %3621 = vmatprep.subr.mxu0 0.0
    %3622 = vmatpush1.msra.mxu0 0.0
    %3623 = vmatprep.subr.mxu0 0.0
    %3624 = vmatpush1.msra.mxu0 0.0
    %3625 = vmatprep.subr.mxu0 0.0
    %3626 = vmatpush1.msra.mxu0 0.0
    %3627 = vmatprep.subr.mxu0 0.0
    %3628 = vmatpush1.msra.mxu0 0.0
    %3629 = vmatprep.subr.mxu0 0.0
    %3630 = vmatpush1.msra.mxu0 0.0
    %3631 = vmatprep.subr.mxu0 0.0
    %3632 = vmatpush1.msra.mxu0 0.0
    %3633 = vmatprep.subr.mxu0 0.0
    %3634 = vmatpush1.msra.mxu0 0.0
    %3635 = vmatprep.subr.mxu0 0.0
    %3636 = vmatpush1.msra.mxu0 0.0
    %3637 = vmatprep.subr.mxu0 0.0
    %3638 = vmatpush1.msra.mxu0 0.0
    %3639 = vmatprep.subr.mxu0 0.0
    %3640 = vmatpush1.msra.mxu0 0.0
    %3641 = vmatprep.subr.mxu0 0.0
    %3642 = vmatpush1.msra.mxu0 0.0
    %3643 = vmatprep.subr.mxu0 0.0
    %3644 = vmatpush1.msra.mxu0 0.0
    %3645 = vmatprep.subr.mxu0 0.0
    %3646 = vmatpush1.msra.mxu0 0.0
    %3647 = vmatprep.subr.mxu0 0.0
    %3648 = vmatpush1.msra.mxu0 0.0
    %3649 = vmatprep.subr.mxu0 0.0
    %3650 = vmatpush1.msra.mxu0 0.0
    %3651 = vmatprep.subr.mxu0 0.0
    %3652 = vmatpush1.msra.mxu0 0.0
    %3653 = vmatprep.subr.mxu0 0.0
    %3654 = vmatpush1.msra.mxu0 0.0
    %3655 = vmatprep.subr.mxu0 0.0
    %3656 = vmatpush1.msra.mxu0 0.0
    %3657 = vmatprep.subr.mxu0 0.0
    %3658 = vmatpush1.msra.mxu0 0.0
    %3659 = vmatprep.subr.mxu0 0.0
    %3660 = vmatpush1.msra.mxu0 0.0
    %3661 = vmatprep.subr.mxu0 0.0
    %3662 = vmatpush1.msra.mxu0 0.0
    %3663 = vmatprep.subr.mxu0 0.0
    %3664 = vmatpush1.msra.mxu0 0.0
    %3665 = vmatprep.mubr.f32.mxu0 0.0
    %3666 = vmatmul.mubr.f32.gmra.mrb[0].mxu0 %v3599
    %v3667 = vpop.f32.mrb[0].mxu0
    %v3668 = vadd.f32 0.0, %v3667
    %v3669 = vpop.f32.mrb[0].mxu0
    %3670 = vdwg.mxu0
    %v3672 = vsel %vm398, %v3593, 0
    %3674 = vmatprep.subr.mxu0 0.0
    %3675 = vmatpush1.msra.mxu0 %v3415
    %3676 = vmatprep.subr.mxu0 0.0
    %3677 = vmatpush1.msra.mxu0 0.0
    %3678 = vmatprep.subr.mxu0 0.0
    %3679 = vmatpush1.msra.mxu0 0.0
    %3680 = vmatprep.subr.mxu0 0.0
    %3681 = vmatpush1.msra.mxu0 0.0
    %3682 = vmatprep.subr.mxu0 0.0
    %3683 = vmatpush1.msra.mxu0 0.0
    %3684 = vmatprep.subr.mxu0 0.0
    %3685 = vmatpush1.msra.mxu0 0.0
    %3686 = vmatprep.subr.mxu0 0.0
    %3687 = vmatpush1.msra.mxu0 0.0
    %3688 = vmatprep.subr.mxu0 0.0
    %3689 = vmatpush1.msra.mxu0 0.0
    %3690 = vmatprep.subr.mxu0 0.0
    %3691 = vmatpush1.msra.mxu0 0.0
    %3692 = vmatprep.subr.mxu0 0.0
    %3693 = vmatpush1.msra.mxu0 0.0
    %3694 = vmatprep.subr.mxu0 0.0
    %3695 = vmatpush1.msra.mxu0 0.0
    %3696 = vmatprep.subr.mxu0 0.0
    %3697 = vmatpush1.msra.mxu0 0.0
    %3698 = vmatprep.subr.mxu0 0.0
    %3699 = vmatpush1.msra.mxu0 0.0
    %3700 = vmatprep.subr.mxu0 0.0
    %3701 = vmatpush1.msra.mxu0 0.0
    %3702 = vmatprep.subr.mxu0 0.0
    %3703 = vmatpush1.msra.mxu0 0.0
    %3704 = vmatprep.subr.mxu0 0.0
    %3705 = vmatpush1.msra.mxu0 0.0
    %3706 = vmatprep.subr.mxu0 0.0
    %3707 = vmatpush1.msra.mxu0 0.0
    %3708 = vmatprep.subr.mxu0 0.0
    %3709 = vmatpush1.msra.mxu0 0.0
    %3710 = vmatprep.subr.mxu0 0.0
    %3711 = vmatpush1.msra.mxu0 0.0
    %3712 = vmatprep.subr.mxu0 0.0
    %3713 = vmatpush1.msra.mxu0 0.0
    %3714 = vmatprep.subr.mxu0 0.0
    %3715 = vmatpush1.msra.mxu0 0.0
    %3716 = vmatprep.subr.mxu0 0.0
    %3717 = vmatpush1.msra.mxu0 0.0
    %3718 = vmatprep.subr.mxu0 0.0
    %3719 = vmatpush1.msra.mxu0 0.0
    %3720 = vmatprep.subr.mxu0 0.0
    %3721 = vmatpush1.msra.mxu0 0.0
    %3722 = vmatprep.subr.mxu0 0.0
    %3723 = vmatpush1.msra.mxu0 0.0
    %3724 = vmatprep.subr.mxu0 0.0
    %3725 = vmatpush1.msra.mxu0 0.0
    %3726 = vmatprep.subr.mxu0 0.0
    %3727 = vmatpush1.msra.mxu0 0.0
    %3728 = vmatprep.subr.mxu0 0.0
    %3729 = vmatpush1.msra.mxu0 0.0
    %3730 = vmatprep.subr.mxu0 0.0
    %3731 = vmatpush1.msra.mxu0 0.0
    %3732 = vmatprep.subr.mxu0 0.0
    %3733 = vmatpush1.msra.mxu0 0.0
    %3734 = vmatprep.subr.mxu0 0.0
    %3735 = vmatpush1.msra.mxu0 0.0
    %3736 = vmatprep.subr.mxu0 0.0
    %3737 = vmatpush1.msra.mxu0 0.0
    %3738 = vmatprep.mubr.f32.mxu0 0.0
    %3739 = vmatmul.mubr.f32.gmra.mrb[0].mxu0 %v3672
    %v3740 = vpop.f32.mrb[0].mxu0
    %v3741 = vadd.f32 0.0, %v3740
    %v3742 = vpop.f32.mrb[0].mxu0
    %3743 = vdwg.mxu0
    %s3744 = scalar_lea.vmem %s9, 32
    %v3745 = vld [vmem:[%s3744] sm:$0xff]
    %v3747 = vsel %vm398, %v3668, 0
    %v3750 = vsel %vm398, %v3741, 0
    %3752 = vmatprep.subr.mxu0 0.0
    %3753 = vmatpush1.msra.mxu0 %v3745
    %3754 = vmatprep.subr.mxu0 0.0
    %3755 = vmatpush1.msra.mxu0 0.0
    %3756 = vmatprep.subr.mxu0 0.0
    %3757 = vmatpush1.msra.mxu0 0.0
    %3758 = vmatprep.subr.mxu0 0.0
    %3759 = vmatpush1.msra.mxu0 0.0
    %3760 = vmatprep.subr.mxu0 0.0
    %3761 = vmatpush1.msra.mxu0 0.0
    %3762 = vmatprep.subr.mxu0 0.0
    %3763 = vmatpush1.msra.mxu0 0.0
    %3764 = vmatprep.subr.mxu0 0.0
    %3765 = vmatpush1.msra.mxu0 0.0
    %3766 = vmatprep.subr.mxu0 0.0
    %3767 = vmatpush1.msra.mxu0 0.0
    %3768 = vmatprep.subr.mxu0 0.0
    %3769 = vmatpush1.msra.mxu0 0.0
    %3770 = vmatprep.subr.mxu0 0.0
    %3771 = vmatpush1.msra.mxu0 0.0
    %3772 = vmatprep.subr.mxu0 0.0
    %3773 = vmatpush1.msra.mxu0 0.0
    %3774 = vmatprep.subr.mxu0 0.0
    %3775 = vmatpush1.msra.mxu0 0.0
    %3776 = vmatprep.subr.mxu0 0.0
    %3777 = vmatpush1.msra.mxu0 0.0
    %3778 = vmatprep.subr.mxu0 0.0
    %3779 = vmatpush1.msra.mxu0 0.0
    %3780 = vmatprep.subr.mxu0 0.0
    %3781 = vmatpush1.msra.mxu0 0.0
    %3782 = vmatprep.subr.mxu0 0.0
    %3783 = vmatpush1.msra.mxu0 0.0
    %3784 = vmatprep.subr.mxu0 0.0
    %3785 = vmatpush1.msra.mxu0 0.0
    %3786 = vmatprep.subr.mxu0 0.0
    %3787 = vmatpush1.msra.mxu0 0.0
    %3788 = vmatprep.subr.mxu0 0.0
    %3789 = vmatpush1.msra.mxu0 0.0
    %3790 = vmatprep.subr.mxu0 0.0
    %3791 = vmatpush1.msra.mxu0 0.0
    %3792 = vmatprep.subr.mxu0 0.0
    %3793 = vmatpush1.msra.mxu0 0.0
    %3794 = vmatprep.subr.mxu0 0.0
    %3795 = vmatpush1.msra.mxu0 0.0
    %3796 = vmatprep.subr.mxu0 0.0
    %3797 = vmatpush1.msra.mxu0 0.0
    %3798 = vmatprep.subr.mxu0 0.0
    %3799 = vmatpush1.msra.mxu0 0.0
    %3800 = vmatprep.subr.mxu0 0.0
    %3801 = vmatpush1.msra.mxu0 0.0
    %3802 = vmatprep.subr.mxu0 0.0
    %3803 = vmatpush1.msra.mxu0 0.0
    %3804 = vmatprep.subr.mxu0 0.0
    %3805 = vmatpush1.msra.mxu0 0.0
    %3806 = vmatprep.subr.mxu0 0.0
    %3807 = vmatpush1.msra.mxu0 0.0
    %3808 = vmatprep.subr.mxu0 0.0
    %3809 = vmatpush1.msra.mxu0 0.0
    %3810 = vmatprep.subr.mxu0 0.0
    %3811 = vmatpush1.msra.mxu0 0.0
    %3812 = vmatprep.subr.mxu0 0.0
    %3813 = vmatpush1.msra.mxu0 0.0
    %3814 = vmatprep.subr.mxu0 0.0
    %3815 = vmatpush1.msra.mxu0 0.0
    %3816 = vmatprep.mubr.f32.mxu0 0.0
    %3817 = vmatmul.mubr.f32.gmra.mrb[0].mxu0 %v3747
    %v3818 = vpop.f32.mrb[0].mxu0
    %v3819 = vadd.f32 0.0, %v3818
    %v3820 = vpop.f32.mrb[0].mxu0
    %3821 = vmatprep.mubr.f32.mxu0 0.0
    %3822 = vmatmul.mubr.f32.gmra.mrb[0].mxu0 %v3750
    %v3823 = vpop.f32.mrb[0].mxu0
    %v3824 = vadd.f32 0.0, %v3823
    %v3825 = vpop.f32.mrb[0].mxu0
    %3826 = vdwg.mxu0
    %v3827 = vadd.f32 %v3146, %v3819
    %v3828 = vadd.f32 %v3147, %v3824
    %s3829 = scalar_lea.vmem %s3, 160
    %v3830 = vld [vmem:[%s3829] sm:$0xff]
    %v3831 = vld [vmem:[%s3829 + $0x8] sm:$0xff]
    %v3832 = vld [vmem:[%s3829 + $0x10] sm:$0xff]
    %v3833 = vld [vmem:[%s3829 + $0x18] sm:$0xff]
    %s3834 = scalar_lea.vmem %s4, 5
    %v3835 = vld [vmem:[%s3834] sm:$0x1]
    %v3837 = vlaneseq
    %v3838 = vshrl.u32 %v3837, 7
    %v3839 = vsub.s32 0, %v3838
    %v3840 = vrot.slane %v3835, %v3839
    %3842 = vmatprep.subr.mxu0 0.0
    %3843 = vmatpush1.msra.mxu0 %v3830
    %3844 = vmatprep.subr.mxu0 0.0
    %3845 = vmatpush1.msra.mxu0 %v3831
    %3846 = vmatprep.subr.mxu0 0.0
    %3847 = vmatpush1.msra.mxu0 %v3832
    %3848 = vmatprep.subr.mxu0 0.0
    %3849 = vmatpush1.msra.mxu0 %v3833
    %3850 = vmatprep.subr.mxu0 0.0
    %3851 = vmatpush1.msra.mxu0 0.0
    %3852 = vmatprep.subr.mxu0 0.0
    %3853 = vmatpush1.msra.mxu0 0.0
    %3854 = vmatprep.subr.mxu0 0.0
    %3855 = vmatpush1.msra.mxu0 0.0
    %3856 = vmatprep.subr.mxu0 0.0
    %3857 = vmatpush1.msra.mxu0 0.0
    %3858 = vmatprep.subr.mxu0 0.0
    %3859 = vmatpush1.msra.mxu0 0.0
    %3860 = vmatprep.subr.mxu0 0.0
    %3861 = vmatpush1.msra.mxu0 0.0
    %3862 = vmatprep.subr.mxu0 0.0
    %3863 = vmatpush1.msra.mxu0 0.0
    %3864 = vmatprep.subr.mxu0 0.0
    %3865 = vmatpush1.msra.mxu0 0.0
    %3866 = vmatprep.subr.mxu0 0.0
    %3867 = vmatpush1.msra.mxu0 0.0
    %3868 = vmatprep.subr.mxu0 0.0
    %3869 = vmatpush1.msra.mxu0 0.0
    %3870 = vmatprep.subr.mxu0 0.0
    %3871 = vmatpush1.msra.mxu0 0.0
    %3872 = vmatprep.subr.mxu0 0.0
    %3873 = vmatpush1.msra.mxu0 0.0
    %3874 = vmatprep.subr.mxu0 0.0
    %3875 = vmatpush1.msra.mxu0 0.0
    %3876 = vmatprep.subr.mxu0 0.0
    %3877 = vmatpush1.msra.mxu0 0.0
    %3878 = vmatprep.subr.mxu0 0.0
    %3879 = vmatpush1.msra.mxu0 0.0
    %3880 = vmatprep.subr.mxu0 0.0
    %3881 = vmatpush1.msra.mxu0 0.0
    %3882 = vmatprep.subr.mxu0 0.0
    %3883 = vmatpush1.msra.mxu0 0.0
    %3884 = vmatprep.subr.mxu0 0.0
    %3885 = vmatpush1.msra.mxu0 0.0
    %3886 = vmatprep.subr.mxu0 0.0
    %3887 = vmatpush1.msra.mxu0 0.0
    %3888 = vmatprep.subr.mxu0 0.0
    %3889 = vmatpush1.msra.mxu0 0.0
    %3890 = vmatprep.subr.mxu0 0.0
    %3891 = vmatpush1.msra.mxu0 0.0
    %3892 = vmatprep.subr.mxu0 0.0
    %3893 = vmatpush1.msra.mxu0 0.0
    %3894 = vmatprep.subr.mxu0 0.0
    %3895 = vmatpush1.msra.mxu0 0.0
    %3896 = vmatprep.subr.mxu0 0.0
    %3897 = vmatpush1.msra.mxu0 0.0
    %3898 = vmatprep.subr.mxu0 0.0
    %3899 = vmatpush1.msra.mxu0 0.0
    %3900 = vmatprep.subr.mxu0 0.0
    %3901 = vmatpush1.msra.mxu0 0.0
    %3902 = vmatprep.subr.mxu0 0.0
    %3903 = vmatpush1.msra.mxu0 0.0
    %3904 = vmatprep.subr.mxu0 0.0
    %3905 = vmatpush1.msra.mxu0 0.0
    %3906 = vmatprep.mubr.f32.mxu0 0.0
    %3907 = vmatmul.mubr.f32.gmra.mrb[0].mxu0 %v3162
    %v3908 = vpop.f32.mrb[0].mxu0
    %v3909 = vadd.f32 %v3840, %v3908
    %v3910 = vpop.f32.mrb[0].mxu0
    %3911 = vmatprep.mubr.f32.mxu0 0.0
    %3912 = vmatmul.mubr.f32.gmra.mrb[0].mxu0 %v3165
    %v3913 = vpop.f32.mrb[0].mxu0
    %v3914 = vadd.f32 %v3840, %v3913
    %v3915 = vpop.f32.mrb[0].mxu0
    %3916 = vdwg.mxu0
    %s3917 = scalar_lea.vmem %s5, 160
    %v3918 = vld [vmem:[%s3917] sm:$0xff]
    %v3919 = vld [vmem:[%s3917 + $0x8] sm:$0xff]
    %v3920 = vld [vmem:[%s3917 + $0x10] sm:$0xff]
    %v3921 = vld [vmem:[%s3917 + $0x18] sm:$0xff]
    %s3922 = scalar_lea.vmem %s6, 5
    %v3923 = vld [vmem:[%s3922] sm:$0x1]
    %v3925 = vlaneseq
    %v3926 = vshrl.u32 %v3925, 7
    %v3927 = vsub.s32 0, %v3926
    %v3928 = vrot.slane %v3923, %v3927
    %3930 = vmatprep.subr.mxu0 0.0
    %3931 = vmatpush1.msra.mxu0 %v3918
    %3932 = vmatprep.subr.mxu0 0.0
    %3933 = vmatpush1.msra.mxu0 %v3919
    %3934 = vmatprep.subr.mxu0 0.0
    %3935 = vmatpush1.msra.mxu0 %v3920
    %3936 = vmatprep.subr.mxu0 0.0
    %3937 = vmatpush1.msra.mxu0 %v3921
    %3938 = vmatprep.subr.mxu0 0.0
    %3939 = vmatpush1.msra.mxu0 0.0
    %3940 = vmatprep.subr.mxu0 0.0
    %3941 = vmatpush1.msra.mxu0 0.0
    %3942 = vmatprep.subr.mxu0 0.0
    %3943 = vmatpush1.msra.mxu0 0.0
    %3944 = vmatprep.subr.mxu0 0.0
    %3945 = vmatpush1.msra.mxu0 0.0
    %3946 = vmatprep.subr.mxu0 0.0
    %3947 = vmatpush1.msra.mxu0 0.0
    %3948 = vmatprep.subr.mxu0 0.0
    %3949 = vmatpush1.msra.mxu0 0.0
    %3950 = vmatprep.subr.mxu0 0.0
    %3951 = vmatpush1.msra.mxu0 0.0
    %3952 = vmatprep.subr.mxu0 0.0
    %3953 = vmatpush1.msra.mxu0 0.0
    %3954 = vmatprep.subr.mxu0 0.0
    %3955 = vmatpush1.msra.mxu0 0.0
    %3956 = vmatprep.subr.mxu0 0.0
    %3957 = vmatpush1.msra.mxu0 0.0
    %3958 = vmatprep.subr.mxu0 0.0
    %3959 = vmatpush1.msra.mxu0 0.0
    %3960 = vmatprep.subr.mxu0 0.0
    %3961 = vmatpush1.msra.mxu0 0.0
    %3962 = vmatprep.subr.mxu0 0.0
    %3963 = vmatpush1.msra.mxu0 0.0
    %3964 = vmatprep.subr.mxu0 0.0
    %3965 = vmatpush1.msra.mxu0 0.0
    %3966 = vmatprep.subr.mxu0 0.0
    %3967 = vmatpush1.msra.mxu0 0.0
    %3968 = vmatprep.subr.mxu0 0.0
    %3969 = vmatpush1.msra.mxu0 0.0
    %3970 = vmatprep.subr.mxu0 0.0
    %3971 = vmatpush1.msra.mxu0 0.0
    %3972 = vmatprep.subr.mxu0 0.0
    %3973 = vmatpush1.msra.mxu0 0.0
    %3974 = vmatprep.subr.mxu0 0.0
    %3975 = vmatpush1.msra.mxu0 0.0
    %3976 = vmatprep.subr.mxu0 0.0
    %3977 = vmatpush1.msra.mxu0 0.0
    %3978 = vmatprep.subr.mxu0 0.0
    %3979 = vmatpush1.msra.mxu0 0.0
    %3980 = vmatprep.subr.mxu0 0.0
    %3981 = vmatpush1.msra.mxu0 0.0
    %3982 = vmatprep.subr.mxu0 0.0
    %3983 = vmatpush1.msra.mxu0 0.0
    %3984 = vmatprep.subr.mxu0 0.0
    %3985 = vmatpush1.msra.mxu0 0.0
    %3986 = vmatprep.subr.mxu0 0.0
    %3987 = vmatpush1.msra.mxu0 0.0
    %3988 = vmatprep.subr.mxu0 0.0
    %3989 = vmatpush1.msra.mxu0 0.0
    %3990 = vmatprep.subr.mxu0 0.0
    %3991 = vmatpush1.msra.mxu0 0.0
    %3992 = vmatprep.subr.mxu0 0.0
    %3993 = vmatpush1.msra.mxu0 0.0
    %3994 = vmatprep.mubr.f32.mxu0 0.0
    %3995 = vmatmul.mubr.f32.gmra.mrb[0].mxu0 %v3162
    %v3996 = vpop.f32.mrb[0].mxu0
    %v3997 = vadd.f32 %v3928, %v3996
    %v3998 = vpop.f32.mrb[0].mxu0
    %3999 = vmatprep.mubr.f32.mxu0 0.0
    %4000 = vmatmul.mubr.f32.gmra.mrb[0].mxu0 %v3165
    %v4001 = vpop.f32.mrb[0].mxu0
    %v4002 = vadd.f32 %v3928, %v4001
    %v4003 = vpop.f32.mrb[0].mxu0
    %4004 = vdwg.mxu0
    %s4005 = scalar_lea.vmem %s7, 160
    %v4006 = vld [vmem:[%s4005] sm:$0xff]
    %v4007 = vld [vmem:[%s4005 + $0x8] sm:$0xff]
    %v4008 = vld [vmem:[%s4005 + $0x10] sm:$0xff]
    %v4009 = vld [vmem:[%s4005 + $0x18] sm:$0xff]
    %s4010 = scalar_lea.vmem %s8, 5
    %v4011 = vld [vmem:[%s4010] sm:$0x1]
    %v4013 = vlaneseq
    %v4014 = vshrl.u32 %v4013, 7
    %v4015 = vsub.s32 0, %v4014
    %v4016 = vrot.slane %v4011, %v4015
    %4018 = vmatprep.subr.mxu0 0.0
    %4019 = vmatpush1.msra.mxu0 %v4006
    %4020 = vmatprep.subr.mxu0 0.0
    %4021 = vmatpush1.msra.mxu0 %v4007
    %4022 = vmatprep.subr.mxu0 0.0
    %4023 = vmatpush1.msra.mxu0 %v4008
    %4024 = vmatprep.subr.mxu0 0.0
    %4025 = vmatpush1.msra.mxu0 %v4009
    %4026 = vmatprep.subr.mxu0 0.0
    %4027 = vmatpush1.msra.mxu0 0.0
    %4028 = vmatprep.subr.mxu0 0.0
    %4029 = vmatpush1.msra.mxu0 0.0
    %4030 = vmatprep.subr.mxu0 0.0
    %4031 = vmatpush1.msra.mxu0 0.0
    %4032 = vmatprep.subr.mxu0 0.0
    %4033 = vmatpush1.msra.mxu0 0.0
    %4034 = vmatprep.subr.mxu0 0.0
    %4035 = vmatpush1.msra.mxu0 0.0
    %4036 = vmatprep.subr.mxu0 0.0
    %4037 = vmatpush1.msra.mxu0 0.0
    %4038 = vmatprep.subr.mxu0 0.0
    %4039 = vmatpush1.msra.mxu0 0.0
    %4040 = vmatprep.subr.mxu0 0.0
    %4041 = vmatpush1.msra.mxu0 0.0
    %4042 = vmatprep.subr.mxu0 0.0
    %4043 = vmatpush1.msra.mxu0 0.0
    %4044 = vmatprep.subr.mxu0 0.0
    %4045 = vmatpush1.msra.mxu0 0.0
    %4046 = vmatprep.subr.mxu0 0.0
    %4047 = vmatpush1.msra.mxu0 0.0
    %4048 = vmatprep.subr.mxu0 0.0
    %4049 = vmatpush1.msra.mxu0 0.0
    %4050 = vmatprep.subr.mxu0 0.0
    %4051 = vmatpush1.msra.mxu0 0.0
    %4052 = vmatprep.subr.mxu0 0.0
    %4053 = vmatpush1.msra.mxu0 0.0
    %4054 = vmatprep.subr.mxu0 0.0
    %4055 = vmatpush1.msra.mxu0 0.0
    %4056 = vmatprep.subr.mxu0 0.0
    %4057 = vmatpush1.msra.mxu0 0.0
    %4058 = vmatprep.subr.mxu0 0.0
    %4059 = vmatpush1.msra.mxu0 0.0
    %4060 = vmatprep.subr.mxu0 0.0
    %4061 = vmatpush1.msra.mxu0 0.0
    %4062 = vmatprep.subr.mxu0 0.0
    %4063 = vmatpush1.msra.mxu0 0.0
    %4064 = vmatprep.subr.mxu0 0.0
    %4065 = vmatpush1.msra.mxu0 0.0
    %4066 = vmatprep.subr.mxu0 0.0
    %4067 = vmatpush1.msra.mxu0 0.0
    %4068 = vmatprep.subr.mxu0 0.0
    %4069 = vmatpush1.msra.mxu0 0.0
    %4070 = vmatprep.subr.mxu0 0.0
    %4071 = vmatpush1.msra.mxu0 0.0
    %4072 = vmatprep.subr.mxu0 0.0
    %4073 = vmatpush1.msra.mxu0 0.0
    %4074 = vmatprep.subr.mxu0 0.0
    %4075 = vmatpush1.msra.mxu0 0.0
    %4076 = vmatprep.subr.mxu0 0.0
    %4077 = vmatpush1.msra.mxu0 0.0
    %4078 = vmatprep.subr.mxu0 0.0
    %4079 = vmatpush1.msra.mxu0 0.0
    %4080 = vmatprep.subr.mxu0 0.0
    %4081 = vmatpush1.msra.mxu0 0.0
    %4082 = vmatprep.mubr.f32.mxu0 0.0
    %4083 = vmatmul.mubr.f32.gmra.mrb[0].mxu0 %v3162
    %v4084 = vpop.f32.mrb[0].mxu0
    %v4085 = vadd.f32 %v4016, %v4084
    %v4086 = vpop.f32.mrb[0].mxu0
    %4087 = vmatprep.mubr.f32.mxu0 0.0
    %4088 = vmatmul.mubr.f32.gmra.mrb[0].mxu0 %v3165
    %v4089 = vpop.f32.mrb[0].mxu0
    %v4090 = vadd.f32 %v4016, %v4089
    %v4091 = vpop.f32.mrb[0].mxu0
    %4092 = vdwg.mxu0
    %v4094 = vsel %vm398, %v3909, 0
    %v4097 = vsel %vm398, %v3997, 0
    %4099 = vmatprep.subr.mxu0 0.0
    %4100 = vmatpush1.xpose.msra.mxu0 %v4097
    %4101 = vmatprep.subr.mxu0 0.0
    %4102 = vmatpush1.xpose.msra.mxu0 0.0
    %4103 = vmatprep.subr.mxu0 0.0
    %4104 = vmatpush1.xpose.msra.mxu0 0.0
    %4105 = vmatprep.subr.mxu0 0.0
    %4106 = vmatpush1.xpose.msra.mxu0 0.0
    %4107 = vmatprep.subr.mxu0 0.0
    %4108 = vmatpush1.xpose.msra.mxu0 0.0
    %4109 = vmatprep.subr.mxu0 0.0
    %4110 = vmatpush1.xpose.msra.mxu0 0.0
    %4111 = vmatprep.subr.mxu0 0.0
    %4112 = vmatpush1.xpose.msra.mxu0 0.0
    %4113 = vmatprep.subr.mxu0 0.0
    %4114 = vmatpush1.xpose.msra.mxu0 0.0
    %4115 = vmatprep.subr.mxu0 0.0
    %4116 = vmatpush1.xpose.msra.mxu0 0.0
    %4117 = vmatprep.subr.mxu0 0.0
    %4118 = vmatpush1.xpose.msra.mxu0 0.0
    %4119 = vmatprep.subr.mxu0 0.0
    %4120 = vmatpush1.xpose.msra.mxu0 0.0
    %4121 = vmatprep.subr.mxu0 0.0
    %4122 = vmatpush1.xpose.msra.mxu0 0.0
    %4123 = vmatprep.subr.mxu0 0.0
    %4124 = vmatpush1.xpose.msra.mxu0 0.0
    %4125 = vmatprep.subr.mxu0 0.0
    %4126 = vmatpush1.xpose.msra.mxu0 0.0
    %4127 = vmatprep.subr.mxu0 0.0
    %4128 = vmatpush1.xpose.msra.mxu0 0.0
    %4129 = vmatprep.subr.mxu0 0.0
    %4130 = vmatpush1.xpose.msra.mxu0 0.0
    %4131 = vmatprep.subr.mxu0 0.0
    %4132 = vmatpush1.xpose.msra.mxu0 0.0
    %4133 = vmatprep.subr.mxu0 0.0
    %4134 = vmatpush1.xpose.msra.mxu0 0.0
    %4135 = vmatprep.subr.mxu0 0.0
    %4136 = vmatpush1.xpose.msra.mxu0 0.0
    %4137 = vmatprep.subr.mxu0 0.0
    %4138 = vmatpush1.xpose.msra.mxu0 0.0
    %4139 = vmatprep.subr.mxu0 0.0
    %4140 = vmatpush1.xpose.msra.mxu0 0.0
    %4141 = vmatprep.subr.mxu0 0.0
    %4142 = vmatpush1.xpose.msra.mxu0 0.0
    %4143 = vmatprep.subr.mxu0 0.0
    %4144 = vmatpush1.xpose.msra.mxu0 0.0
    %4145 = vmatprep.subr.mxu0 0.0
    %4146 = vmatpush1.xpose.msra.mxu0 0.0
    %4147 = vmatprep.subr.mxu0 0.0
    %4148 = vmatpush1.xpose.msra.mxu0 0.0
    %4149 = vmatprep.subr.mxu0 0.0
    %4150 = vmatpush1.xpose.msra.mxu0 0.0
    %4151 = vmatprep.subr.mxu0 0.0
    %4152 = vmatpush1.xpose.msra.mxu0 0.0
    %4153 = vmatprep.subr.mxu0 0.0
    %4154 = vmatpush1.xpose.msra.mxu0 0.0
    %4155 = vmatprep.subr.mxu0 0.0
    %4156 = vmatpush1.xpose.msra.mxu0 0.0
    %4157 = vmatprep.subr.mxu0 0.0
    %4158 = vmatpush1.xpose.msra.mxu0 0.0
    %4159 = vmatprep.subr.mxu0 0.0
    %4160 = vmatpush1.xpose.msra.mxu0 0.0
    %4161 = vmatprep.subr.mxu0 0.0
    %4162 = vmatpush1.xpose.msra.mxu0 0.0
    %4163 = vmatprep.mubr.f32.mxu0 0.0
    %4164 = vmatmul.mubr.f32.gmra.mrb[0].mxu0 %v4094
    %v4165 = vpop.f32.mrb[0].mxu0
    %v4166 = vadd.f32 0.0, %v4165
    %v4167 = vpop.f32.mrb[0].mxu0
    %4168 = vdwg.mxu0
    %v4170 = vsel %vm398, %v3914, 0
    %v4173 = vsel %vm398, %v4002, 0
    %4175 = vmatprep.subr.mxu0 0.0
    %4176 = vmatpush1.xpose.msra.mxu0 %v4173
    %4177 = vmatprep.subr.mxu0 0.0
    %4178 = vmatpush1.xpose.msra.mxu0 0.0
    %4179 = vmatprep.subr.mxu0 0.0
    %4180 = vmatpush1.xpose.msra.mxu0 0.0
    %4181 = vmatprep.subr.mxu0 0.0
    %4182 = vmatpush1.xpose.msra.mxu0 0.0
    %4183 = vmatprep.subr.mxu0 0.0
    %4184 = vmatpush1.xpose.msra.mxu0 0.0
    %4185 = vmatprep.subr.mxu0 0.0
    %4186 = vmatpush1.xpose.msra.mxu0 0.0
    %4187 = vmatprep.subr.mxu0 0.0
    %4188 = vmatpush1.xpose.msra.mxu0 0.0
    %4189 = vmatprep.subr.mxu0 0.0
    %4190 = vmatpush1.xpose.msra.mxu0 0.0
    %4191 = vmatprep.subr.mxu0 0.0
    %4192 = vmatpush1.xpose.msra.mxu0 0.0
    %4193 = vmatprep.subr.mxu0 0.0
    %4194 = vmatpush1.xpose.msra.mxu0 0.0
    %4195 = vmatprep.subr.mxu0 0.0
    %4196 = vmatpush1.xpose.msra.mxu0 0.0
    %4197 = vmatprep.subr.mxu0 0.0
    %4198 = vmatpush1.xpose.msra.mxu0 0.0
    %4199 = vmatprep.subr.mxu0 0.0
    %4200 = vmatpush1.xpose.msra.mxu0 0.0
    %4201 = vmatprep.subr.mxu0 0.0
    %4202 = vmatpush1.xpose.msra.mxu0 0.0
    %4203 = vmatprep.subr.mxu0 0.0
    %4204 = vmatpush1.xpose.msra.mxu0 0.0
    %4205 = vmatprep.subr.mxu0 0.0
    %4206 = vmatpush1.xpose.msra.mxu0 0.0
    %4207 = vmatprep.subr.mxu0 0.0
    %4208 = vmatpush1.xpose.msra.mxu0 0.0
    %4209 = vmatprep.subr.mxu0 0.0
    %4210 = vmatpush1.xpose.msra.mxu0 0.0
    %4211 = vmatprep.subr.mxu0 0.0
    %4212 = vmatpush1.xpose.msra.mxu0 0.0
    %4213 = vmatprep.subr.mxu0 0.0
    %4214 = vmatpush1.xpose.msra.mxu0 0.0
    %4215 = vmatprep.subr.mxu0 0.0
    %4216 = vmatpush1.xpose.msra.mxu0 0.0
    %4217 = vmatprep.subr.mxu0 0.0
    %4218 = vmatpush1.xpose.msra.mxu0 0.0
    %4219 = vmatprep.subr.mxu0 0.0
    %4220 = vmatpush1.xpose.msra.mxu0 0.0
    %4221 = vmatprep.subr.mxu0 0.0
    %4222 = vmatpush1.xpose.msra.mxu0 0.0
    %4223 = vmatprep.subr.mxu0 0.0
    %4224 = vmatpush1.xpose.msra.mxu0 0.0
    %4225 = vmatprep.subr.mxu0 0.0
    %4226 = vmatpush1.xpose.msra.mxu0 0.0
    %4227 = vmatprep.subr.mxu0 0.0
    %4228 = vmatpush1.xpose.msra.mxu0 0.0
    %4229 = vmatprep.subr.mxu0 0.0
    %4230 = vmatpush1.xpose.msra.mxu0 0.0
    %4231 = vmatprep.subr.mxu0 0.0
    %4232 = vmatpush1.xpose.msra.mxu0 0.0
    %4233 = vmatprep.subr.mxu0 0.0
    %4234 = vmatpush1.xpose.msra.mxu0 0.0
    %4235 = vmatprep.subr.mxu0 0.0
    %4236 = vmatpush1.xpose.msra.mxu0 0.0
    %4237 = vmatprep.subr.mxu0 0.0
    %4238 = vmatpush1.xpose.msra.mxu0 0.0
    %4239 = vmatprep.mubr.f32.mxu0 0.0
    %4240 = vmatmul.mubr.f32.gmra.mrb[0].mxu0 %v4170
    %v4241 = vpop.f32.mrb[0].mxu0
    %v4242 = vadd.f32 0.0, %v4241
    %v4243 = vpop.f32.mrb[0].mxu0
    %4244 = vdwg.mxu0
    %v4245 = vmul.f32 %v4166, 0.35355338
    %v4246 = vmul.f32 %v4242, 0.35355338
    %v4247 = vsel %vm398, %v4245, -inf
    %4248 = vmax.xlane.f32.xlu0 %v4247
    %v4249 = vpop.xlane.xlu0 %4248
    %v4250 = vsel %vm398, %v4246, -inf
    %4251 = vmax.xlane.f32.xlu0 %v4250
    %v4252 = vpop.xlane.xlu0 %4251
    %v4253 = vsub.f32 %v4245, %v4249
    %v4254 = vsub.f32 %v4246, %v4252
    %v4255 = vmul.f32 %v4253, 1.442695
    %v4256 = vpow.pop %v4255
    %v4257 = vmul.f32 %v4254, 1.442695
    %v4258 = vpow.pop %v4257
    %v4259 = vsel %vm398, %v4256, 0.0
    %4260 = vadd.xlane.f32.xlu0 %v4259
    %v4261 = vpop.xlane.xlu0 %4260
    %v4262 = vsel %vm398, %v4258, 0.0
    %4263 = vadd.xlane.f32.xlu0 %v4262
    %v4264 = vpop.xlane.xlu0 %4263
    %v4265 = vrcp.pop %v4261
    %v4266 = vrcp.pop %v4264
    %v4267 = vmul.f32 %v4256, %v4265
    %v4268 = vmul.f32 %v4258, %v4266
    %v4269 = vsel %vm398, %v4267, 0.0
    %v4270 = vsel %vm398, %v4268, 0.0
    %v4271 = vadd.f32 %v4269, %v4270
    %v4272 = vmul.f32 %v4271, %v578
    %v4274 = vsel %vm398, %v4267, 0
    %4276 = vmatprep.subr.mxu0 0.0
    %4277 = vmatpush1.msra.mxu0 %v4085
    %4278 = vmatprep.subr.mxu0 0.0
    %4279 = vmatpush1.msra.mxu0 0.0
    %4280 = vmatprep.subr.mxu0 0.0
    %4281 = vmatpush1.msra.mxu0 0.0
    %4282 = vmatprep.subr.mxu0 0.0
    %4283 = vmatpush1.msra.mxu0 0.0
    %4284 = vmatprep.subr.mxu0 0.0
    %4285 = vmatpush1.msra.mxu0 0.0
    %4286 = vmatprep.subr.mxu0 0.0
    %4287 = vmatpush1.msra.mxu0 0.0
    %4288 = vmatprep.subr.mxu0 0.0
    %4289 = vmatpush1.msra.mxu0 0.0
    %4290 = vmatprep.subr.mxu0 0.0
    %4291 = vmatpush1.msra.mxu0 0.0
    %4292 = vmatprep.subr.mxu0 0.0
    %4293 = vmatpush1.msra.mxu0 0.0
    %4294 = vmatprep.subr.mxu0 0.0
    %4295 = vmatpush1.msra.mxu0 0.0
    %4296 = vmatprep.subr.mxu0 0.0
    %4297 = vmatpush1.msra.mxu0 0.0
    %4298 = vmatprep.subr.mxu0 0.0
    %4299 = vmatpush1.msra.mxu0 0.0
    %4300 = vmatprep.subr.mxu0 0.0
    %4301 = vmatpush1.msra.mxu0 0.0
    %4302 = vmatprep.subr.mxu0 0.0
    %4303 = vmatpush1.msra.mxu0 0.0
    %4304 = vmatprep.subr.mxu0 0.0
    %4305 = vmatpush1.msra.mxu0 0.0
    %4306 = vmatprep.subr.mxu0 0.0
    %4307 = vmatpush1.msra.mxu0 0.0
    %4308 = vmatprep.subr.mxu0 0.0
    %4309 = vmatpush1.msra.mxu0 0.0
    %4310 = vmatprep.subr.mxu0 0.0
    %4311 = vmatpush1.msra.mxu0 0.0
    %4312 = vmatprep.subr.mxu0 0.0
    %4313 = vmatpush1.msra.mxu0 0.0
    %4314 = vmatprep.subr.mxu0 0.0
    %4315 = vmatpush1.msra.mxu0 0.0
    %4316 = vmatprep.subr.mxu0 0.0
    %4317 = vmatpush1.msra.mxu0 0.0
    %4318 = vmatprep.subr.mxu0 0.0
    %4319 = vmatpush1.msra.mxu0 0.0
    %4320 = vmatprep.subr.mxu0 0.0
    %4321 = vmatpush1.msra.mxu0 0.0
    %4322 = vmatprep.subr.mxu0 0.0
    %4323 = vmatpush1.msra.mxu0 0.0
    %4324 = vmatprep.subr.mxu0 0.0
    %4325 = vmatpush1.msra.mxu0 0.0
    %4326 = vmatprep.subr.mxu0 0.0
    %4327 = vmatpush1.msra.mxu0 0.0
    %4328 = vmatprep.subr.mxu0 0.0
    %4329 = vmatpush1.msra.mxu0 0.0
    %4330 = vmatprep.subr.mxu0 0.0
    %4331 = vmatpush1.msra.mxu0 0.0
    %4332 = vmatprep.subr.mxu0 0.0
    %4333 = vmatpush1.msra.mxu0 0.0
    %4334 = vmatprep.subr.mxu0 0.0
    %4335 = vmatpush1.msra.mxu0 0.0
    %4336 = vmatprep.subr.mxu0 0.0
    %4337 = vmatpush1.msra.mxu0 0.0
    %4338 = vmatprep.subr.mxu0 0.0
    %4339 = vmatpush1.msra.mxu0 0.0
    %4340 = vmatprep.mubr.f32.mxu0 0.0
    %4341 = vmatmul.mubr.f32.gmra.mrb[0].mxu0 %v4274
    %v4342 = vpop.f32.mrb[0].mxu0
    %v4343 = vadd.f32 0.0, %v4342
    %v4344 = vpop.f32.mrb[0].mxu0
    %4345 = vdwg.mxu0
    %v4347 = vsel %vm398, %v4268, 0
    %4349 = vmatprep.subr.mxu0 0.0
    %4350 = vmatpush1.msra.mxu0 %v4090
    %4351 = vmatprep.subr.mxu0 0.0
    %4352 = vmatpush1.msra.mxu0 0.0
    %4353 = vmatprep.subr.mxu0 0.0
    %4354 = vmatpush1.msra.mxu0 0.0
    %4355 = vmatprep.subr.mxu0 0.0
    %4356 = vmatpush1.msra.mxu0 0.0
    %4357 = vmatprep.subr.mxu0 0.0
    %4358 = vmatpush1.msra.mxu0 0.0
    %4359 = vmatprep.subr.mxu0 0.0
    %4360 = vmatpush1.msra.mxu0 0.0
    %4361 = vmatprep.subr.mxu0 0.0
    %4362 = vmatpush1.msra.mxu0 0.0
    %4363 = vmatprep.subr.mxu0 0.0
    %4364 = vmatpush1.msra.mxu0 0.0
    %4365 = vmatprep.subr.mxu0 0.0
    %4366 = vmatpush1.msra.mxu0 0.0
    %4367 = vmatprep.subr.mxu0 0.0
    %4368 = vmatpush1.msra.mxu0 0.0
    %4369 = vmatprep.subr.mxu0 0.0
    %4370 = vmatpush1.msra.mxu0 0.0
    %4371 = vmatprep.subr.mxu0 0.0
    %4372 = vmatpush1.msra.mxu0 0.0
    %4373 = vmatprep.subr.mxu0 0.0
    %4374 = vmatpush1.msra.mxu0 0.0
    %4375 = vmatprep.subr.mxu0 0.0
    %4376 = vmatpush1.msra.mxu0 0.0
    %4377 = vmatprep.subr.mxu0 0.0
    %4378 = vmatpush1.msra.mxu0 0.0
    %4379 = vmatprep.subr.mxu0 0.0
    %4380 = vmatpush1.msra.mxu0 0.0
    %4381 = vmatprep.subr.mxu0 0.0
    %4382 = vmatpush1.msra.mxu0 0.0
    %4383 = vmatprep.subr.mxu0 0.0
    %4384 = vmatpush1.msra.mxu0 0.0
    %4385 = vmatprep.subr.mxu0 0.0
    %4386 = vmatpush1.msra.mxu0 0.0
    %4387 = vmatprep.subr.mxu0 0.0
    %4388 = vmatpush1.msra.mxu0 0.0
    %4389 = vmatprep.subr.mxu0 0.0
    %4390 = vmatpush1.msra.mxu0 0.0
    %4391 = vmatprep.subr.mxu0 0.0
    %4392 = vmatpush1.msra.mxu0 0.0
    %4393 = vmatprep.subr.mxu0 0.0
    %4394 = vmatpush1.msra.mxu0 0.0
    %4395 = vmatprep.subr.mxu0 0.0
    %4396 = vmatpush1.msra.mxu0 0.0
    %4397 = vmatprep.subr.mxu0 0.0
    %4398 = vmatpush1.msra.mxu0 0.0
    %4399 = vmatprep.subr.mxu0 0.0
    %4400 = vmatpush1.msra.mxu0 0.0
    %4401 = vmatprep.subr.mxu0 0.0
    %4402 = vmatpush1.msra.mxu0 0.0
    %4403 = vmatprep.subr.mxu0 0.0
    %4404 = vmatpush1.msra.mxu0 0.0
    %4405 = vmatprep.subr.mxu0 0.0
    %4406 = vmatpush1.msra.mxu0 0.0
    %4407 = vmatprep.subr.mxu0 0.0
    %4408 = vmatpush1.msra.mxu0 0.0
    %4409 = vmatprep.subr.mxu0 0.0
    %4410 = vmatpush1.msra.mxu0 0.0
    %4411 = vmatprep.subr.mxu0 0.0
    %4412 = vmatpush1.msra.mxu0 0.0
    %4413 = vmatprep.mubr.f32.mxu0 0.0
    %4414 = vmatmul.mubr.f32.gmra.mrb[0].mxu0 %v4347
    %v4415 = vpop.f32.mrb[0].mxu0
    %v4416 = vadd.f32 0.0, %v4415
    %v4417 = vpop.f32.mrb[0].mxu0
    %4418 = vdwg.mxu0
    %s4419 = scalar_lea.vmem %s9, 40
    %v4420 = vld [vmem:[%s4419] sm:$0xff]
    %v4422 = vsel %vm398, %v4343, 0
    %v4425 = vsel %vm398, %v4416, 0
    %4427 = vmatprep.subr.mxu0 0.0
    %4428 = vmatpush1.msra.mxu0 %v4420
    %4429 = vmatprep.subr.mxu0 0.0
    %4430 = vmatpush1.msra.mxu0 0.0
    %4431 = vmatprep.subr.mxu0 0.0
    %4432 = vmatpush1.msra.mxu0 0.0
    %4433 = vmatprep.subr.mxu0 0.0
    %4434 = vmatpush1.msra.mxu0 0.0
    %4435 = vmatprep.subr.mxu0 0.0
    %4436 = vmatpush1.msra.mxu0 0.0
    %4437 = vmatprep.subr.mxu0 0.0
    %4438 = vmatpush1.msra.mxu0 0.0
    %4439 = vmatprep.subr.mxu0 0.0
    %4440 = vmatpush1.msra.mxu0 0.0
    %4441 = vmatprep.subr.mxu0 0.0
    %4442 = vmatpush1.msra.mxu0 0.0
    %4443 = vmatprep.subr.mxu0 0.0
    %4444 = vmatpush1.msra.mxu0 0.0
    %4445 = vmatprep.subr.mxu0 0.0
    %4446 = vmatpush1.msra.mxu0 0.0
    %4447 = vmatprep.subr.mxu0 0.0
    %4448 = vmatpush1.msra.mxu0 0.0
    %4449 = vmatprep.subr.mxu0 0.0
    %4450 = vmatpush1.msra.mxu0 0.0
    %4451 = vmatprep.subr.mxu0 0.0
    %4452 = vmatpush1.msra.mxu0 0.0
    %4453 = vmatprep.subr.mxu0 0.0
    %4454 = vmatpush1.msra.mxu0 0.0
    %4455 = vmatprep.subr.mxu0 0.0
    %4456 = vmatpush1.msra.mxu0 0.0
    %4457 = vmatprep.subr.mxu0 0.0
    %4458 = vmatpush1.msra.mxu0 0.0
    %4459 = vmatprep.subr.mxu0 0.0
    %4460 = vmatpush1.msra.mxu0 0.0
    %4461 = vmatprep.subr.mxu0 0.0
    %4462 = vmatpush1.msra.mxu0 0.0
    %4463 = vmatprep.subr.mxu0 0.0
    %4464 = vmatpush1.msra.mxu0 0.0
    %4465 = vmatprep.subr.mxu0 0.0
    %4466 = vmatpush1.msra.mxu0 0.0
    %4467 = vmatprep.subr.mxu0 0.0
    %4468 = vmatpush1.msra.mxu0 0.0
    %4469 = vmatprep.subr.mxu0 0.0
    %4470 = vmatpush1.msra.mxu0 0.0
    %4471 = vmatprep.subr.mxu0 0.0
    %4472 = vmatpush1.msra.mxu0 0.0
    %4473 = vmatprep.subr.mxu0 0.0
    %4474 = vmatpush1.msra.mxu0 0.0
    %4475 = vmatprep.subr.mxu0 0.0
    %4476 = vmatpush1.msra.mxu0 0.0
    %4477 = vmatprep.subr.mxu0 0.0
    %4478 = vmatpush1.msra.mxu0 0.0
    %4479 = vmatprep.subr.mxu0 0.0
    %4480 = vmatpush1.msra.mxu0 0.0
    %4481 = vmatprep.subr.mxu0 0.0
    %4482 = vmatpush1.msra.mxu0 0.0
    %4483 = vmatprep.subr.mxu0 0.0
    %4484 = vmatpush1.msra.mxu0 0.0
    %4485 = vmatprep.subr.mxu0 0.0
    %4486 = vmatpush1.msra.mxu0 0.0
    %4487 = vmatprep.subr.mxu0 0.0
    %4488 = vmatpush1.msra.mxu0 0.0
    %4489 = vmatprep.subr.mxu0 0.0
    %4490 = vmatpush1.msra.mxu0 0.0
    %4491 = vmatprep.mubr.f32.mxu0 0.0
    %4492 = vmatmul.mubr.f32.gmra.mrb[0].mxu0 %v4422
    %v4493 = vpop.f32.mrb[0].mxu0
    %v4494 = vadd.f32 0.0, %v4493
    %v4495 = vpop.f32.mrb[0].mxu0
    %4496 = vmatprep.mubr.f32.mxu0 0.0
    %4497 = vmatmul.mubr.f32.gmra.mrb[0].mxu0 %v4425
    %v4498 = vpop.f32.mrb[0].mxu0
    %v4499 = vadd.f32 0.0, %v4498
    %v4500 = vpop.f32.mrb[0].mxu0
    %4501 = vdwg.mxu0
    %v4502 = vadd.f32 %v3827, %v4494
    %v4503 = vadd.f32 %v3828, %v4499
    %s4504 = scalar_lea.vmem %s3, 192
    %v4505 = vld [vmem:[%s4504] sm:$0xff]
    %v4506 = vld [vmem:[%s4504 + $0x8] sm:$0xff]
    %v4507 = vld [vmem:[%s4504 + $0x10] sm:$0xff]
    %v4508 = vld [vmem:[%s4504 + $0x18] sm:$0xff]
    %s4509 = scalar_lea.vmem %s4, 6
    %v4510 = vld [vmem:[%s4509] sm:$0x1]
    %v4512 = vlaneseq
    %v4513 = vshrl.u32 %v4512, 7
    %v4514 = vsub.s32 0, %v4513
    %v4515 = vrot.slane %v4510, %v4514
    %4517 = vmatprep.subr.mxu0 0.0
    %4518 = vmatpush1.msra.mxu0 %v4505
    %4519 = vmatprep.subr.mxu0 0.0
    %4520 = vmatpush1.msra.mxu0 %v4506
    %4521 = vmatprep.subr.mxu0 0.0
    %4522 = vmatpush1.msra.mxu0 %v4507
    %4523 = vmatprep.subr.mxu0 0.0
    %4524 = vmatpush1.msra.mxu0 %v4508
    %4525 = vmatprep.subr.mxu0 0.0
    %4526 = vmatpush1.msra.mxu0 0.0
    %4527 = vmatprep.subr.mxu0 0.0
    %4528 = vmatpush1.msra.mxu0 0.0
    %4529 = vmatprep.subr.mxu0 0.0
    %4530 = vmatpush1.msra.mxu0 0.0
    %4531 = vmatprep.subr.mxu0 0.0
    %4532 = vmatpush1.msra.mxu0 0.0
    %4533 = vmatprep.subr.mxu0 0.0
    %4534 = vmatpush1.msra.mxu0 0.0
    %4535 = vmatprep.subr.mxu0 0.0
    %4536 = vmatpush1.msra.mxu0 0.0
    %4537 = vmatprep.subr.mxu0 0.0
    %4538 = vmatpush1.msra.mxu0 0.0
    %4539 = vmatprep.subr.mxu0 0.0
    %4540 = vmatpush1.msra.mxu0 0.0
    %4541 = vmatprep.subr.mxu0 0.0
    %4542 = vmatpush1.msra.mxu0 0.0
    %4543 = vmatprep.subr.mxu0 0.0
    %4544 = vmatpush1.msra.mxu0 0.0
    %4545 = vmatprep.subr.mxu0 0.0
    %4546 = vmatpush1.msra.mxu0 0.0
    %4547 = vmatprep.subr.mxu0 0.0
    %4548 = vmatpush1.msra.mxu0 0.0
    %4549 = vmatprep.subr.mxu0 0.0
    %4550 = vmatpush1.msra.mxu0 0.0
    %4551 = vmatprep.subr.mxu0 0.0
    %4552 = vmatpush1.msra.mxu0 0.0
    %4553 = vmatprep.subr.mxu0 0.0
    %4554 = vmatpush1.msra.mxu0 0.0
    %4555 = vmatprep.subr.mxu0 0.0
    %4556 = vmatpush1.msra.mxu0 0.0
    %4557 = vmatprep.subr.mxu0 0.0
    %4558 = vmatpush1.msra.mxu0 0.0
    %4559 = vmatprep.subr.mxu0 0.0
    %4560 = vmatpush1.msra.mxu0 0.0
    %4561 = vmatprep.subr.mxu0 0.0
    %4562 = vmatpush1.msra.mxu0 0.0
    %4563 = vmatprep.subr.mxu0 0.0
    %4564 = vmatpush1.msra.mxu0 0.0
    %4565 = vmatprep.subr.mxu0 0.0
    %4566 = vmatpush1.msra.mxu0 0.0
    %4567 = vmatprep.subr.mxu0 0.0
    %4568 = vmatpush1.msra.mxu0 0.0
    %4569 = vmatprep.subr.mxu0 0.0
    %4570 = vmatpush1.msra.mxu0 0.0
    %4571 = vmatprep.subr.mxu0 0.0
    %4572 = vmatpush1.msra.mxu0 0.0
    %4573 = vmatprep.subr.mxu0 0.0
    %4574 = vmatpush1.msra.mxu0 0.0
    %4575 = vmatprep.subr.mxu0 0.0
    %4576 = vmatpush1.msra.mxu0 0.0
    %4577 = vmatprep.subr.mxu0 0.0
    %4578 = vmatpush1.msra.mxu0 0.0
    %4579 = vmatprep.subr.mxu0 0.0
    %4580 = vmatpush1.msra.mxu0 0.0
    %4581 = vmatprep.mubr.f32.mxu0 0.0
    %4582 = vmatmul.mubr.f32.gmra.mrb[0].mxu0 %v3162
    %v4583 = vpop.f32.mrb[0].mxu0
    %v4584 = vadd.f32 %v4515, %v4583
    %v4585 = vpop.f32.mrb[0].mxu0
    %4586 = vmatprep.mubr.f32.mxu0 0.0
    %4587 = vmatmul.mubr.f32.gmra.mrb[0].mxu0 %v3165
    %v4588 = vpop.f32.mrb[0].mxu0
    %v4589 = vadd.f32 %v4515, %v4588
    %v4590 = vpop.f32.mrb[0].mxu0
    %4591 = vdwg.mxu0
    %s4592 = scalar_lea.vmem %s5, 192
    %v4593 = vld [vmem:[%s4592] sm:$0xff]
    %v4594 = vld [vmem:[%s4592 + $0x8] sm:$0xff]
    %v4595 = vld [vmem:[%s4592 + $0x10] sm:$0xff]
    %v4596 = vld [vmem:[%s4592 + $0x18] sm:$0xff]
    %s4597 = scalar_lea.vmem %s6, 6
    %v4598 = vld [vmem:[%s4597] sm:$0x1]
    %v4600 = vlaneseq
    %v4601 = vshrl.u32 %v4600, 7
    %v4602 = vsub.s32 0, %v4601
    %v4603 = vrot.slane %v4598, %v4602
    %4605 = vmatprep.subr.mxu0 0.0
    %4606 = vmatpush1.msra.mxu0 %v4593
    %4607 = vmatprep.subr.mxu0 0.0
    %4608 = vmatpush1.msra.mxu0 %v4594
    %4609 = vmatprep.subr.mxu0 0.0
    %4610 = vmatpush1.msra.mxu0 %v4595
    %4611 = vmatprep.subr.mxu0 0.0
    %4612 = vmatpush1.msra.mxu0 %v4596
    %4613 = vmatprep.subr.mxu0 0.0
    %4614 = vmatpush1.msra.mxu0 0.0
    %4615 = vmatprep.subr.mxu0 0.0
    %4616 = vmatpush1.msra.mxu0 0.0
    %4617 = vmatprep.subr.mxu0 0.0
    %4618 = vmatpush1.msra.mxu0 0.0
    %4619 = vmatprep.subr.mxu0 0.0
    %4620 = vmatpush1.msra.mxu0 0.0
    %4621 = vmatprep.subr.mxu0 0.0
    %4622 = vmatpush1.msra.mxu0 0.0
    %4623 = vmatprep.subr.mxu0 0.0
    %4624 = vmatpush1.msra.mxu0 0.0
    %4625 = vmatprep.subr.mxu0 0.0
    %4626 = vmatpush1.msra.mxu0 0.0
    %4627 = vmatprep.subr.mxu0 0.0
    %4628 = vmatpush1.msra.mxu0 0.0
    %4629 = vmatprep.subr.mxu0 0.0
    %4630 = vmatpush1.msra.mxu0 0.0
    %4631 = vmatprep.subr.mxu0 0.0
    %4632 = vmatpush1.msra.mxu0 0.0
    %4633 = vmatprep.subr.mxu0 0.0
    %4634 = vmatpush1.msra.mxu0 0.0
    %4635 = vmatprep.subr.mxu0 0.0
    %4636 = vmatpush1.msra.mxu0 0.0
    %4637 = vmatprep.subr.mxu0 0.0
    %4638 = vmatpush1.msra.mxu0 0.0
    %4639 = vmatprep.subr.mxu0 0.0
    %4640 = vmatpush1.msra.mxu0 0.0
    %4641 = vmatprep.subr.mxu0 0.0
    %4642 = vmatpush1.msra.mxu0 0.0
    %4643 = vmatprep.subr.mxu0 0.0
    %4644 = vmatpush1.msra.mxu0 0.0
    %4645 = vmatprep.subr.mxu0 0.0
    %4646 = vmatpush1.msra.mxu0 0.0
    %4647 = vmatprep.subr.mxu0 0.0
    %4648 = vmatpush1.msra.mxu0 0.0
    %4649 = vmatprep.subr.mxu0 0.0
    %4650 = vmatpush1.msra.mxu0 0.0
    %4651 = vmatprep.subr.mxu0 0.0
    %4652 = vmatpush1.msra.mxu0 0.0
    %4653 = vmatprep.subr.mxu0 0.0
    %4654 = vmatpush1.msra.mxu0 0.0
    %4655 = vmatprep.subr.mxu0 0.0
    %4656 = vmatpush1.msra.mxu0 0.0
    %4657 = vmatprep.subr.mxu0 0.0
    %4658 = vmatpush1.msra.mxu0 0.0
    %4659 = vmatprep.subr.mxu0 0.0
    %4660 = vmatpush1.msra.mxu0 0.0
    %4661 = vmatprep.subr.mxu0 0.0
    %4662 = vmatpush1.msra.mxu0 0.0
    %4663 = vmatprep.subr.mxu0 0.0
    %4664 = vmatpush1.msra.mxu0 0.0
    %4665 = vmatprep.subr.mxu0 0.0
    %4666 = vmatpush1.msra.mxu0 0.0
    %4667 = vmatprep.subr.mxu0 0.0
    %4668 = vmatpush1.msra.mxu0 0.0
    %4669 = vmatprep.mubr.f32.mxu0 0.0
    %4670 = vmatmul.mubr.f32.gmra.mrb[0].mxu0 %v3162
    %v4671 = vpop.f32.mrb[0].mxu0
    %v4672 = vadd.f32 %v4603, %v4671
    %v4673 = vpop.f32.mrb[0].mxu0
    %4674 = vmatprep.mubr.f32.mxu0 0.0
    %4675 = vmatmul.mubr.f32.gmra.mrb[0].mxu0 %v3165
    %v4676 = vpop.f32.mrb[0].mxu0
    %v4677 = vadd.f32 %v4603, %v4676
    %v4678 = vpop.f32.mrb[0].mxu0
    %4679 = vdwg.mxu0
    %s4680 = scalar_lea.vmem %s7, 192
    %v4681 = vld [vmem:[%s4680] sm:$0xff]
    %v4682 = vld [vmem:[%s4680 + $0x8] sm:$0xff]
    %v4683 = vld [vmem:[%s4680 + $0x10] sm:$0xff]
    %v4684 = vld [vmem:[%s4680 + $0x18] sm:$0xff]
    %s4685 = scalar_lea.vmem %s8, 6
    %v4686 = vld [vmem:[%s4685] sm:$0x1]
    %v4688 = vlaneseq
    %v4689 = vshrl.u32 %v4688, 7
    %v4690 = vsub.s32 0, %v4689
    %v4691 = vrot.slane %v4686, %v4690
    %4693 = vmatprep.subr.mxu0 0.0
    %4694 = vmatpush1.msra.mxu0 %v4681
    %4695 = vmatprep.subr.mxu0 0.0
    %4696 = vmatpush1.msra.mxu0 %v4682
    %4697 = vmatprep.subr.mxu0 0.0
    %4698 = vmatpush1.msra.mxu0 %v4683
    %4699 = vmatprep.subr.mxu0 0.0
    %4700 = vmatpush1.msra.mxu0 %v4684
    %4701 = vmatprep.subr.mxu0 0.0
    %4702 = vmatpush1.msra.mxu0 0.0
    %4703 = vmatprep.subr.mxu0 0.0
    %4704 = vmatpush1.msra.mxu0 0.0
    %4705 = vmatprep.subr.mxu0 0.0
    %4706 = vmatpush1.msra.mxu0 0.0
    %4707 = vmatprep.subr.mxu0 0.0
    %4708 = vmatpush1.msra.mxu0 0.0
    %4709 = vmatprep.subr.mxu0 0.0
    %4710 = vmatpush1.msra.mxu0 0.0
    %4711 = vmatprep.subr.mxu0 0.0
    %4712 = vmatpush1.msra.mxu0 0.0
    %4713 = vmatprep.subr.mxu0 0.0
    %4714 = vmatpush1.msra.mxu0 0.0
    %4715 = vmatprep.subr.mxu0 0.0
    %4716 = vmatpush1.msra.mxu0 0.0
    %4717 = vmatprep.subr.mxu0 0.0
    %4718 = vmatpush1.msra.mxu0 0.0
    %4719 = vmatprep.subr.mxu0 0.0
    %4720 = vmatpush1.msra.mxu0 0.0
    %4721 = vmatprep.subr.mxu0 0.0
    %4722 = vmatpush1.msra.mxu0 0.0
    %4723 = vmatprep.subr.mxu0 0.0
    %4724 = vmatpush1.msra.mxu0 0.0
    %4725 = vmatprep.subr.mxu0 0.0
    %4726 = vmatpush1.msra.mxu0 0.0
    %4727 = vmatprep.subr.mxu0 0.0
    %4728 = vmatpush1.msra.mxu0 0.0
    %4729 = vmatprep.subr.mxu0 0.0
    %4730 = vmatpush1.msra.mxu0 0.0
    %4731 = vmatprep.subr.mxu0 0.0
    %4732 = vmatpush1.msra.mxu0 0.0
    %4733 = vmatprep.subr.mxu0 0.0
    %4734 = vmatpush1.msra.mxu0 0.0
    %4735 = vmatprep.subr.mxu0 0.0
    %4736 = vmatpush1.msra.mxu0 0.0
    %4737 = vmatprep.subr.mxu0 0.0
    %4738 = vmatpush1.msra.mxu0 0.0
    %4739 = vmatprep.subr.mxu0 0.0
    %4740 = vmatpush1.msra.mxu0 0.0
    %4741 = vmatprep.subr.mxu0 0.0
    %4742 = vmatpush1.msra.mxu0 0.0
    %4743 = vmatprep.subr.mxu0 0.0
    %4744 = vmatpush1.msra.mxu0 0.0
    %4745 = vmatprep.subr.mxu0 0.0
    %4746 = vmatpush1.msra.mxu0 0.0
    %4747 = vmatprep.subr.mxu0 0.0
    %4748 = vmatpush1.msra.mxu0 0.0
    %4749 = vmatprep.subr.mxu0 0.0
    %4750 = vmatpush1.msra.mxu0 0.0
    %4751 = vmatprep.subr.mxu0 0.0
    %4752 = vmatpush1.msra.mxu0 0.0
    %4753 = vmatprep.subr.mxu0 0.0
    %4754 = vmatpush1.msra.mxu0 0.0
    %4755 = vmatprep.subr.mxu0 0.0
    %4756 = vmatpush1.msra.mxu0 0.0
    %4757 = vmatprep.mubr.f32.mxu0 0.0
    %4758 = vmatmul.mubr.f32.gmra.mrb[0].mxu0 %v3162
    %v4759 = vpop.f32.mrb[0].mxu0
    %v4760 = vadd.f32 %v4691, %v4759
    %v4761 = vpop.f32.mrb[0].mxu0
    %4762 = vmatprep.mubr.f32.mxu0 0.0
    %4763 = vmatmul.mubr.f32.gmra.mrb[0].mxu0 %v3165
    %v4764 = vpop.f32.mrb[0].mxu0
    %v4765 = vadd.f32 %v4691, %v4764
    %v4766 = vpop.f32.mrb[0].mxu0
    %4767 = vdwg.mxu0
    %v4769 = vsel %vm398, %v4584, 0
    %v4772 = vsel %vm398, %v4672, 0
    %4774 = vmatprep.subr.mxu0 0.0
    %4775 = vmatpush1.xpose.msra.mxu0 %v4772
    %4776 = vmatprep.subr.mxu0 0.0
    %4777 = vmatpush1.xpose.msra.mxu0 0.0
    %4778 = vmatprep.subr.mxu0 0.0
    %4779 = vmatpush1.xpose.msra.mxu0 0.0
    %4780 = vmatprep.subr.mxu0 0.0
    %4781 = vmatpush1.xpose.msra.mxu0 0.0
    %4782 = vmatprep.subr.mxu0 0.0
    %4783 = vmatpush1.xpose.msra.mxu0 0.0
    %4784 = vmatprep.subr.mxu0 0.0
    %4785 = vmatpush1.xpose.msra.mxu0 0.0
    %4786 = vmatprep.subr.mxu0 0.0
    %4787 = vmatpush1.xpose.msra.mxu0 0.0
    %4788 = vmatprep.subr.mxu0 0.0
    %4789 = vmatpush1.xpose.msra.mxu0 0.0
    %4790 = vmatprep.subr.mxu0 0.0
    %4791 = vmatpush1.xpose.msra.mxu0 0.0
    %4792 = vmatprep.subr.mxu0 0.0
    %4793 = vmatpush1.xpose.msra.mxu0 0.0
    %4794 = vmatprep.subr.mxu0 0.0
    %4795 = vmatpush1.xpose.msra.mxu0 0.0
    %4796 = vmatprep.subr.mxu0 0.0
    %4797 = vmatpush1.xpose.msra.mxu0 0.0
    %4798 = vmatprep.subr.mxu0 0.0
    %4799 = vmatpush1.xpose.msra.mxu0 0.0
    %4800 = vmatprep.subr.mxu0 0.0
    %4801 = vmatpush1.xpose.msra.mxu0 0.0
    %4802 = vmatprep.subr.mxu0 0.0
    %4803 = vmatpush1.xpose.msra.mxu0 0.0
    %4804 = vmatprep.subr.mxu0 0.0
    %4805 = vmatpush1.xpose.msra.mxu0 0.0
    %4806 = vmatprep.subr.mxu0 0.0
    %4807 = vmatpush1.xpose.msra.mxu0 0.0
    %4808 = vmatprep.subr.mxu0 0.0
    %4809 = vmatpush1.xpose.msra.mxu0 0.0
    %4810 = vmatprep.subr.mxu0 0.0
    %4811 = vmatpush1.xpose.msra.mxu0 0.0
    %4812 = vmatprep.subr.mxu0 0.0
    %4813 = vmatpush1.xpose.msra.mxu0 0.0
    %4814 = vmatprep.subr.mxu0 0.0
    %4815 = vmatpush1.xpose.msra.mxu0 0.0
    %4816 = vmatprep.subr.mxu0 0.0
    %4817 = vmatpush1.xpose.msra.mxu0 0.0
    %4818 = vmatprep.subr.mxu0 0.0
    %4819 = vmatpush1.xpose.msra.mxu0 0.0
    %4820 = vmatprep.subr.mxu0 0.0
    %4821 = vmatpush1.xpose.msra.mxu0 0.0
    %4822 = vmatprep.subr.mxu0 0.0
    %4823 = vmatpush1.xpose.msra.mxu0 0.0
    %4824 = vmatprep.subr.mxu0 0.0
    %4825 = vmatpush1.xpose.msra.mxu0 0.0
    %4826 = vmatprep.subr.mxu0 0.0
    %4827 = vmatpush1.xpose.msra.mxu0 0.0
    %4828 = vmatprep.subr.mxu0 0.0
    %4829 = vmatpush1.xpose.msra.mxu0 0.0
    %4830 = vmatprep.subr.mxu0 0.0
    %4831 = vmatpush1.xpose.msra.mxu0 0.0
    %4832 = vmatprep.subr.mxu0 0.0
    %4833 = vmatpush1.xpose.msra.mxu0 0.0
    %4834 = vmatprep.subr.mxu0 0.0
    %4835 = vmatpush1.xpose.msra.mxu0 0.0
    %4836 = vmatprep.subr.mxu0 0.0
    %4837 = vmatpush1.xpose.msra.mxu0 0.0
    %4838 = vmatprep.mubr.f32.mxu0 0.0
    %4839 = vmatmul.mubr.f32.gmra.mrb[0].mxu0 %v4769
    %v4840 = vpop.f32.mrb[0].mxu0
    %v4841 = vadd.f32 0.0, %v4840
    %v4842 = vpop.f32.mrb[0].mxu0
    %4843 = vdwg.mxu0
    %v4845 = vsel %vm398, %v4589, 0
    %v4848 = vsel %vm398, %v4677, 0
    %4850 = vmatprep.subr.mxu0 0.0
    %4851 = vmatpush1.xpose.msra.mxu0 %v4848
    %4852 = vmatprep.subr.mxu0 0.0
    %4853 = vmatpush1.xpose.msra.mxu0 0.0
    %4854 = vmatprep.subr.mxu0 0.0
    %4855 = vmatpush1.xpose.msra.mxu0 0.0
    %4856 = vmatprep.subr.mxu0 0.0
    %4857 = vmatpush1.xpose.msra.mxu0 0.0
    %4858 = vmatprep.subr.mxu0 0.0
    %4859 = vmatpush1.xpose.msra.mxu0 0.0
    %4860 = vmatprep.subr.mxu0 0.0
    %4861 = vmatpush1.xpose.msra.mxu0 0.0
    %4862 = vmatprep.subr.mxu0 0.0
    %4863 = vmatpush1.xpose.msra.mxu0 0.0
    %4864 = vmatprep.subr.mxu0 0.0
    %4865 = vmatpush1.xpose.msra.mxu0 0.0
    %4866 = vmatprep.subr.mxu0 0.0
    %4867 = vmatpush1.xpose.msra.mxu0 0.0
    %4868 = vmatprep.subr.mxu0 0.0
    %4869 = vmatpush1.xpose.msra.mxu0 0.0
    %4870 = vmatprep.subr.mxu0 0.0
    %4871 = vmatpush1.xpose.msra.mxu0 0.0
    %4872 = vmatprep.subr.mxu0 0.0
    %4873 = vmatpush1.xpose.msra.mxu0 0.0
    %4874 = vmatprep.subr.mxu0 0.0
    %4875 = vmatpush1.xpose.msra.mxu0 0.0
    %4876 = vmatprep.subr.mxu0 0.0
    %4877 = vmatpush1.xpose.msra.mxu0 0.0
    %4878 = vmatprep.subr.mxu0 0.0
    %4879 = vmatpush1.xpose.msra.mxu0 0.0
    %4880 = vmatprep.subr.mxu0 0.0
    %4881 = vmatpush1.xpose.msra.mxu0 0.0
    %4882 = vmatprep.subr.mxu0 0.0
    %4883 = vmatpush1.xpose.msra.mxu0 0.0
    %4884 = vmatprep.subr.mxu0 0.0
    %4885 = vmatpush1.xpose.msra.mxu0 0.0
    %4886 = vmatprep.subr.mxu0 0.0
    %4887 = vmatpush1.xpose.msra.mxu0 0.0
    %4888 = vmatprep.subr.mxu0 0.0
    %4889 = vmatpush1.xpose.msra.mxu0 0.0
    %4890 = vmatprep.subr.mxu0 0.0
    %4891 = vmatpush1.xpose.msra.mxu0 0.0
    %4892 = vmatprep.subr.mxu0 0.0
    %4893 = vmatpush1.xpose.msra.mxu0 0.0
    %4894 = vmatprep.subr.mxu0 0.0
    %4895 = vmatpush1.xpose.msra.mxu0 0.0
    %4896 = vmatprep.subr.mxu0 0.0
    %4897 = vmatpush1.xpose.msra.mxu0 0.0
    %4898 = vmatprep.subr.mxu0 0.0
    %4899 = vmatpush1.xpose.msra.mxu0 0.0
    %4900 = vmatprep.subr.mxu0 0.0
    %4901 = vmatpush1.xpose.msra.mxu0 0.0
    %4902 = vmatprep.subr.mxu0 0.0
    %4903 = vmatpush1.xpose.msra.mxu0 0.0
    %4904 = vmatprep.subr.mxu0 0.0
    %4905 = vmatpush1.xpose.msra.mxu0 0.0
    %4906 = vmatprep.subr.mxu0 0.0
    %4907 = vmatpush1.xpose.msra.mxu0 0.0
    %4908 = vmatprep.subr.mxu0 0.0
    %4909 = vmatpush1.xpose.msra.mxu0 0.0
    %4910 = vmatprep.subr.mxu0 0.0
    %4911 = vmatpush1.xpose.msra.mxu0 0.0
    %4912 = vmatprep.subr.mxu0 0.0
    %4913 = vmatpush1.xpose.msra.mxu0 0.0
    %4914 = vmatprep.mubr.f32.mxu0 0.0
    %4915 = vmatmul.mubr.f32.gmra.mrb[0].mxu0 %v4845
    %v4916 = vpop.f32.mrb[0].mxu0
    %v4917 = vadd.f32 0.0, %v4916
    %v4918 = vpop.f32.mrb[0].mxu0
    %4919 = vdwg.mxu0
    %v4920 = vmul.f32 %v4841, 0.35355338
    %v4921 = vmul.f32 %v4917, 0.35355338
    %v4922 = vsel %vm398, %v4920, -inf
    %4923 = vmax.xlane.f32.xlu0 %v4922
    %v4924 = vpop.xlane.xlu0 %4923
    %v4925 = vsel %vm398, %v4921, -inf
    %4926 = vmax.xlane.f32.xlu0 %v4925
    %v4927 = vpop.xlane.xlu0 %4926
    %v4928 = vsub.f32 %v4920, %v4924
    %v4929 = vsub.f32 %v4921, %v4927
    %v4930 = vmul.f32 %v4928, 1.442695
    %v4931 = vpow.pop %v4930
    %v4932 = vmul.f32 %v4929, 1.442695
    %v4933 = vpow.pop %v4932
    %v4934 = vsel %vm398, %v4931, 0.0
    %4935 = vadd.xlane.f32.xlu0 %v4934
    %v4936 = vpop.xlane.xlu0 %4935
    %v4937 = vsel %vm398, %v4933, 0.0
    %4938 = vadd.xlane.f32.xlu0 %v4937
    %v4939 = vpop.xlane.xlu0 %4938
    %v4940 = vrcp.pop %v4936
    %v4941 = vrcp.pop %v4939
    %v4942 = vmul.f32 %v4931, %v4940
    %v4943 = vmul.f32 %v4933, %v4941
    %v4944 = vsel %vm398, %v4942, 0.0
    %v4945 = vsel %vm398, %v4943, 0.0
    %v4946 = vadd.f32 %v4944, %v4945
    %v4947 = vmul.f32 %v4946, %v578
    %v4949 = vsel %vm398, %v4942, 0
    %4951 = vmatprep.subr.mxu0 0.0
    %4952 = vmatpush1.msra.mxu0 %v4760
    %4953 = vmatprep.subr.mxu0 0.0
    %4954 = vmatpush1.msra.mxu0 0.0
    %4955 = vmatprep.subr.mxu0 0.0
    %4956 = vmatpush1.msra.mxu0 0.0
    %4957 = vmatprep.subr.mxu0 0.0
    %4958 = vmatpush1.msra.mxu0 0.0
    %4959 = vmatprep.subr.mxu0 0.0
    %4960 = vmatpush1.msra.mxu0 0.0
    %4961 = vmatprep.subr.mxu0 0.0
    %4962 = vmatpush1.msra.mxu0 0.0
    %4963 = vmatprep.subr.mxu0 0.0
    %4964 = vmatpush1.msra.mxu0 0.0
    %4965 = vmatprep.subr.mxu0 0.0
    %4966 = vmatpush1.msra.mxu0 0.0
    %4967 = vmatprep.subr.mxu0 0.0
    %4968 = vmatpush1.msra.mxu0 0.0
    %4969 = vmatprep.subr.mxu0 0.0
    %4970 = vmatpush1.msra.mxu0 0.0
    %4971 = vmatprep.subr.mxu0 0.0
    %4972 = vmatpush1.msra.mxu0 0.0
    %4973 = vmatprep.subr.mxu0 0.0
    %4974 = vmatpush1.msra.mxu0 0.0
    %4975 = vmatprep.subr.mxu0 0.0
    %4976 = vmatpush1.msra.mxu0 0.0
    %4977 = vmatprep.subr.mxu0 0.0
    %4978 = vmatpush1.msra.mxu0 0.0
    %4979 = vmatprep.subr.mxu0 0.0
    %4980 = vmatpush1.msra.mxu0 0.0
    %4981 = vmatprep.subr.mxu0 0.0
    %4982 = vmatpush1.msra.mxu0 0.0
    %4983 = vmatprep.subr.mxu0 0.0
    %4984 = vmatpush1.msra.mxu0 0.0
    %4985 = vmatprep.subr.mxu0 0.0
    %4986 = vmatpush1.msra.mxu0 0.0
    %4987 = vmatprep.subr.mxu0 0.0
    %4988 = vmatpush1.msra.mxu0 0.0
    %4989 = vmatprep.subr.mxu0 0.0
    %4990 = vmatpush1.msra.mxu0 0.0
    %4991 = vmatprep.subr.mxu0 0.0
    %4992 = vmatpush1.msra.mxu0 0.0
    %4993 = vmatprep.subr.mxu0 0.0
    %4994 = vmatpush1.msra.mxu0 0.0
    %4995 = vmatprep.subr.mxu0 0.0
    %4996 = vmatpush1.msra.mxu0 0.0
    %4997 = vmatprep.subr.mxu0 0.0
    %4998 = vmatpush1.msra.mxu0 0.0
    %4999 = vmatprep.subr.mxu0 0.0
    %5000 = vmatpush1.msra.mxu0 0.0
    %5001 = vmatprep.subr.mxu0 0.0
    %5002 = vmatpush1.msra.mxu0 0.0
    %5003 = vmatprep.subr.mxu0 0.0
    %5004 = vmatpush1.msra.mxu0 0.0
    %5005 = vmatprep.subr.mxu0 0.0
    %5006 = vmatpush1.msra.mxu0 0.0
    %5007 = vmatprep.subr.mxu0 0.0
    %5008 = vmatpush1.msra.mxu0 0.0
    %5009 = vmatprep.subr.mxu0 0.0
    %5010 = vmatpush1.msra.mxu0 0.0
    %5011 = vmatprep.subr.mxu0 0.0
    %5012 = vmatpush1.msra.mxu0 0.0
    %5013 = vmatprep.subr.mxu0 0.0
    %5014 = vmatpush1.msra.mxu0 0.0
    %5015 = vmatprep.mubr.f32.mxu0 0.0
    %5016 = vmatmul.mubr.f32.gmra.mrb[0].mxu0 %v4949
    %v5017 = vpop.f32.mrb[0].mxu0
    %v5018 = vadd.f32 0.0, %v5017
    %v5019 = vpop.f32.mrb[0].mxu0
    %5020 = vdwg.mxu0
    %v5022 = vsel %vm398, %v4943, 0
    %5024 = vmatprep.subr.mxu0 0.0
    %5025 = vmatpush1.msra.mxu0 %v4765
    %5026 = vmatprep.subr.mxu0 0.0
    %5027 = vmatpush1.msra.mxu0 0.0
    %5028 = vmatprep.subr.mxu0 0.0
    %5029 = vmatpush1.msra.mxu0 0.0
    %5030 = vmatprep.subr.mxu0 0.0
    %5031 = vmatpush1.msra.mxu0 0.0
    %5032 = vmatprep.subr.mxu0 0.0
    %5033 = vmatpush1.msra.mxu0 0.0
    %5034 = vmatprep.subr.mxu0 0.0
    %5035 = vmatpush1.msra.mxu0 0.0
    %5036 = vmatprep.subr.mxu0 0.0
    %5037 = vmatpush1.msra.mxu0 0.0
    %5038 = vmatprep.subr.mxu0 0.0
    %5039 = vmatpush1.msra.mxu0 0.0
    %5040 = vmatprep.subr.mxu0 0.0
    %5041 = vmatpush1.msra.mxu0 0.0
    %5042 = vmatprep.subr.mxu0 0.0
    %5043 = vmatpush1.msra.mxu0 0.0
    %5044 = vmatprep.subr.mxu0 0.0
    %5045 = vmatpush1.msra.mxu0 0.0
    %5046 = vmatprep.subr.mxu0 0.0
    %5047 = vmatpush1.msra.mxu0 0.0
    %5048 = vmatprep.subr.mxu0 0.0
    %5049 = vmatpush1.msra.mxu0 0.0
    %5050 = vmatprep.subr.mxu0 0.0
    %5051 = vmatpush1.msra.mxu0 0.0
    %5052 = vmatprep.subr.mxu0 0.0
    %5053 = vmatpush1.msra.mxu0 0.0
    %5054 = vmatprep.subr.mxu0 0.0
    %5055 = vmatpush1.msra.mxu0 0.0
    %5056 = vmatprep.subr.mxu0 0.0
    %5057 = vmatpush1.msra.mxu0 0.0
    %5058 = vmatprep.subr.mxu0 0.0
    %5059 = vmatpush1.msra.mxu0 0.0
    %5060 = vmatprep.subr.mxu0 0.0
    %5061 = vmatpush1.msra.mxu0 0.0
    %5062 = vmatprep.subr.mxu0 0.0
    %5063 = vmatpush1.msra.mxu0 0.0
    %5064 = vmatprep.subr.mxu0 0.0
    %5065 = vmatpush1.msra.mxu0 0.0
    %5066 = vmatprep.subr.mxu0 0.0
    %5067 = vmatpush1.msra.mxu0 0.0
    %5068 = vmatprep.subr.mxu0 0.0
    %5069 = vmatpush1.msra.mxu0 0.0
    %5070 = vmatprep.subr.mxu0 0.0
    %5071 = vmatpush1.msra.mxu0 0.0
    %5072 = vmatprep.subr.mxu0 0.0
    %5073 = vmatpush1.msra.mxu0 0.0
    %5074 = vmatprep.subr.mxu0 0.0
    %5075 = vmatpush1.msra.mxu0 0.0
    %5076 = vmatprep.subr.mxu0 0.0
    %5077 = vmatpush1.msra.mxu0 0.0
    %5078 = vmatprep.subr.mxu0 0.0
    %5079 = vmatpush1.msra.mxu0 0.0
    %5080 = vmatprep.subr.mxu0 0.0
    %5081 = vmatpush1.msra.mxu0 0.0
    %5082 = vmatprep.subr.mxu0 0.0
    %5083 = vmatpush1.msra.mxu0 0.0
    %5084 = vmatprep.subr.mxu0 0.0
    %5085 = vmatpush1.msra.mxu0 0.0
    %5086 = vmatprep.subr.mxu0 0.0
    %5087 = vmatpush1.msra.mxu0 0.0
    %5088 = vmatprep.mubr.f32.mxu0 0.0
    %5089 = vmatmul.mubr.f32.gmra.mrb[0].mxu0 %v5022
    %v5090 = vpop.f32.mrb[0].mxu0
    %v5091 = vadd.f32 0.0, %v5090
    %v5092 = vpop.f32.mrb[0].mxu0
    %5093 = vdwg.mxu0
    %s5094 = scalar_lea.vmem %s9, 48
    %v5095 = vld [vmem:[%s5094] sm:$0xff]
    %v5097 = vsel %vm398, %v5018, 0
    %v5100 = vsel %vm398, %v5091, 0
    %5102 = vmatprep.subr.mxu0 0.0
    %5103 = vmatpush1.msra.mxu0 %v5095
    %5104 = vmatprep.subr.mxu0 0.0
    %5105 = vmatpush1.msra.mxu0 0.0
    %5106 = vmatprep.subr.mxu0 0.0
    %5107 = vmatpush1.msra.mxu0 0.0
    %5108 = vmatprep.subr.mxu0 0.0
    %5109 = vmatpush1.msra.mxu0 0.0
    %5110 = vmatprep.subr.mxu0 0.0
    %5111 = vmatpush1.msra.mxu0 0.0
    %5112 = vmatprep.subr.mxu0 0.0
    %5113 = vmatpush1.msra.mxu0 0.0
    %5114 = vmatprep.subr.mxu0 0.0
    %5115 = vmatpush1.msra.mxu0 0.0
    %5116 = vmatprep.subr.mxu0 0.0
    %5117 = vmatpush1.msra.mxu0 0.0
    %5118 = vmatprep.subr.mxu0 0.0
    %5119 = vmatpush1.msra.mxu0 0.0
    %5120 = vmatprep.subr.mxu0 0.0
    %5121 = vmatpush1.msra.mxu0 0.0
    %5122 = vmatprep.subr.mxu0 0.0
    %5123 = vmatpush1.msra.mxu0 0.0
    %5124 = vmatprep.subr.mxu0 0.0
    %5125 = vmatpush1.msra.mxu0 0.0
    %5126 = vmatprep.subr.mxu0 0.0
    %5127 = vmatpush1.msra.mxu0 0.0
    %5128 = vmatprep.subr.mxu0 0.0
    %5129 = vmatpush1.msra.mxu0 0.0
    %5130 = vmatprep.subr.mxu0 0.0
    %5131 = vmatpush1.msra.mxu0 0.0
    %5132 = vmatprep.subr.mxu0 0.0
    %5133 = vmatpush1.msra.mxu0 0.0
    %5134 = vmatprep.subr.mxu0 0.0
    %5135 = vmatpush1.msra.mxu0 0.0
    %5136 = vmatprep.subr.mxu0 0.0
    %5137 = vmatpush1.msra.mxu0 0.0
    %5138 = vmatprep.subr.mxu0 0.0
    %5139 = vmatpush1.msra.mxu0 0.0
    %5140 = vmatprep.subr.mxu0 0.0
    %5141 = vmatpush1.msra.mxu0 0.0
    %5142 = vmatprep.subr.mxu0 0.0
    %5143 = vmatpush1.msra.mxu0 0.0
    %5144 = vmatprep.subr.mxu0 0.0
    %5145 = vmatpush1.msra.mxu0 0.0
    %5146 = vmatprep.subr.mxu0 0.0
    %5147 = vmatpush1.msra.mxu0 0.0
    %5148 = vmatprep.subr.mxu0 0.0
    %5149 = vmatpush1.msra.mxu0 0.0
    %5150 = vmatprep.subr.mxu0 0.0
    %5151 = vmatpush1.msra.mxu0 0.0
    %5152 = vmatprep.subr.mxu0 0.0
    %5153 = vmatpush1.msra.mxu0 0.0
    %5154 = vmatprep.subr.mxu0 0.0
    %5155 = vmatpush1.msra.mxu0 0.0
    %5156 = vmatprep.subr.mxu0 0.0
    %5157 = vmatpush1.msra.mxu0 0.0
    %5158 = vmatprep.subr.mxu0 0.0
    %5159 = vmatpush1.msra.mxu0 0.0
    %5160 = vmatprep.subr.mxu0 0.0
    %5161 = vmatpush1.msra.mxu0 0.0
    %5162 = vmatprep.subr.mxu0 0.0
    %5163 = vmatpush1.msra.mxu0 0.0
    %5164 = vmatprep.subr.mxu0 0.0
    %5165 = vmatpush1.msra.mxu0 0.0
    %5166 = vmatprep.mubr.f32.mxu0 0.0
    %5167 = vmatmul.mubr.f32.gmra.mrb[0].mxu0 %v5097
    %v5168 = vpop.f32.mrb[0].mxu0
    %v5169 = vadd.f32 0.0, %v5168
    %v5170 = vpop.f32.mrb[0].mxu0
    %5171 = vmatprep.mubr.f32.mxu0 0.0
    %5172 = vmatmul.mubr.f32.gmra.mrb[0].mxu0 %v5100
    %v5173 = vpop.f32.mrb[0].mxu0
    %v5174 = vadd.f32 0.0, %v5173
    %v5175 = vpop.f32.mrb[0].mxu0
    %5176 = vdwg.mxu0
    %v5177 = vadd.f32 %v4502, %v5169
    %v5178 = vadd.f32 %v4503, %v5174
    %s5179 = scalar_lea.vmem %s3, 224
    %v5180 = vld [vmem:[%s5179] sm:$0xff]
    %v5181 = vld [vmem:[%s5179 + $0x8] sm:$0xff]
    %v5182 = vld [vmem:[%s5179 + $0x10] sm:$0xff]
    %v5183 = vld [vmem:[%s5179 + $0x18] sm:$0xff]
    %s5184 = scalar_lea.vmem %s4, 7
    %v5185 = vld [vmem:[%s5184] sm:$0x1]
    %v5187 = vlaneseq
    %v5188 = vshrl.u32 %v5187, 7
    %v5189 = vsub.s32 0, %v5188
    %v5190 = vrot.slane %v5185, %v5189
    %5192 = vmatprep.subr.mxu0 0.0
    %5193 = vmatpush1.msra.mxu0 %v5180
    %5194 = vmatprep.subr.mxu0 0.0
    %5195 = vmatpush1.msra.mxu0 %v5181
    %5196 = vmatprep.subr.mxu0 0.0
    %5197 = vmatpush1.msra.mxu0 %v5182
    %5198 = vmatprep.subr.mxu0 0.0
    %5199 = vmatpush1.msra.mxu0 %v5183
    %5200 = vmatprep.subr.mxu0 0.0
    %5201 = vmatpush1.msra.mxu0 0.0
    %5202 = vmatprep.subr.mxu0 0.0
    %5203 = vmatpush1.msra.mxu0 0.0
    %5204 = vmatprep.subr.mxu0 0.0
    %5205 = vmatpush1.msra.mxu0 0.0
    %5206 = vmatprep.subr.mxu0 0.0
    %5207 = vmatpush1.msra.mxu0 0.0
    %5208 = vmatprep.subr.mxu0 0.0
    %5209 = vmatpush1.msra.mxu0 0.0
    %5210 = vmatprep.subr.mxu0 0.0
    %5211 = vmatpush1.msra.mxu0 0.0
    %5212 = vmatprep.subr.mxu0 0.0
    %5213 = vmatpush1.msra.mxu0 0.0
    %5214 = vmatprep.subr.mxu0 0.0
    %5215 = vmatpush1.msra.mxu0 0.0
    %5216 = vmatprep.subr.mxu0 0.0
    %5217 = vmatpush1.msra.mxu0 0.0
    %5218 = vmatprep.subr.mxu0 0.0
    %5219 = vmatpush1.msra.mxu0 0.0
    %5220 = vmatprep.subr.mxu0 0.0
    %5221 = vmatpush1.msra.mxu0 0.0
    %5222 = vmatprep.subr.mxu0 0.0
    %5223 = vmatpush1.msra.mxu0 0.0
    %5224 = vmatprep.subr.mxu0 0.0
    %5225 = vmatpush1.msra.mxu0 0.0
    %5226 = vmatprep.subr.mxu0 0.0
    %5227 = vmatpush1.msra.mxu0 0.0
    %5228 = vmatprep.subr.mxu0 0.0
    %5229 = vmatpush1.msra.mxu0 0.0
    %5230 = vmatprep.subr.mxu0 0.0
    %5231 = vmatpush1.msra.mxu0 0.0
    %5232 = vmatprep.subr.mxu0 0.0
    %5233 = vmatpush1.msra.mxu0 0.0
    %5234 = vmatprep.subr.mxu0 0.0
    %5235 = vmatpush1.msra.mxu0 0.0
    %5236 = vmatprep.subr.mxu0 0.0
    %5237 = vmatpush1.msra.mxu0 0.0
    %5238 = vmatprep.subr.mxu0 0.0
    %5239 = vmatpush1.msra.mxu0 0.0
    %5240 = vmatprep.subr.mxu0 0.0
    %5241 = vmatpush1.msra.mxu0 0.0
    %5242 = vmatprep.subr.mxu0 0.0
    %5243 = vmatpush1.msra.mxu0 0.0
    %5244 = vmatprep.subr.mxu0 0.0
    %5245 = vmatpush1.msra.mxu0 0.0
    %5246 = vmatprep.subr.mxu0 0.0
    %5247 = vmatpush1.msra.mxu0 0.0
    %5248 = vmatprep.subr.mxu0 0.0
    %5249 = vmatpush1.msra.mxu0 0.0
    %5250 = vmatprep.subr.mxu0 0.0
    %5251 = vmatpush1.msra.mxu0 0.0
    %5252 = vmatprep.subr.mxu0 0.0
    %5253 = vmatpush1.msra.mxu0 0.0
    %5254 = vmatprep.subr.mxu0 0.0
    %5255 = vmatpush1.msra.mxu0 0.0
    %5256 = vmatprep.mubr.f32.mxu0 0.0
    %5257 = vmatmul.mubr.f32.gmra.mrb[0].mxu0 %v3162
    %v5258 = vpop.f32.mrb[0].mxu0
    %v5259 = vadd.f32 %v5190, %v5258
    %v5260 = vpop.f32.mrb[0].mxu0
    %5261 = vmatprep.mubr.f32.mxu0 0.0
    %5262 = vmatmul.mubr.f32.gmra.mrb[0].mxu0 %v3165
    %v5263 = vpop.f32.mrb[0].mxu0
    %v5264 = vadd.f32 %v5190, %v5263
    %v5265 = vpop.f32.mrb[0].mxu0
    %5266 = vdwg.mxu0
    %s5267 = scalar_lea.vmem %s5, 224
    %v5268 = vld [vmem:[%s5267] sm:$0xff]
    %v5269 = vld [vmem:[%s5267 + $0x8] sm:$0xff]
    %v5270 = vld [vmem:[%s5267 + $0x10] sm:$0xff]
    %v5271 = vld [vmem:[%s5267 + $0x18] sm:$0xff]
    %s5272 = scalar_lea.vmem %s6, 7
    %v5273 = vld [vmem:[%s5272] sm:$0x1]
    %v5275 = vlaneseq
    %v5276 = vshrl.u32 %v5275, 7
    %v5277 = vsub.s32 0, %v5276
    %v5278 = vrot.slane %v5273, %v5277
    %5280 = vmatprep.subr.mxu0 0.0
    %5281 = vmatpush1.msra.mxu0 %v5268
    %5282 = vmatprep.subr.mxu0 0.0
    %5283 = vmatpush1.msra.mxu0 %v5269
    %5284 = vmatprep.subr.mxu0 0.0
    %5285 = vmatpush1.msra.mxu0 %v5270
    %5286 = vmatprep.subr.mxu0 0.0
    %5287 = vmatpush1.msra.mxu0 %v5271
    %5288 = vmatprep.subr.mxu0 0.0
    %5289 = vmatpush1.msra.mxu0 0.0
    %5290 = vmatprep.subr.mxu0 0.0
    %5291 = vmatpush1.msra.mxu0 0.0
    %5292 = vmatprep.subr.mxu0 0.0
    %5293 = vmatpush1.msra.mxu0 0.0
    %5294 = vmatprep.subr.mxu0 0.0
    %5295 = vmatpush1.msra.mxu0 0.0
    %5296 = vmatprep.subr.mxu0 0.0
    %5297 = vmatpush1.msra.mxu0 0.0
    %5298 = vmatprep.subr.mxu0 0.0
    %5299 = vmatpush1.msra.mxu0 0.0
    %5300 = vmatprep.subr.mxu0 0.0
    %5301 = vmatpush1.msra.mxu0 0.0
    %5302 = vmatprep.subr.mxu0 0.0
    %5303 = vmatpush1.msra.mxu0 0.0
    %5304 = vmatprep.subr.mxu0 0.0
    %5305 = vmatpush1.msra.mxu0 0.0
    %5306 = vmatprep.subr.mxu0 0.0
    %5307 = vmatpush1.msra.mxu0 0.0
    %5308 = vmatprep.subr.mxu0 0.0
    %5309 = vmatpush1.msra.mxu0 0.0
    %5310 = vmatprep.subr.mxu0 0.0
    %5311 = vmatpush1.msra.mxu0 0.0
    %5312 = vmatprep.subr.mxu0 0.0
    %5313 = vmatpush1.msra.mxu0 0.0
    %5314 = vmatprep.subr.mxu0 0.0
    %5315 = vmatpush1.msra.mxu0 0.0
    %5316 = vmatprep.subr.mxu0 0.0
    %5317 = vmatpush1.msra.mxu0 0.0
    %5318 = vmatprep.subr.mxu0 0.0
    %5319 = vmatpush1.msra.mxu0 0.0
    %5320 = vmatprep.subr.mxu0 0.0
    %5321 = vmatpush1.msra.mxu0 0.0
    %5322 = vmatprep.subr.mxu0 0.0
    %5323 = vmatpush1.msra.mxu0 0.0
    %5324 = vmatprep.subr.mxu0 0.0
    %5325 = vmatpush1.msra.mxu0 0.0
    %5326 = vmatprep.subr.mxu0 0.0
    %5327 = vmatpush1.msra.mxu0 0.0
    %5328 = vmatprep.subr.mxu0 0.0
    %5329 = vmatpush1.msra.mxu0 0.0
    %5330 = vmatprep.subr.mxu0 0.0
    %5331 = vmatpush1.msra.mxu0 0.0
    %5332 = vmatprep.subr.mxu0 0.0
    %5333 = vmatpush1.msra.mxu0 0.0
    %5334 = vmatprep.subr.mxu0 0.0
    %5335 = vmatpush1.msra.mxu0 0.0
    %5336 = vmatprep.subr.mxu0 0.0
    %5337 = vmatpush1.msra.mxu0 0.0
    %5338 = vmatprep.subr.mxu0 0.0
    %5339 = vmatpush1.msra.mxu0 0.0
    %5340 = vmatprep.subr.mxu0 0.0
    %5341 = vmatpush1.msra.mxu0 0.0
    %5342 = vmatprep.subr.mxu0 0.0
    %5343 = vmatpush1.msra.mxu0 0.0
    %5344 = vmatprep.mubr.f32.mxu0 0.0
    %5345 = vmatmul.mubr.f32.gmra.mrb[0].mxu0 %v3162
    %v5346 = vpop.f32.mrb[0].mxu0
    %v5347 = vadd.f32 %v5278, %v5346
    %v5348 = vpop.f32.mrb[0].mxu0
    %5349 = vmatprep.mubr.f32.mxu0 0.0
    %5350 = vmatmul.mubr.f32.gmra.mrb[0].mxu0 %v3165
    %v5351 = vpop.f32.mrb[0].mxu0
    %v5352 = vadd.f32 %v5278, %v5351
    %v5353 = vpop.f32.mrb[0].mxu0
    %5354 = vdwg.mxu0
    %s5355 = scalar_lea.vmem %s7, 224
    %v5356 = vld [vmem:[%s5355] sm:$0xff]
    %v5357 = vld [vmem:[%s5355 + $0x8] sm:$0xff]
    %v5358 = vld [vmem:[%s5355 + $0x10] sm:$0xff]
    %v5359 = vld [vmem:[%s5355 + $0x18] sm:$0xff]
    %s5360 = scalar_lea.vmem %s8, 7
    %v5361 = vld [vmem:[%s5360] sm:$0x1]
    %v5363 = vlaneseq
    %v5364 = vshrl.u32 %v5363, 7
    %v5365 = vsub.s32 0, %v5364
    %v5366 = vrot.slane %v5361, %v5365
    %5368 = vmatprep.subr.mxu0 0.0
    %5369 = vmatpush1.msra.mxu0 %v5356
    %5370 = vmatprep.subr.mxu0 0.0
    %5371 = vmatpush1.msra.mxu0 %v5357
    %5372 = vmatprep.subr.mxu0 0.0
    %5373 = vmatpush1.msra.mxu0 %v5358
    %5374 = vmatprep.subr.mxu0 0.0
    %5375 = vmatpush1.msra.mxu0 %v5359
    %5376 = vmatprep.subr.mxu0 0.0
    %5377 = vmatpush1.msra.mxu0 0.0
    %5378 = vmatprep.subr.mxu0 0.0
    %5379 = vmatpush1.msra.mxu0 0.0
    %5380 = vmatprep.subr.mxu0 0.0
    %5381 = vmatpush1.msra.mxu0 0.0
    %5382 = vmatprep.subr.mxu0 0.0
    %5383 = vmatpush1.msra.mxu0 0.0
    %5384 = vmatprep.subr.mxu0 0.0
    %5385 = vmatpush1.msra.mxu0 0.0
    %5386 = vmatprep.subr.mxu0 0.0
    %5387 = vmatpush1.msra.mxu0 0.0
    %5388 = vmatprep.subr.mxu0 0.0
    %5389 = vmatpush1.msra.mxu0 0.0
    %5390 = vmatprep.subr.mxu0 0.0
    %5391 = vmatpush1.msra.mxu0 0.0
    %5392 = vmatprep.subr.mxu0 0.0
    %5393 = vmatpush1.msra.mxu0 0.0
    %5394 = vmatprep.subr.mxu0 0.0
    %5395 = vmatpush1.msra.mxu0 0.0
    %5396 = vmatprep.subr.mxu0 0.0
    %5397 = vmatpush1.msra.mxu0 0.0
    %5398 = vmatprep.subr.mxu0 0.0
    %5399 = vmatpush1.msra.mxu0 0.0
    %5400 = vmatprep.subr.mxu0 0.0
    %5401 = vmatpush1.msra.mxu0 0.0
    %5402 = vmatprep.subr.mxu0 0.0
    %5403 = vmatpush1.msra.mxu0 0.0
    %5404 = vmatprep.subr.mxu0 0.0
    %5405 = vmatpush1.msra.mxu0 0.0
    %5406 = vmatprep.subr.mxu0 0.0
    %5407 = vmatpush1.msra.mxu0 0.0
    %5408 = vmatprep.subr.mxu0 0.0
    %5409 = vmatpush1.msra.mxu0 0.0
    %5410 = vmatprep.subr.mxu0 0.0
    %5411 = vmatpush1.msra.mxu0 0.0
    %5412 = vmatprep.subr.mxu0 0.0
    %5413 = vmatpush1.msra.mxu0 0.0
    %5414 = vmatprep.subr.mxu0 0.0
    %5415 = vmatpush1.msra.mxu0 0.0
    %5416 = vmatprep.subr.mxu0 0.0
    %5417 = vmatpush1.msra.mxu0 0.0
    %5418 = vmatprep.subr.mxu0 0.0
    %5419 = vmatpush1.msra.mxu0 0.0
    %5420 = vmatprep.subr.mxu0 0.0
    %5421 = vmatpush1.msra.mxu0 0.0
    %5422 = vmatprep.subr.mxu0 0.0
    %5423 = vmatpush1.msra.mxu0 0.0
    %5424 = vmatprep.subr.mxu0 0.0
    %5425 = vmatpush1.msra.mxu0 0.0
    %5426 = vmatprep.subr.mxu0 0.0
    %5427 = vmatpush1.msra.mxu0 0.0
    %5428 = vmatprep.subr.mxu0 0.0
    %5429 = vmatpush1.msra.mxu0 0.0
    %5430 = vmatprep.subr.mxu0 0.0
    %5431 = vmatpush1.msra.mxu0 0.0
    %5432 = vmatprep.mubr.f32.mxu0 0.0
    %5433 = vmatmul.mubr.f32.gmra.mrb[0].mxu0 %v3162
    %v5434 = vpop.f32.mrb[0].mxu0
    %v5435 = vadd.f32 %v5366, %v5434
    %v5436 = vpop.f32.mrb[0].mxu0
    %5437 = vmatprep.mubr.f32.mxu0 0.0
    %5438 = vmatmul.mubr.f32.gmra.mrb[0].mxu0 %v3165
    %v5439 = vpop.f32.mrb[0].mxu0
    %v5440 = vadd.f32 %v5366, %v5439
    %v5441 = vpop.f32.mrb[0].mxu0
    %5442 = vdwg.mxu0
    %v5444 = vsel %vm398, %v5259, 0
    %v5447 = vsel %vm398, %v5347, 0
    %5449 = vmatprep.subr.mxu0 0.0
    %5450 = vmatpush1.xpose.msra.mxu0 %v5447
    %5451 = vmatprep.subr.mxu0 0.0
    %5452 = vmatpush1.xpose.msra.mxu0 0.0
    %5453 = vmatprep.subr.mxu0 0.0
    %5454 = vmatpush1.xpose.msra.mxu0 0.0
    %5455 = vmatprep.subr.mxu0 0.0
    %5456 = vmatpush1.xpose.msra.mxu0 0.0
    %5457 = vmatprep.subr.mxu0 0.0
    %5458 = vmatpush1.xpose.msra.mxu0 0.0
    %5459 = vmatprep.subr.mxu0 0.0
    %5460 = vmatpush1.xpose.msra.mxu0 0.0
    %5461 = vmatprep.subr.mxu0 0.0
    %5462 = vmatpush1.xpose.msra.mxu0 0.0
    %5463 = vmatprep.subr.mxu0 0.0
    %5464 = vmatpush1.xpose.msra.mxu0 0.0
    %5465 = vmatprep.subr.mxu0 0.0
    %5466 = vmatpush1.xpose.msra.mxu0 0.0
    %5467 = vmatprep.subr.mxu0 0.0
    %5468 = vmatpush1.xpose.msra.mxu0 0.0
    %5469 = vmatprep.subr.mxu0 0.0
    %5470 = vmatpush1.xpose.msra.mxu0 0.0
    %5471 = vmatprep.subr.mxu0 0.0
    %5472 = vmatpush1.xpose.msra.mxu0 0.0
    %5473 = vmatprep.subr.mxu0 0.0
    %5474 = vmatpush1.xpose.msra.mxu0 0.0
    %5475 = vmatprep.subr.mxu0 0.0
    %5476 = vmatpush1.xpose.msra.mxu0 0.0
    %5477 = vmatprep.subr.mxu0 0.0
    %5478 = vmatpush1.xpose.msra.mxu0 0.0
    %5479 = vmatprep.subr.mxu0 0.0
    %5480 = vmatpush1.xpose.msra.mxu0 0.0
    %5481 = vmatprep.subr.mxu0 0.0
    %5482 = vmatpush1.xpose.msra.mxu0 0.0
    %5483 = vmatprep.subr.mxu0 0.0
    %5484 = vmatpush1.xpose.msra.mxu0 0.0
    %5485 = vmatprep.subr.mxu0 0.0
    %5486 = vmatpush1.xpose.msra.mxu0 0.0
    %5487 = vmatprep.subr.mxu0 0.0
    %5488 = vmatpush1.xpose.msra.mxu0 0.0
    %5489 = vmatprep.subr.mxu0 0.0
    %5490 = vmatpush1.xpose.msra.mxu0 0.0
    %5491 = vmatprep.subr.mxu0 0.0
    %5492 = vmatpush1.xpose.msra.mxu0 0.0
    %5493 = vmatprep.subr.mxu0 0.0
    %5494 = vmatpush1.xpose.msra.mxu0 0.0
    %5495 = vmatprep.subr.mxu0 0.0
    %5496 = vmatpush1.xpose.msra.mxu0 0.0
    %5497 = vmatprep.subr.mxu0 0.0
    %5498 = vmatpush1.xpose.msra.mxu0 0.0
    %5499 = vmatprep.subr.mxu0 0.0
    %5500 = vmatpush1.xpose.msra.mxu0 0.0
    %5501 = vmatprep.subr.mxu0 0.0
    %5502 = vmatpush1.xpose.msra.mxu0 0.0
    %5503 = vmatprep.subr.mxu0 0.0
    %5504 = vmatpush1.xpose.msra.mxu0 0.0
    %5505 = vmatprep.subr.mxu0 0.0
    %5506 = vmatpush1.xpose.msra.mxu0 0.0
    %5507 = vmatprep.subr.mxu0 0.0
    %5508 = vmatpush1.xpose.msra.mxu0 0.0
    %5509 = vmatprep.subr.mxu0 0.0
    %5510 = vmatpush1.xpose.msra.mxu0 0.0
    %5511 = vmatprep.subr.mxu0 0.0
    %5512 = vmatpush1.xpose.msra.mxu0 0.0
    %5513 = vmatprep.mubr.f32.mxu0 0.0
    %5514 = vmatmul.mubr.f32.gmra.mrb[0].mxu0 %v5444
    %v5515 = vpop.f32.mrb[0].mxu0
    %v5516 = vadd.f32 0.0, %v5515
    %v5517 = vpop.f32.mrb[0].mxu0
    %5518 = vdwg.mxu0
    %v5520 = vsel %vm398, %v5264, 0
    %v5523 = vsel %vm398, %v5352, 0
    %5525 = vmatprep.subr.mxu0 0.0
    %5526 = vmatpush1.xpose.msra.mxu0 %v5523
    %5527 = vmatprep.subr.mxu0 0.0
    %5528 = vmatpush1.xpose.msra.mxu0 0.0
    %5529 = vmatprep.subr.mxu0 0.0
    %5530 = vmatpush1.xpose.msra.mxu0 0.0
    %5531 = vmatprep.subr.mxu0 0.0
    %5532 = vmatpush1.xpose.msra.mxu0 0.0
    %5533 = vmatprep.subr.mxu0 0.0
    %5534 = vmatpush1.xpose.msra.mxu0 0.0
    %5535 = vmatprep.subr.mxu0 0.0
    %5536 = vmatpush1.xpose.msra.mxu0 0.0
    %5537 = vmatprep.subr.mxu0 0.0
    %5538 = vmatpush1.xpose.msra.mxu0 0.0
    %5539 = vmatprep.subr.mxu0 0.0
    %5540 = vmatpush1.xpose.msra.mxu0 0.0
    %5541 = vmatprep.subr.mxu0 0.0
    %5542 = vmatpush1.xpose.msra.mxu0 0.0
    %5543 = vmatprep.subr.mxu0 0.0
    %5544 = vmatpush1.xpose.msra.mxu0 0.0
    %5545 = vmatprep.subr.mxu0 0.0
    %5546 = vmatpush1.xpose.msra.mxu0 0.0
    %5547 = vmatprep.subr.mxu0 0.0
    %5548 = vmatpush1.xpose.msra.mxu0 0.0
    %5549 = vmatprep.subr.mxu0 0.0
    %5550 = vmatpush1.xpose.msra.mxu0 0.0
    %5551 = vmatprep.subr.mxu0 0.0
    %5552 = vmatpush1.xpose.msra.mxu0 0.0
    %5553 = vmatprep.subr.mxu0 0.0
    %5554 = vmatpush1.xpose.msra.mxu0 0.0
    %5555 = vmatprep.subr.mxu0 0.0
    %5556 = vmatpush1.xpose.msra.mxu0 0.0
    %5557 = vmatprep.subr.mxu0 0.0
    %5558 = vmatpush1.xpose.msra.mxu0 0.0
    %5559 = vmatprep.subr.mxu0 0.0
    %5560 = vmatpush1.xpose.msra.mxu0 0.0
    %5561 = vmatprep.subr.mxu0 0.0
    %5562 = vmatpush1.xpose.msra.mxu0 0.0
    %5563 = vmatprep.subr.mxu0 0.0
    %5564 = vmatpush1.xpose.msra.mxu0 0.0
    %5565 = vmatprep.subr.mxu0 0.0
    %5566 = vmatpush1.xpose.msra.mxu0 0.0
    %5567 = vmatprep.subr.mxu0 0.0
    %5568 = vmatpush1.xpose.msra.mxu0 0.0
    %5569 = vmatprep.subr.mxu0 0.0
    %5570 = vmatpush1.xpose.msra.mxu0 0.0
    %5571 = vmatprep.subr.mxu0 0.0
    %5572 = vmatpush1.xpose.msra.mxu0 0.0
    %5573 = vmatprep.subr.mxu0 0.0
    %5574 = vmatpush1.xpose.msra.mxu0 0.0
    %5575 = vmatprep.subr.mxu0 0.0
    %5576 = vmatpush1.xpose.msra.mxu0 0.0
    %5577 = vmatprep.subr.mxu0 0.0
    %5578 = vmatpush1.xpose.msra.mxu0 0.0
    %5579 = vmatprep.subr.mxu0 0.0
    %5580 = vmatpush1.xpose.msra.mxu0 0.0
    %5581 = vmatprep.subr.mxu0 0.0
    %5582 = vmatpush1.xpose.msra.mxu0 0.0
    %5583 = vmatprep.subr.mxu0 0.0
    %5584 = vmatpush1.xpose.msra.mxu0 0.0
    %5585 = vmatprep.subr.mxu0 0.0
    %5586 = vmatpush1.xpose.msra.mxu0 0.0
    %5587 = vmatprep.subr.mxu0 0.0
    %5588 = vmatpush1.xpose.msra.mxu0 0.0
    %5589 = vmatprep.mubr.f32.mxu0 0.0
    %5590 = vmatmul.mubr.f32.gmra.mrb[0].mxu0 %v5520
    %v5591 = vpop.f32.mrb[0].mxu0
    %v5592 = vadd.f32 0.0, %v5591
    %v5593 = vpop.f32.mrb[0].mxu0
    %5594 = vdwg.mxu0
    %v5595 = vmul.f32 %v5516, 0.35355338
    %v5596 = vmul.f32 %v5592, 0.35355338
    %v5597 = vsel %vm398, %v5595, -inf
    %5598 = vmax.xlane.f32.xlu0 %v5597
    %v5599 = vpop.xlane.xlu0 %5598
    %v5600 = vsel %vm398, %v5596, -inf
    %5601 = vmax.xlane.f32.xlu0 %v5600
    %v5602 = vpop.xlane.xlu0 %5601
    %v5603 = vsub.f32 %v5595, %v5599
    %v5604 = vsub.f32 %v5596, %v5602
    %v5605 = vmul.f32 %v5603, 1.442695
    %v5606 = vpow.pop %v5605
    %v5607 = vmul.f32 %v5604, 1.442695
    %v5608 = vpow.pop %v5607
    %v5609 = vsel %vm398, %v5606, 0.0
    %5610 = vadd.xlane.f32.xlu0 %v5609
    %v5611 = vpop.xlane.xlu0 %5610
    %v5612 = vsel %vm398, %v5608, 0.0
    %5613 = vadd.xlane.f32.xlu0 %v5612
    %v5614 = vpop.xlane.xlu0 %5613
    %v5615 = vrcp.pop %v5611
    %v5616 = vrcp.pop %v5614
    %v5617 = vmul.f32 %v5606, %v5615
    %v5618 = vmul.f32 %v5608, %v5616
    %v5619 = vsel %vm398, %v5617, 0.0
    %v5620 = vsel %vm398, %v5618, 0.0
    %v5621 = vadd.f32 %v5619, %v5620
    %v5622 = vmul.f32 %v5621, %v578
    %v5624 = vsel %vm398, %v5617, 0
    %5626 = vmatprep.subr.mxu0 0.0
    %5627 = vmatpush1.msra.mxu0 %v5435
    %5628 = vmatprep.subr.mxu0 0.0
    %5629 = vmatpush1.msra.mxu0 0.0
    %5630 = vmatprep.subr.mxu0 0.0
    %5631 = vmatpush1.msra.mxu0 0.0
    %5632 = vmatprep.subr.mxu0 0.0
    %5633 = vmatpush1.msra.mxu0 0.0
    %5634 = vmatprep.subr.mxu0 0.0
    %5635 = vmatpush1.msra.mxu0 0.0
    %5636 = vmatprep.subr.mxu0 0.0
    %5637 = vmatpush1.msra.mxu0 0.0
    %5638 = vmatprep.subr.mxu0 0.0
    %5639 = vmatpush1.msra.mxu0 0.0
    %5640 = vmatprep.subr.mxu0 0.0
    %5641 = vmatpush1.msra.mxu0 0.0
    %5642 = vmatprep.subr.mxu0 0.0
    %5643 = vmatpush1.msra.mxu0 0.0
    %5644 = vmatprep.subr.mxu0 0.0
    %5645 = vmatpush1.msra.mxu0 0.0
    %5646 = vmatprep.subr.mxu0 0.0
    %5647 = vmatpush1.msra.mxu0 0.0
    %5648 = vmatprep.subr.mxu0 0.0
    %5649 = vmatpush1.msra.mxu0 0.0
    %5650 = vmatprep.subr.mxu0 0.0
    %5651 = vmatpush1.msra.mxu0 0.0
    %5652 = vmatprep.subr.mxu0 0.0
    %5653 = vmatpush1.msra.mxu0 0.0
    %5654 = vmatprep.subr.mxu0 0.0
    %5655 = vmatpush1.msra.mxu0 0.0
    %5656 = vmatprep.subr.mxu0 0.0
    %5657 = vmatpush1.msra.mxu0 0.0
    %5658 = vmatprep.subr.mxu0 0.0
    %5659 = vmatpush1.msra.mxu0 0.0
    %5660 = vmatprep.subr.mxu0 0.0
    %5661 = vmatpush1.msra.mxu0 0.0
    %5662 = vmatprep.subr.mxu0 0.0
    %5663 = vmatpush1.msra.mxu0 0.0
    %5664 = vmatprep.subr.mxu0 0.0
    %5665 = vmatpush1.msra.mxu0 0.0
    %5666 = vmatprep.subr.mxu0 0.0
    %5667 = vmatpush1.msra.mxu0 0.0
    %5668 = vmatprep.subr.mxu0 0.0
    %5669 = vmatpush1.msra.mxu0 0.0
    %5670 = vmatprep.subr.mxu0 0.0
    %5671 = vmatpush1.msra.mxu0 0.0
    %5672 = vmatprep.subr.mxu0 0.0
    %5673 = vmatpush1.msra.mxu0 0.0
    %5674 = vmatprep.subr.mxu0 0.0
    %5675 = vmatpush1.msra.mxu0 0.0
    %5676 = vmatprep.subr.mxu0 0.0
    %5677 = vmatpush1.msra.mxu0 0.0
    %5678 = vmatprep.subr.mxu0 0.0
    %5679 = vmatpush1.msra.mxu0 0.0
    %5680 = vmatprep.subr.mxu0 0.0
    %5681 = vmatpush1.msra.mxu0 0.0
    %5682 = vmatprep.subr.mxu0 0.0
    %5683 = vmatpush1.msra.mxu0 0.0
    %5684 = vmatprep.subr.mxu0 0.0
    %5685 = vmatpush1.msra.mxu0 0.0
    %5686 = vmatprep.subr.mxu0 0.0
    %5687 = vmatpush1.msra.mxu0 0.0
    %5688 = vmatprep.subr.mxu0 0.0
    %5689 = vmatpush1.msra.mxu0 0.0
    %5690 = vmatprep.mubr.f32.mxu0 0.0
    %5691 = vmatmul.mubr.f32.gmra.mrb[0].mxu0 %v5624
    %v5692 = vpop.f32.mrb[0].mxu0
    %v5693 = vadd.f32 0.0, %v5692
    %v5694 = vpop.f32.mrb[0].mxu0
    %5695 = vdwg.mxu0
    %v5697 = vsel %vm398, %v5618, 0
    %5699 = vmatprep.subr.mxu0 0.0
    %5700 = vmatpush1.msra.mxu0 %v5440
    %5701 = vmatprep.subr.mxu0 0.0
    %5702 = vmatpush1.msra.mxu0 0.0
    %5703 = vmatprep.subr.mxu0 0.0
    %5704 = vmatpush1.msra.mxu0 0.0
    %5705 = vmatprep.subr.mxu0 0.0
    %5706 = vmatpush1.msra.mxu0 0.0
    %5707 = vmatprep.subr.mxu0 0.0
    %5708 = vmatpush1.msra.mxu0 0.0
    %5709 = vmatprep.subr.mxu0 0.0
    %5710 = vmatpush1.msra.mxu0 0.0
    %5711 = vmatprep.subr.mxu0 0.0
    %5712 = vmatpush1.msra.mxu0 0.0
    %5713 = vmatprep.subr.mxu0 0.0
    %5714 = vmatpush1.msra.mxu0 0.0
    %5715 = vmatprep.subr.mxu0 0.0
    %5716 = vmatpush1.msra.mxu0 0.0
    %5717 = vmatprep.subr.mxu0 0.0
    %5718 = vmatpush1.msra.mxu0 0.0
    %5719 = vmatprep.subr.mxu0 0.0
    %5720 = vmatpush1.msra.mxu0 0.0
    %5721 = vmatprep.subr.mxu0 0.0
    %5722 = vmatpush1.msra.mxu0 0.0
    %5723 = vmatprep.subr.mxu0 0.0
    %5724 = vmatpush1.msra.mxu0 0.0
    %5725 = vmatprep.subr.mxu0 0.0
    %5726 = vmatpush1.msra.mxu0 0.0
    %5727 = vmatprep.subr.mxu0 0.0
    %5728 = vmatpush1.msra.mxu0 0.0
    %5729 = vmatprep.subr.mxu0 0.0
    %5730 = vmatpush1.msra.mxu0 0.0
    %5731 = vmatprep.subr.mxu0 0.0
    %5732 = vmatpush1.msra.mxu0 0.0
    %5733 = vmatprep.subr.mxu0 0.0
    %5734 = vmatpush1.msra.mxu0 0.0
    %5735 = vmatprep.subr.mxu0 0.0
    %5736 = vmatpush1.msra.mxu0 0.0
    %5737 = vmatprep.subr.mxu0 0.0
    %5738 = vmatpush1.msra.mxu0 0.0
    %5739 = vmatprep.subr.mxu0 0.0
    %5740 = vmatpush1.msra.mxu0 0.0
    %5741 = vmatprep.subr.mxu0 0.0
    %5742 = vmatpush1.msra.mxu0 0.0
    %5743 = vmatprep.subr.mxu0 0.0
    %5744 = vmatpush1.msra.mxu0 0.0
    %5745 = vmatprep.subr.mxu0 0.0
    %5746 = vmatpush1.msra.mxu0 0.0
    %5747 = vmatprep.subr.mxu0 0.0
    %5748 = vmatpush1.msra.mxu0 0.0
    %5749 = vmatprep.subr.mxu0 0.0
    %5750 = vmatpush1.msra.mxu0 0.0
    %5751 = vmatprep.subr.mxu0 0.0
    %5752 = vmatpush1.msra.mxu0 0.0
    %5753 = vmatprep.subr.mxu0 0.0
    %5754 = vmatpush1.msra.mxu0 0.0
    %5755 = vmatprep.subr.mxu0 0.0
    %5756 = vmatpush1.msra.mxu0 0.0
    %5757 = vmatprep.subr.mxu0 0.0
    %5758 = vmatpush1.msra.mxu0 0.0
    %5759 = vmatprep.subr.mxu0 0.0
    %5760 = vmatpush1.msra.mxu0 0.0
    %5761 = vmatprep.subr.mxu0 0.0
    %5762 = vmatpush1.msra.mxu0 0.0
    %5763 = vmatprep.mubr.f32.mxu0 0.0
    %5764 = vmatmul.mubr.f32.gmra.mrb[0].mxu0 %v5697
    %v5765 = vpop.f32.mrb[0].mxu0
    %v5766 = vadd.f32 0.0, %v5765
    %v5767 = vpop.f32.mrb[0].mxu0
    %5768 = vdwg.mxu0
    %s5769 = scalar_lea.vmem %s9, 56
    %v5770 = vld [vmem:[%s5769] sm:$0xff]
    %v5772 = vsel %vm398, %v5693, 0
    %v5775 = vsel %vm398, %v5766, 0
    %5777 = vmatprep.subr.mxu0 0.0
    %5778 = vmatpush1.msra.mxu0 %v5770
    %5779 = vmatprep.subr.mxu0 0.0
    %5780 = vmatpush1.msra.mxu0 0.0
    %5781 = vmatprep.subr.mxu0 0.0
    %5782 = vmatpush1.msra.mxu0 0.0
    %5783 = vmatprep.subr.mxu0 0.0
    %5784 = vmatpush1.msra.mxu0 0.0
    %5785 = vmatprep.subr.mxu0 0.0
    %5786 = vmatpush1.msra.mxu0 0.0
    %5787 = vmatprep.subr.mxu0 0.0
    %5788 = vmatpush1.msra.mxu0 0.0
    %5789 = vmatprep.subr.mxu0 0.0
    %5790 = vmatpush1.msra.mxu0 0.0
    %5791 = vmatprep.subr.mxu0 0.0
    %5792 = vmatpush1.msra.mxu0 0.0
    %5793 = vmatprep.subr.mxu0 0.0
    %5794 = vmatpush1.msra.mxu0 0.0
    %5795 = vmatprep.subr.mxu0 0.0
    %5796 = vmatpush1.msra.mxu0 0.0
    %5797 = vmatprep.subr.mxu0 0.0
    %5798 = vmatpush1.msra.mxu0 0.0
    %5799 = vmatprep.subr.mxu0 0.0
    %5800 = vmatpush1.msra.mxu0 0.0
    %5801 = vmatprep.subr.mxu0 0.0
    %5802 = vmatpush1.msra.mxu0 0.0
    %5803 = vmatprep.subr.mxu0 0.0
    %5804 = vmatpush1.msra.mxu0 0.0
    %5805 = vmatprep.subr.mxu0 0.0
    %5806 = vmatpush1.msra.mxu0 0.0
    %5807 = vmatprep.subr.mxu0 0.0
    %5808 = vmatpush1.msra.mxu0 0.0
    %5809 = vmatprep.subr.mxu0 0.0
    %5810 = vmatpush1.msra.mxu0 0.0
    %5811 = vmatprep.subr.mxu0 0.0
    %5812 = vmatpush1.msra.mxu0 0.0
    %5813 = vmatprep.subr.mxu0 0.0
    %5814 = vmatpush1.msra.mxu0 0.0
    %5815 = vmatprep.subr.mxu0 0.0
    %5816 = vmatpush1.msra.mxu0 0.0
    %5817 = vmatprep.subr.mxu0 0.0
    %5818 = vmatpush1.msra.mxu0 0.0
    %5819 = vmatprep.subr.mxu0 0.0
    %5820 = vmatpush1.msra.mxu0 0.0
    %5821 = vmatprep.subr.mxu0 0.0
    %5822 = vmatpush1.msra.mxu0 0.0
    %5823 = vmatprep.subr.mxu0 0.0
    %5824 = vmatpush1.msra.mxu0 0.0
    %5825 = vmatprep.subr.mxu0 0.0
    %5826 = vmatpush1.msra.mxu0 0.0
    %5827 = vmatprep.subr.mxu0 0.0
    %5828 = vmatpush1.msra.mxu0 0.0
    %5829 = vmatprep.subr.mxu0 0.0
    %5830 = vmatpush1.msra.mxu0 0.0
    %5831 = vmatprep.subr.mxu0 0.0
    %5832 = vmatpush1.msra.mxu0 0.0
    %5833 = vmatprep.subr.mxu0 0.0
    %5834 = vmatpush1.msra.mxu0 0.0
    %5835 = vmatprep.subr.mxu0 0.0
    %5836 = vmatpush1.msra.mxu0 0.0
    %5837 = vmatprep.subr.mxu0 0.0
    %5838 = vmatpush1.msra.mxu0 0.0
    %5839 = vmatprep.subr.mxu0 0.0
    %5840 = vmatpush1.msra.mxu0 0.0
    %5841 = vmatprep.mubr.f32.mxu0 0.0
    %5842 = vmatmul.mubr.f32.gmra.mrb[0].mxu0 %v5772
    %v5843 = vpop.f32.mrb[0].mxu0
    %v5844 = vadd.f32 0.0, %v5843
    %v5845 = vpop.f32.mrb[0].mxu0
    %5846 = vmatprep.mubr.f32.mxu0 0.0
    %5847 = vmatmul.mubr.f32.gmra.mrb[0].mxu0 %v5775
    %v5848 = vpop.f32.mrb[0].mxu0
    %v5849 = vadd.f32 0.0, %v5848
    %v5850 = vpop.f32.mrb[0].mxu0
    %5851 = vdwg.mxu0
    %v5852 = vadd.f32 %v5177, %v5844
    %v5853 = vadd.f32 %v5178, %v5849
    %5855 = vrot.lane.b32.xlu0 %v4272, 8
    %v5856 = vpop.permute.xlu0 %5855
    %5859 = vrot.lane.b32.xlu0 %v4947, 16
    %v5860 = vpop.permute.xlu0 %5859
    %5863 = vrot.lane.b32.xlu0 %v5622, 24
    %v5864 = vpop.permute.xlu0 %5863
    %v5866 = vsel %vm398, %v3597, %v5856
    %v5867 = vsel %vm2848, %v5866, %v5860
    %v5868 = vsel %vm2850, %v5867, %v5864
    %v5869 = vsel %vm81, %v5868, 0.0
    %s5870 = scalar_lea.vmem %s24, 8
    %5871 = vst [vmem:[%s5870] sm:$0xff] %v5869
    %s5872 = scalar_lea.vmem %s11, 1
    %v5873 = vld [vmem:[%s5872] sm:$0x1]
    %s5874 = scalar_lea.vmem %s12, 1
    %v5875 = vld [vmem:[%s5874] sm:$0x1]
    %v5876 = vsel %vm81, %v5852, 0.0
    %5877 = vadd.xlane.f32.xlu0 %v5876
    %v5878 = vpop.xlane.xlu0 %5877
    %v5879 = vsel %vm81, %v5853, 0.0
    %5880 = vadd.xlane.f32.xlu0 %v5879
    %v5881 = vpop.xlane.xlu0 %5880
    %v5882 = vmul.f32 %v5878, %v88
    %v5883 = vmul.f32 %v5881, %v88
    %v5884 = vsub.f32 %v5852, %v5882
    %v5885 = vsub.f32 %v5853, %v5883
    %v5886 = vmul.f32 %v5884, %v5884
    %v5887 = vmul.f32 %v5885, %v5885
    %v5888 = vsel %vm81, %v5886, 0.0
    %5889 = vadd.xlane.f32.xlu0 %v5888
    %v5890 = vpop.xlane.xlu0 %5889
    %v5891 = vsel %vm81, %v5887, 0.0
    %5892 = vadd.xlane.f32.xlu0 %v5891
    %v5893 = vpop.xlane.xlu0 %5892
    %v5894 = vmul.f32 %v5890, %v88
    %v5895 = vmul.f32 %v5893, %v88
    %v5896 = vadd.f32 %v5894, 1e-05
    %v5897 = vadd.f32 %v5895, 1e-05
    %v5898 = vrsqrt.pop %v5896
    %v5899 = vrsqrt.pop %v5897
    %v5900 = vmul.f32 %v5884, %v5898
    %v5901 = vmul.f32 %v5885, %v5899
    %v5903 = vlaneseq
    %v5904 = vshrl.u32 %v5903, 7
    %v5905 = vsub.s32 0, %v5904
    %v5906 = vrot.slane %v5873, %v5905
    %v5908 = vmul.f32 %v5900, %v5906
    %v5909 = vmul.f32 %v5901, %v5906
    %v5911 = vlaneseq
    %v5912 = vshrl.u32 %v5911, 7
    %v5913 = vsub.s32 0, %v5912
    %v5914 = vrot.slane %v5875, %v5913
    %v5916 = vadd.f32 %v5908, %v5914
    %v5917 = vadd.f32 %v5909, %v5914
    %s5918 = scalar_lea.vmem %s13, 32
    %v5919 = vld [vmem:[%s5918] sm:$0xff]
    %v5920 = vld [vmem:[%s5918 + $0x8] sm:$0xff]
    %v5921 = vld [vmem:[%s5918 + $0x10] sm:$0xff]
    %v5922 = vld [vmem:[%s5918 + $0x18] sm:$0xff]
    %s5923 = scalar_lea.vmem %s14, 1
    %v5924 = vld [vmem:[%s5923] sm:$0x1]
    %v5926 = vlaneseq
    %v5927 = vshrl.u32 %v5926, 7
    %v5928 = vsub.s32 0, %v5927
    %v5929 = vrot.slane %v5924, %v5928
    %v5932 = vsel %vm81, %v5916, 0
    %v5935 = vsel %vm81, %v5917, 0
    %5937 = vmatprep.subr.mxu0 0.0
    %5938 = vmatpush1.msra.mxu0 %v5919
    %5939 = vmatprep.subr.mxu0 0.0
    %5940 = vmatpush1.msra.mxu0 %v5920
    %5941 = vmatprep.subr.mxu0 0.0
    %5942 = vmatpush1.msra.mxu0 %v5921
    %5943 = vmatprep.subr.mxu0 0.0
    %5944 = vmatpush1.msra.mxu0 %v5922
    %5945 = vmatprep.subr.mxu0 0.0
    %5946 = vmatpush1.msra.mxu0 0.0
    %5947 = vmatprep.subr.mxu0 0.0
    %5948 = vmatpush1.msra.mxu0 0.0
    %5949 = vmatprep.subr.mxu0 0.0
    %5950 = vmatpush1.msra.mxu0 0.0
    %5951 = vmatprep.subr.mxu0 0.0
    %5952 = vmatpush1.msra.mxu0 0.0
    %5953 = vmatprep.subr.mxu0 0.0
    %5954 = vmatpush1.msra.mxu0 0.0
    %5955 = vmatprep.subr.mxu0 0.0
    %5956 = vmatpush1.msra.mxu0 0.0
    %5957 = vmatprep.subr.mxu0 0.0
    %5958 = vmatpush1.msra.mxu0 0.0
    %5959 = vmatprep.subr.mxu0 0.0
    %5960 = vmatpush1.msra.mxu0 0.0
    %5961 = vmatprep.subr.mxu0 0.0
    %5962 = vmatpush1.msra.mxu0 0.0
    %5963 = vmatprep.subr.mxu0 0.0
    %5964 = vmatpush1.msra.mxu0 0.0
    %5965 = vmatprep.subr.mxu0 0.0
    %5966 = vmatpush1.msra.mxu0 0.0
    %5967 = vmatprep.subr.mxu0 0.0
    %5968 = vmatpush1.msra.mxu0 0.0
    %5969 = vmatprep.subr.mxu0 0.0
    %5970 = vmatpush1.msra.mxu0 0.0
    %5971 = vmatprep.subr.mxu0 0.0
    %5972 = vmatpush1.msra.mxu0 0.0
    %5973 = vmatprep.subr.mxu0 0.0
    %5974 = vmatpush1.msra.mxu0 0.0
    %5975 = vmatprep.subr.mxu0 0.0
    %5976 = vmatpush1.msra.mxu0 0.0
    %5977 = vmatprep.subr.mxu0 0.0
    %5978 = vmatpush1.msra.mxu0 0.0
    %5979 = vmatprep.subr.mxu0 0.0
    %5980 = vmatpush1.msra.mxu0 0.0
    %5981 = vmatprep.subr.mxu0 0.0
    %5982 = vmatpush1.msra.mxu0 0.0
    %5983 = vmatprep.subr.mxu0 0.0
    %5984 = vmatpush1.msra.mxu0 0.0
    %5985 = vmatprep.subr.mxu0 0.0
    %5986 = vmatpush1.msra.mxu0 0.0
    %5987 = vmatprep.subr.mxu0 0.0
    %5988 = vmatpush1.msra.mxu0 0.0
    %5989 = vmatprep.subr.mxu0 0.0
    %5990 = vmatpush1.msra.mxu0 0.0
    %5991 = vmatprep.subr.mxu0 0.0
    %5992 = vmatpush1.msra.mxu0 0.0
    %5993 = vmatprep.subr.mxu0 0.0
    %5994 = vmatpush1.msra.mxu0 0.0
    %5995 = vmatprep.subr.mxu0 0.0
    %5996 = vmatpush1.msra.mxu0 0.0
    %5997 = vmatprep.subr.mxu0 0.0
    %5998 = vmatpush1.msra.mxu0 0.0
    %5999 = vmatprep.subr.mxu0 0.0
    %6000 = vmatpush1.msra.mxu0 0.0
    %6001 = vmatprep.mubr.f32.mxu0 0.0
    %6002 = vmatmul.mubr.f32.gmra.mrb[0].mxu0 %v5932
    %v6003 = vpop.f32.mrb[0].mxu0
    %v6004 = vadd.f32 %v5929, %v6003
    %v6005 = vpop.f32.mrb[0].mxu0
    %6006 = vmatprep.mubr.f32.mxu0 0.0
    %6007 = vmatmul.mubr.f32.gmra.mrb[0].mxu0 %v5935
    %v6008 = vpop.f32.mrb[0].mxu0
    %v6009 = vadd.f32 %v5929, %v6008
    %v6010 = vpop.f32.mrb[0].mxu0
    %6011 = vdwg.mxu0
    %v6012 = vmax.f32 %v6004, 0.0
    %v6013 = vmax.f32 %v6009, 0.0
    %s6014 = scalar_lea.vmem %s15, 128
    %v6015 = vld [vmem:[%s6014] sm:$0xff]
    %v6016 = vld [vmem:[%s6014 + $0x8] sm:$0xff]
    %v6017 = vld [vmem:[%s6014 + $0x10] sm:$0xff]
    %v6018 = vld [vmem:[%s6014 + $0x18] sm:$0xff]
    %v6019 = vld [vmem:[%s6014 + $0x20] sm:$0xff]
    %v6020 = vld [vmem:[%s6014 + $0x28] sm:$0xff]
    %v6021 = vld [vmem:[%s6014 + $0x30] sm:$0xff]
    %v6022 = vld [vmem:[%s6014 + $0x38] sm:$0xff]
    %v6023 = vld [vmem:[%s6014 + $0x40] sm:$0xff]
    %v6024 = vld [vmem:[%s6014 + $0x48] sm:$0xff]
    %v6025 = vld [vmem:[%s6014 + $0x50] sm:$0xff]
    %v6026 = vld [vmem:[%s6014 + $0x58] sm:$0xff]
    %v6027 = vld [vmem:[%s6014 + $0x60] sm:$0xff]
    %v6028 = vld [vmem:[%s6014 + $0x68] sm:$0xff]
    %v6029 = vld [vmem:[%s6014 + $0x70] sm:$0xff]
    %v6030 = vld [vmem:[%s6014 + $0x78] sm:$0xff]
    %s6031 = scalar_lea.vmem %s16, 1
    %v6032 = vld [vmem:[%s6031] sm:$0x1]
    %v6034 = vlaneseq
    %v6035 = vshrl.u32 %v6034, 7
    %v6036 = vsub.s32 0, %v6035
    %v6037 = vrot.slane %v6032, %v6036
    %6039 = vmatprep.subr.mxu0 0.0
    %6040 = vmatpush1.msra.mxu0 %v6015
    %6041 = vmatprep.subr.mxu0 0.0
    %6042 = vmatpush1.msra.mxu0 %v6016
    %6043 = vmatprep.subr.mxu0 0.0
    %6044 = vmatpush1.msra.mxu0 %v6017
    %6045 = vmatprep.subr.mxu0 0.0
    %6046 = vmatpush1.msra.mxu0 %v6018
    %6047 = vmatprep.subr.mxu0 0.0
    %6048 = vmatpush1.msra.mxu0 %v6019
    %6049 = vmatprep.subr.mxu0 0.0
    %6050 = vmatpush1.msra.mxu0 %v6020
    %6051 = vmatprep.subr.mxu0 0.0
    %6052 = vmatpush1.msra.mxu0 %v6021
    %6053 = vmatprep.subr.mxu0 0.0
    %6054 = vmatpush1.msra.mxu0 %v6022
    %6055 = vmatprep.subr.mxu0 0.0
    %6056 = vmatpush1.msra.mxu0 %v6023
    %6057 = vmatprep.subr.mxu0 0.0
    %6058 = vmatpush1.msra.mxu0 %v6024
    %6059 = vmatprep.subr.mxu0 0.0
    %6060 = vmatpush1.msra.mxu0 %v6025
    %6061 = vmatprep.subr.mxu0 0.0
    %6062 = vmatpush1.msra.mxu0 %v6026
    %6063 = vmatprep.subr.mxu0 0.0
    %6064 = vmatpush1.msra.mxu0 %v6027
    %6065 = vmatprep.subr.mxu0 0.0
    %6066 = vmatpush1.msra.mxu0 %v6028
    %6067 = vmatprep.subr.mxu0 0.0
    %6068 = vmatpush1.msra.mxu0 %v6029
    %6069 = vmatprep.subr.mxu0 0.0
    %6070 = vmatpush1.msra.mxu0 %v6030
    %6071 = vmatprep.subr.mxu0 0.0
    %6072 = vmatpush1.msra.mxu0 0.0
    %6073 = vmatprep.subr.mxu0 0.0
    %6074 = vmatpush1.msra.mxu0 0.0
    %6075 = vmatprep.subr.mxu0 0.0
    %6076 = vmatpush1.msra.mxu0 0.0
    %6077 = vmatprep.subr.mxu0 0.0
    %6078 = vmatpush1.msra.mxu0 0.0
    %6079 = vmatprep.subr.mxu0 0.0
    %6080 = vmatpush1.msra.mxu0 0.0
    %6081 = vmatprep.subr.mxu0 0.0
    %6082 = vmatpush1.msra.mxu0 0.0
    %6083 = vmatprep.subr.mxu0 0.0
    %6084 = vmatpush1.msra.mxu0 0.0
    %6085 = vmatprep.subr.mxu0 0.0
    %6086 = vmatpush1.msra.mxu0 0.0
    %6087 = vmatprep.subr.mxu0 0.0
    %6088 = vmatpush1.msra.mxu0 0.0
    %6089 = vmatprep.subr.mxu0 0.0
    %6090 = vmatpush1.msra.mxu0 0.0
    %6091 = vmatprep.subr.mxu0 0.0
    %6092 = vmatpush1.msra.mxu0 0.0
    %6093 = vmatprep.subr.mxu0 0.0
    %6094 = vmatpush1.msra.mxu0 0.0
    %6095 = vmatprep.subr.mxu0 0.0
    %6096 = vmatpush1.msra.mxu0 0.0
    %6097 = vmatprep.subr.mxu0 0.0
    %6098 = vmatpush1.msra.mxu0 0.0
    %6099 = vmatprep.subr.mxu0 0.0
    %6100 = vmatpush1.msra.mxu0 0.0
    %6101 = vmatprep.subr.mxu0 0.0
    %6102 = vmatpush1.msra.mxu0 0.0
    %6103 = vmatprep.mubr.f32.mxu0 0.0
    %6104 = vmatmul.mubr.f32.gmra.mrb[0].mxu0 %v6012
    %v6105 = vpop.f32.mrb[0].mxu0
    %v6106 = vadd.f32 %v6037, %v6105
    %v6107 = vpop.f32.mrb[0].mxu0
    %6108 = vmatprep.mubr.f32.mxu0 0.0
    %6109 = vmatmul.mubr.f32.gmra.mrb[0].mxu0 %v6013
    %v6110 = vpop.f32.mrb[0].mxu0
    %v6111 = vadd.f32 %v6037, %v6110
    %v6112 = vpop.f32.mrb[0].mxu0
    %6113 = vdwg.mxu0
    %v6114 = vadd.f32 %v5852, %v6106
    %v6115 = vadd.f32 %v5853, %v6111
    %v6116 = vld [vmem:[%s17] sm:$0x1]
    %v6117 = vld [vmem:[%s18] sm:$0x1]
    %v6118 = vsel %vm81, %v6114, 0.0
    %6119 = vadd.xlane.f32.xlu0 %v6118
    %v6120 = vpop.xlane.xlu0 %6119
    %v6121 = vsel %vm81, %v6115, 0.0
    %6122 = vadd.xlane.f32.xlu0 %v6121
    %v6123 = vpop.xlane.xlu0 %6122
    %v6124 = vmul.f32 %v6120, %v88
    %v6125 = vmul.f32 %v6123, %v88
    %v6126 = vsub.f32 %v6114, %v6124
    %v6127 = vsub.f32 %v6115, %v6125
    %v6128 = vmul.f32 %v6126, %v6126
    %v6129 = vmul.f32 %v6127, %v6127
    %v6130 = vsel %vm81, %v6128, 0.0
    %6131 = vadd.xlane.f32.xlu0 %v6130
    %v6132 = vpop.xlane.xlu0 %6131
    %v6133 = vsel %vm81, %v6129, 0.0
    %6134 = vadd.xlane.f32.xlu0 %v6133
    %v6135 = vpop.xlane.xlu0 %6134
    %v6136 = vmul.f32 %v6132, %v88
    %v6137 = vmul.f32 %v6135, %v88
    %v6138 = vadd.f32 %v6136, 1e-05
    %v6139 = vadd.f32 %v6137, 1e-05
    %v6140 = vrsqrt.pop %v6138
    %v6141 = vrsqrt.pop %v6139
    %v6142 = vmul.f32 %v6126, %v6140
    %v6143 = vmul.f32 %v6127, %v6141
    %v6145 = vlaneseq
    %v6146 = vshrl.u32 %v6145, 7
    %v6147 = vsub.s32 0, %v6146
    %v6148 = vrot.slane %v6116, %v6147
    %v6150 = vmul.f32 %v6142, %v6148
    %v6151 = vmul.f32 %v6143, %v6148
    %v6153 = vlaneseq
    %v6154 = vshrl.u32 %v6153, 7
    %v6155 = vsub.s32 0, %v6154
    %v6156 = vrot.slane %v6117, %v6155
    %v6158 = vadd.f32 %v6150, %v6156
    %v6159 = vadd.f32 %v6151, %v6156
    %v6160 = vsel %vm81, %v6158, 0.0
    %v6161 = vrot.slane %v6160, 4
    %v6162 = vadd.f32 %v6160, %v6161
    %v6163 = vrot.slane %v6162, 2
    %v6164 = vadd.f32 %v6162, %v6163
    %v6165 = vrot.slane %v6164, 1
    %v6166 = vadd.f32 %v6164, %v6165
    %v6167 = vsel %vm81, %v6159, 0.0
    %v6168 = vrot.slane %v6167, 4
    %v6169 = vadd.f32 %v6167, %v6168
    %v6170 = vrot.slane %v6169, 2
    %v6171 = vadd.f32 %v6169, %v6170
    %v6172 = vrot.slane %v6171, 1
    %v6173 = vadd.f32 %v6171, %v6172
    %v6174 = vrcp.pop 8.0
    %v6175 = vmul.f32 %v6166, %v6174
    %v6176 = vmul.f32 %v6173, %v6174
    %v6177 = vld [vmem:[%s19] sm:$0xff]
    %v6178 = vld [vmem:[%s19 + $0x8] sm:$0xff]
    %v6179 = vld [vmem:[%s19 + $0x10] sm:$0xff]
    %v6180 = vld [vmem:[%s19 + $0x18] sm:$0xff]
    %v6181 = vld [vmem:[%s20] sm:$0x1]
    %v6183 = vlaneseq
    %v6184 = vshrl.u32 %v6183, 7
    %v6185 = vsub.s32 0, %v6184
    %v6186 = vrot.slane %v6181, %v6185
    %vm6190 = vcmask 1041409
    %v6191 = vsel %vm6190, %v6176, %v6175
    %v6192 = vsel %vm81, %v6191, 0
    %6194 = vmatprep.subr.mxu0 0.0
    %6195 = vmatpush1.msra.mxu0 %v6177
    %6196 = vmatprep.subr.mxu0 0.0
    %6197 = vmatpush1.msra.mxu0 %v6178
    %6198 = vmatprep.subr.mxu0 0.0
    %6199 = vmatpush1.msra.mxu0 %v6179
    %6200 = vmatprep.subr.mxu0 0.0
    %6201 = vmatpush1.msra.mxu0 %v6180
    %6202 = vmatprep.subr.mxu0 0.0
    %6203 = vmatpush1.msra.mxu0 0.0
    %6204 = vmatprep.subr.mxu0 0.0
    %6205 = vmatpush1.msra.mxu0 0.0
    %6206 = vmatprep.subr.mxu0 0.0
    %6207 = vmatpush1.msra.mxu0 0.0
    %6208 = vmatprep.subr.mxu0 0.0
    %6209 = vmatpush1.msra.mxu0 0.0
    %6210 = vmatprep.subr.mxu0 0.0
    %6211 = vmatpush1.msra.mxu0 0.0
    %6212 = vmatprep.subr.mxu0 0.0
    %6213 = vmatpush1.msra.mxu0 0.0
    %6214 = vmatprep.subr.mxu0 0.0
    %6215 = vmatpush1.msra.mxu0 0.0
    %6216 = vmatprep.subr.mxu0 0.0
    %6217 = vmatpush1.msra.mxu0 0.0
    %6218 = vmatprep.subr.mxu0 0.0
    %6219 = vmatpush1.msra.mxu0 0.0
    %6220 = vmatprep.subr.mxu0 0.0
    %6221 = vmatpush1.msra.mxu0 0.0
    %6222 = vmatprep.subr.mxu0 0.0
    %6223 = vmatpush1.msra.mxu0 0.0
    %6224 = vmatprep.subr.mxu0 0.0
    %6225 = vmatpush1.msra.mxu0 0.0
    %6226 = vmatprep.subr.mxu0 0.0
    %6227 = vmatpush1.msra.mxu0 0.0
    %6228 = vmatprep.subr.mxu0 0.0
    %6229 = vmatpush1.msra.mxu0 0.0
    %6230 = vmatprep.subr.mxu0 0.0
    %6231 = vmatpush1.msra.mxu0 0.0
    %6232 = vmatprep.subr.mxu0 0.0
    %6233 = vmatpush1.msra.mxu0 0.0
    %6234 = vmatprep.subr.mxu0 0.0
    %6235 = vmatpush1.msra.mxu0 0.0
    %6236 = vmatprep.subr.mxu0 0.0
    %6237 = vmatpush1.msra.mxu0 0.0
    %6238 = vmatprep.subr.mxu0 0.0
    %6239 = vmatpush1.msra.mxu0 0.0
    %6240 = vmatprep.subr.mxu0 0.0
    %6241 = vmatpush1.msra.mxu0 0.0
    %6242 = vmatprep.subr.mxu0 0.0
    %6243 = vmatpush1.msra.mxu0 0.0
    %6244 = vmatprep.subr.mxu0 0.0
    %6245 = vmatpush1.msra.mxu0 0.0
    %6246 = vmatprep.subr.mxu0 0.0
    %6247 = vmatpush1.msra.mxu0 0.0
    %6248 = vmatprep.subr.mxu0 0.0
    %6249 = vmatpush1.msra.mxu0 0.0
    %6250 = vmatprep.subr.mxu0 0.0
    %6251 = vmatpush1.msra.mxu0 0.0
    %6252 = vmatprep.subr.mxu0 0.0
    %6253 = vmatpush1.msra.mxu0 0.0
    %6254 = vmatprep.subr.mxu0 0.0
    %6255 = vmatpush1.msra.mxu0 0.0
    %6256 = vmatprep.subr.mxu0 0.0
    %6257 = vmatpush1.msra.mxu0 0.0
    %6258 = vmatprep.mubr.f32.mxu0 0.0
    %6259 = vmatmul.mubr.f32.gmra.mrb[0].mxu0 %v6192
    %v6260 = vpop.f32.mrb[0].mxu0
    %v6261 = vadd.f32 %v6186, %v6260
    %v6262 = vpop.f32.mrb[0].mxu0
    %6263 = vdwg.mxu0
    %v6264 = vmax.f32 %v6261, 0.0
    %v6265 = vld [vmem:[%s21] sm:$0xff]
    %v6266 = vld [vmem:[%s21 + $0x8] sm:$0xff]
    %v6267 = vld [vmem:[%s21 + $0x10] sm:$0xff]
    %v6268 = vld [vmem:[%s21 + $0x18] sm:$0xff]
    %v6269 = vld [vmem:[%s21 + $0x20] sm:$0xff]
    %v6270 = vld [vmem:[%s21 + $0x28] sm:$0xff]
    %v6271 = vld [vmem:[%s21 + $0x30] sm:$0xff]
    %v6272 = vld [vmem:[%s21 + $0x38] sm:$0xff]
    %v6273 = vld [vmem:[%s21 + $0x40] sm:$0xff]
    %v6274 = vld [vmem:[%s21 + $0x48] sm:$0xff]
    %v6275 = vld [vmem:[%s21 + $0x50] sm:$0xff]
    %v6276 = vld [vmem:[%s21 + $0x58] sm:$0xff]
    %v6277 = vld [vmem:[%s21 + $0x60] sm:$0xff]
    %v6278 = vld [vmem:[%s21 + $0x68] sm:$0xff]
    %v6279 = vld [vmem:[%s21 + $0x70] sm:$0xff]
    %v6280 = vld [vmem:[%s21 + $0x78] sm:$0xff]
    %v6281 = vld [vmem:[%s22] sm:$0x1]
    %v6283 = vlaneseq
    %v6284 = vshrl.u32 %v6283, 7
    %v6285 = vsub.s32 0, %v6284
    %v6286 = vrot.slane %v6281, %v6285
    %6288 = vmatprep.subr.mxu0 0.0
    %6289 = vmatpush1.msra.mxu0 %v6265
    %6290 = vmatprep.subr.mxu0 0.0
    %6291 = vmatpush1.msra.mxu0 %v6266
    %6292 = vmatprep.subr.mxu0 0.0
    %6293 = vmatpush1.msra.mxu0 %v6267
    %6294 = vmatprep.subr.mxu0 0.0
    %6295 = vmatpush1.msra.mxu0 %v6268
    %6296 = vmatprep.subr.mxu0 0.0
    %6297 = vmatpush1.msra.mxu0 %v6269
    %6298 = vmatprep.subr.mxu0 0.0
    %6299 = vmatpush1.msra.mxu0 %v6270
    %6300 = vmatprep.subr.mxu0 0.0
    %6301 = vmatpush1.msra.mxu0 %v6271
    %6302 = vmatprep.subr.mxu0 0.0
    %6303 = vmatpush1.msra.mxu0 %v6272
    %6304 = vmatprep.subr.mxu0 0.0
    %6305 = vmatpush1.msra.mxu0 %v6273
    %6306 = vmatprep.subr.mxu0 0.0
    %6307 = vmatpush1.msra.mxu0 %v6274
    %6308 = vmatprep.subr.mxu0 0.0
    %6309 = vmatpush1.msra.mxu0 %v6275
    %6310 = vmatprep.subr.mxu0 0.0
    %6311 = vmatpush1.msra.mxu0 %v6276
    %6312 = vmatprep.subr.mxu0 0.0
    %6313 = vmatpush1.msra.mxu0 %v6277
    %6314 = vmatprep.subr.mxu0 0.0
    %6315 = vmatpush1.msra.mxu0 %v6278
    %6316 = vmatprep.subr.mxu0 0.0
    %6317 = vmatpush1.msra.mxu0 %v6279
    %6318 = vmatprep.subr.mxu0 0.0
    %6319 = vmatpush1.msra.mxu0 %v6280
    %6320 = vmatprep.subr.mxu0 0.0
    %6321 = vmatpush1.msra.mxu0 0.0
    %6322 = vmatprep.subr.mxu0 0.0
    %6323 = vmatpush1.msra.mxu0 0.0
    %6324 = vmatprep.subr.mxu0 0.0
    %6325 = vmatpush1.msra.mxu0 0.0
    %6326 = vmatprep.subr.mxu0 0.0
    %6327 = vmatpush1.msra.mxu0 0.0
    %6328 = vmatprep.subr.mxu0 0.0
    %6329 = vmatpush1.msra.mxu0 0.0
    %6330 = vmatprep.subr.mxu0 0.0
    %6331 = vmatpush1.msra.mxu0 0.0
    %6332 = vmatprep.subr.mxu0 0.0
    %6333 = vmatpush1.msra.mxu0 0.0
    %6334 = vmatprep.subr.mxu0 0.0
    %6335 = vmatpush1.msra.mxu0 0.0
    %6336 = vmatprep.subr.mxu0 0.0
    %6337 = vmatpush1.msra.mxu0 0.0
    %6338 = vmatprep.subr.mxu0 0.0
    %6339 = vmatpush1.msra.mxu0 0.0
    %6340 = vmatprep.subr.mxu0 0.0
    %6341 = vmatpush1.msra.mxu0 0.0
    %6342 = vmatprep.subr.mxu0 0.0
    %6343 = vmatpush1.msra.mxu0 0.0
    %6344 = vmatprep.subr.mxu0 0.0
    %6345 = vmatpush1.msra.mxu0 0.0
    %6346 = vmatprep.subr.mxu0 0.0
    %6347 = vmatpush1.msra.mxu0 0.0
    %6348 = vmatprep.subr.mxu0 0.0
    %6349 = vmatpush1.msra.mxu0 0.0
    %6350 = vmatprep.subr.mxu0 0.0
    %6351 = vmatpush1.msra.mxu0 0.0
    %6352 = vmatprep.mubr.f32.mxu0 0.0
    %6353 = vmatmul.mubr.f32.gmra.mrb[0].mxu0 %v6264
    %v6354 = vpop.f32.mrb[0].mxu0
    %v6355 = vadd.f32 %v6286, %v6354
    %v6356 = vpop.f32.mrb[0].mxu0
    %6357 = vdwg.mxu0
    %6358 = vst [vmem:[#allocation2] sm:$0x3] %v6355
    // Predicated region
    $region94: #{_forward.1} parent=1 // pred_check
      _
    $region95: #{_forward.1} parent=1 // pred_check_branch
      %6360 = sbr.rel (0) target = $region97
    $region96: #{_forward.1} parent=1 // pred_region
      %s6362 = ssub.s32 32, 32
      %6363 = vsyncadd [#allocation3], %s6362
      %s6365 = sshll.u32 [#allocation2], 4
      %s6366 = int_to_ptr.vmem [resolvable:$true] %s6365
      %6368 = dma.vmem_to_hbm [thread:$0]  %s6366, 32, %s23, [#allocation3]
    $region97: #{_forward.1} parent=1 // pred_fallthru
      _
    // Predicated region
    $region98: #{_forward.1} parent=1 // pred_check
      _
    $region99: #{_forward.1} parent=1 // pred_check_branch
      %6370 = sbr.rel (0) target = $region101
    $region100: #{_forward.1} parent=1 // pred_region
      _
    $region101: #{_forward.1} parent=1 // pred_fallthru
      _
    // Predicated region
    $region102: #{_forward.1} parent=1 // pred_check
      _
    $region103: #{_forward.1} parent=1 // pred_check_branch
      %6372 = sbr.rel (0) target = $region105
    $region104: #{_forward.1} parent=1 // pred_region
      %6373 = dma.done [#allocation3], 32
    $region105: #{_forward.1} parent=1 // pred_fallthru
      _
    // Predicated region
    $region106: #{_forward.1} parent=1 // pred_check
      _
    $region107: #{_forward.1} parent=1 // pred_check_branch
      %6375 = sbr.rel (0) target = $region109
    $region108: #{_forward.1} parent=1 // pred_region
      _
    $region109: #{_forward.1} parent=1 // pred_fallthru
      _
    %6376 = vsyncpa [#allocation3], 1

</llo_original>
